<compile_context>
chip_gen: v7x
topology: tpu7x:2x2x1
jax: 0.10.0
libtpu: 0.0.40
codegen_flags: <defaults>
</compile_context>

<pallas_src>
import jax
import jax.numpy as jnp
from jax.experimental import pallas as pl
from jax.experimental.pallas import tpu as pltpu

# Full-f32 matmul path for the pure-JAX reference (and any wrapper matmuls),
# so the tolerance check against the kernel is meaningful.
jax.config.update("jax_default_matmul_precision", "highest")

# Precision of the in-kernel dots.  Per the perf review this can be dropped to
# jax.lax.Precision.HIGH (3-pass) or DEFAULT (1-pass) when tolerances allow.
MATMUL_PRECISION = jax.lax.Precision.HIGHEST


def mmu_seq_kernel(x_ref, out0_ref, mem0_ref, w_x_ref, w_rm_ref, w_out_ref,
                   outs_ref, mem_final_ref, xpre_ref, st_ref):
    """Runs the full T-step MMU recurrence in a single grid step.

    x_ref:       (T*B, I)    flattened inputs, lane-dense (features on lanes)
    out0_ref:    (B, O)      initial recurrent output state
    mem0_ref:    (B, M)      initial memory state
    w_x_ref:     (I, 4M)     fused x->gates weights   [blk|inp|read|write]
    w_rm_ref:    (O+M, 4M)   fused [out;mem]->gates weights (mem rows of the
                             block_inp columns are zero)
    w_out_ref:   (M, O)      hidden -> output projection
    outs_ref:    (T*B, O)    per-step outputs (written back to HBM once)
    mem_final_ref: (B, M)    final memory (written once, after the loop)
    xpre_ref:    (T*B, 4M)   VMEM scratch: precomputed x contribution
    st_ref:      (B, O+M)    VMEM scratch: lane-contiguous carried state
                             columns [0:O] = out, [O:O+M] = mem
    """
    B, O = out0_ref.shape
    M = mem0_ref.shape[-1]
    T = xpre_ref.shape[0] // B

    # ---- Phase 0: recurrence-independent x projection, ONE batched matmul.
    xpre_ref[...] = jnp.dot(x_ref[...], w_x_ref[...],
                            preferred_element_type=jnp.float32,
                            precision=MATMUL_PRECISION)            # (T*B, 4M)

    # ---- Initialize the lane-contiguous carried state (no concatenate).
    st_ref[:, 0:O] = out0_ref[...]
    st_ref[:, O:O + M] = mem0_ref[...]

    # Weights stay VMEM/vreg-resident across the whole loop.
    w_rm = w_rm_ref[...]      # (O+M, 4M)
    w_out = w_out_ref[...]    # (M, O)

    def step(t, carry):
        row = pl.multiple_of(t * B, B)                # sublane-aligned offset
        act = st_ref[...]                             # (B, O+M) single load
        # One fused MXU matmul for all four gates + precomputed x term.
        pre = xpre_ref[pl.ds(row, B), :] + jnp.dot(
            act, w_rm, preferred_element_type=jnp.float32,
            precision=MATMUL_PRECISION)                # (B, 4M) = (8, 128)
        gates = jax.nn.sigmoid(pre)   # single EUP pass over the packed slab

        block_inp = gates[:, 0 * M:1 * M]
        inp_gate = gates[:, 1 * M:2 * M]
        read_gate = gates[:, 2 * M:3 * M]
        write_gate = gates[:, 3 * M:4 * M]

        hidden_act = read_gate + block_inp * inp_gate            # (B, M)
        new_mem = act[:, O:O + M] + write_gate * jnp.tanh(hidden_act)
        # output_activation == 'tanh'
        new_out = jnp.tanh(jnp.dot(hidden_act, w_out,
                                   preferred_element_type=jnp.float32,
                                   precision=MATMUL_PRECISION))  # (B, O)

        # Sliced VMEM stores into fixed lane ranges (no cross-lane assembly).
        st_ref[:, 0:O] = new_out
        st_ref[:, O:O + M] = new_mem
        outs_ref[pl.ds(row, B), :] = new_out
        return carry

    jax.lax.fori_loop(0, T, step, 0, unroll=True)

    # Single final-memory store (not once per step).
    mem_final_ref[...] = st_ref[:, O:O + M]


def pack_params(p):
    """Pack per-gate weights into lane-dense fused matrices (done once, offline).

    Returns:
      w_x:  (I, 4M)    x contribution; column blocks = [block_inp | inp_gate |
                       readgate | writegate].
      w_rm: (O+M, 4M)  [out_prev ; mem] contribution; mem rows of the
                       block_inp columns are zero (block_inp ignores mem).
      w_out: (M, O)    transposed hidden->output projection.
    """
    M, _I = p["w_inp"].shape
    zeros_mm = jnp.zeros((M, M), jnp.float32)

    def rm_cols(w_rec, w_mem):
        w_mem_t = zeros_mm if w_mem is None else w_mem.T
        return jnp.concatenate([w_rec.T, w_mem_t], axis=0)        # (O+M, M)

    w_x = jnp.concatenate([p["w_inp"].T, p["w_inpgate"].T,
                           p["w_readgate"].T, p["w_writegate"].T],
                          axis=1)                                  # (I, 4M)
    w_rm = jnp.concatenate([
        rm_cols(p["w_rec_inp"], None),
        rm_cols(p["w_rec_inpgate"], p["w_mem_inpgate"]),
        rm_cols(p["w_rec_readgate"], p["w_mem_readgate"]),
        rm_cols(p["w_rec_writegate"], p["w_mem_writegate"]),
    ], axis=1)                                                     # (O+M, 4M)
    w_out = p["w_hid_out"].T                                       # (M, O)
    return w_x, w_rm, w_out


@jax.jit
def mmu_forward_seq(x_seq, out0, mem0, w_x, w_rm, w_out):
    """Run T recurrent MMU steps in a single Pallas kernel invocation.

    Args use the PyTorch module's (feature, batch) layout:
      x_seq: (T, I, B), out0: (O, B), mem0: (M, B)
    Returns (outs, mem_final): outs (T, O, B), mem_final (M, B).
    """
    T, I, B = x_seq.shape
    O = out0.shape[0]
    M = mem0.shape[0]
    K = O + M
    G = 4 * M

    # Layout plumbing only: lane-dense (rows = time*batch, lanes = features).
    x_flat = jnp.transpose(x_seq, (0, 2, 1)).reshape(T * B, I)     # (T*B, I)
    out_bd = out0.T                                                # (B, O)
    mem_bd = mem0.T                                                # (B, M)

    grid_spec = pltpu.PrefetchScalarGridSpec(
        num_scalar_prefetch=0,
        grid=(1,),                       # single step: recurrence loops in-kernel
        in_specs=[
            pl.BlockSpec((T * B, I), lambda i: (0, 0)),   # all inputs
            pl.BlockSpec((B, O), lambda i: (0, 0)),       # initial out state
            pl.BlockSpec((B, M), lambda i: (0, 0)),       # initial mem state
            pl.BlockSpec((I, G), lambda i: (0, 0)),       # fused x->gate weights
            pl.BlockSpec((K, G), lambda i: (0, 0)),       # fused [out;mem]->gate weights
            pl.BlockSpec((M, O), lambda i: (0, 0)),       # output projection
        ],
        out_specs=[
            pl.BlockSpec((T * B, O), lambda i: (0, 0)),   # all per-step outputs
            pl.BlockSpec((B, M), lambda i: (0, 0)),       # final memory
        ],
        scratch_shapes=[
            pltpu.VMEM((T * B, G), jnp.float32),          # precomputed x projection
            pltpu.VMEM((B, K), jnp.float32),              # lane-contiguous [out|mem] state
        ],
    )

    outs_flat, mem_final_bd = pl.pallas_call(
        mmu_seq_kernel,
        grid_spec=grid_spec,
        out_shape=(
            jax.ShapeDtypeStruct((T * B, O), jnp.float32),
            jax.ShapeDtypeStruct((B, M), jnp.float32),
        ),
        compiler_params=pltpu.CompilerParams(
            dimension_semantics=("arbitrary",)),
        # TODO(synk): for v7x, once batch is packed with independent sequences,
        # add a leading "parallel" grid axis over batch halves to use both TCs.
    )(x_flat, out_bd, mem_bd, w_x, w_rm, w_out)

    outs = jnp.transpose(outs_flat.reshape(T, B, O), (0, 2, 1))    # (T, O, B)
    return outs, mem_final_bd.T


def init_params(key, input_size, memory_size, output_size):
    """Deterministic kaiming-normal-ish init (std = sqrt(2/fan_in)), torch layout."""
    shapes = {
        "w_inpgate": (memory_size, input_size),
        "w_rec_inpgate": (memory_size, output_size),
        "w_mem_inpgate": (memory_size, memory_size),
        "w_inp": (memory_size, input_size),
        "w_rec_inp": (memory_size, output_size),
        "w_readgate": (memory_size, input_size),
        "w_rec_readgate": (memory_size, output_size),
        "w_mem_readgate": (memory_size, memory_size),
        "w_writegate": (memory_size, input_size),
        "w_rec_writegate": (memory_size, output_size),
        "w_mem_writegate": (memory_size, memory_size),
        "w_hid_out": (output_size, memory_size),
    }
    params = {}
    keys = jax.random.split(key, len(shapes))
    for k, (name, shp) in zip(keys, shapes.items()):
        std = (2.0 / shp[1]) ** 0.5
        params[name] = std * jax.random.normal(k, shp, dtype=jnp.float32)
    # NOTE: the bias parameters (w_*_bias) exist in __init__ but are never
    # used in graph_compute, so they are intentionally omitted here.
    return params


def reference_forward_seq(x_seq, out0, mem0, p):
    """Pure-JAX scan reference in the module's (feature, batch) layout."""
    sig = jax.nn.sigmoid

    def step(carry, x):
        out, mem = carry
        block_inp = sig(p["w_inp"] @ x + p["w_rec_inp"] @ out)
        inp_gate = sig(p["w_inpgate"] @ x + p["w_mem_inpgate"] @ mem
                       + p["w_rec_inpgate"] @ out)
        inp_out = block_inp * inp_gate
        mem_out = sig(p["w_readgate"] @ x + p["w_rec_readgate"] @ out
                      + p["w_mem_readgate"] @ mem)
        hidden_act = mem_out + inp_out
        write_gate = sig(p["w_writegate"] @ x + p["w_mem_writegate"] @ mem
                         + p["w_rec_writegate"] @ out)
        new_mem = mem + write_gate * jnp.tanh(hidden_act)
        new_out = jnp.tanh(p["w_hid_out"] @ hidden_act)
        return (new_out, new_mem), new_out

    (out_f, mem_f), outs = jax.lax.scan(step, (out0, mem0), x_seq)
    return outs, mem_f


if __name__ == "__main__":
    input_size, hidden_size, memory_size, output_size = 16, 32, 32, 16
    batch = 8
    seq_len = 6

    key = jax.random.PRNGKey(0)
    kp, kx = jax.random.split(key)
    params = init_params(kp, input_size, memory_size, output_size)
    w_x, w_rm, w_out = pack_params(params)   # (16,128), (48,128), (32,16) — packed once

    x_seq = jax.random.normal(kx, (seq_len, input_size, batch), dtype=jnp.float32)
    # reset(batch_size): mem and out start at zero
    out0 = jnp.zeros((output_size, batch), dtype=jnp.float32)
    mem0 = jnp.zeros((memory_size, batch), dtype=jnp.float32)

    outs, mem_final = mmu_forward_seq(x_seq, out0, mem0, w_x, w_rm, w_out)
    jax.block_until_ready((outs, mem_final))

    ref_outs, ref_mem = reference_forward_seq(x_seq, out0, mem0, params)
    assert outs.shape == (seq_len, output_size, batch)
    assert mem_final.shape == (memory_size, batch)
    err_o = float(jnp.max(jnp.abs(outs - ref_outs)))
    err_m = float(jnp.max(jnp.abs(mem_final - ref_mem)))
    assert err_o < 1e-4, err_o
    assert err_m < 1e-4, err_m

    print("KERNEL_OK")
</pallas_src>

<mosaic_0001>
module attributes {stable_mosaic.version = 11 : i64} {
  func.func @mmu_seq_kernel(%arg0: i32, %arg1: memref<48x16xf32, #tpu.memory_space<vmem>>, %arg2: memref<8x16xf32, #tpu.memory_space<vmem>>, %arg3: memref<8x32xf32, #tpu.memory_space<vmem>>, %arg4: memref<16x128xf32, #tpu.memory_space<vmem>>, %arg5: memref<48x128xf32, #tpu.memory_space<vmem>>, %arg6: memref<32x16xf32, #tpu.memory_space<vmem>>, %arg7: memref<48x16xf32, #tpu.memory_space<vmem>>, %arg8: memref<8x32xf32, #tpu.memory_space<vmem>>, %arg9: memref<48x128xf32, #tpu.memory_space<vmem>>, %arg10: memref<8x48xf32, #tpu.memory_space<vmem>>) attributes {dimension_semantics = [#tpu.dimension_semantics<arbitrary>], iteration_bounds = array<i64: 1>, scalar_prefetch = 0 : i64, scratch_operands = 2 : i64, tpu.core_type = #tpu.core_type<tc>, window_params = [{pipeline_mode = #tpu.pipeline_mode<synchronous>, transform_indices = @transform_0, window_bounds = array<i64: 48, 16>}, {pipeline_mode = #tpu.pipeline_mode<synchronous>, transform_indices = @transform_1, window_bounds = array<i64: 8, 16>}, {pipeline_mode = #tpu.pipeline_mode<synchronous>, transform_indices = @transform_2, window_bounds = array<i64: 8, 32>}, {pipeline_mode = #tpu.pipeline_mode<synchronous>, transform_indices = @transform_3, window_bounds = array<i64: 16, 128>}, {pipeline_mode = #tpu.pipeline_mode<synchronous>, transform_indices = @transform_4, window_bounds = array<i64: 48, 128>}, {pipeline_mode = #tpu.pipeline_mode<synchronous>, transform_indices = @transform_5, window_bounds = array<i64: 32, 16>}, {pipeline_mode = #tpu.pipeline_mode<synchronous>, transform_indices = @transform_6, window_bounds = array<i64: 48, 16>}, {pipeline_mode = #tpu.pipeline_mode<synchronous>, transform_indices = @transform_7, window_bounds = array<i64: 8, 32>}]} {
    %c0 = arith.constant 0 : index
    %c0_0 = arith.constant 0 : index
    %0 = vector.load %arg1[%c0, %c0_0] : memref<48x16xf32, #tpu.memory_space<vmem>>, vector<48x16xf32>
    %c0_1 = arith.constant 0 : index
    %c0_2 = arith.constant 0 : index
    %1 = vector.load %arg4[%c0_1, %c0_2] : memref<16x128xf32, #tpu.memory_space<vmem>>, vector<16x128xf32>
    %cst = arith.constant dense<0.000000e+00> : vector<48x128xf32>
    %2 = tpu.matmul %0, %1, %cst {dimension_numbers = #tpu.dot_dimension_numbers<[1], [0], [0], [1], [0, 0, 1, 1], [], []>, precision = #tpu.contract_precision<fp32>} : vector<48x16xf32>, vector<16x128xf32>, vector<48x128xf32> -> vector<48x128xf32>
    %c0_3 = arith.constant 0 : index
    %c0_4 = arith.constant 0 : index
    %3 = vector.load %arg9[%c0_3, %c0_4] : memref<48x128xf32, #tpu.memory_space<vmem>>, vector<48x128xf32>
    tpu.vector_store %arg9[%c0_3, %c0_4], %2 {strides = array<i32>} : memref<48x128xf32, #tpu.memory_space<vmem>>, vector<48x128xf32>,
    %c0_5 = arith.constant 0 : index
    %c0_6 = arith.constant 0 : index
    %4 = vector.load %arg2[%c0_5, %c0_6] : memref<8x16xf32, #tpu.memory_space<vmem>>, vector<8x16xf32>
    %c0_7 = arith.constant 0 : index
    %c0_8 = arith.constant 0 : index
    %5 = vector.load %arg10[%c0_7, %c0_8] : memref<8x48xf32, #tpu.memory_space<vmem>>, vector<8x16xf32>
    tpu.vector_store %arg10[%c0_7, %c0_8], %4 {strides = array<i32>} : memref<8x48xf32, #tpu.memory_space<vmem>>, vector<8x16xf32>,
    %c0_9 = arith.constant 0 : index
    %c0_10 = arith.constant 0 : index
    %6 = vector.load %arg3[%c0_9, %c0_10] : memref<8x32xf32, #tpu.memory_space<vmem>>, vector<8x32xf32>
    %c0_11 = arith.constant 0 : index
    %c16 = arith.constant 16 : index
    %7 = vector.load %arg10[%c0_11, %c16] : memref<8x48xf32, #tpu.memory_space<vmem>>, vector<8x32xf32>
    tpu.vector_store %arg10[%c0_11, %c16], %6 {strides = array<i32>} : memref<8x48xf32, #tpu.memory_space<vmem>>, vector<8x32xf32>,
    %c0_12 = arith.constant 0 : index
    %c0_13 = arith.constant 0 : index
    %8 = vector.load %arg5[%c0_12, %c0_13] : memref<48x128xf32, #tpu.memory_space<vmem>>, vector<48x128xf32>
    %c0_14 = arith.constant 0 : index
    %c0_15 = arith.constant 0 : index
    %9 = vector.load %arg6[%c0_14, %c0_15] : memref<32x16xf32, #tpu.memory_space<vmem>>, vector<32x16xf32>
    %c0_i32 = arith.constant 0 : i32
    %c8_i32 = arith.constant 8 : i32
    %10 = arith.muli %c0_i32, %c8_i32 : i32
    %11 = tpu.assume_multiple %10, 8 : i32
    %c0_16 = arith.constant 0 : index
    %c0_17 = arith.constant 0 : index
    %12 = vector.load %arg10[%c0_16, %c0_17] : memref<8x48xf32, #tpu.memory_space<vmem>>, vector<8x48xf32>
    %13 = arith.index_cast %11 : i32 to index
    %c0_18 = arith.constant 0 : index
    %14 = vector.load %arg9[%13, %c0_18] : memref<48x128xf32, #tpu.memory_space<vmem>>, vector<8x128xf32>
    %cst_19 = arith.constant dense<0.000000e+00> : vector<8x128xf32>
    %15 = tpu.matmul %12, %8, %cst_19 {dimension_numbers = #tpu.dot_dimension_numbers<[1], [0], [0], [1], [0, 0, 1, 1], [], []>, precision = #tpu.contract_precision<fp32>} : vector<8x48xf32>, vector<48x128xf32>, vector<8x128xf32> -> vector<8x128xf32>
    %16 = arith.addf %14, %15 : vector<8x128xf32>
    %17 = arith.negf %16 : vector<8x128xf32>
    %18 = math.exp %17 : vector<8x128xf32>
    %cst_20 = arith.constant 1.000000e+00 : f32
    %19 = vector.broadcast %cst_20 : f32 to vector<8x128xf32>
    %20 = arith.addf %19, %18 : vector<8x128xf32>
    %21 = arith.divf %19, %20 : vector<8x128xf32>
    %22 = vector.extract_strided_slice %21 {offsets = [0, 0], sizes = [8, 32], strides = [1, 1]} : vector<8x128xf32> to vector<8x32xf32>
    %23 = vector.extract_strided_slice %21 {offsets = [0, 32], sizes = [8, 32], strides = [1, 1]} : vector<8x128xf32> to vector<8x32xf32>
    %24 = vector.extract_strided_slice %21 {offsets = [0, 64], sizes = [8, 32], strides = [1, 1]} : vector<8x128xf32> to vector<8x32xf32>
    %25 = vector.extract_strided_slice %21 {offsets = [0, 96], sizes = [8, 32], strides = [1, 1]} : vector<8x128xf32> to vector<8x32xf32>
    %26 = arith.mulf %22, %23 : vector<8x32xf32>
    %27 = arith.addf %24, %26 : vector<8x32xf32>
    %28 = vector.extract_strided_slice %12 {offsets = [0, 16], sizes = [8, 32], strides = [1, 1]} : vector<8x48xf32> to vector<8x32xf32>
    %29 = math.tanh %27 : vector<8x32xf32>
    %30 = arith.mulf %25, %29 : vector<8x32xf32>
    %31 = arith.addf %28, %30 : vector<8x32xf32>
    %cst_21 = arith.constant dense<0.000000e+00> : vector<8x16xf32>
    %32 = tpu.matmul %27, %9, %cst_21 {dimension_numbers = #tpu.dot_dimension_numbers<[1], [0], [0], [1], [0, 0, 1, 1], [], []>, precision = #tpu.contract_precision<fp32>} : vector<8x32xf32>, vector<32x16xf32>, vector<8x16xf32> -> vector<8x16xf32>
    %33 = math.tanh %32 : vector<8x16xf32>
    %c0_22 = arith.constant 0 : index
    %c0_23 = arith.constant 0 : index
    %34 = vector.load %arg10[%c0_22, %c0_23] : memref<8x48xf32, #tpu.memory_space<vmem>>, vector<8x16xf32>
    tpu.vector_store %arg10[%c0_22, %c0_23], %33 {strides = array<i32>} : memref<8x48xf32, #tpu.memory_space<vmem>>, vector<8x16xf32>,
    %c0_24 = arith.constant 0 : index
    %c16_25 = arith.constant 16 : index
    %35 = vector.load %arg10[%c0_24, %c16_25] : memref<8x48xf32, #tpu.memory_space<vmem>>, vector<8x32xf32>
    tpu.vector_store %arg10[%c0_24, %c16_25], %31 {strides = array<i32>} : memref<8x48xf32, #tpu.memory_space<vmem>>, vector<8x32xf32>,
    %36 = arith.index_cast %11 : i32 to index
    %c0_26 = arith.constant 0 : index
    %37 = vector.load %arg7[%36, %c0_26] : memref<48x16xf32, #tpu.memory_space<vmem>>, vector<8x16xf32>
    tpu.vector_store %arg7[%36, %c0_26], %33 {strides = array<i32>} : memref<48x16xf32, #tpu.memory_space<vmem>>, vector<8x16xf32>,
    %c1_i32 = arith.constant 1 : i32
    %c8_i32_27 = arith.constant 8 : i32
    %38 = arith.muli %c1_i32, %c8_i32_27 : i32
    %39 = tpu.assume_multiple %38, 8 : i32
    %c0_28 = arith.constant 0 : index
    %c0_29 = arith.constant 0 : index
    %40 = vector.load %arg10[%c0_28, %c0_29] : memref<8x48xf32, #tpu.memory_space<vmem>>, vector<8x48xf32>
    %41 = arith.index_cast %39 : i32 to index
    %c0_30 = arith.constant 0 : index
    %42 = vector.load %arg9[%41, %c0_30] : memref<48x128xf32, #tpu.memory_space<vmem>>, vector<8x128xf32>
    %cst_31 = arith.constant dense<0.000000e+00> : vector<8x128xf32>
    %43 = tpu.matmul %40, %8, %cst_31 {dimension_numbers = #tpu.dot_dimension_numbers<[1], [0], [0], [1], [0, 0, 1, 1], [], []>, precision = #tpu.contract_precision<fp32>} : vector<8x48xf32>, vector<48x128xf32>, vector<8x128xf32> -> vector<8x128xf32>
    %44 = arith.addf %42, %43 : vector<8x128xf32>
    %45 = arith.negf %44 : vector<8x128xf32>
    %46 = math.exp %45 : vector<8x128xf32>
    %cst_32 = arith.constant 1.000000e+00 : f32
    %47 = vector.broadcast %cst_32 : f32 to vector<8x128xf32>
    %48 = arith.addf %47, %46 : vector<8x128xf32>
    %49 = arith.divf %47, %48 : vector<8x128xf32>
    %50 = vector.extract_strided_slice %49 {offsets = [0, 0], sizes = [8, 32], strides = [1, 1]} : vector<8x128xf32> to vector<8x32xf32>
    %51 = vector.extract_strided_slice %49 {offsets = [0, 32], sizes = [8, 32], strides = [1, 1]} : vector<8x128xf32> to vector<8x32xf32>
    %52 = vector.extract_strided_slice %49 {offsets = [0, 64], sizes = [8, 32], strides = [1, 1]} : vector<8x128xf32> to vector<8x32xf32>
    %53 = vector.extract_strided_slice %49 {offsets = [0, 96], sizes = [8, 32], strides = [1, 1]} : vector<8x128xf32> to vector<8x32xf32>
    %54 = arith.mulf %50, %51 : vector<8x32xf32>
    %55 = arith.addf %52, %54 : vector<8x32xf32>
    %56 = vector.extract_strided_slice %40 {offsets = [0, 16], sizes = [8, 32], strides = [1, 1]} : vector<8x48xf32> to vector<8x32xf32>
    %57 = math.tanh %55 : vector<8x32xf32>
    %58 = arith.mulf %53, %57 : vector<8x32xf32>
    %59 = arith.addf %56, %58 : vector<8x32xf32>
    %cst_33 = arith.constant dense<0.000000e+00> : vector<8x16xf32>
    %60 = tpu.matmul %55, %9, %cst_33 {dimension_numbers = #tpu.dot_dimension_numbers<[1], [0], [0], [1], [0, 0, 1, 1], [], []>, precision = #tpu.contract_precision<fp32>} : vector<8x32xf32>, vector<32x16xf32>, vector<8x16xf32> -> vector<8x16xf32>
    %61 = math.tanh %60 : vector<8x16xf32>
    %c0_34 = arith.constant 0 : index
    %c0_35 = arith.constant 0 : index
    %62 = vector.load %arg10[%c0_34, %c0_35] : memref<8x48xf32, #tpu.memory_space<vmem>>, vector<8x16xf32>
    tpu.vector_store %arg10[%c0_34, %c0_35], %61 {strides = array<i32>} : memref<8x48xf32, #tpu.memory_space<vmem>>, vector<8x16xf32>,
    %c0_36 = arith.constant 0 : index
    %c16_37 = arith.constant 16 : index
    %63 = vector.load %arg10[%c0_36, %c16_37] : memref<8x48xf32, #tpu.memory_space<vmem>>, vector<8x32xf32>
    tpu.vector_store %arg10[%c0_36, %c16_37], %59 {strides = array<i32>} : memref<8x48xf32, #tpu.memory_space<vmem>>, vector<8x32xf32>,
    %64 = arith.index_cast %39 : i32 to index
    %c0_38 = arith.constant 0 : index
    %65 = vector.load %arg7[%64, %c0_38] : memref<48x16xf32, #tpu.memory_space<vmem>>, vector<8x16xf32>
    tpu.vector_store %arg7[%64, %c0_38], %61 {strides = array<i32>} : memref<48x16xf32, #tpu.memory_space<vmem>>, vector<8x16xf32>,
    %c2_i32 = arith.constant 2 : i32
    %c8_i32_39 = arith.constant 8 : i32
    %66 = arith.muli %c2_i32, %c8_i32_39 : i32
    %67 = tpu.assume_multiple %66, 8 : i32
    %c0_40 = arith.constant 0 : index
    %c0_41 = arith.constant 0 : index
    %68 = vector.load %arg10[%c0_40, %c0_41] : memref<8x48xf32, #tpu.memory_space<vmem>>, vector<8x48xf32>
    %69 = arith.index_cast %67 : i32 to index
    %c0_42 = arith.constant 0 : index
    %70 = vector.load %arg9[%69, %c0_42] : memref<48x128xf32, #tpu.memory_space<vmem>>, vector<8x128xf32>
    %cst_43 = arith.constant dense<0.000000e+00> : vector<8x128xf32>
    %71 = tpu.matmul %68, %8, %cst_43 {dimension_numbers = #tpu.dot_dimension_numbers<[1], [0], [0], [1], [0, 0, 1, 1], [], []>, precision = #tpu.contract_precision<fp32>} : vector<8x48xf32>, vector<48x128xf32>, vector<8x128xf32> -> vector<8x128xf32>
    %72 = arith.addf %70, %71 : vector<8x128xf32>
    %73 = arith.negf %72 : vector<8x128xf32>
    %74 = math.exp %73 : vector<8x128xf32>
    %cst_44 = arith.constant 1.000000e+00 : f32
    %75 = vector.broadcast %cst_44 : f32 to vector<8x128xf32>
    %76 = arith.addf %75, %74 : vector<8x128xf32>
    %77 = arith.divf %75, %76 : vector<8x128xf32>
    %78 = vector.extract_strided_slice %77 {offsets = [0, 0], sizes = [8, 32], strides = [1, 1]} : vector<8x128xf32> to vector<8x32xf32>
    %79 = vector.extract_strided_slice %77 {offsets = [0, 32], sizes = [8, 32], strides = [1, 1]} : vector<8x128xf32> to vector<8x32xf32>
    %80 = vector.extract_strided_slice %77 {offsets = [0, 64], sizes = [8, 32], strides = [1, 1]} : vector<8x128xf32> to vector<8x32xf32>
    %81 = vector.extract_strided_slice %77 {offsets = [0, 96], sizes = [8, 32], strides = [1, 1]} : vector<8x128xf32> to vector<8x32xf32>
    %82 = arith.mulf %78, %79 : vector<8x32xf32>
    %83 = arith.addf %80, %82 : vector<8x32xf32>
    %84 = vector.extract_strided_slice %68 {offsets = [0, 16], sizes = [8, 32], strides = [1, 1]} : vector<8x48xf32> to vector<8x32xf32>
    %85 = math.tanh %83 : vector<8x32xf32>
    %86 = arith.mulf %81, %85 : vector<8x32xf32>
    %87 = arith.addf %84, %86 : vector<8x32xf32>
    %cst_45 = arith.constant dense<0.000000e+00> : vector<8x16xf32>
    %88 = tpu.matmul %83, %9, %cst_45 {dimension_numbers = #tpu.dot_dimension_numbers<[1], [0], [0], [1], [0, 0, 1, 1], [], []>, precision = #tpu.contract_precision<fp32>} : vector<8x32xf32>, vector<32x16xf32>, vector<8x16xf32> -> vector<8x16xf32>
    %89 = math.tanh %88 : vector<8x16xf32>
    %c0_46 = arith.constant 0 : index
    %c0_47 = arith.constant 0 : index
    %90 = vector.load %arg10[%c0_46, %c0_47] : memref<8x48xf32, #tpu.memory_space<vmem>>, vector<8x16xf32>
    tpu.vector_store %arg10[%c0_46, %c0_47], %89 {strides = array<i32>} : memref<8x48xf32, #tpu.memory_space<vmem>>, vector<8x16xf32>,
    %c0_48 = arith.constant 0 : index
    %c16_49 = arith.constant 16 : index
    %91 = vector.load %arg10[%c0_48, %c16_49] : memref<8x48xf32, #tpu.memory_space<vmem>>, vector<8x32xf32>
    tpu.vector_store %arg10[%c0_48, %c16_49], %87 {strides = array<i32>} : memref<8x48xf32, #tpu.memory_space<vmem>>, vector<8x32xf32>,
    %92 = arith.index_cast %67 : i32 to index
    %c0_50 = arith.constant 0 : index
    %93 = vector.load %arg7[%92, %c0_50] : memref<48x16xf32, #tpu.memory_space<vmem>>, vector<8x16xf32>
    tpu.vector_store %arg7[%92, %c0_50], %89 {strides = array<i32>} : memref<48x16xf32, #tpu.memory_space<vmem>>, vector<8x16xf32>,
    %c3_i32 = arith.constant 3 : i32
    %c8_i32_51 = arith.constant 8 : i32
    %94 = arith.muli %c3_i32, %c8_i32_51 : i32
    %95 = tpu.assume_multiple %94, 8 : i32
    %c0_52 = arith.constant 0 : index
    %c0_53 = arith.constant 0 : index
    %96 = vector.load %arg10[%c0_52, %c0_53] : memref<8x48xf32, #tpu.memory_space<vmem>>, vector<8x48xf32>
    %97 = arith.index_cast %95 : i32 to index
    %c0_54 = arith.constant 0 : index
    %98 = vector.load %arg9[%97, %c0_54] : memref<48x128xf32, #tpu.memory_space<vmem>>, vector<8x128xf32>
    %cst_55 = arith.constant dense<0.000000e+00> : vector<8x128xf32>
    %99 = tpu.matmul %96, %8, %cst_55 {dimension_numbers = #tpu.dot_dimension_numbers<[1], [0], [0], [1], [0, 0, 1, 1], [], []>, precision = #tpu.contract_precision<fp32>} : vector<8x48xf32>, vector<48x128xf32>, vector<8x128xf32> -> vector<8x128xf32>
    %100 = arith.addf %98, %99 : vector<8x128xf32>
    %101 = arith.negf %100 : vector<8x128xf32>
    %102 = math.exp %101 : vector<8x128xf32>
    %cst_56 = arith.constant 1.000000e+00 : f32
    %103 = vector.broadcast %cst_56 : f32 to vector<8x128xf32>
    %104 = arith.addf %103, %102 : vector<8x128xf32>
    %105 = arith.divf %103, %104 : vector<8x128xf32>
    %106 = vector.extract_strided_slice %105 {offsets = [0, 0], sizes = [8, 32], strides = [1, 1]} : vector<8x128xf32> to vector<8x32xf32>
    %107 = vector.extract_strided_slice %105 {offsets = [0, 32], sizes = [8, 32], strides = [1, 1]} : vector<8x128xf32> to vector<8x32xf32>
    %108 = vector.extract_strided_slice %105 {offsets = [0, 64], sizes = [8, 32], strides = [1, 1]} : vector<8x128xf32> to vector<8x32xf32>
    %109 = vector.extract_strided_slice %105 {offsets = [0, 96], sizes = [8, 32], strides = [1, 1]} : vector<8x128xf32> to vector<8x32xf32>
    %110 = arith.mulf %106, %107 : vector<8x32xf32>
    %111 = arith.addf %108, %110 : vector<8x32xf32>
    %112 = vector.extract_strided_slice %96 {offsets = [0, 16], sizes = [8, 32], strides = [1, 1]} : vector<8x48xf32> to vector<8x32xf32>
    %113 = math.tanh %111 : vector<8x32xf32>
    %114 = arith.mulf %109, %113 : vector<8x32xf32>
    %115 = arith.addf %112, %114 : vector<8x32xf32>
    %cst_57 = arith.constant dense<0.000000e+00> : vector<8x16xf32>
    %116 = tpu.matmul %111, %9, %cst_57 {dimension_numbers = #tpu.dot_dimension_numbers<[1], [0], [0], [1], [0, 0, 1, 1], [], []>, precision = #tpu.contract_precision<fp32>} : vector<8x32xf32>, vector<32x16xf32>, vector<8x16xf32> -> vector<8x16xf32>
    %117 = math.tanh %116 : vector<8x16xf32>
    %c0_58 = arith.constant 0 : index
    %c0_59 = arith.constant 0 : index
    %118 = vector.load %arg10[%c0_58, %c0_59] : memref<8x48xf32, #tpu.memory_space<vmem>>, vector<8x16xf32>
    tpu.vector_store %arg10[%c0_58, %c0_59], %117 {strides = array<i32>} : memref<8x48xf32, #tpu.memory_space<vmem>>, vector<8x16xf32>,
    %c0_60 = arith.constant 0 : index
    %c16_61 = arith.constant 16 : index
    %119 = vector.load %arg10[%c0_60, %c16_61] : memref<8x48xf32, #tpu.memory_space<vmem>>, vector<8x32xf32>
    tpu.vector_store %arg10[%c0_60, %c16_61], %115 {strides = array<i32>} : memref<8x48xf32, #tpu.memory_space<vmem>>, vector<8x32xf32>,
    %120 = arith.index_cast %95 : i32 to index
    %c0_62 = arith.constant 0 : index
    %121 = vector.load %arg7[%120, %c0_62] : memref<48x16xf32, #tpu.memory_space<vmem>>, vector<8x16xf32>
    tpu.vector_store %arg7[%120, %c0_62], %117 {strides = array<i32>} : memref<48x16xf32, #tpu.memory_space<vmem>>, vector<8x16xf32>,
    %c4_i32 = arith.constant 4 : i32
    %c8_i32_63 = arith.constant 8 : i32
    %122 = arith.muli %c4_i32, %c8_i32_63 : i32
    %123 = tpu.assume_multiple %122, 8 : i32
    %c0_64 = arith.constant 0 : index
    %c0_65 = arith.constant 0 : index
    %124 = vector.load %arg10[%c0_64, %c0_65] : memref<8x48xf32, #tpu.memory_space<vmem>>, vector<8x48xf32>
    %125 = arith.index_cast %123 : i32 to index
    %c0_66 = arith.constant 0 : index
    %126 = vector.load %arg9[%125, %c0_66] : memref<48x128xf32, #tpu.memory_space<vmem>>, vector<8x128xf32>
    %cst_67 = arith.constant dense<0.000000e+00> : vector<8x128xf32>
    %127 = tpu.matmul %124, %8, %cst_67 {dimension_numbers = #tpu.dot_dimension_numbers<[1], [0], [0], [1], [0, 0, 1, 1], [], []>, precision = #tpu.contract_precision<fp32>} : vector<8x48xf32>, vector<48x128xf32>, vector<8x128xf32> -> vector<8x128xf32>
    %128 = arith.addf %126, %127 : vector<8x128xf32>
    %129 = arith.negf %128 : vector<8x128xf32>
    %130 = math.exp %129 : vector<8x128xf32>
    %cst_68 = arith.constant 1.000000e+00 : f32
    %131 = vector.broadcast %cst_68 : f32 to vector<8x128xf32>
    %132 = arith.addf %131, %130 : vector<8x128xf32>
    %133 = arith.divf %131, %132 : vector<8x128xf32>
    %134 = vector.extract_strided_slice %133 {offsets = [0, 0], sizes = [8, 32], strides = [1, 1]} : vector<8x128xf32> to vector<8x32xf32>
    %135 = vector.extract_strided_slice %133 {offsets = [0, 32], sizes = [8, 32], strides = [1, 1]} : vector<8x128xf32> to vector<8x32xf32>
    %136 = vector.extract_strided_slice %133 {offsets = [0, 64], sizes = [8, 32], strides = [1, 1]} : vector<8x128xf32> to vector<8x32xf32>
    %137 = vector.extract_strided_slice %133 {offsets = [0, 96], sizes = [8, 32], strides = [1, 1]} : vector<8x128xf32> to vector<8x32xf32>
    %138 = arith.mulf %134, %135 : vector<8x32xf32>
    %139 = arith.addf %136, %138 : vector<8x32xf32>
    %140 = vector.extract_strided_slice %124 {offsets = [0, 16], sizes = [8, 32], strides = [1, 1]} : vector<8x48xf32> to vector<8x32xf32>
    %141 = math.tanh %139 : vector<8x32xf32>
    %142 = arith.mulf %137, %141 : vector<8x32xf32>
    %143 = arith.addf %140, %142 : vector<8x32xf32>
    %cst_69 = arith.constant dense<0.000000e+00> : vector<8x16xf32>
    %144 = tpu.matmul %139, %9, %cst_69 {dimension_numbers = #tpu.dot_dimension_numbers<[1], [0], [0], [1], [0, 0, 1, 1], [], []>, precision = #tpu.contract_precision<fp32>} : vector<8x32xf32>, vector<32x16xf32>, vector<8x16xf32> -> vector<8x16xf32>
    %145 = math.tanh %144 : vector<8x16xf32>
    %c0_70 = arith.constant 0 : index
    %c0_71 = arith.constant 0 : index
    %146 = vector.load %arg10[%c0_70, %c0_71] : memref<8x48xf32, #tpu.memory_space<vmem>>, vector<8x16xf32>
    tpu.vector_store %arg10[%c0_70, %c0_71], %145 {strides = array<i32>} : memref<8x48xf32, #tpu.memory_space<vmem>>, vector<8x16xf32>,
    %c0_72 = arith.constant 0 : index
    %c16_73 = arith.constant 16 : index
    %147 = vector.load %arg10[%c0_72, %c16_73] : memref<8x48xf32, #tpu.memory_space<vmem>>, vector<8x32xf32>
    tpu.vector_store %arg10[%c0_72, %c16_73], %143 {strides = array<i32>} : memref<8x48xf32, #tpu.memory_space<vmem>>, vector<8x32xf32>,
    %148 = arith.index_cast %123 : i32 to index
    %c0_74 = arith.constant 0 : index
    %149 = vector.load %arg7[%148, %c0_74] : memref<48x16xf32, #tpu.memory_space<vmem>>, vector<8x16xf32>
    tpu.vector_store %arg7[%148, %c0_74], %145 {strides = array<i32>} : memref<48x16xf32, #tpu.memory_space<vmem>>, vector<8x16xf32>,
    %c5_i32 = arith.constant 5 : i32
    %c8_i32_75 = arith.constant 8 : i32
    %150 = arith.muli %c5_i32, %c8_i32_75 : i32
    %151 = tpu.assume_multiple %150, 8 : i32
    %c0_76 = arith.constant 0 : index
    %c0_77 = arith.constant 0 : index
    %152 = vector.load %arg10[%c0_76, %c0_77] : memref<8x48xf32, #tpu.memory_space<vmem>>, vector<8x48xf32>
    %153 = arith.index_cast %151 : i32 to index
    %c0_78 = arith.constant 0 : index
    %154 = vector.load %arg9[%153, %c0_78] : memref<48x128xf32, #tpu.memory_space<vmem>>, vector<8x128xf32>
    %cst_79 = arith.constant dense<0.000000e+00> : vector<8x128xf32>
    %155 = tpu.matmul %152, %8, %cst_79 {dimension_numbers = #tpu.dot_dimension_numbers<[1], [0], [0], [1], [0, 0, 1, 1], [], []>, precision = #tpu.contract_precision<fp32>} : vector<8x48xf32>, vector<48x128xf32>, vector<8x128xf32> -> vector<8x128xf32>
    %156 = arith.addf %154, %155 : vector<8x128xf32>
    %157 = arith.negf %156 : vector<8x128xf32>
    %158 = math.exp %157 : vector<8x128xf32>
    %cst_80 = arith.constant 1.000000e+00 : f32
    %159 = vector.broadcast %cst_80 : f32 to vector<8x128xf32>
    %160 = arith.addf %159, %158 : vector<8x128xf32>
    %161 = arith.divf %159, %160 : vector<8x128xf32>
    %162 = vector.extract_strided_slice %161 {offsets = [0, 0], sizes = [8, 32], strides = [1, 1]} : vector<8x128xf32> to vector<8x32xf32>
    %163 = vector.extract_strided_slice %161 {offsets = [0, 32], sizes = [8, 32], strides = [1, 1]} : vector<8x128xf32> to vector<8x32xf32>
    %164 = vector.extract_strided_slice %161 {offsets = [0, 64], sizes = [8, 32], strides = [1, 1]} : vector<8x128xf32> to vector<8x32xf32>
    %165 = vector.extract_strided_slice %161 {offsets = [0, 96], sizes = [8, 32], strides = [1, 1]} : vector<8x128xf32> to vector<8x32xf32>
    %166 = arith.mulf %162, %163 : vector<8x32xf32>
    %167 = arith.addf %164, %166 : vector<8x32xf32>
    %168 = vector.extract_strided_slice %152 {offsets = [0, 16], sizes = [8, 32], strides = [1, 1]} : vector<8x48xf32> to vector<8x32xf32>
    %169 = math.tanh %167 : vector<8x32xf32>
    %170 = arith.mulf %165, %169 : vector<8x32xf32>
    %171 = arith.addf %168, %170 : vector<8x32xf32>
    %cst_81 = arith.constant dense<0.000000e+00> : vector<8x16xf32>
    %172 = tpu.matmul %167, %9, %cst_81 {dimension_numbers = #tpu.dot_dimension_numbers<[1], [0], [0], [1], [0, 0, 1, 1], [], []>, precision = #tpu.contract_precision<fp32>} : vector<8x32xf32>, vector<32x16xf32>, vector<8x16xf32> -> vector<8x16xf32>
    %173 = math.tanh %172 : vector<8x16xf32>
    %c0_82 = arith.constant 0 : index
    %c0_83 = arith.constant 0 : index
    %174 = vector.load %arg10[%c0_82, %c0_83] : memref<8x48xf32, #tpu.memory_space<vmem>>, vector<8x16xf32>
    tpu.vector_store %arg10[%c0_82, %c0_83], %173 {strides = array<i32>} : memref<8x48xf32, #tpu.memory_space<vmem>>, vector<8x16xf32>,
    %c0_84 = arith.constant 0 : index
    %c16_85 = arith.constant 16 : index
    %175 = vector.load %arg10[%c0_84, %c16_85] : memref<8x48xf32, #tpu.memory_space<vmem>>, vector<8x32xf32>
    tpu.vector_store %arg10[%c0_84, %c16_85], %171 {strides = array<i32>} : memref<8x48xf32, #tpu.memory_space<vmem>>, vector<8x32xf32>,
    %176 = arith.index_cast %151 : i32 to index
    %c0_86 = arith.constant 0 : index
    %177 = vector.load %arg7[%176, %c0_86] : memref<48x16xf32, #tpu.memory_space<vmem>>, vector<8x16xf32>
    tpu.vector_store %arg7[%176, %c0_86], %173 {strides = array<i32>} : memref<48x16xf32, #tpu.memory_space<vmem>>, vector<8x16xf32>,
    %c6_i32 = arith.constant 6 : i32
    %c0_87 = arith.constant 0 : index
    %c16_88 = arith.constant 16 : index
    %178 = vector.load %arg10[%c0_87, %c16_88] : memref<8x48xf32, #tpu.memory_space<vmem>>, vector<8x32xf32>
    %c0_89 = arith.constant 0 : index
    %c0_90 = arith.constant 0 : index
    %179 = vector.load %arg8[%c0_89, %c0_90] : memref<8x32xf32, #tpu.memory_space<vmem>>, vector<8x32xf32>
    tpu.vector_store %arg8[%c0_89, %c0_90], %178 {strides = array<i32>} : memref<8x32xf32, #tpu.memory_space<vmem>>, vector<8x32xf32>,
    return
  }
  func.func @transform_0(%arg0: i32) -> (i32, i32) {
    %c0_i32 = arith.constant 0 : i32
    %c0_i32_0 = arith.constant 0 : i32
    %c0_i32_1 = arith.constant 0 : i32
    return %c0_i32, %c0_i32_0 : i32, i32
  }
  func.func @transform_1(%arg0: i32) -> (i32, i32) {
    %c0_i32 = arith.constant 0 : i32
    %c0_i32_0 = arith.constant 0 : i32
    %c0_i32_1 = arith.constant 0 : i32
    return %c0_i32, %c0_i32_0 : i32, i32
  }
  func.func @transform_2(%arg0: i32) -> (i32, i32) {
    %c0_i32 = arith.constant 0 : i32
    %c0_i32_0 = arith.constant 0 : i32
    %c0_i32_1 = arith.constant 0 : i32
    return %c0_i32, %c0_i32_0 : i32, i32
  }
  func.func @transform_3(%arg0: i32) -> (i32, i32) {
    %c0_i32 = arith.constant 0 : i32
    %c0_i32_0 = arith.constant 0 : i32
    %c0_i32_1 = arith.constant 0 : i32
    return %c0_i32, %c0_i32_0 : i32, i32
  }
  func.func @transform_4(%arg0: i32) -> (i32, i32) {
    %c0_i32 = arith.constant 0 : i32
    %c0_i32_0 = arith.constant 0 : i32
    %c0_i32_1 = arith.constant 0 : i32
    return %c0_i32, %c0_i32_0 : i32, i32
  }
  func.func @transform_5(%arg0: i32) -> (i32, i32) {
    %c0_i32 = arith.constant 0 : i32
    %c0_i32_0 = arith.constant 0 : i32
    %c0_i32_1 = arith.constant 0 : i32
    return %c0_i32, %c0_i32_0 : i32, i32
  }
  func.func @transform_6(%arg0: i32) -> (i32, i32) {
    %c0_i32 = arith.constant 0 : i32
    %c0_i32_0 = arith.constant 0 : i32
    %c0_i32_1 = arith.constant 0 : i32
    return %c0_i32, %c0_i32_0 : i32, i32
  }
  func.func @transform_7(%arg0: i32) -> (i32, i32) {
    %c0_i32 = arith.constant 0 : i32
    %c0_i32_0 = arith.constant 0 : i32
    %c0_i32_1 = arith.constant 0 : i32
    return %c0_i32, %c0_i32_0 : i32, i32
  }
}

</mosaic_0001>

<llo_original>
// kernel: mmu_forward_seq.1
$region0: #{mmu_forward_seq.1}
  #allocation0 [shape = 'u32[]', space=smem, size = 0x4, offset = 0x4, fixed_abs, tag = 'smem constant byte address 0x4 - core index']
  #allocation1 [shape = 'u32[144,128]{1,0:T(1,128)}', space=vmem, size = 0x12000, scoped, tag = 'internal scratch']
  #allocation2 [shape = 'f32[48,128]{1,0:T(8,128)}', space=vmem, size = 0x6000, scoped, tag = 'scratch operand']
  #allocation3 [shape = 'f32[8,48]{1,0:T(8,128)}', space=vmem, size = 0x1000, scoped, tag = 'scratch operand']
  %s0 = inlined_call_operand.vmem [shape: f32[48,16], index: 0, kind: input, shape index: {}]
  %s1 = inlined_call_operand.vmem [shape: f32[8,16], index: 1, kind: input, shape index: {}]
  %s2 = inlined_call_operand.hbm [shape: f32[8,32], index: 2, kind: input, shape index: {}]
  %s3 = inlined_call_operand.hbm [shape: f32[16,128], index: 3, kind: input, shape index: {}]
  %s4 = inlined_call_operand.hbm [shape: f32[48,128], index: 4, kind: input, shape index: {}]
  %s5 = inlined_call_operand.vmem [shape: f32[32,16], index: 5, kind: input, shape index: {}]
  %s6 = inlined_call_operand.hbm [shape: f32[48,16], index: 6, kind: output, shape index: {0}]
  %s7 = inlined_call_operand.hbm [shape: f32[8,32], index: 7, kind: output, shape index: {1}]
  %8 = xla_tuple %s6, %s7
  %s9 = sld [smem:[#allocation0]]
  $region54: #{mmu_forward_seq.1} parent=0
    _
  %s11 = ssub.s32 1, %s9
  %s12 = scalar_select 0, %s11, %s9
  $region1: #{mmu_forward_seq.1} parent=0
    #allocation4 [shape = 'u8[4096]{0}', space=vmem, size = 0x1000, scoped, tag = 'input window, operand 2, single buffered']
    #allocation5 [shape = 's32[1]{0}', space=sflag, size = 0x4, scoped, tag = 'scoped memory for mmu_forward_seq.1']
    #allocation6 [shape = 's32[1]{0}', space=sflag, size = 0x4, scoped, tag = 'scoped memory for mmu_forward_seq.1']
    #allocation7 [shape = 'u8[8192]{0}', space=vmem, size = 0x2000, scoped, tag = 'input window, operand 3, single buffered']
    #allocation8 [shape = 's32[1]{0}', space=sflag, size = 0x4, scoped, tag = 'scoped memory for mmu_forward_seq.1']
    #allocation9 [shape = 'u8[24576]{0}', space=vmem, size = 0x6000, scoped, tag = 'input window, operand 4, single buffered']
    #allocation10 [shape = 'u8[24576]{0}', space=vmem, size = 0x6000, scoped, tag = 'output window, operand 0, single buffered']
    #allocation11 [shape = 'u8[4096]{0}', space=vmem, size = 0x1000, scoped, tag = 'output window, operand 1, single buffered']
    #allocation12 [shape = 's32[1]{0}', space=sflag, size = 0x4, scoped, tag = 'scoped memory for mmu_forward_seq.1']
    %13 = vsyncpa [#allocation5], 0
    %14 = vsyncpa [#allocation8], 0
    %15 = vsyncpa [#allocation6], 0
    %16 = vsyncpa [#allocation12], 0
    // Predicated region
    $region2: #{mmu_forward_seq.1} parent=1 // pred_check
      _
    $region3: #{mmu_forward_seq.1} parent=1 // pred_check_branch
      %18 = sbr.rel (0) target = $region5
    $region4: #{mmu_forward_seq.1} parent=1 // pred_region
      _
    $region5: #{mmu_forward_seq.1} parent=1 // pred_fallthru
      _
    // Predicated region
    $region6: #{mmu_forward_seq.1} parent=1 // pred_check
      _
    $region7: #{mmu_forward_seq.1} parent=1 // pred_check_branch
      %20 = sbr.rel (0) target = $region9
    $region8: #{mmu_forward_seq.1} parent=1 // pred_region
      _
    $region9: #{mmu_forward_seq.1} parent=1 // pred_fallthru
      _
    // Predicated region
    $region10: #{mmu_forward_seq.1} parent=1 // pred_check
      _
    $region11: #{mmu_forward_seq.1} parent=1 // pred_check_branch
      %22 = sbr.rel (0) target = $region13
    $region12: #{mmu_forward_seq.1} parent=1 // pred_region
      %s24 = ssub.s32 128, 128
      %25 = vsyncadd [#allocation5], %s24
      %s27 = sshll.u32 [#allocation4], 4
      %s28 = int_to_ptr.vmem [resolvable:$true] %s27
      %30 = dma.hbm_to_vmem [thread:$0]  %s2, 128, %s28, [#allocation5]
    $region13: #{mmu_forward_seq.1} parent=1 // pred_fallthru
      _
    // Predicated region
    $region14: #{mmu_forward_seq.1} parent=1 // pred_check
      _
    $region15: #{mmu_forward_seq.1} parent=1 // pred_check_branch
      %32 = sbr.rel (0) target = $region17
    $region16: #{mmu_forward_seq.1} parent=1 // pred_region
      %s34 = ssub.s32 256, 256
      %35 = vsyncadd [#allocation8], %s34
      %s36 = sshll.u32 [#allocation7], 4
      %s37 = int_to_ptr.vmem [resolvable:$true] %s36
      %42 = dma.hbm_to_vmem [thread:$0]  %s3, 256, %s37, [#allocation8], 128, 128, 8
    $region17: #{mmu_forward_seq.1} parent=1 // pred_fallthru
      _
    // Predicated region
    $region18: #{mmu_forward_seq.1} parent=1 // pred_check
      _
    $region19: #{mmu_forward_seq.1} parent=1 // pred_check_branch
      %44 = sbr.rel (0) target = $region21
    $region20: #{mmu_forward_seq.1} parent=1 // pred_region
      %s46 = ssub.s32 768, 768
      %47 = vsyncadd [#allocation8], %s46
      %s48 = sshll.u32 [#allocation9], 4
      %s49 = int_to_ptr.vmem [resolvable:$true] %s48
      %54 = dma.hbm_to_vmem [thread:$0]  %s4, 768, %s49, [#allocation8], 128, 128, 8
    $region21: #{mmu_forward_seq.1} parent=1 // pred_fallthru
      _
    // Predicated region
    $region22: #{mmu_forward_seq.1} parent=1 // pred_check
      _
    $region23: #{mmu_forward_seq.1} parent=1 // pred_check_branch
      %56 = sbr.rel (0) target = $region25
    $region24: #{mmu_forward_seq.1} parent=1 // pred_region
      _
    $region25: #{mmu_forward_seq.1} parent=1 // pred_fallthru
      _
    // Predicated region
    $region26: #{mmu_forward_seq.1} parent=1 // pred_check
      _
    $region27: #{mmu_forward_seq.1} parent=1 // pred_check_branch
      %58 = sbr.rel (0) target = $region29
    $region28: #{mmu_forward_seq.1} parent=1 // pred_region
      %59 = dma.done [#allocation5], 128
    $region29: #{mmu_forward_seq.1} parent=1 // pred_fallthru
      _
    // Predicated region
    $region30: #{mmu_forward_seq.1} parent=1 // pred_check
      _
    $region31: #{mmu_forward_seq.1} parent=1 // pred_check_branch
      %61 = sbr.rel (0) target = $region33
    $region32: #{mmu_forward_seq.1} parent=1 // pred_region
      %62 = dma.done [#allocation8], 256
    $region33: #{mmu_forward_seq.1} parent=1 // pred_fallthru
      _
    // Predicated region
    $region34: #{mmu_forward_seq.1} parent=1 // pred_check
      _
    $region35: #{mmu_forward_seq.1} parent=1 // pred_check_branch
      %64 = sbr.rel (0) target = $region37
    $region36: #{mmu_forward_seq.1} parent=1 // pred_region
      %65 = dma.done [#allocation8], 768
    $region37: #{mmu_forward_seq.1} parent=1 // pred_fallthru
      _
    %v66 = vld [vmem:[%s0] sm:$0xff]
    %v67 = vld [vmem:[%s0 + $0x8] sm:$0xff]
    %v68 = vld [vmem:[%s0 + $0x10] sm:$0xff]
    %v69 = vld [vmem:[%s0 + $0x18] sm:$0xff]
    %v70 = vld [vmem:[%s0 + $0x20] sm:$0xff]
    %v71 = vld [vmem:[%s0 + $0x28] sm:$0xff]
    %v72 = vld [vmem:[#allocation7] sm:$0xff]
    %v73 = vld [vmem:[#allocation7 + $0x8] sm:$0xff]
    %vm74 = vcmask 130048
    %v76 = vsel %vm74, %v66, 0
    %v79 = vsel %vm74, %v67, 0
    %v82 = vsel %vm74, %v68, 0
    %v85 = vsel %vm74, %v69, 0
    %v88 = vsel %vm74, %v70, 0
    %v91 = vsel %vm74, %v71, 0
    %93 = vmatprep.subr.mxu0 0.0
    %v94 = vand.u32 %v72, 4294901760
    %95 = vmatpush1.msra.mxu0 %v94
    %96 = vmatprep.subr.mxu0 0.0
    %v97 = vand.u32 %v73, 4294901760
    %98 = vmatpush1.msra.mxu0 %v97
    %99 = vmatprep.subr.mxu0 0.0
    %100 = vmatpush1.msra.mxu0 0.0
    %101 = vmatprep.subr.mxu0 0.0
    %102 = vmatpush1.msra.mxu0 0.0
    %103 = vmatprep.subr.mxu0 0.0
    %104 = vmatpush1.msra.mxu0 0.0
    %105 = vmatprep.subr.mxu0 0.0
    %106 = vmatpush1.msra.mxu0 0.0
    %107 = vmatprep.subr.mxu0 0.0
    %108 = vmatpush1.msra.mxu0 0.0
    %109 = vmatprep.subr.mxu0 0.0
    %110 = vmatpush1.msra.mxu0 0.0
    %111 = vmatprep.subr.mxu0 0.0
    %112 = vmatpush1.msra.mxu0 0.0
    %113 = vmatprep.subr.mxu0 0.0
    %114 = vmatpush1.msra.mxu0 0.0
    %115 = vmatprep.subr.mxu0 0.0
    %116 = vmatpush1.msra.mxu0 0.0
    %117 = vmatprep.subr.mxu0 0.0
    %118 = vmatpush1.msra.mxu0 0.0
    %119 = vmatprep.subr.mxu0 0.0
    %120 = vmatpush1.msra.mxu0 0.0
    %121 = vmatprep.subr.mxu0 0.0
    %122 = vmatpush1.msra.mxu0 0.0
    %123 = vmatprep.subr.mxu0 0.0
    %124 = vmatpush1.msra.mxu0 0.0
    %125 = vmatprep.subr.mxu0 0.0
    %126 = vmatpush1.msra.mxu0 0.0
    %127 = vmatprep.subr.mxu0 0.0
    %128 = vmatpush1.msra.mxu0 0.0
    %129 = vmatprep.subr.mxu0 0.0
    %130 = vmatpush1.msra.mxu0 0.0
    %131 = vmatprep.subr.mxu0 0.0
    %132 = vmatpush1.msra.mxu0 0.0
    %133 = vmatprep.subr.mxu0 0.0
    %134 = vmatpush1.msra.mxu0 0.0
    %135 = vmatprep.subr.mxu0 0.0
    %136 = vmatpush1.msra.mxu0 0.0
    %137 = vmatprep.subr.mxu0 0.0
    %138 = vmatpush1.msra.mxu0 0.0
    %139 = vmatprep.subr.mxu0 0.0
    %140 = vmatpush1.msra.mxu0 0.0
    %141 = vmatprep.subr.mxu0 0.0
    %142 = vmatpush1.msra.mxu0 0.0
    %143 = vmatprep.subr.mxu0 0.0
    %144 = vmatpush1.msra.mxu0 0.0
    %145 = vmatprep.subr.mxu0 0.0
    %146 = vmatpush1.msra.mxu0 0.0
    %147 = vmatprep.subr.mxu0 0.0
    %148 = vmatpush1.msra.mxu0 0.0
    %149 = vmatprep.subr.mxu0 0.0
    %150 = vmatpush1.msra.mxu0 0.0
    %151 = vmatprep.subr.mxu0 0.0
    %152 = vmatpush1.msra.mxu0 0.0
    %153 = vmatprep.subr.mxu0 0.0
    %154 = vmatpush1.msra.mxu0 0.0
    %155 = vmatprep.subr.mxu0 0.0
    %156 = vmatpush1.msra.mxu0 0.0
    %157 = vmatprep.subr.mxu0 0.0
    %158 = vmatpush1.msra.mxu0 0.0
    %159 = vmatprep.mubr.f32.mxu0 0.0
    %v160 = vand.u32 %v76, 4294901760
    %v161 = vsub.f32 %v76, %v160
    %v162 = vand.u32 %v161, 4294901760
    %v163 = vsub.f32 %v161, %v162
    %v164 = vand.u32 %v163, 4294901760
    %165 = vmatmul.mubr.f32.gmra.mrb[0].mxu0 %v164
    %v166 = vpop.f32.mrb[0].mxu0
    %v167 = vadd.f32 0.0, %v166
    %v168 = vpop.f32.mrb[0].mxu0
    %169 = vmatprep.mubr.f32.mxu0 0.0
    %v170 = vand.u32 %v79, 4294901760
    %v171 = vsub.f32 %v79, %v170
    %v172 = vand.u32 %v171, 4294901760
    %v173 = vsub.f32 %v171, %v172
    %v174 = vand.u32 %v173, 4294901760
    %175 = vmatmul.mubr.f32.gmra.mrb[0].mxu0 %v174
    %v176 = vpop.f32.mrb[0].mxu0
    %v177 = vadd.f32 0.0, %v176
    %v178 = vpop.f32.mrb[0].mxu0
    %179 = vmatprep.mubr.f32.mxu0 0.0
    %v180 = vand.u32 %v82, 4294901760
    %v181 = vsub.f32 %v82, %v180
    %v182 = vand.u32 %v181, 4294901760
    %v183 = vsub.f32 %v181, %v182
    %v184 = vand.u32 %v183, 4294901760
    %185 = vmatmul.mubr.f32.gmra.mrb[0].mxu0 %v184
    %v186 = vpop.f32.mrb[0].mxu0
    %v187 = vadd.f32 0.0, %v186
    %v188 = vpop.f32.mrb[0].mxu0
    %189 = vmatprep.mubr.f32.mxu0 0.0
    %v190 = vand.u32 %v85, 4294901760
    %v191 = vsub.f32 %v85, %v190
    %v192 = vand.u32 %v191, 4294901760
    %v193 = vsub.f32 %v191, %v192
    %v194 = vand.u32 %v193, 4294901760
    %195 = vmatmul.mubr.f32.gmra.mrb[0].mxu0 %v194
    %v196 = vpop.f32.mrb[0].mxu0
    %v197 = vadd.f32 0.0, %v196
    %v198 = vpop.f32.mrb[0].mxu0
    %199 = vmatprep.mubr.f32.mxu0 0.0
    %v200 = vand.u32 %v88, 4294901760
    %v201 = vsub.f32 %v88, %v200
    %v202 = vand.u32 %v201, 4294901760
    %v203 = vsub.f32 %v201, %v202
    %v204 = vand.u32 %v203, 4294901760
    %205 = vmatmul.mubr.f32.gmra.mrb[0].mxu0 %v204
    %v206 = vpop.f32.mrb[0].mxu0
    %v207 = vadd.f32 0.0, %v206
    %v208 = vpop.f32.mrb[0].mxu0
    %209 = vmatprep.mubr.f32.mxu0 0.0
    %v210 = vand.u32 %v91, 4294901760
    %v211 = vsub.f32 %v91, %v210
    %v212 = vand.u32 %v211, 4294901760
    %v213 = vsub.f32 %v211, %v212
    %v214 = vand.u32 %v213, 4294901760
    %215 = vmatmul.mubr.f32.gmra.mrb[0].mxu0 %v214
    %v216 = vpop.f32.mrb[0].mxu0
    %v217 = vadd.f32 0.0, %v216
    %v218 = vpop.f32.mrb[0].mxu0
    %219 = vdwg.mxu0
    %220 = vmatprep.subr.mxu0 0.0
    %v221 = vand.u32 %v72, 4294901760
    %v222 = vsub.f32 %v72, %v221
    %v223 = vand.u32 %v222, 4294901760
    %v224 = vsub.f32 %v222, %v223
    %v225 = vand.u32 %v224, 4294901760
    %226 = vmatpush1.msra.mxu0 %v225
    %227 = vmatprep.subr.mxu0 0.0
    %v228 = vand.u32 %v73, 4294901760
    %v229 = vsub.f32 %v73, %v228
    %v230 = vand.u32 %v229, 4294901760
    %v231 = vsub.f32 %v229, %v230
    %v232 = vand.u32 %v231, 4294901760
    %233 = vmatpush1.msra.mxu0 %v232
    %234 = vmatprep.subr.mxu0 0.0
    %235 = vmatpush1.msra.mxu0 0.0
    %236 = vmatprep.subr.mxu0 0.0
    %237 = vmatpush1.msra.mxu0 0.0
    %238 = vmatprep.subr.mxu0 0.0
    %239 = vmatpush1.msra.mxu0 0.0
    %240 = vmatprep.subr.mxu0 0.0
    %241 = vmatpush1.msra.mxu0 0.0
    %242 = vmatprep.subr.mxu0 0.0
    %243 = vmatpush1.msra.mxu0 0.0
    %244 = vmatprep.subr.mxu0 0.0
    %245 = vmatpush1.msra.mxu0 0.0
    %246 = vmatprep.subr.mxu0 0.0
    %247 = vmatpush1.msra.mxu0 0.0
    %248 = vmatprep.subr.mxu0 0.0
    %249 = vmatpush1.msra.mxu0 0.0
    %250 = vmatprep.subr.mxu0 0.0
    %251 = vmatpush1.msra.mxu0 0.0
    %252 = vmatprep.subr.mxu0 0.0
    %253 = vmatpush1.msra.mxu0 0.0
    %254 = vmatprep.subr.mxu0 0.0
    %255 = vmatpush1.msra.mxu0 0.0
    %256 = vmatprep.subr.mxu0 0.0
    %257 = vmatpush1.msra.mxu0 0.0
    %258 = vmatprep.subr.mxu0 0.0
    %259 = vmatpush1.msra.mxu0 0.0
    %260 = vmatprep.subr.mxu0 0.0
    %261 = vmatpush1.msra.mxu0 0.0
    %262 = vmatprep.subr.mxu0 0.0
    %263 = vmatpush1.msra.mxu0 0.0
    %264 = vmatprep.subr.mxu0 0.0
    %265 = vmatpush1.msra.mxu0 0.0
    %266 = vmatprep.subr.mxu0 0.0
    %267 = vmatpush1.msra.mxu0 0.0
    %268 = vmatprep.subr.mxu0 0.0
    %269 = vmatpush1.msra.mxu0 0.0
    %270 = vmatprep.subr.mxu0 0.0
    %271 = vmatpush1.msra.mxu0 0.0
    %272 = vmatprep.subr.mxu0 0.0
    %273 = vmatpush1.msra.mxu0 0.0
    %274 = vmatprep.subr.mxu0 0.0
    %275 = vmatpush1.msra.mxu0 0.0
    %276 = vmatprep.subr.mxu0 0.0
    %277 = vmatpush1.msra.mxu0 0.0
    %278 = vmatprep.subr.mxu0 0.0
    %279 = vmatpush1.msra.mxu0 0.0
    %280 = vmatprep.subr.mxu0 0.0
    %281 = vmatpush1.msra.mxu0 0.0
    %282 = vmatprep.subr.mxu0 0.0
    %283 = vmatpush1.msra.mxu0 0.0
    %284 = vmatprep.subr.mxu0 0.0
    %285 = vmatpush1.msra.mxu0 0.0
    %286 = vmatprep.subr.mxu0 0.0
    %287 = vmatpush1.msra.mxu0 0.0
    %288 = vmatprep.subr.mxu0 0.0
    %289 = vmatpush1.msra.mxu0 0.0
    %290 = vmatprep.subr.mxu0 0.0
    %291 = vmatpush1.msra.mxu0 0.0
    %292 = vmatprep.subr.mxu0 0.0
    %293 = vmatpush1.msra.mxu0 0.0
    %294 = vmatprep.mubr.f32.mxu0 0.0
    %v295 = vand.u32 %v76, 4294901760
    %296 = vmatmul.mubr.f32.gmra.mrb[0].mxu0 %v295
    %v297 = vpop.f32.mrb[0].mxu0
    %v298 = vadd.f32 %v167, %v297
    %v299 = vpop.f32.mrb[0].mxu0
    %300 = vmatprep.mubr.f32.mxu0 0.0
    %v301 = vand.u32 %v79, 4294901760
    %302 = vmatmul.mubr.f32.gmra.mrb[0].mxu0 %v301
    %v303 = vpop.f32.mrb[0].mxu0
    %v304 = vadd.f32 %v177, %v303
    %v305 = vpop.f32.mrb[0].mxu0
    %306 = vmatprep.mubr.f32.mxu0 0.0
    %v307 = vand.u32 %v82, 4294901760
    %308 = vmatmul.mubr.f32.gmra.mrb[0].mxu0 %v307
    %v309 = vpop.f32.mrb[0].mxu0
    %v310 = vadd.f32 %v187, %v309
    %v311 = vpop.f32.mrb[0].mxu0
    %312 = vmatprep.mubr.f32.mxu0 0.0
    %v313 = vand.u32 %v85, 4294901760
    %314 = vmatmul.mubr.f32.gmra.mrb[0].mxu0 %v313
    %v315 = vpop.f32.mrb[0].mxu0
    %v316 = vadd.f32 %v197, %v315
    %v317 = vpop.f32.mrb[0].mxu0
    %318 = vmatprep.mubr.f32.mxu0 0.0
    %v319 = vand.u32 %v88, 4294901760
    %320 = vmatmul.mubr.f32.gmra.mrb[0].mxu0 %v319
    %v321 = vpop.f32.mrb[0].mxu0
    %v322 = vadd.f32 %v207, %v321
    %v323 = vpop.f32.mrb[0].mxu0
    %324 = vmatprep.mubr.f32.mxu0 0.0
    %v325 = vand.u32 %v91, 4294901760
    %326 = vmatmul.mubr.f32.gmra.mrb[0].mxu0 %v325
    %v327 = vpop.f32.mrb[0].mxu0
    %v328 = vadd.f32 %v217, %v327
    %v329 = vpop.f32.mrb[0].mxu0
    %330 = vdwg.mxu0
    %331 = vmatprep.subr.mxu0 0.0
    %v332 = vand.u32 %v72, 4294901760
    %v333 = vsub.f32 %v72, %v332
    %334 = vmatpush1.msra.mxu0 %v333
    %335 = vmatprep.subr.mxu0 0.0
    %v336 = vand.u32 %v73, 4294901760
    %v337 = vsub.f32 %v73, %v336
    %338 = vmatpush1.msra.mxu0 %v337
    %339 = vmatprep.subr.mxu0 0.0
    %340 = vmatpush1.msra.mxu0 0.0
    %341 = vmatprep.subr.mxu0 0.0
    %342 = vmatpush1.msra.mxu0 0.0
    %343 = vmatprep.subr.mxu0 0.0
    %344 = vmatpush1.msra.mxu0 0.0
    %345 = vmatprep.subr.mxu0 0.0
    %346 = vmatpush1.msra.mxu0 0.0
    %347 = vmatprep.subr.mxu0 0.0
    %348 = vmatpush1.msra.mxu0 0.0
    %349 = vmatprep.subr.mxu0 0.0
    %350 = vmatpush1.msra.mxu0 0.0
    %351 = vmatprep.subr.mxu0 0.0
    %352 = vmatpush1.msra.mxu0 0.0
    %353 = vmatprep.subr.mxu0 0.0
    %354 = vmatpush1.msra.mxu0 0.0
    %355 = vmatprep.subr.mxu0 0.0
    %356 = vmatpush1.msra.mxu0 0.0
    %357 = vmatprep.subr.mxu0 0.0
    %358 = vmatpush1.msra.mxu0 0.0
    %359 = vmatprep.subr.mxu0 0.0
    %360 = vmatpush1.msra.mxu0 0.0
    %361 = vmatprep.subr.mxu0 0.0
    %362 = vmatpush1.msra.mxu0 0.0
    %363 = vmatprep.subr.mxu0 0.0
    %364 = vmatpush1.msra.mxu0 0.0
    %365 = vmatprep.subr.mxu0 0.0
    %366 = vmatpush1.msra.mxu0 0.0
    %367 = vmatprep.subr.mxu0 0.0
    %368 = vmatpush1.msra.mxu0 0.0
    %369 = vmatprep.subr.mxu0 0.0
    %370 = vmatpush1.msra.mxu0 0.0
    %371 = vmatprep.subr.mxu0 0.0
    %372 = vmatpush1.msra.mxu0 0.0
    %373 = vmatprep.subr.mxu0 0.0
    %374 = vmatpush1.msra.mxu0 0.0
    %375 = vmatprep.subr.mxu0 0.0
    %376 = vmatpush1.msra.mxu0 0.0
    %377 = vmatprep.subr.mxu0 0.0
    %378 = vmatpush1.msra.mxu0 0.0
    %379 = vmatprep.subr.mxu0 0.0
    %380 = vmatpush1.msra.mxu0 0.0
    %381 = vmatprep.subr.mxu0 0.0
    %382 = vmatpush1.msra.mxu0 0.0
    %383 = vmatprep.subr.mxu0 0.0
    %384 = vmatpush1.msra.mxu0 0.0
    %385 = vmatprep.subr.mxu0 0.0
    %386 = vmatpush1.msra.mxu0 0.0
    %387 = vmatprep.subr.mxu0 0.0
    %388 = vmatpush1.msra.mxu0 0.0
    %389 = vmatprep.subr.mxu0 0.0
    %390 = vmatpush1.msra.mxu0 0.0
    %391 = vmatprep.subr.mxu0 0.0
    %392 = vmatpush1.msra.mxu0 0.0
    %393 = vmatprep.subr.mxu0 0.0
    %394 = vmatpush1.msra.mxu0 0.0
    %395 = vmatprep.subr.mxu0 0.0
    %396 = vmatpush1.msra.mxu0 0.0
    %397 = vmatprep.subr.mxu0 0.0
    %398 = vmatpush1.msra.mxu0 0.0
    %399 = vmatprep.mubr.f32.mxu0 0.0
    %v400 = vand.u32 %v76, 4294901760
    %v401 = vsub.f32 %v76, %v400
    %402 = vmatmul.mubr.f32.gmra.mrb[0].mxu0 %v401
    %v403 = vpop.f32.mrb[0].mxu0
    %v404 = vadd.f32 %v298, %v403
    %v405 = vpop.f32.mrb[0].mxu0
    %406 = vmatprep.mubr.f32.mxu0 0.0
    %v407 = vand.u32 %v79, 4294901760
    %v408 = vsub.f32 %v79, %v407
    %409 = vmatmul.mubr.f32.gmra.mrb[0].mxu0 %v408
    %v410 = vpop.f32.mrb[0].mxu0
    %v411 = vadd.f32 %v304, %v410
    %v412 = vpop.f32.mrb[0].mxu0
    %413 = vmatprep.mubr.f32.mxu0 0.0
    %v414 = vand.u32 %v82, 4294901760
    %v415 = vsub.f32 %v82, %v414
    %416 = vmatmul.mubr.f32.gmra.mrb[0].mxu0 %v415
    %v417 = vpop.f32.mrb[0].mxu0
    %v418 = vadd.f32 %v310, %v417
    %v419 = vpop.f32.mrb[0].mxu0
    %420 = vmatprep.mubr.f32.mxu0 0.0
    %v421 = vand.u32 %v85, 4294901760
    %v422 = vsub.f32 %v85, %v421
    %423 = vmatmul.mubr.f32.gmra.mrb[0].mxu0 %v422
    %v424 = vpop.f32.mrb[0].mxu0
    %v425 = vadd.f32 %v316, %v424
    %v426 = vpop.f32.mrb[0].mxu0
    %427 = vmatprep.mubr.f32.mxu0 0.0
    %v428 = vand.u32 %v88, 4294901760
    %v429 = vsub.f32 %v88, %v428
    %430 = vmatmul.mubr.f32.gmra.mrb[0].mxu0 %v429
    %v431 = vpop.f32.mrb[0].mxu0
    %v432 = vadd.f32 %v322, %v431
    %v433 = vpop.f32.mrb[0].mxu0
    %434 = vmatprep.mubr.f32.mxu0 0.0
    %v435 = vand.u32 %v91, 4294901760
    %v436 = vsub.f32 %v91, %v435
    %437 = vmatmul.mubr.f32.gmra.mrb[0].mxu0 %v436
    %v438 = vpop.f32.mrb[0].mxu0
    %v439 = vadd.f32 %v328, %v438
    %v440 = vpop.f32.mrb[0].mxu0
    %441 = vdwg.mxu0
    %442 = vmatprep.subr.mxu0 0.0
    %v443 = vand.u32 %v72, 4294901760
    %444 = vmatpush1.msra.mxu0 %v443
    %445 = vmatprep.subr.mxu0 0.0
    %v446 = vand.u32 %v73, 4294901760
    %447 = vmatpush1.msra.mxu0 %v446
    %448 = vmatprep.subr.mxu0 0.0
    %449 = vmatpush1.msra.mxu0 0.0
    %450 = vmatprep.subr.mxu0 0.0
    %451 = vmatpush1.msra.mxu0 0.0
    %452 = vmatprep.subr.mxu0 0.0
    %453 = vmatpush1.msra.mxu0 0.0
    %454 = vmatprep.subr.mxu0 0.0
    %455 = vmatpush1.msra.mxu0 0.0
    %456 = vmatprep.subr.mxu0 0.0
    %457 = vmatpush1.msra.mxu0 0.0
    %458 = vmatprep.subr.mxu0 0.0
    %459 = vmatpush1.msra.mxu0 0.0
    %460 = vmatprep.subr.mxu0 0.0
    %461 = vmatpush1.msra.mxu0 0.0
    %462 = vmatprep.subr.mxu0 0.0
    %463 = vmatpush1.msra.mxu0 0.0
    %464 = vmatprep.subr.mxu0 0.0
    %465 = vmatpush1.msra.mxu0 0.0
    %466 = vmatprep.subr.mxu0 0.0
    %467 = vmatpush1.msra.mxu0 0.0
    %468 = vmatprep.subr.mxu0 0.0
    %469 = vmatpush1.msra.mxu0 0.0
    %470 = vmatprep.subr.mxu0 0.0
    %471 = vmatpush1.msra.mxu0 0.0
    %472 = vmatprep.subr.mxu0 0.0
    %473 = vmatpush1.msra.mxu0 0.0
    %474 = vmatprep.subr.mxu0 0.0
    %475 = vmatpush1.msra.mxu0 0.0
    %476 = vmatprep.subr.mxu0 0.0
    %477 = vmatpush1.msra.mxu0 0.0
    %478 = vmatprep.subr.mxu0 0.0
    %479 = vmatpush1.msra.mxu0 0.0
    %480 = vmatprep.subr.mxu0 0.0
    %481 = vmatpush1.msra.mxu0 0.0
    %482 = vmatprep.subr.mxu0 0.0
    %483 = vmatpush1.msra.mxu0 0.0
    %484 = vmatprep.subr.mxu0 0.0
    %485 = vmatpush1.msra.mxu0 0.0
    %486 = vmatprep.subr.mxu0 0.0
    %487 = vmatpush1.msra.mxu0 0.0
    %488 = vmatprep.subr.mxu0 0.0
    %489 = vmatpush1.msra.mxu0 0.0
    %490 = vmatprep.subr.mxu0 0.0
    %491 = vmatpush1.msra.mxu0 0.0
    %492 = vmatprep.subr.mxu0 0.0
    %493 = vmatpush1.msra.mxu0 0.0
    %494 = vmatprep.subr.mxu0 0.0
    %495 = vmatpush1.msra.mxu0 0.0
    %496 = vmatprep.subr.mxu0 0.0
    %497 = vmatpush1.msra.mxu0 0.0
    %498 = vmatprep.subr.mxu0 0.0
    %499 = vmatpush1.msra.mxu0 0.0
    %500 = vmatprep.subr.mxu0 0.0
    %501 = vmatpush1.msra.mxu0 0.0
    %502 = vmatprep.subr.mxu0 0.0
    %503 = vmatpush1.msra.mxu0 0.0
    %504 = vmatprep.subr.mxu0 0.0
    %505 = vmatpush1.msra.mxu0 0.0
    %506 = vmatprep.subr.mxu0 0.0
    %507 = vmatpush1.msra.mxu0 0.0
    %508 = vmatprep.mubr.f32.mxu0 0.0
    %v509 = vand.u32 %v76, 4294901760
    %v510 = vsub.f32 %v76, %v509
    %v511 = vand.u32 %v510, 4294901760
    %512 = vmatmul.mubr.f32.gmra.mrb[0].mxu0 %v511
    %v513 = vpop.f32.mrb[0].mxu0
    %v514 = vadd.f32 %v404, %v513
    %v515 = vpop.f32.mrb[0].mxu0
    %516 = vmatprep.mubr.f32.mxu0 0.0
    %v517 = vand.u32 %v79, 4294901760
    %v518 = vsub.f32 %v79, %v517
    %v519 = vand.u32 %v518, 4294901760
    %520 = vmatmul.mubr.f32.gmra.mrb[0].mxu0 %v519
    %v521 = vpop.f32.mrb[0].mxu0
    %v522 = vadd.f32 %v411, %v521
    %v523 = vpop.f32.mrb[0].mxu0
    %524 = vmatprep.mubr.f32.mxu0 0.0
    %v525 = vand.u32 %v82, 4294901760
    %v526 = vsub.f32 %v82, %v525
    %v527 = vand.u32 %v526, 4294901760
    %528 = vmatmul.mubr.f32.gmra.mrb[0].mxu0 %v527
    %v529 = vpop.f32.mrb[0].mxu0
    %v530 = vadd.f32 %v418, %v529
    %v531 = vpop.f32.mrb[0].mxu0
    %532 = vmatprep.mubr.f32.mxu0 0.0
    %v533 = vand.u32 %v85, 4294901760
    %v534 = vsub.f32 %v85, %v533
    %v535 = vand.u32 %v534, 4294901760
    %536 = vmatmul.mubr.f32.gmra.mrb[0].mxu0 %v535
    %v537 = vpop.f32.mrb[0].mxu0
    %v538 = vadd.f32 %v425, %v537
    %v539 = vpop.f32.mrb[0].mxu0
    %540 = vmatprep.mubr.f32.mxu0 0.0
    %v541 = vand.u32 %v88, 4294901760
    %v542 = vsub.f32 %v88, %v541
    %v543 = vand.u32 %v542, 4294901760
    %544 = vmatmul.mubr.f32.gmra.mrb[0].mxu0 %v543
    %v545 = vpop.f32.mrb[0].mxu0
    %v546 = vadd.f32 %v432, %v545
    %v547 = vpop.f32.mrb[0].mxu0
    %548 = vmatprep.mubr.f32.mxu0 0.0
    %v549 = vand.u32 %v91, 4294901760
    %v550 = vsub.f32 %v91, %v549
    %v551 = vand.u32 %v550, 4294901760
    %552 = vmatmul.mubr.f32.gmra.mrb[0].mxu0 %v551
    %v553 = vpop.f32.mrb[0].mxu0
    %v554 = vadd.f32 %v439, %v553
    %v555 = vpop.f32.mrb[0].mxu0
    %556 = vdwg.mxu0
    %557 = vmatprep.subr.mxu0 0.0
    %v558 = vand.u32 %v72, 4294901760
    %v559 = vsub.f32 %v72, %v558
    %v560 = vand.u32 %v559, 4294901760
    %561 = vmatpush1.msra.mxu0 %v560
    %562 = vmatprep.subr.mxu0 0.0
    %v563 = vand.u32 %v73, 4294901760
    %v564 = vsub.f32 %v73, %v563
    %v565 = vand.u32 %v564, 4294901760
    %566 = vmatpush1.msra.mxu0 %v565
    %567 = vmatprep.subr.mxu0 0.0
    %568 = vmatpush1.msra.mxu0 0.0
    %569 = vmatprep.subr.mxu0 0.0
    %570 = vmatpush1.msra.mxu0 0.0
    %571 = vmatprep.subr.mxu0 0.0
    %572 = vmatpush1.msra.mxu0 0.0
    %573 = vmatprep.subr.mxu0 0.0
    %574 = vmatpush1.msra.mxu0 0.0
    %575 = vmatprep.subr.mxu0 0.0
    %576 = vmatpush1.msra.mxu0 0.0
    %577 = vmatprep.subr.mxu0 0.0
    %578 = vmatpush1.msra.mxu0 0.0
    %579 = vmatprep.subr.mxu0 0.0
    %580 = vmatpush1.msra.mxu0 0.0
    %581 = vmatprep.subr.mxu0 0.0
    %582 = vmatpush1.msra.mxu0 0.0
    %583 = vmatprep.subr.mxu0 0.0
    %584 = vmatpush1.msra.mxu0 0.0
    %585 = vmatprep.subr.mxu0 0.0
    %586 = vmatpush1.msra.mxu0 0.0
    %587 = vmatprep.subr.mxu0 0.0
    %588 = vmatpush1.msra.mxu0 0.0
    %589 = vmatprep.subr.mxu0 0.0
    %590 = vmatpush1.msra.mxu0 0.0
    %591 = vmatprep.subr.mxu0 0.0
    %592 = vmatpush1.msra.mxu0 0.0
    %593 = vmatprep.subr.mxu0 0.0
    %594 = vmatpush1.msra.mxu0 0.0
    %595 = vmatprep.subr.mxu0 0.0
    %596 = vmatpush1.msra.mxu0 0.0
    %597 = vmatprep.subr.mxu0 0.0
    %598 = vmatpush1.msra.mxu0 0.0
    %599 = vmatprep.subr.mxu0 0.0
    %600 = vmatpush1.msra.mxu0 0.0
    %601 = vmatprep.subr.mxu0 0.0
    %602 = vmatpush1.msra.mxu0 0.0
    %603 = vmatprep.subr.mxu0 0.0
    %604 = vmatpush1.msra.mxu0 0.0
    %605 = vmatprep.subr.mxu0 0.0
    %606 = vmatpush1.msra.mxu0 0.0
    %607 = vmatprep.subr.mxu0 0.0
    %608 = vmatpush1.msra.mxu0 0.0
    %609 = vmatprep.subr.mxu0 0.0
    %610 = vmatpush1.msra.mxu0 0.0
    %611 = vmatprep.subr.mxu0 0.0
    %612 = vmatpush1.msra.mxu0 0.0
    %613 = vmatprep.subr.mxu0 0.0
    %614 = vmatpush1.msra.mxu0 0.0
    %615 = vmatprep.subr.mxu0 0.0
    %616 = vmatpush1.msra.mxu0 0.0
    %617 = vmatprep.subr.mxu0 0.0
    %618 = vmatpush1.msra.mxu0 0.0
    %619 = vmatprep.subr.mxu0 0.0
    %620 = vmatpush1.msra.mxu0 0.0
    %621 = vmatprep.subr.mxu0 0.0
    %622 = vmatpush1.msra.mxu0 0.0
    %623 = vmatprep.subr.mxu0 0.0
    %624 = vmatpush1.msra.mxu0 0.0
    %625 = vmatprep.subr.mxu0 0.0
    %626 = vmatpush1.msra.mxu0 0.0
    %627 = vmatprep.mubr.f32.mxu0 0.0
    %v628 = vand.u32 %v76, 4294901760
    %629 = vmatmul.mubr.f32.gmra.mrb[0].mxu0 %v628
    %v630 = vpop.f32.mrb[0].mxu0
    %v631 = vadd.f32 %v514, %v630
    %v632 = vpop.f32.mrb[0].mxu0
    %633 = vmatprep.mubr.f32.mxu0 0.0
    %v634 = vand.u32 %v79, 4294901760
    %635 = vmatmul.mubr.f32.gmra.mrb[0].mxu0 %v634
    %v636 = vpop.f32.mrb[0].mxu0
    %v637 = vadd.f32 %v522, %v636
    %v638 = vpop.f32.mrb[0].mxu0
    %639 = vmatprep.mubr.f32.mxu0 0.0
    %v640 = vand.u32 %v82, 4294901760
    %641 = vmatmul.mubr.f32.gmra.mrb[0].mxu0 %v640
    %v642 = vpop.f32.mrb[0].mxu0
    %v643 = vadd.f32 %v530, %v642
    %v644 = vpop.f32.mrb[0].mxu0
    %645 = vmatprep.mubr.f32.mxu0 0.0
    %v646 = vand.u32 %v85, 4294901760
    %647 = vmatmul.mubr.f32.gmra.mrb[0].mxu0 %v646
    %v648 = vpop.f32.mrb[0].mxu0
    %v649 = vadd.f32 %v538, %v648
    %v650 = vpop.f32.mrb[0].mxu0
    %651 = vmatprep.mubr.f32.mxu0 0.0
    %v652 = vand.u32 %v88, 4294901760
    %653 = vmatmul.mubr.f32.gmra.mrb[0].mxu0 %v652
    %v654 = vpop.f32.mrb[0].mxu0
    %v655 = vadd.f32 %v546, %v654
    %v656 = vpop.f32.mrb[0].mxu0
    %657 = vmatprep.mubr.f32.mxu0 0.0
    %v658 = vand.u32 %v91, 4294901760
    %659 = vmatmul.mubr.f32.gmra.mrb[0].mxu0 %v658
    %v660 = vpop.f32.mrb[0].mxu0
    %v661 = vadd.f32 %v554, %v660
    %v662 = vpop.f32.mrb[0].mxu0
    %663 = vdwg.mxu0
    %664 = vmatprep.subr.mxu0 0.0
    %v665 = vand.u32 %v72, 4294901760
    %666 = vmatpush1.msra.mxu0 %v665
    %667 = vmatprep.subr.mxu0 0.0
    %v668 = vand.u32 %v73, 4294901760
    %669 = vmatpush1.msra.mxu0 %v668
    %670 = vmatprep.subr.mxu0 0.0
    %671 = vmatpush1.msra.mxu0 0.0
    %672 = vmatprep.subr.mxu0 0.0
    %673 = vmatpush1.msra.mxu0 0.0
    %674 = vmatprep.subr.mxu0 0.0
    %675 = vmatpush1.msra.mxu0 0.0
    %676 = vmatprep.subr.mxu0 0.0
    %677 = vmatpush1.msra.mxu0 0.0
    %678 = vmatprep.subr.mxu0 0.0
    %679 = vmatpush1.msra.mxu0 0.0
    %680 = vmatprep.subr.mxu0 0.0
    %681 = vmatpush1.msra.mxu0 0.0
    %682 = vmatprep.subr.mxu0 0.0
    %683 = vmatpush1.msra.mxu0 0.0
    %684 = vmatprep.subr.mxu0 0.0
    %685 = vmatpush1.msra.mxu0 0.0
    %686 = vmatprep.subr.mxu0 0.0
    %687 = vmatpush1.msra.mxu0 0.0
    %688 = vmatprep.subr.mxu0 0.0
    %689 = vmatpush1.msra.mxu0 0.0
    %690 = vmatprep.subr.mxu0 0.0
    %691 = vmatpush1.msra.mxu0 0.0
    %692 = vmatprep.subr.mxu0 0.0
    %693 = vmatpush1.msra.mxu0 0.0
    %694 = vmatprep.subr.mxu0 0.0
    %695 = vmatpush1.msra.mxu0 0.0
    %696 = vmatprep.subr.mxu0 0.0
    %697 = vmatpush1.msra.mxu0 0.0
    %698 = vmatprep.subr.mxu0 0.0
    %699 = vmatpush1.msra.mxu0 0.0
    %700 = vmatprep.subr.mxu0 0.0
    %701 = vmatpush1.msra.mxu0 0.0
    %702 = vmatprep.subr.mxu0 0.0
    %703 = vmatpush1.msra.mxu0 0.0
    %704 = vmatprep.subr.mxu0 0.0
    %705 = vmatpush1.msra.mxu0 0.0
    %706 = vmatprep.subr.mxu0 0.0
    %707 = vmatpush1.msra.mxu0 0.0
    %708 = vmatprep.subr.mxu0 0.0
    %709 = vmatpush1.msra.mxu0 0.0
    %710 = vmatprep.subr.mxu0 0.0
    %711 = vmatpush1.msra.mxu0 0.0
    %712 = vmatprep.subr.mxu0 0.0
    %713 = vmatpush1.msra.mxu0 0.0
    %714 = vmatprep.subr.mxu0 0.0
    %715 = vmatpush1.msra.mxu0 0.0
    %716 = vmatprep.subr.mxu0 0.0
    %717 = vmatpush1.msra.mxu0 0.0
    %718 = vmatprep.subr.mxu0 0.0
    %719 = vmatpush1.msra.mxu0 0.0
    %720 = vmatprep.subr.mxu0 0.0
    %721 = vmatpush1.msra.mxu0 0.0
    %722 = vmatprep.subr.mxu0 0.0
    %723 = vmatpush1.msra.mxu0 0.0
    %724 = vmatprep.subr.mxu0 0.0
    %725 = vmatpush1.msra.mxu0 0.0
    %726 = vmatprep.subr.mxu0 0.0
    %727 = vmatpush1.msra.mxu0 0.0
    %728 = vmatprep.subr.mxu0 0.0
    %729 = vmatpush1.msra.mxu0 0.0
    %730 = vmatprep.mubr.f32.mxu0 0.0
    %v731 = vand.u32 %v76, 4294901760
    %732 = vmatmul.mubr.f32.gmra.mrb[0].mxu0 %v731
    %v733 = vpop.f32.mrb[0].mxu0
    %v734 = vadd.f32 %v631, %v733
    %v735 = vpop.f32.mrb[0].mxu0
    %736 = vmatprep.mubr.f32.mxu0 0.0
    %v737 = vand.u32 %v79, 4294901760
    %738 = vmatmul.mubr.f32.gmra.mrb[0].mxu0 %v737
    %v739 = vpop.f32.mrb[0].mxu0
    %v740 = vadd.f32 %v637, %v739
    %v741 = vpop.f32.mrb[0].mxu0
    %742 = vmatprep.mubr.f32.mxu0 0.0
    %v743 = vand.u32 %v82, 4294901760
    %744 = vmatmul.mubr.f32.gmra.mrb[0].mxu0 %v743
    %v745 = vpop.f32.mrb[0].mxu0
    %v746 = vadd.f32 %v643, %v745
    %v747 = vpop.f32.mrb[0].mxu0
    %748 = vmatprep.mubr.f32.mxu0 0.0
    %v749 = vand.u32 %v85, 4294901760
    %750 = vmatmul.mubr.f32.gmra.mrb[0].mxu0 %v749
    %v751 = vpop.f32.mrb[0].mxu0
    %v752 = vadd.f32 %v649, %v751
    %v753 = vpop.f32.mrb[0].mxu0
    %754 = vmatprep.mubr.f32.mxu0 0.0
    %v755 = vand.u32 %v88, 4294901760
    %756 = vmatmul.mubr.f32.gmra.mrb[0].mxu0 %v755
    %v757 = vpop.f32.mrb[0].mxu0
    %v758 = vadd.f32 %v655, %v757
    %v759 = vpop.f32.mrb[0].mxu0
    %760 = vmatprep.mubr.f32.mxu0 0.0
    %v761 = vand.u32 %v91, 4294901760
    %762 = vmatmul.mubr.f32.gmra.mrb[0].mxu0 %v761
    %v763 = vpop.f32.mrb[0].mxu0
    %v764 = vadd.f32 %v661, %v763
    %v765 = vpop.f32.mrb[0].mxu0
    %766 = vdwg.mxu0
    %767 = vst [vmem:[#allocation2] sm:$0xff] %v734
    %768 = vst [vmem:[#allocation2 + $0x8] sm:$0xff] %v740
    %769 = vst [vmem:[#allocation2 + $0x10] sm:$0xff] %v746
    %770 = vst [vmem:[#allocation2 + $0x18] sm:$0xff] %v752
    %771 = vst [vmem:[#allocation2 + $0x20] sm:$0xff] %v758
    %772 = vst [vmem:[#allocation2 + $0x28] sm:$0xff] %v764
    %v773 = vld [vmem:[%s1] sm:$0xff]
    %774 = vst.msk [vmem:[#allocation3] sm:$0xff] %vm74, %v773
    %v775 = vld [vmem:[#allocation4] sm:$0xff]
    %777 = vrot.lane.b32.xlu0 %v775, 16
    %v778 = vpop.permute.xlu0 %777
    %vm780 = vcmask 392320
    %781 = vst.msk [vmem:[#allocation3] sm:$0xff] %vm780, %v778
    %v782 = vld [vmem:[#allocation9] sm:$0xff]
    %v783 = vld [vmem:[#allocation9 + $0x8] sm:$0xff]
    %v784 = vld [vmem:[#allocation9 + $0x10] sm:$0xff]
    %v785 = vld [vmem:[#allocation9 + $0x18] sm:$0xff]
    %v786 = vld [vmem:[#allocation9 + $0x20] sm:$0xff]
    %v787 = vld [vmem:[#allocation9 + $0x28] sm:$0xff]
    %v788 = vld [vmem:[%s5] sm:$0xff]
    %v789 = vld [vmem:[%s5 + $0x8] sm:$0xff]
    %v790 = vld [vmem:[%s5 + $0x10] sm:$0xff]
    %v791 = vld [vmem:[%s5 + $0x18] sm:$0xff]
    %v792 = vld [vmem:[#allocation3] sm:$0xff]
    %v793 = vld [vmem:[#allocation2] sm:$0xff]
    %vm794 = vcmask 392192
    %v796 = vsel %vm794, %v792, 0
    %798 = vmatprep.subr.mxu0 0.0
    %v799 = vand.u32 %v782, 4294901760
    %800 = vmatpush1.msra.mxu0 %v799
    %801 = vmatprep.subr.mxu0 0.0
    %v802 = vand.u32 %v783, 4294901760
    %803 = vmatpush1.msra.mxu0 %v802
    %804 = vmatprep.subr.mxu0 0.0
    %v805 = vand.u32 %v784, 4294901760
    %806 = vmatpush1.msra.mxu0 %v805
    %807 = vmatprep.subr.mxu0 0.0
    %v808 = vand.u32 %v785, 4294901760
    %809 = vmatpush1.msra.mxu0 %v808
    %810 = vmatprep.subr.mxu0 0.0
    %v811 = vand.u32 %v786, 4294901760
    %812 = vmatpush1.msra.mxu0 %v811
    %813 = vmatprep.subr.mxu0 0.0
    %v814 = vand.u32 %v787, 4294901760
    %815 = vmatpush1.msra.mxu0 %v814
    %816 = vmatprep.subr.mxu0 0.0
    %817 = vmatpush1.msra.mxu0 0.0
    %818 = vmatprep.subr.mxu0 0.0
    %819 = vmatpush1.msra.mxu0 0.0
    %820 = vmatprep.subr.mxu0 0.0
    %821 = vmatpush1.msra.mxu0 0.0
    %822 = vmatprep.subr.mxu0 0.0
    %823 = vmatpush1.msra.mxu0 0.0
    %824 = vmatprep.subr.mxu0 0.0
    %825 = vmatpush1.msra.mxu0 0.0
    %826 = vmatprep.subr.mxu0 0.0
    %827 = vmatpush1.msra.mxu0 0.0
    %828 = vmatprep.subr.mxu0 0.0
    %829 = vmatpush1.msra.mxu0 0.0
    %830 = vmatprep.subr.mxu0 0.0
    %831 = vmatpush1.msra.mxu0 0.0
    %832 = vmatprep.subr.mxu0 0.0
    %833 = vmatpush1.msra.mxu0 0.0
    %834 = vmatprep.subr.mxu0 0.0
    %835 = vmatpush1.msra.mxu0 0.0
    %836 = vmatprep.subr.mxu0 0.0
    %837 = vmatpush1.msra.mxu0 0.0
    %838 = vmatprep.subr.mxu0 0.0
    %839 = vmatpush1.msra.mxu0 0.0
    %840 = vmatprep.subr.mxu0 0.0
    %841 = vmatpush1.msra.mxu0 0.0
    %842 = vmatprep.subr.mxu0 0.0
    %843 = vmatpush1.msra.mxu0 0.0
    %844 = vmatprep.subr.mxu0 0.0
    %845 = vmatpush1.msra.mxu0 0.0
    %846 = vmatprep.subr.mxu0 0.0
    %847 = vmatpush1.msra.mxu0 0.0
    %848 = vmatprep.subr.mxu0 0.0
    %849 = vmatpush1.msra.mxu0 0.0
    %850 = vmatprep.subr.mxu0 0.0
    %851 = vmatpush1.msra.mxu0 0.0
    %852 = vmatprep.subr.mxu0 0.0
    %853 = vmatpush1.msra.mxu0 0.0
    %854 = vmatprep.subr.mxu0 0.0
    %855 = vmatpush1.msra.mxu0 0.0
    %856 = vmatprep.subr.mxu0 0.0
    %857 = vmatpush1.msra.mxu0 0.0
    %858 = vmatprep.subr.mxu0 0.0
    %859 = vmatpush1.msra.mxu0 0.0
    %860 = vmatprep.subr.mxu0 0.0
    %861 = vmatpush1.msra.mxu0 0.0
    %862 = vmatprep.subr.mxu0 0.0
    %863 = vmatpush1.msra.mxu0 0.0
    %864 = vmatprep.subr.mxu0 0.0
    %865 = vmatpush1.msra.mxu0 0.0
    %866 = vmatprep.subr.mxu0 0.0
    %867 = vmatpush1.msra.mxu0 0.0
    %868 = vmatprep.mubr.f32.mxu0 0.0
    %v869 = vand.u32 %v796, 4294901760
    %v870 = vsub.f32 %v796, %v869
    %v871 = vand.u32 %v870, 4294901760
    %v872 = vsub.f32 %v870, %v871
    %v873 = vand.u32 %v872, 4294901760
    %874 = vmatmul.mubr.f32.gmra.mrb[0].mxu0 %v873
    %v875 = vpop.f32.mrb[0].mxu0
    %v876 = vadd.f32 0.0, %v875
    %v877 = vpop.f32.mrb[0].mxu0
    %878 = vdwg.mxu0
    %879 = vmatprep.subr.mxu0 0.0
    %v880 = vand.u32 %v782, 4294901760
    %v881 = vsub.f32 %v782, %v880
    %v882 = vand.u32 %v881, 4294901760
    %v883 = vsub.f32 %v881, %v882
    %v884 = vand.u32 %v883, 4294901760
    %885 = vmatpush1.msra.mxu0 %v884
    %886 = vmatprep.subr.mxu0 0.0
    %v887 = vand.u32 %v783, 4294901760
    %v888 = vsub.f32 %v783, %v887
    %v889 = vand.u32 %v888, 4294901760
    %v890 = vsub.f32 %v888, %v889
    %v891 = vand.u32 %v890, 4294901760
    %892 = vmatpush1.msra.mxu0 %v891
    %893 = vmatprep.subr.mxu0 0.0
    %v894 = vand.u32 %v784, 4294901760
    %v895 = vsub.f32 %v784, %v894
    %v896 = vand.u32 %v895, 4294901760
    %v897 = vsub.f32 %v895, %v896
    %v898 = vand.u32 %v897, 4294901760
    %899 = vmatpush1.msra.mxu0 %v898
    %900 = vmatprep.subr.mxu0 0.0
    %v901 = vand.u32 %v785, 4294901760
    %v902 = vsub.f32 %v785, %v901
    %v903 = vand.u32 %v902, 4294901760
    %v904 = vsub.f32 %v902, %v903
    %v905 = vand.u32 %v904, 4294901760
    %906 = vmatpush1.msra.mxu0 %v905
    %907 = vmatprep.subr.mxu0 0.0
    %v908 = vand.u32 %v786, 4294901760
    %v909 = vsub.f32 %v786, %v908
    %v910 = vand.u32 %v909, 4294901760
    %v911 = vsub.f32 %v909, %v910
    %v912 = vand.u32 %v911, 4294901760
    %913 = vmatpush1.msra.mxu0 %v912
    %914 = vmatprep.subr.mxu0 0.0
    %v915 = vand.u32 %v787, 4294901760
    %v916 = vsub.f32 %v787, %v915
    %v917 = vand.u32 %v916, 4294901760
    %v918 = vsub.f32 %v916, %v917
    %v919 = vand.u32 %v918, 4294901760
    %920 = vmatpush1.msra.mxu0 %v919
    %921 = vmatprep.subr.mxu0 0.0
    %922 = vmatpush1.msra.mxu0 0.0
    %923 = vmatprep.subr.mxu0 0.0
    %924 = vmatpush1.msra.mxu0 0.0
    %925 = vmatprep.subr.mxu0 0.0
    %926 = vmatpush1.msra.mxu0 0.0
    %927 = vmatprep.subr.mxu0 0.0
    %928 = vmatpush1.msra.mxu0 0.0
    %929 = vmatprep.subr.mxu0 0.0
    %930 = vmatpush1.msra.mxu0 0.0
    %931 = vmatprep.subr.mxu0 0.0
    %932 = vmatpush1.msra.mxu0 0.0
    %933 = vmatprep.subr.mxu0 0.0
    %934 = vmatpush1.msra.mxu0 0.0
    %935 = vmatprep.subr.mxu0 0.0
    %936 = vmatpush1.msra.mxu0 0.0
    %937 = vmatprep.subr.mxu0 0.0
    %938 = vmatpush1.msra.mxu0 0.0
    %939 = vmatprep.subr.mxu0 0.0
    %940 = vmatpush1.msra.mxu0 0.0
    %941 = vmatprep.subr.mxu0 0.0
    %942 = vmatpush1.msra.mxu0 0.0
    %943 = vmatprep.subr.mxu0 0.0
    %944 = vmatpush1.msra.mxu0 0.0
    %945 = vmatprep.subr.mxu0 0.0
    %946 = vmatpush1.msra.mxu0 0.0
    %947 = vmatprep.subr.mxu0 0.0
    %948 = vmatpush1.msra.mxu0 0.0
    %949 = vmatprep.subr.mxu0 0.0
    %950 = vmatpush1.msra.mxu0 0.0
    %951 = vmatprep.subr.mxu0 0.0
    %952 = vmatpush1.msra.mxu0 0.0
    %953 = vmatprep.subr.mxu0 0.0
    %954 = vmatpush1.msra.mxu0 0.0
    %955 = vmatprep.subr.mxu0 0.0
    %956 = vmatpush1.msra.mxu0 0.0
    %957 = vmatprep.subr.mxu0 0.0
    %958 = vmatpush1.msra.mxu0 0.0
    %959 = vmatprep.subr.mxu0 0.0
    %960 = vmatpush1.msra.mxu0 0.0
    %961 = vmatprep.subr.mxu0 0.0
    %962 = vmatpush1.msra.mxu0 0.0
    %963 = vmatprep.subr.mxu0 0.0
    %964 = vmatpush1.msra.mxu0 0.0
    %965 = vmatprep.subr.mxu0 0.0
    %966 = vmatpush1.msra.mxu0 0.0
    %967 = vmatprep.subr.mxu0 0.0
    %968 = vmatpush1.msra.mxu0 0.0
    %969 = vmatprep.subr.mxu0 0.0
    %970 = vmatpush1.msra.mxu0 0.0
    %971 = vmatprep.subr.mxu0 0.0
    %972 = vmatpush1.msra.mxu0 0.0
    %973 = vmatprep.mubr.f32.mxu0 0.0
    %v974 = vand.u32 %v796, 4294901760
    %975 = vmatmul.mubr.f32.gmra.mrb[0].mxu0 %v974
    %v976 = vpop.f32.mrb[0].mxu0
    %v977 = vadd.f32 %v876, %v976
    %v978 = vpop.f32.mrb[0].mxu0
    %979 = vdwg.mxu0
    %980 = vmatprep.subr.mxu0 0.0
    %v981 = vand.u32 %v782, 4294901760
    %v982 = vsub.f32 %v782, %v981
    %983 = vmatpush1.msra.mxu0 %v982
    %984 = vmatprep.subr.mxu0 0.0
    %v985 = vand.u32 %v783, 4294901760
    %v986 = vsub.f32 %v783, %v985
    %987 = vmatpush1.msra.mxu0 %v986
    %988 = vmatprep.subr.mxu0 0.0
    %v989 = vand.u32 %v784, 4294901760
    %v990 = vsub.f32 %v784, %v989
    %991 = vmatpush1.msra.mxu0 %v990
    %992 = vmatprep.subr.mxu0 0.0
    %v993 = vand.u32 %v785, 4294901760
    %v994 = vsub.f32 %v785, %v993
    %995 = vmatpush1.msra.mxu0 %v994
    %996 = vmatprep.subr.mxu0 0.0
    %v997 = vand.u32 %v786, 4294901760
    %v998 = vsub.f32 %v786, %v997
    %999 = vmatpush1.msra.mxu0 %v998
    %1000 = vmatprep.subr.mxu0 0.0
    %v1001 = vand.u32 %v787, 4294901760
    %v1002 = vsub.f32 %v787, %v1001
    %1003 = vmatpush1.msra.mxu0 %v1002
    %1004 = vmatprep.subr.mxu0 0.0
    %1005 = vmatpush1.msra.mxu0 0.0
    %1006 = vmatprep.subr.mxu0 0.0
    %1007 = vmatpush1.msra.mxu0 0.0
    %1008 = vmatprep.subr.mxu0 0.0
    %1009 = vmatpush1.msra.mxu0 0.0
    %1010 = vmatprep.subr.mxu0 0.0
    %1011 = vmatpush1.msra.mxu0 0.0
    %1012 = vmatprep.subr.mxu0 0.0
    %1013 = vmatpush1.msra.mxu0 0.0
    %1014 = vmatprep.subr.mxu0 0.0
    %1015 = vmatpush1.msra.mxu0 0.0
    %1016 = vmatprep.subr.mxu0 0.0
    %1017 = vmatpush1.msra.mxu0 0.0
    %1018 = vmatprep.subr.mxu0 0.0
    %1019 = vmatpush1.msra.mxu0 0.0
    %1020 = vmatprep.subr.mxu0 0.0
    %1021 = vmatpush1.msra.mxu0 0.0
    %1022 = vmatprep.subr.mxu0 0.0
    %1023 = vmatpush1.msra.mxu0 0.0
    %1024 = vmatprep.subr.mxu0 0.0
    %1025 = vmatpush1.msra.mxu0 0.0
    %1026 = vmatprep.subr.mxu0 0.0
    %1027 = vmatpush1.msra.mxu0 0.0
    %1028 = vmatprep.subr.mxu0 0.0
    %1029 = vmatpush1.msra.mxu0 0.0
    %1030 = vmatprep.subr.mxu0 0.0
    %1031 = vmatpush1.msra.mxu0 0.0
    %1032 = vmatprep.subr.mxu0 0.0
    %1033 = vmatpush1.msra.mxu0 0.0
    %1034 = vmatprep.subr.mxu0 0.0
    %1035 = vmatpush1.msra.mxu0 0.0
    %1036 = vmatprep.subr.mxu0 0.0
    %1037 = vmatpush1.msra.mxu0 0.0
    %1038 = vmatprep.subr.mxu0 0.0
    %1039 = vmatpush1.msra.mxu0 0.0
    %1040 = vmatprep.subr.mxu0 0.0
    %1041 = vmatpush1.msra.mxu0 0.0
    %1042 = vmatprep.subr.mxu0 0.0
    %1043 = vmatpush1.msra.mxu0 0.0
    %1044 = vmatprep.subr.mxu0 0.0
    %1045 = vmatpush1.msra.mxu0 0.0
    %1046 = vmatprep.subr.mxu0 0.0
    %1047 = vmatpush1.msra.mxu0 0.0
    %1048 = vmatprep.subr.mxu0 0.0
    %1049 = vmatpush1.msra.mxu0 0.0
    %1050 = vmatprep.subr.mxu0 0.0
    %1051 = vmatpush1.msra.mxu0 0.0
    %1052 = vmatprep.subr.mxu0 0.0
    %1053 = vmatpush1.msra.mxu0 0.0
    %1054 = vmatprep.subr.mxu0 0.0
    %1055 = vmatpush1.msra.mxu0 0.0
    %1056 = vmatprep.mubr.f32.mxu0 0.0
    %v1057 = vand.u32 %v796, 4294901760
    %v1058 = vsub.f32 %v796, %v1057
    %1059 = vmatmul.mubr.f32.gmra.mrb[0].mxu0 %v1058
    %v1060 = vpop.f32.mrb[0].mxu0
    %v1061 = vadd.f32 %v977, %v1060
    %v1062 = vpop.f32.mrb[0].mxu0
    %1063 = vdwg.mxu0
    %1064 = vmatprep.subr.mxu0 0.0
    %v1065 = vand.u32 %v782, 4294901760
    %1066 = vmatpush1.msra.mxu0 %v1065
    %1067 = vmatprep.subr.mxu0 0.0
    %v1068 = vand.u32 %v783, 4294901760
    %1069 = vmatpush1.msra.mxu0 %v1068
    %1070 = vmatprep.subr.mxu0 0.0
    %v1071 = vand.u32 %v784, 4294901760
    %1072 = vmatpush1.msra.mxu0 %v1071
    %1073 = vmatprep.subr.mxu0 0.0
    %v1074 = vand.u32 %v785, 4294901760
    %1075 = vmatpush1.msra.mxu0 %v1074
    %1076 = vmatprep.subr.mxu0 0.0
    %v1077 = vand.u32 %v786, 4294901760
    %1078 = vmatpush1.msra.mxu0 %v1077
    %1079 = vmatprep.subr.mxu0 0.0
    %v1080 = vand.u32 %v787, 4294901760
    %1081 = vmatpush1.msra.mxu0 %v1080
    %1082 = vmatprep.subr.mxu0 0.0
    %1083 = vmatpush1.msra.mxu0 0.0
    %1084 = vmatprep.subr.mxu0 0.0
    %1085 = vmatpush1.msra.mxu0 0.0
    %1086 = vmatprep.subr.mxu0 0.0
    %1087 = vmatpush1.msra.mxu0 0.0
    %1088 = vmatprep.subr.mxu0 0.0
    %1089 = vmatpush1.msra.mxu0 0.0
    %1090 = vmatprep.subr.mxu0 0.0
    %1091 = vmatpush1.msra.mxu0 0.0
    %1092 = vmatprep.subr.mxu0 0.0
    %1093 = vmatpush1.msra.mxu0 0.0
    %1094 = vmatprep.subr.mxu0 0.0
    %1095 = vmatpush1.msra.mxu0 0.0
    %1096 = vmatprep.subr.mxu0 0.0
    %1097 = vmatpush1.msra.mxu0 0.0
    %1098 = vmatprep.subr.mxu0 0.0
    %1099 = vmatpush1.msra.mxu0 0.0
    %1100 = vmatprep.subr.mxu0 0.0
    %1101 = vmatpush1.msra.mxu0 0.0
    %1102 = vmatprep.subr.mxu0 0.0
    %1103 = vmatpush1.msra.mxu0 0.0
    %1104 = vmatprep.subr.mxu0 0.0
    %1105 = vmatpush1.msra.mxu0 0.0
    %1106 = vmatprep.subr.mxu0 0.0
    %1107 = vmatpush1.msra.mxu0 0.0
    %1108 = vmatprep.subr.mxu0 0.0
    %1109 = vmatpush1.msra.mxu0 0.0
    %1110 = vmatprep.subr.mxu0 0.0
    %1111 = vmatpush1.msra.mxu0 0.0
    %1112 = vmatprep.subr.mxu0 0.0
    %1113 = vmatpush1.msra.mxu0 0.0
    %1114 = vmatprep.subr.mxu0 0.0
    %1115 = vmatpush1.msra.mxu0 0.0
    %1116 = vmatprep.subr.mxu0 0.0
    %1117 = vmatpush1.msra.mxu0 0.0
    %1118 = vmatprep.subr.mxu0 0.0
    %1119 = vmatpush1.msra.mxu0 0.0
    %1120 = vmatprep.subr.mxu0 0.0
    %1121 = vmatpush1.msra.mxu0 0.0
    %1122 = vmatprep.subr.mxu0 0.0
    %1123 = vmatpush1.msra.mxu0 0.0
    %1124 = vmatprep.subr.mxu0 0.0
    %1125 = vmatpush1.msra.mxu0 0.0
    %1126 = vmatprep.subr.mxu0 0.0
    %1127 = vmatpush1.msra.mxu0 0.0
    %1128 = vmatprep.subr.mxu0 0.0
    %1129 = vmatpush1.msra.mxu0 0.0
    %1130 = vmatprep.subr.mxu0 0.0
    %1131 = vmatpush1.msra.mxu0 0.0
    %1132 = vmatprep.subr.mxu0 0.0
    %1133 = vmatpush1.msra.mxu0 0.0
    %1134 = vmatprep.mubr.f32.mxu0 0.0
    %v1135 = vand.u32 %v796, 4294901760
    %v1136 = vsub.f32 %v796, %v1135
    %v1137 = vand.u32 %v1136, 4294901760
    %1138 = vmatmul.mubr.f32.gmra.mrb[0].mxu0 %v1137
    %v1139 = vpop.f32.mrb[0].mxu0
    %v1140 = vadd.f32 %v1061, %v1139
    %v1141 = vpop.f32.mrb[0].mxu0
    %1142 = vdwg.mxu0
    %1143 = vmatprep.subr.mxu0 0.0
    %v1144 = vand.u32 %v782, 4294901760
    %v1145 = vsub.f32 %v782, %v1144
    %v1146 = vand.u32 %v1145, 4294901760
    %1147 = vmatpush1.msra.mxu0 %v1146
    %1148 = vmatprep.subr.mxu0 0.0
    %v1149 = vand.u32 %v783, 4294901760
    %v1150 = vsub.f32 %v783, %v1149
    %v1151 = vand.u32 %v1150, 4294901760
    %1152 = vmatpush1.msra.mxu0 %v1151
    %1153 = vmatprep.subr.mxu0 0.0
    %v1154 = vand.u32 %v784, 4294901760
    %v1155 = vsub.f32 %v784, %v1154
    %v1156 = vand.u32 %v1155, 4294901760
    %1157 = vmatpush1.msra.mxu0 %v1156
    %1158 = vmatprep.subr.mxu0 0.0
    %v1159 = vand.u32 %v785, 4294901760
    %v1160 = vsub.f32 %v785, %v1159
    %v1161 = vand.u32 %v1160, 4294901760
    %1162 = vmatpush1.msra.mxu0 %v1161
    %1163 = vmatprep.subr.mxu0 0.0
    %v1164 = vand.u32 %v786, 4294901760
    %v1165 = vsub.f32 %v786, %v1164
    %v1166 = vand.u32 %v1165, 4294901760
    %1167 = vmatpush1.msra.mxu0 %v1166
    %1168 = vmatprep.subr.mxu0 0.0
    %v1169 = vand.u32 %v787, 4294901760
    %v1170 = vsub.f32 %v787, %v1169
    %v1171 = vand.u32 %v1170, 4294901760
    %1172 = vmatpush1.msra.mxu0 %v1171
    %1173 = vmatprep.subr.mxu0 0.0
    %1174 = vmatpush1.msra.mxu0 0.0
    %1175 = vmatprep.subr.mxu0 0.0
    %1176 = vmatpush1.msra.mxu0 0.0
    %1177 = vmatprep.subr.mxu0 0.0
    %1178 = vmatpush1.msra.mxu0 0.0
    %1179 = vmatprep.subr.mxu0 0.0
    %1180 = vmatpush1.msra.mxu0 0.0
    %1181 = vmatprep.subr.mxu0 0.0
    %1182 = vmatpush1.msra.mxu0 0.0
    %1183 = vmatprep.subr.mxu0 0.0
    %1184 = vmatpush1.msra.mxu0 0.0
    %1185 = vmatprep.subr.mxu0 0.0
    %1186 = vmatpush1.msra.mxu0 0.0
    %1187 = vmatprep.subr.mxu0 0.0
    %1188 = vmatpush1.msra.mxu0 0.0
    %1189 = vmatprep.subr.mxu0 0.0
    %1190 = vmatpush1.msra.mxu0 0.0
    %1191 = vmatprep.subr.mxu0 0.0
    %1192 = vmatpush1.msra.mxu0 0.0
    %1193 = vmatprep.subr.mxu0 0.0
    %1194 = vmatpush1.msra.mxu0 0.0
    %1195 = vmatprep.subr.mxu0 0.0
    %1196 = vmatpush1.msra.mxu0 0.0
    %1197 = vmatprep.subr.mxu0 0.0
    %1198 = vmatpush1.msra.mxu0 0.0
    %1199 = vmatprep.subr.mxu0 0.0
    %1200 = vmatpush1.msra.mxu0 0.0
    %1201 = vmatprep.subr.mxu0 0.0
    %1202 = vmatpush1.msra.mxu0 0.0
    %1203 = vmatprep.subr.mxu0 0.0
    %1204 = vmatpush1.msra.mxu0 0.0
    %1205 = vmatprep.subr.mxu0 0.0
    %1206 = vmatpush1.msra.mxu0 0.0
    %1207 = vmatprep.subr.mxu0 0.0
    %1208 = vmatpush1.msra.mxu0 0.0
    %1209 = vmatprep.subr.mxu0 0.0
    %1210 = vmatpush1.msra.mxu0 0.0
    %1211 = vmatprep.subr.mxu0 0.0
    %1212 = vmatpush1.msra.mxu0 0.0
    %1213 = vmatprep.subr.mxu0 0.0
    %1214 = vmatpush1.msra.mxu0 0.0
    %1215 = vmatprep.subr.mxu0 0.0
    %1216 = vmatpush1.msra.mxu0 0.0
    %1217 = vmatprep.subr.mxu0 0.0
    %1218 = vmatpush1.msra.mxu0 0.0
    %1219 = vmatprep.subr.mxu0 0.0
    %1220 = vmatpush1.msra.mxu0 0.0
    %1221 = vmatprep.subr.mxu0 0.0
    %1222 = vmatpush1.msra.mxu0 0.0
    %1223 = vmatprep.subr.mxu0 0.0
    %1224 = vmatpush1.msra.mxu0 0.0
    %1225 = vmatprep.mubr.f32.mxu0 0.0
    %v1226 = vand.u32 %v796, 4294901760
    %1227 = vmatmul.mubr.f32.gmra.mrb[0].mxu0 %v1226
    %v1228 = vpop.f32.mrb[0].mxu0
    %v1229 = vadd.f32 %v1140, %v1228
    %v1230 = vpop.f32.mrb[0].mxu0
    %1231 = vdwg.mxu0
    %1232 = vmatprep.subr.mxu0 0.0
    %v1233 = vand.u32 %v782, 4294901760
    %1234 = vmatpush1.msra.mxu0 %v1233
    %1235 = vmatprep.subr.mxu0 0.0
    %v1236 = vand.u32 %v783, 4294901760
    %1237 = vmatpush1.msra.mxu0 %v1236
    %1238 = vmatprep.subr.mxu0 0.0
    %v1239 = vand.u32 %v784, 4294901760
    %1240 = vmatpush1.msra.mxu0 %v1239
    %1241 = vmatprep.subr.mxu0 0.0
    %v1242 = vand.u32 %v785, 4294901760
    %1243 = vmatpush1.msra.mxu0 %v1242
    %1244 = vmatprep.subr.mxu0 0.0
    %v1245 = vand.u32 %v786, 4294901760
    %1246 = vmatpush1.msra.mxu0 %v1245
    %1247 = vmatprep.subr.mxu0 0.0
    %v1248 = vand.u32 %v787, 4294901760
    %1249 = vmatpush1.msra.mxu0 %v1248
    %1250 = vmatprep.subr.mxu0 0.0
    %1251 = vmatpush1.msra.mxu0 0.0
    %1252 = vmatprep.subr.mxu0 0.0
    %1253 = vmatpush1.msra.mxu0 0.0
    %1254 = vmatprep.subr.mxu0 0.0
    %1255 = vmatpush1.msra.mxu0 0.0
    %1256 = vmatprep.subr.mxu0 0.0
    %1257 = vmatpush1.msra.mxu0 0.0
    %1258 = vmatprep.subr.mxu0 0.0
    %1259 = vmatpush1.msra.mxu0 0.0
    %1260 = vmatprep.subr.mxu0 0.0
    %1261 = vmatpush1.msra.mxu0 0.0
    %1262 = vmatprep.subr.mxu0 0.0
    %1263 = vmatpush1.msra.mxu0 0.0
    %1264 = vmatprep.subr.mxu0 0.0
    %1265 = vmatpush1.msra.mxu0 0.0
    %1266 = vmatprep.subr.mxu0 0.0
    %1267 = vmatpush1.msra.mxu0 0.0
    %1268 = vmatprep.subr.mxu0 0.0
    %1269 = vmatpush1.msra.mxu0 0.0
    %1270 = vmatprep.subr.mxu0 0.0
    %1271 = vmatpush1.msra.mxu0 0.0
    %1272 = vmatprep.subr.mxu0 0.0
    %1273 = vmatpush1.msra.mxu0 0.0
    %1274 = vmatprep.subr.mxu0 0.0
    %1275 = vmatpush1.msra.mxu0 0.0
    %1276 = vmatprep.subr.mxu0 0.0
    %1277 = vmatpush1.msra.mxu0 0.0
    %1278 = vmatprep.subr.mxu0 0.0
    %1279 = vmatpush1.msra.mxu0 0.0
    %1280 = vmatprep.subr.mxu0 0.0
    %1281 = vmatpush1.msra.mxu0 0.0
    %1282 = vmatprep.subr.mxu0 0.0
    %1283 = vmatpush1.msra.mxu0 0.0
    %1284 = vmatprep.subr.mxu0 0.0
    %1285 = vmatpush1.msra.mxu0 0.0
    %1286 = vmatprep.subr.mxu0 0.0
    %1287 = vmatpush1.msra.mxu0 0.0
    %1288 = vmatprep.subr.mxu0 0.0
    %1289 = vmatpush1.msra.mxu0 0.0
    %1290 = vmatprep.subr.mxu0 0.0
    %1291 = vmatpush1.msra.mxu0 0.0
    %1292 = vmatprep.subr.mxu0 0.0
    %1293 = vmatpush1.msra.mxu0 0.0
    %1294 = vmatprep.subr.mxu0 0.0
    %1295 = vmatpush1.msra.mxu0 0.0
    %1296 = vmatprep.subr.mxu0 0.0
    %1297 = vmatpush1.msra.mxu0 0.0
    %1298 = vmatprep.subr.mxu0 0.0
    %1299 = vmatpush1.msra.mxu0 0.0
    %1300 = vmatprep.subr.mxu0 0.0
    %1301 = vmatpush1.msra.mxu0 0.0
    %1302 = vmatprep.mubr.f32.mxu0 0.0
    %v1303 = vand.u32 %v796, 4294901760
    %1304 = vmatmul.mubr.f32.gmra.mrb[0].mxu0 %v1303
    %v1305 = vpop.f32.mrb[0].mxu0
    %v1306 = vadd.f32 %v1229, %v1305
    %v1307 = vpop.f32.mrb[0].mxu0
    %1308 = vdwg.mxu0
    %v1309 = vadd.f32 %v793, %v1306
    %v1310 = vxor.u32 %v1309, 2147483648
    %v1311 = vmul.f32 %v1310, 1.442695
    %v1312 = vpow.pop %v1311
    %v1313 = vadd.f32 %v1312, 1.0
    %v1314 = vrcp.pop %v1313
    %v1315 = vmul.f32 1.0, %v1314
    %1317 = vrot.lane.b32.xlu0 %v1315, 96
    %v1318 = vpop.permute.xlu0 %1317
    %v1320 = vmul.f32 %v1315, %v1318
    %1322 = vrot.lane.b32.xlu0 %v1320, 64
    %v1323 = vpop.permute.xlu0 %1322
    %v1325 = vadd.f32 %v1315, %v1323
    %v1326 = vtanh.pop %v1325
    %1328 = vrot.lane.b32.xlu0 %v1326, 32
    %v1329 = vpop.permute.xlu0 %1328
    %v1331 = vmul.f32 %v1315, %v1329
    %1333 = vrot.lane.b32.xlu0 %v1331, 48
    %v1334 = vpop.permute.xlu0 %1333
    %v1336 = vadd.f32 %v792, %v1334
    %1338 = vrot.lane.b32.xlu0 %v1325, 64
    %v1339 = vpop.permute.xlu0 %1338
    %vm1340 = vcmask 261120
    %v1341 = vsel %vm1340, %v1339, 0
    %1343 = vmatprep.subr.mxu0 0.0
    %v1344 = vand.u32 %v788, 4294901760
    %1345 = vmatpush1.msra.mxu0 %v1344
    %1346 = vmatprep.subr.mxu0 0.0
    %v1347 = vand.u32 %v789, 4294901760
    %1348 = vmatpush1.msra.mxu0 %v1347
    %1349 = vmatprep.subr.mxu0 0.0
    %v1350 = vand.u32 %v790, 4294901760
    %1351 = vmatpush1.msra.mxu0 %v1350
    %1352 = vmatprep.subr.mxu0 0.0
    %v1353 = vand.u32 %v791, 4294901760
    %1354 = vmatpush1.msra.mxu0 %v1353
    %1355 = vmatprep.subr.mxu0 0.0
    %1356 = vmatpush1.msra.mxu0 0.0
    %1357 = vmatprep.subr.mxu0 0.0
    %1358 = vmatpush1.msra.mxu0 0.0
    %1359 = vmatprep.subr.mxu0 0.0
    %1360 = vmatpush1.msra.mxu0 0.0
    %1361 = vmatprep.subr.mxu0 0.0
    %1362 = vmatpush1.msra.mxu0 0.0
    %1363 = vmatprep.subr.mxu0 0.0
    %1364 = vmatpush1.msra.mxu0 0.0
    %1365 = vmatprep.subr.mxu0 0.0
    %1366 = vmatpush1.msra.mxu0 0.0
    %1367 = vmatprep.subr.mxu0 0.0
    %1368 = vmatpush1.msra.mxu0 0.0
    %1369 = vmatprep.subr.mxu0 0.0
    %1370 = vmatpush1.msra.mxu0 0.0
    %1371 = vmatprep.subr.mxu0 0.0
    %1372 = vmatpush1.msra.mxu0 0.0
    %1373 = vmatprep.subr.mxu0 0.0
    %1374 = vmatpush1.msra.mxu0 0.0
    %1375 = vmatprep.subr.mxu0 0.0
    %1376 = vmatpush1.msra.mxu0 0.0
    %1377 = vmatprep.subr.mxu0 0.0
    %1378 = vmatpush1.msra.mxu0 0.0
    %1379 = vmatprep.subr.mxu0 0.0
    %1380 = vmatpush1.msra.mxu0 0.0
    %1381 = vmatprep.subr.mxu0 0.0
    %1382 = vmatpush1.msra.mxu0 0.0
    %1383 = vmatprep.subr.mxu0 0.0
    %1384 = vmatpush1.msra.mxu0 0.0
    %1385 = vmatprep.subr.mxu0 0.0
    %1386 = vmatpush1.msra.mxu0 0.0
    %1387 = vmatprep.subr.mxu0 0.0
    %1388 = vmatpush1.msra.mxu0 0.0
    %1389 = vmatprep.subr.mxu0 0.0
    %1390 = vmatpush1.msra.mxu0 0.0
    %1391 = vmatprep.subr.mxu0 0.0
    %1392 = vmatpush1.msra.mxu0 0.0
    %1393 = vmatprep.subr.mxu0 0.0
    %1394 = vmatpush1.msra.mxu0 0.0
    %1395 = vmatprep.subr.mxu0 0.0
    %1396 = vmatpush1.msra.mxu0 0.0
    %1397 = vmatprep.subr.mxu0 0.0
    %1398 = vmatpush1.msra.mxu0 0.0
    %1399 = vmatprep.subr.mxu0 0.0
    %1400 = vmatpush1.msra.mxu0 0.0
    %1401 = vmatprep.subr.mxu0 0.0
    %1402 = vmatpush1.msra.mxu0 0.0
    %1403 = vmatprep.subr.mxu0 0.0
    %1404 = vmatpush1.msra.mxu0 0.0
    %1405 = vmatprep.subr.mxu0 0.0
    %1406 = vmatpush1.msra.mxu0 0.0
    %1407 = vmatprep.subr.mxu0 0.0
    %1408 = vmatpush1.msra.mxu0 0.0
    %1409 = vmatprep.subr.mxu0 0.0
    %1410 = vmatpush1.msra.mxu0 0.0
    %1411 = vmatprep.mubr.f32.mxu0 0.0
    %v1412 = vand.u32 %v1341, 4294901760
    %v1413 = vsub.f32 %v1341, %v1412
    %v1414 = vand.u32 %v1413, 4294901760
    %v1415 = vsub.f32 %v1413, %v1414
    %v1416 = vand.u32 %v1415, 4294901760
    %1417 = vmatmul.mubr.f32.gmra.mrb[0].mxu0 %v1416
    %v1418 = vpop.f32.mrb[0].mxu0
    %v1419 = vadd.f32 0.0, %v1418
    %v1420 = vpop.f32.mrb[0].mxu0
    %1421 = vdwg.mxu0
    %1422 = vmatprep.subr.mxu0 0.0
    %v1423 = vand.u32 %v788, 4294901760
    %v1424 = vsub.f32 %v788, %v1423
    %v1425 = vand.u32 %v1424, 4294901760
    %v1426 = vsub.f32 %v1424, %v1425
    %v1427 = vand.u32 %v1426, 4294901760
    %1428 = vmatpush1.msra.mxu0 %v1427
    %1429 = vmatprep.subr.mxu0 0.0
    %v1430 = vand.u32 %v789, 4294901760
    %v1431 = vsub.f32 %v789, %v1430
    %v1432 = vand.u32 %v1431, 4294901760
    %v1433 = vsub.f32 %v1431, %v1432
    %v1434 = vand.u32 %v1433, 4294901760
    %1435 = vmatpush1.msra.mxu0 %v1434
    %1436 = vmatprep.subr.mxu0 0.0
    %v1437 = vand.u32 %v790, 4294901760
    %v1438 = vsub.f32 %v790, %v1437
    %v1439 = vand.u32 %v1438, 4294901760
    %v1440 = vsub.f32 %v1438, %v1439
    %v1441 = vand.u32 %v1440, 4294901760
    %1442 = vmatpush1.msra.mxu0 %v1441
    %1443 = vmatprep.subr.mxu0 0.0
    %v1444 = vand.u32 %v791, 4294901760
    %v1445 = vsub.f32 %v791, %v1444
    %v1446 = vand.u32 %v1445, 4294901760
    %v1447 = vsub.f32 %v1445, %v1446
    %v1448 = vand.u32 %v1447, 4294901760
    %1449 = vmatpush1.msra.mxu0 %v1448
    %1450 = vmatprep.subr.mxu0 0.0
    %1451 = vmatpush1.msra.mxu0 0.0
    %1452 = vmatprep.subr.mxu0 0.0
    %1453 = vmatpush1.msra.mxu0 0.0
    %1454 = vmatprep.subr.mxu0 0.0
    %1455 = vmatpush1.msra.mxu0 0.0
    %1456 = vmatprep.subr.mxu0 0.0
    %1457 = vmatpush1.msra.mxu0 0.0
    %1458 = vmatprep.subr.mxu0 0.0
    %1459 = vmatpush1.msra.mxu0 0.0
    %1460 = vmatprep.subr.mxu0 0.0
    %1461 = vmatpush1.msra.mxu0 0.0
    %1462 = vmatprep.subr.mxu0 0.0
    %1463 = vmatpush1.msra.mxu0 0.0
    %1464 = vmatprep.subr.mxu0 0.0
    %1465 = vmatpush1.msra.mxu0 0.0
    %1466 = vmatprep.subr.mxu0 0.0
    %1467 = vmatpush1.msra.mxu0 0.0
    %1468 = vmatprep.subr.mxu0 0.0
    %1469 = vmatpush1.msra.mxu0 0.0
    %1470 = vmatprep.subr.mxu0 0.0
    %1471 = vmatpush1.msra.mxu0 0.0
    %1472 = vmatprep.subr.mxu0 0.0
    %1473 = vmatpush1.msra.mxu0 0.0
    %1474 = vmatprep.subr.mxu0 0.0
    %1475 = vmatpush1.msra.mxu0 0.0
    %1476 = vmatprep.subr.mxu0 0.0
    %1477 = vmatpush1.msra.mxu0 0.0
    %1478 = vmatprep.subr.mxu0 0.0
    %1479 = vmatpush1.msra.mxu0 0.0
    %1480 = vmatprep.subr.mxu0 0.0
    %1481 = vmatpush1.msra.mxu0 0.0
    %1482 = vmatprep.subr.mxu0 0.0
    %1483 = vmatpush1.msra.mxu0 0.0
    %1484 = vmatprep.subr.mxu0 0.0
    %1485 = vmatpush1.msra.mxu0 0.0
    %1486 = vmatprep.subr.mxu0 0.0
    %1487 = vmatpush1.msra.mxu0 0.0
    %1488 = vmatprep.subr.mxu0 0.0
    %1489 = vmatpush1.msra.mxu0 0.0
    %1490 = vmatprep.subr.mxu0 0.0
    %1491 = vmatpush1.msra.mxu0 0.0
    %1492 = vmatprep.subr.mxu0 0.0
    %1493 = vmatpush1.msra.mxu0 0.0
    %1494 = vmatprep.subr.mxu0 0.0
    %1495 = vmatpush1.msra.mxu0 0.0
    %1496 = vmatprep.subr.mxu0 0.0
    %1497 = vmatpush1.msra.mxu0 0.0
    %1498 = vmatprep.subr.mxu0 0.0
    %1499 = vmatpush1.msra.mxu0 0.0
    %1500 = vmatprep.subr.mxu0 0.0
    %1501 = vmatpush1.msra.mxu0 0.0
    %1502 = vmatprep.subr.mxu0 0.0
    %1503 = vmatpush1.msra.mxu0 0.0
    %1504 = vmatprep.subr.mxu0 0.0
    %1505 = vmatpush1.msra.mxu0 0.0
    %1506 = vmatprep.mubr.f32.mxu0 0.0
    %v1507 = vand.u32 %v1341, 4294901760
    %1508 = vmatmul.mubr.f32.gmra.mrb[0].mxu0 %v1507
    %v1509 = vpop.f32.mrb[0].mxu0
    %v1510 = vadd.f32 %v1419, %v1509
    %v1511 = vpop.f32.mrb[0].mxu0
    %1512 = vdwg.mxu0
    %1513 = vmatprep.subr.mxu0 0.0
    %v1514 = vand.u32 %v788, 4294901760
    %v1515 = vsub.f32 %v788, %v1514
    %1516 = vmatpush1.msra.mxu0 %v1515
    %1517 = vmatprep.subr.mxu0 0.0
    %v1518 = vand.u32 %v789, 4294901760
    %v1519 = vsub.f32 %v789, %v1518
    %1520 = vmatpush1.msra.mxu0 %v1519
    %1521 = vmatprep.subr.mxu0 0.0
    %v1522 = vand.u32 %v790, 4294901760
    %v1523 = vsub.f32 %v790, %v1522
    %1524 = vmatpush1.msra.mxu0 %v1523
    %1525 = vmatprep.subr.mxu0 0.0
    %v1526 = vand.u32 %v791, 4294901760
    %v1527 = vsub.f32 %v791, %v1526
    %1528 = vmatpush1.msra.mxu0 %v1527
    %1529 = vmatprep.subr.mxu0 0.0
    %1530 = vmatpush1.msra.mxu0 0.0
    %1531 = vmatprep.subr.mxu0 0.0
    %1532 = vmatpush1.msra.mxu0 0.0
    %1533 = vmatprep.subr.mxu0 0.0
    %1534 = vmatpush1.msra.mxu0 0.0
    %1535 = vmatprep.subr.mxu0 0.0
    %1536 = vmatpush1.msra.mxu0 0.0
    %1537 = vmatprep.subr.mxu0 0.0
    %1538 = vmatpush1.msra.mxu0 0.0
    %1539 = vmatprep.subr.mxu0 0.0
    %1540 = vmatpush1.msra.mxu0 0.0
    %1541 = vmatprep.subr.mxu0 0.0
    %1542 = vmatpush1.msra.mxu0 0.0
    %1543 = vmatprep.subr.mxu0 0.0
    %1544 = vmatpush1.msra.mxu0 0.0
    %1545 = vmatprep.subr.mxu0 0.0
    %1546 = vmatpush1.msra.mxu0 0.0
    %1547 = vmatprep.subr.mxu0 0.0
    %1548 = vmatpush1.msra.mxu0 0.0
    %1549 = vmatprep.subr.mxu0 0.0
    %1550 = vmatpush1.msra.mxu0 0.0
    %1551 = vmatprep.subr.mxu0 0.0
    %1552 = vmatpush1.msra.mxu0 0.0
    %1553 = vmatprep.subr.mxu0 0.0
    %1554 = vmatpush1.msra.mxu0 0.0
    %1555 = vmatprep.subr.mxu0 0.0
    %1556 = vmatpush1.msra.mxu0 0.0
    %1557 = vmatprep.subr.mxu0 0.0
    %1558 = vmatpush1.msra.mxu0 0.0
    %1559 = vmatprep.subr.mxu0 0.0
    %1560 = vmatpush1.msra.mxu0 0.0
    %1561 = vmatprep.subr.mxu0 0.0
    %1562 = vmatpush1.msra.mxu0 0.0
    %1563 = vmatprep.subr.mxu0 0.0
    %1564 = vmatpush1.msra.mxu0 0.0
    %1565 = vmatprep.subr.mxu0 0.0
    %1566 = vmatpush1.msra.mxu0 0.0
    %1567 = vmatprep.subr.mxu0 0.0
    %1568 = vmatpush1.msra.mxu0 0.0
    %1569 = vmatprep.subr.mxu0 0.0
    %1570 = vmatpush1.msra.mxu0 0.0
    %1571 = vmatprep.subr.mxu0 0.0
    %1572 = vmatpush1.msra.mxu0 0.0
    %1573 = vmatprep.subr.mxu0 0.0
    %1574 = vmatpush1.msra.mxu0 0.0
    %1575 = vmatprep.subr.mxu0 0.0
    %1576 = vmatpush1.msra.mxu0 0.0
    %1577 = vmatprep.subr.mxu0 0.0
    %1578 = vmatpush1.msra.mxu0 0.0
    %1579 = vmatprep.subr.mxu0 0.0
    %1580 = vmatpush1.msra.mxu0 0.0
    %1581 = vmatprep.subr.mxu0 0.0
    %1582 = vmatpush1.msra.mxu0 0.0
    %1583 = vmatprep.subr.mxu0 0.0
    %1584 = vmatpush1.msra.mxu0 0.0
    %1585 = vmatprep.mubr.f32.mxu0 0.0
    %v1586 = vand.u32 %v1341, 4294901760
    %v1587 = vsub.f32 %v1341, %v1586
    %1588 = vmatmul.mubr.f32.gmra.mrb[0].mxu0 %v1587
    %v1589 = vpop.f32.mrb[0].mxu0
    %v1590 = vadd.f32 %v1510, %v1589
    %v1591 = vpop.f32.mrb[0].mxu0
    %1592 = vdwg.mxu0
    %1593 = vmatprep.subr.mxu0 0.0
    %v1594 = vand.u32 %v788, 4294901760
    %1595 = vmatpush1.msra.mxu0 %v1594
    %1596 = vmatprep.subr.mxu0 0.0
    %v1597 = vand.u32 %v789, 4294901760
    %1598 = vmatpush1.msra.mxu0 %v1597
    %1599 = vmatprep.subr.mxu0 0.0
    %v1600 = vand.u32 %v790, 4294901760
    %1601 = vmatpush1.msra.mxu0 %v1600
    %1602 = vmatprep.subr.mxu0 0.0
    %v1603 = vand.u32 %v791, 4294901760
    %1604 = vmatpush1.msra.mxu0 %v1603
    %1605 = vmatprep.subr.mxu0 0.0
    %1606 = vmatpush1.msra.mxu0 0.0
    %1607 = vmatprep.subr.mxu0 0.0
    %1608 = vmatpush1.msra.mxu0 0.0
    %1609 = vmatprep.subr.mxu0 0.0
    %1610 = vmatpush1.msra.mxu0 0.0
    %1611 = vmatprep.subr.mxu0 0.0
    %1612 = vmatpush1.msra.mxu0 0.0
    %1613 = vmatprep.subr.mxu0 0.0
    %1614 = vmatpush1.msra.mxu0 0.0
    %1615 = vmatprep.subr.mxu0 0.0
    %1616 = vmatpush1.msra.mxu0 0.0
    %1617 = vmatprep.subr.mxu0 0.0
    %1618 = vmatpush1.msra.mxu0 0.0
    %1619 = vmatprep.subr.mxu0 0.0
    %1620 = vmatpush1.msra.mxu0 0.0
    %1621 = vmatprep.subr.mxu0 0.0
    %1622 = vmatpush1.msra.mxu0 0.0
    %1623 = vmatprep.subr.mxu0 0.0
    %1624 = vmatpush1.msra.mxu0 0.0
    %1625 = vmatprep.subr.mxu0 0.0
    %1626 = vmatpush1.msra.mxu0 0.0
    %1627 = vmatprep.subr.mxu0 0.0
    %1628 = vmatpush1.msra.mxu0 0.0
    %1629 = vmatprep.subr.mxu0 0.0
    %1630 = vmatpush1.msra.mxu0 0.0
    %1631 = vmatprep.subr.mxu0 0.0
    %1632 = vmatpush1.msra.mxu0 0.0
    %1633 = vmatprep.subr.mxu0 0.0
    %1634 = vmatpush1.msra.mxu0 0.0
    %1635 = vmatprep.subr.mxu0 0.0
    %1636 = vmatpush1.msra.mxu0 0.0
    %1637 = vmatprep.subr.mxu0 0.0
    %1638 = vmatpush1.msra.mxu0 0.0
    %1639 = vmatprep.subr.mxu0 0.0
    %1640 = vmatpush1.msra.mxu0 0.0
    %1641 = vmatprep.subr.mxu0 0.0
    %1642 = vmatpush1.msra.mxu0 0.0
    %1643 = vmatprep.subr.mxu0 0.0
    %1644 = vmatpush1.msra.mxu0 0.0
    %1645 = vmatprep.subr.mxu0 0.0
    %1646 = vmatpush1.msra.mxu0 0.0
    %1647 = vmatprep.subr.mxu0 0.0
    %1648 = vmatpush1.msra.mxu0 0.0
    %1649 = vmatprep.subr.mxu0 0.0
    %1650 = vmatpush1.msra.mxu0 0.0
    %1651 = vmatprep.subr.mxu0 0.0
    %1652 = vmatpush1.msra.mxu0 0.0
    %1653 = vmatprep.subr.mxu0 0.0
    %1654 = vmatpush1.msra.mxu0 0.0
    %1655 = vmatprep.subr.mxu0 0.0
    %1656 = vmatpush1.msra.mxu0 0.0
    %1657 = vmatprep.subr.mxu0 0.0
    %1658 = vmatpush1.msra.mxu0 0.0
    %1659 = vmatprep.subr.mxu0 0.0
    %1660 = vmatpush1.msra.mxu0 0.0
    %1661 = vmatprep.mubr.f32.mxu0 0.0
    %v1662 = vand.u32 %v1341, 4294901760
    %v1663 = vsub.f32 %v1341, %v1662
    %v1664 = vand.u32 %v1663, 4294901760
    %1665 = vmatmul.mubr.f32.gmra.mrb[0].mxu0 %v1664
    %v1666 = vpop.f32.mrb[0].mxu0
    %v1667 = vadd.f32 %v1590, %v1666
    %v1668 = vpop.f32.mrb[0].mxu0
    %1669 = vdwg.mxu0
    %1670 = vmatprep.subr.mxu0 0.0
    %v1671 = vand.u32 %v788, 4294901760
    %v1672 = vsub.f32 %v788, %v1671
    %v1673 = vand.u32 %v1672, 4294901760
    %1674 = vmatpush1.msra.mxu0 %v1673
    %1675 = vmatprep.subr.mxu0 0.0
    %v1676 = vand.u32 %v789, 4294901760
    %v1677 = vsub.f32 %v789, %v1676
    %v1678 = vand.u32 %v1677, 4294901760
    %1679 = vmatpush1.msra.mxu0 %v1678
    %1680 = vmatprep.subr.mxu0 0.0
    %v1681 = vand.u32 %v790, 4294901760
    %v1682 = vsub.f32 %v790, %v1681
    %v1683 = vand.u32 %v1682, 4294901760
    %1684 = vmatpush1.msra.mxu0 %v1683
    %1685 = vmatprep.subr.mxu0 0.0
    %v1686 = vand.u32 %v791, 4294901760
    %v1687 = vsub.f32 %v791, %v1686
    %v1688 = vand.u32 %v1687, 4294901760
    %1689 = vmatpush1.msra.mxu0 %v1688
    %1690 = vmatprep.subr.mxu0 0.0
    %1691 = vmatpush1.msra.mxu0 0.0
    %1692 = vmatprep.subr.mxu0 0.0
    %1693 = vmatpush1.msra.mxu0 0.0
    %1694 = vmatprep.subr.mxu0 0.0
    %1695 = vmatpush1.msra.mxu0 0.0
    %1696 = vmatprep.subr.mxu0 0.0
    %1697 = vmatpush1.msra.mxu0 0.0
    %1698 = vmatprep.subr.mxu0 0.0
    %1699 = vmatpush1.msra.mxu0 0.0
    %1700 = vmatprep.subr.mxu0 0.0
    %1701 = vmatpush1.msra.mxu0 0.0
    %1702 = vmatprep.subr.mxu0 0.0
    %1703 = vmatpush1.msra.mxu0 0.0
    %1704 = vmatprep.subr.mxu0 0.0
    %1705 = vmatpush1.msra.mxu0 0.0
    %1706 = vmatprep.subr.mxu0 0.0
    %1707 = vmatpush1.msra.mxu0 0.0
    %1708 = vmatprep.subr.mxu0 0.0
    %1709 = vmatpush1.msra.mxu0 0.0
    %1710 = vmatprep.subr.mxu0 0.0
    %1711 = vmatpush1.msra.mxu0 0.0
    %1712 = vmatprep.subr.mxu0 0.0
    %1713 = vmatpush1.msra.mxu0 0.0
    %1714 = vmatprep.subr.mxu0 0.0
    %1715 = vmatpush1.msra.mxu0 0.0
    %1716 = vmatprep.subr.mxu0 0.0
    %1717 = vmatpush1.msra.mxu0 0.0
    %1718 = vmatprep.subr.mxu0 0.0
    %1719 = vmatpush1.msra.mxu0 0.0
    %1720 = vmatprep.subr.mxu0 0.0
    %1721 = vmatpush1.msra.mxu0 0.0
    %1722 = vmatprep.subr.mxu0 0.0
    %1723 = vmatpush1.msra.mxu0 0.0
    %1724 = vmatprep.subr.mxu0 0.0
    %1725 = vmatpush1.msra.mxu0 0.0
    %1726 = vmatprep.subr.mxu0 0.0
    %1727 = vmatpush1.msra.mxu0 0.0
    %1728 = vmatprep.subr.mxu0 0.0
    %1729 = vmatpush1.msra.mxu0 0.0
    %1730 = vmatprep.subr.mxu0 0.0
    %1731 = vmatpush1.msra.mxu0 0.0
    %1732 = vmatprep.subr.mxu0 0.0
    %1733 = vmatpush1.msra.mxu0 0.0
    %1734 = vmatprep.subr.mxu0 0.0
    %1735 = vmatpush1.msra.mxu0 0.0
    %1736 = vmatprep.subr.mxu0 0.0
    %1737 = vmatpush1.msra.mxu0 0.0
    %1738 = vmatprep.subr.mxu0 0.0
    %1739 = vmatpush1.msra.mxu0 0.0
    %1740 = vmatprep.subr.mxu0 0.0
    %1741 = vmatpush1.msra.mxu0 0.0
    %1742 = vmatprep.subr.mxu0 0.0
    %1743 = vmatpush1.msra.mxu0 0.0
    %1744 = vmatprep.subr.mxu0 0.0
    %1745 = vmatpush1.msra.mxu0 0.0
    %1746 = vmatprep.mubr.f32.mxu0 0.0
    %v1747 = vand.u32 %v1341, 4294901760
    %1748 = vmatmul.mubr.f32.gmra.mrb[0].mxu0 %v1747
    %v1749 = vpop.f32.mrb[0].mxu0
    %v1750 = vadd.f32 %v1667, %v1749
    %v1751 = vpop.f32.mrb[0].mxu0
    %1752 = vdwg.mxu0
    %1753 = vmatprep.subr.mxu0 0.0
    %v1754 = vand.u32 %v788, 4294901760
    %1755 = vmatpush1.msra.mxu0 %v1754
    %1756 = vmatprep.subr.mxu0 0.0
    %v1757 = vand.u32 %v789, 4294901760
    %1758 = vmatpush1.msra.mxu0 %v1757
    %1759 = vmatprep.subr.mxu0 0.0
    %v1760 = vand.u32 %v790, 4294901760
    %1761 = vmatpush1.msra.mxu0 %v1760
    %1762 = vmatprep.subr.mxu0 0.0
    %v1763 = vand.u32 %v791, 4294901760
    %1764 = vmatpush1.msra.mxu0 %v1763
    %1765 = vmatprep.subr.mxu0 0.0
    %1766 = vmatpush1.msra.mxu0 0.0
    %1767 = vmatprep.subr.mxu0 0.0
    %1768 = vmatpush1.msra.mxu0 0.0
    %1769 = vmatprep.subr.mxu0 0.0
    %1770 = vmatpush1.msra.mxu0 0.0
    %1771 = vmatprep.subr.mxu0 0.0
    %1772 = vmatpush1.msra.mxu0 0.0
    %1773 = vmatprep.subr.mxu0 0.0
    %1774 = vmatpush1.msra.mxu0 0.0
    %1775 = vmatprep.subr.mxu0 0.0
    %1776 = vmatpush1.msra.mxu0 0.0
    %1777 = vmatprep.subr.mxu0 0.0
    %1778 = vmatpush1.msra.mxu0 0.0
    %1779 = vmatprep.subr.mxu0 0.0
    %1780 = vmatpush1.msra.mxu0 0.0
    %1781 = vmatprep.subr.mxu0 0.0
    %1782 = vmatpush1.msra.mxu0 0.0
    %1783 = vmatprep.subr.mxu0 0.0
    %1784 = vmatpush1.msra.mxu0 0.0
    %1785 = vmatprep.subr.mxu0 0.0
    %1786 = vmatpush1.msra.mxu0 0.0
    %1787 = vmatprep.subr.mxu0 0.0
    %1788 = vmatpush1.msra.mxu0 0.0
    %1789 = vmatprep.subr.mxu0 0.0
    %1790 = vmatpush1.msra.mxu0 0.0
    %1791 = vmatprep.subr.mxu0 0.0
    %1792 = vmatpush1.msra.mxu0 0.0
    %1793 = vmatprep.subr.mxu0 0.0
    %1794 = vmatpush1.msra.mxu0 0.0
    %1795 = vmatprep.subr.mxu0 0.0
    %1796 = vmatpush1.msra.mxu0 0.0
    %1797 = vmatprep.subr.mxu0 0.0
    %1798 = vmatpush1.msra.mxu0 0.0
    %1799 = vmatprep.subr.mxu0 0.0
    %1800 = vmatpush1.msra.mxu0 0.0
    %1801 = vmatprep.subr.mxu0 0.0
    %1802 = vmatpush1.msra.mxu0 0.0
    %1803 = vmatprep.subr.mxu0 0.0
    %1804 = vmatpush1.msra.mxu0 0.0
    %1805 = vmatprep.subr.mxu0 0.0
    %1806 = vmatpush1.msra.mxu0 0.0
    %1807 = vmatprep.subr.mxu0 0.0
    %1808 = vmatpush1.msra.mxu0 0.0
    %1809 = vmatprep.subr.mxu0 0.0
    %1810 = vmatpush1.msra.mxu0 0.0
    %1811 = vmatprep.subr.mxu0 0.0
    %1812 = vmatpush1.msra.mxu0 0.0
    %1813 = vmatprep.subr.mxu0 0.0
    %1814 = vmatpush1.msra.mxu0 0.0
    %1815 = vmatprep.subr.mxu0 0.0
    %1816 = vmatpush1.msra.mxu0 0.0
    %1817 = vmatprep.subr.mxu0 0.0
    %1818 = vmatpush1.msra.mxu0 0.0
    %1819 = vmatprep.subr.mxu0 0.0
    %1820 = vmatpush1.msra.mxu0 0.0
    %1821 = vmatprep.mubr.f32.mxu0 0.0
    %v1822 = vand.u32 %v1341, 4294901760
    %1823 = vmatmul.mubr.f32.gmra.mrb[0].mxu0 %v1822
    %v1824 = vpop.f32.mrb[0].mxu0
    %v1825 = vadd.f32 %v1750, %v1824
    %v1826 = vpop.f32.mrb[0].mxu0
    %1827 = vdwg.mxu0
    %v1828 = vtanh.pop %v1825
    %1829 = vst.msk [vmem:[#allocation3] sm:$0xff] %vm74, %v1828
    %1830 = vst.msk [vmem:[#allocation3] sm:$0xff] %vm780, %v1336
    %1831 = vst.msk [vmem:[#allocation10] sm:$0xff] %vm74, %v1828
    %v1832 = vld [vmem:[#allocation3] sm:$0xff]
    %s1833 = scalar_lea.vmem [#allocation2], 8
    %v1834 = vld [vmem:[%s1833] sm:$0xff]
    %v1836 = vsel %vm794, %v1832, 0
    %1838 = vmatprep.subr.mxu0 0.0
    %v1839 = vand.u32 %v782, 4294901760
    %1840 = vmatpush1.msra.mxu0 %v1839
    %1841 = vmatprep.subr.mxu0 0.0
    %v1842 = vand.u32 %v783, 4294901760
    %1843 = vmatpush1.msra.mxu0 %v1842
    %1844 = vmatprep.subr.mxu0 0.0
    %v1845 = vand.u32 %v784, 4294901760
    %1846 = vmatpush1.msra.mxu0 %v1845
    %1847 = vmatprep.subr.mxu0 0.0
    %v1848 = vand.u32 %v785, 4294901760
    %1849 = vmatpush1.msra.mxu0 %v1848
    %1850 = vmatprep.subr.mxu0 0.0
    %v1851 = vand.u32 %v786, 4294901760
    %1852 = vmatpush1.msra.mxu0 %v1851
    %1853 = vmatprep.subr.mxu0 0.0
    %v1854 = vand.u32 %v787, 4294901760
    %1855 = vmatpush1.msra.mxu0 %v1854
    %1856 = vmatprep.subr.mxu0 0.0
    %1857 = vmatpush1.msra.mxu0 0.0
    %1858 = vmatprep.subr.mxu0 0.0
    %1859 = vmatpush1.msra.mxu0 0.0
    %1860 = vmatprep.subr.mxu0 0.0
    %1861 = vmatpush1.msra.mxu0 0.0
    %1862 = vmatprep.subr.mxu0 0.0
    %1863 = vmatpush1.msra.mxu0 0.0
    %1864 = vmatprep.subr.mxu0 0.0
    %1865 = vmatpush1.msra.mxu0 0.0
    %1866 = vmatprep.subr.mxu0 0.0
    %1867 = vmatpush1.msra.mxu0 0.0
    %1868 = vmatprep.subr.mxu0 0.0
    %1869 = vmatpush1.msra.mxu0 0.0
    %1870 = vmatprep.subr.mxu0 0.0
    %1871 = vmatpush1.msra.mxu0 0.0
    %1872 = vmatprep.subr.mxu0 0.0
    %1873 = vmatpush1.msra.mxu0 0.0
    %1874 = vmatprep.subr.mxu0 0.0
    %1875 = vmatpush1.msra.mxu0 0.0
    %1876 = vmatprep.subr.mxu0 0.0
    %1877 = vmatpush1.msra.mxu0 0.0
    %1878 = vmatprep.subr.mxu0 0.0
    %1879 = vmatpush1.msra.mxu0 0.0
    %1880 = vmatprep.subr.mxu0 0.0
    %1881 = vmatpush1.msra.mxu0 0.0
    %1882 = vmatprep.subr.mxu0 0.0
    %1883 = vmatpush1.msra.mxu0 0.0
    %1884 = vmatprep.subr.mxu0 0.0
    %1885 = vmatpush1.msra.mxu0 0.0
    %1886 = vmatprep.subr.mxu0 0.0
    %1887 = vmatpush1.msra.mxu0 0.0
    %1888 = vmatprep.subr.mxu0 0.0
    %1889 = vmatpush1.msra.mxu0 0.0
    %1890 = vmatprep.subr.mxu0 0.0
    %1891 = vmatpush1.msra.mxu0 0.0
    %1892 = vmatprep.subr.mxu0 0.0
    %1893 = vmatpush1.msra.mxu0 0.0
    %1894 = vmatprep.subr.mxu0 0.0
    %1895 = vmatpush1.msra.mxu0 0.0
    %1896 = vmatprep.subr.mxu0 0.0
    %1897 = vmatpush1.msra.mxu0 0.0
    %1898 = vmatprep.subr.mxu0 0.0
    %1899 = vmatpush1.msra.mxu0 0.0
    %1900 = vmatprep.subr.mxu0 0.0
    %1901 = vmatpush1.msra.mxu0 0.0
    %1902 = vmatprep.subr.mxu0 0.0
    %1903 = vmatpush1.msra.mxu0 0.0
    %1904 = vmatprep.subr.mxu0 0.0
    %1905 = vmatpush1.msra.mxu0 0.0
    %1906 = vmatprep.subr.mxu0 0.0
    %1907 = vmatpush1.msra.mxu0 0.0
    %1908 = vmatprep.mubr.f32.mxu0 0.0
    %v1909 = vand.u32 %v1836, 4294901760
    %v1910 = vsub.f32 %v1836, %v1909
    %v1911 = vand.u32 %v1910, 4294901760
    %v1912 = vsub.f32 %v1910, %v1911
    %v1913 = vand.u32 %v1912, 4294901760
    %1914 = vmatmul.mubr.f32.gmra.mrb[0].mxu0 %v1913
    %v1915 = vpop.f32.mrb[0].mxu0
    %v1916 = vadd.f32 0.0, %v1915
    %v1917 = vpop.f32.mrb[0].mxu0
    %1918 = vdwg.mxu0
    %1919 = vmatprep.subr.mxu0 0.0
    %v1920 = vand.u32 %v782, 4294901760
    %v1921 = vsub.f32 %v782, %v1920
    %v1922 = vand.u32 %v1921, 4294901760
    %v1923 = vsub.f32 %v1921, %v1922
    %v1924 = vand.u32 %v1923, 4294901760
    %1925 = vmatpush1.msra.mxu0 %v1924
    %1926 = vmatprep.subr.mxu0 0.0
    %v1927 = vand.u32 %v783, 4294901760
    %v1928 = vsub.f32 %v783, %v1927
    %v1929 = vand.u32 %v1928, 4294901760
    %v1930 = vsub.f32 %v1928, %v1929
    %v1931 = vand.u32 %v1930, 4294901760
    %1932 = vmatpush1.msra.mxu0 %v1931
    %1933 = vmatprep.subr.mxu0 0.0
    %v1934 = vand.u32 %v784, 4294901760
    %v1935 = vsub.f32 %v784, %v1934
    %v1936 = vand.u32 %v1935, 4294901760
    %v1937 = vsub.f32 %v1935, %v1936
    %v1938 = vand.u32 %v1937, 4294901760
    %1939 = vmatpush1.msra.mxu0 %v1938
    %1940 = vmatprep.subr.mxu0 0.0
    %v1941 = vand.u32 %v785, 4294901760
    %v1942 = vsub.f32 %v785, %v1941
    %v1943 = vand.u32 %v1942, 4294901760
    %v1944 = vsub.f32 %v1942, %v1943
    %v1945 = vand.u32 %v1944, 4294901760
    %1946 = vmatpush1.msra.mxu0 %v1945
    %1947 = vmatprep.subr.mxu0 0.0
    %v1948 = vand.u32 %v786, 4294901760
    %v1949 = vsub.f32 %v786, %v1948
    %v1950 = vand.u32 %v1949, 4294901760
    %v1951 = vsub.f32 %v1949, %v1950
    %v1952 = vand.u32 %v1951, 4294901760
    %1953 = vmatpush1.msra.mxu0 %v1952
    %1954 = vmatprep.subr.mxu0 0.0
    %v1955 = vand.u32 %v787, 4294901760
    %v1956 = vsub.f32 %v787, %v1955
    %v1957 = vand.u32 %v1956, 4294901760
    %v1958 = vsub.f32 %v1956, %v1957
    %v1959 = vand.u32 %v1958, 4294901760
    %1960 = vmatpush1.msra.mxu0 %v1959
    %1961 = vmatprep.subr.mxu0 0.0
    %1962 = vmatpush1.msra.mxu0 0.0
    %1963 = vmatprep.subr.mxu0 0.0
    %1964 = vmatpush1.msra.mxu0 0.0
    %1965 = vmatprep.subr.mxu0 0.0
    %1966 = vmatpush1.msra.mxu0 0.0
    %1967 = vmatprep.subr.mxu0 0.0
    %1968 = vmatpush1.msra.mxu0 0.0
    %1969 = vmatprep.subr.mxu0 0.0
    %1970 = vmatpush1.msra.mxu0 0.0
    %1971 = vmatprep.subr.mxu0 0.0
    %1972 = vmatpush1.msra.mxu0 0.0
    %1973 = vmatprep.subr.mxu0 0.0
    %1974 = vmatpush1.msra.mxu0 0.0
    %1975 = vmatprep.subr.mxu0 0.0
    %1976 = vmatpush1.msra.mxu0 0.0
    %1977 = vmatprep.subr.mxu0 0.0
    %1978 = vmatpush1.msra.mxu0 0.0
    %1979 = vmatprep.subr.mxu0 0.0
    %1980 = vmatpush1.msra.mxu0 0.0
    %1981 = vmatprep.subr.mxu0 0.0
    %1982 = vmatpush1.msra.mxu0 0.0
    %1983 = vmatprep.subr.mxu0 0.0
    %1984 = vmatpush1.msra.mxu0 0.0
    %1985 = vmatprep.subr.mxu0 0.0
    %1986 = vmatpush1.msra.mxu0 0.0
    %1987 = vmatprep.subr.mxu0 0.0
    %1988 = vmatpush1.msra.mxu0 0.0
    %1989 = vmatprep.subr.mxu0 0.0
    %1990 = vmatpush1.msra.mxu0 0.0
    %1991 = vmatprep.subr.mxu0 0.0
    %1992 = vmatpush1.msra.mxu0 0.0
    %1993 = vmatprep.subr.mxu0 0.0
    %1994 = vmatpush1.msra.mxu0 0.0
    %1995 = vmatprep.subr.mxu0 0.0
    %1996 = vmatpush1.msra.mxu0 0.0
    %1997 = vmatprep.subr.mxu0 0.0
    %1998 = vmatpush1.msra.mxu0 0.0
    %1999 = vmatprep.subr.mxu0 0.0
    %2000 = vmatpush1.msra.mxu0 0.0
    %2001 = vmatprep.subr.mxu0 0.0
    %2002 = vmatpush1.msra.mxu0 0.0
    %2003 = vmatprep.subr.mxu0 0.0
    %2004 = vmatpush1.msra.mxu0 0.0
    %2005 = vmatprep.subr.mxu0 0.0
    %2006 = vmatpush1.msra.mxu0 0.0
    %2007 = vmatprep.subr.mxu0 0.0
    %2008 = vmatpush1.msra.mxu0 0.0
    %2009 = vmatprep.subr.mxu0 0.0
    %2010 = vmatpush1.msra.mxu0 0.0
    %2011 = vmatprep.subr.mxu0 0.0
    %2012 = vmatpush1.msra.mxu0 0.0
    %2013 = vmatprep.mubr.f32.mxu0 0.0
    %v2014 = vand.u32 %v1836, 4294901760
    %2015 = vmatmul.mubr.f32.gmra.mrb[0].mxu0 %v2014
    %v2016 = vpop.f32.mrb[0].mxu0
    %v2017 = vadd.f32 %v1916, %v2016
    %v2018 = vpop.f32.mrb[0].mxu0
    %2019 = vdwg.mxu0
    %2020 = vmatprep.subr.mxu0 0.0
    %v2021 = vand.u32 %v782, 4294901760
    %v2022 = vsub.f32 %v782, %v2021
    %2023 = vmatpush1.msra.mxu0 %v2022
    %2024 = vmatprep.subr.mxu0 0.0
    %v2025 = vand.u32 %v783, 4294901760
    %v2026 = vsub.f32 %v783, %v2025
    %2027 = vmatpush1.msra.mxu0 %v2026
    %2028 = vmatprep.subr.mxu0 0.0
    %v2029 = vand.u32 %v784, 4294901760
    %v2030 = vsub.f32 %v784, %v2029
    %2031 = vmatpush1.msra.mxu0 %v2030
    %2032 = vmatprep.subr.mxu0 0.0
    %v2033 = vand.u32 %v785, 4294901760
    %v2034 = vsub.f32 %v785, %v2033
    %2035 = vmatpush1.msra.mxu0 %v2034
    %2036 = vmatprep.subr.mxu0 0.0
    %v2037 = vand.u32 %v786, 4294901760
    %v2038 = vsub.f32 %v786, %v2037
    %2039 = vmatpush1.msra.mxu0 %v2038
    %2040 = vmatprep.subr.mxu0 0.0
    %v2041 = vand.u32 %v787, 4294901760
    %v2042 = vsub.f32 %v787, %v2041
    %2043 = vmatpush1.msra.mxu0 %v2042
    %2044 = vmatprep.subr.mxu0 0.0
    %2045 = vmatpush1.msra.mxu0 0.0
    %2046 = vmatprep.subr.mxu0 0.0
    %2047 = vmatpush1.msra.mxu0 0.0
    %2048 = vmatprep.subr.mxu0 0.0
    %2049 = vmatpush1.msra.mxu0 0.0
    %2050 = vmatprep.subr.mxu0 0.0
    %2051 = vmatpush1.msra.mxu0 0.0
    %2052 = vmatprep.subr.mxu0 0.0
    %2053 = vmatpush1.msra.mxu0 0.0
    %2054 = vmatprep.subr.mxu0 0.0
    %2055 = vmatpush1.msra.mxu0 0.0
    %2056 = vmatprep.subr.mxu0 0.0
    %2057 = vmatpush1.msra.mxu0 0.0
    %2058 = vmatprep.subr.mxu0 0.0
    %2059 = vmatpush1.msra.mxu0 0.0
    %2060 = vmatprep.subr.mxu0 0.0
    %2061 = vmatpush1.msra.mxu0 0.0
    %2062 = vmatprep.subr.mxu0 0.0
    %2063 = vmatpush1.msra.mxu0 0.0
    %2064 = vmatprep.subr.mxu0 0.0
    %2065 = vmatpush1.msra.mxu0 0.0
    %2066 = vmatprep.subr.mxu0 0.0
    %2067 = vmatpush1.msra.mxu0 0.0
    %2068 = vmatprep.subr.mxu0 0.0
    %2069 = vmatpush1.msra.mxu0 0.0
    %2070 = vmatprep.subr.mxu0 0.0
    %2071 = vmatpush1.msra.mxu0 0.0
    %2072 = vmatprep.subr.mxu0 0.0
    %2073 = vmatpush1.msra.mxu0 0.0
    %2074 = vmatprep.subr.mxu0 0.0
    %2075 = vmatpush1.msra.mxu0 0.0
    %2076 = vmatprep.subr.mxu0 0.0
    %2077 = vmatpush1.msra.mxu0 0.0
    %2078 = vmatprep.subr.mxu0 0.0
    %2079 = vmatpush1.msra.mxu0 0.0
    %2080 = vmatprep.subr.mxu0 0.0
    %2081 = vmatpush1.msra.mxu0 0.0
    %2082 = vmatprep.subr.mxu0 0.0
    %2083 = vmatpush1.msra.mxu0 0.0
    %2084 = vmatprep.subr.mxu0 0.0
    %2085 = vmatpush1.msra.mxu0 0.0
    %2086 = vmatprep.subr.mxu0 0.0
    %2087 = vmatpush1.msra.mxu0 0.0
    %2088 = vmatprep.subr.mxu0 0.0
    %2089 = vmatpush1.msra.mxu0 0.0
    %2090 = vmatprep.subr.mxu0 0.0
    %2091 = vmatpush1.msra.mxu0 0.0
    %2092 = vmatprep.subr.mxu0 0.0
    %2093 = vmatpush1.msra.mxu0 0.0
    %2094 = vmatprep.subr.mxu0 0.0
    %2095 = vmatpush1.msra.mxu0 0.0
    %2096 = vmatprep.mubr.f32.mxu0 0.0
    %v2097 = vand.u32 %v1836, 4294901760
    %v2098 = vsub.f32 %v1836, %v2097
    %2099 = vmatmul.mubr.f32.gmra.mrb[0].mxu0 %v2098
    %v2100 = vpop.f32.mrb[0].mxu0
    %v2101 = vadd.f32 %v2017, %v2100
    %v2102 = vpop.f32.mrb[0].mxu0
    %2103 = vdwg.mxu0
    %2104 = vmatprep.subr.mxu0 0.0
    %v2105 = vand.u32 %v782, 4294901760
    %2106 = vmatpush1.msra.mxu0 %v2105
    %2107 = vmatprep.subr.mxu0 0.0
    %v2108 = vand.u32 %v783, 4294901760
    %2109 = vmatpush1.msra.mxu0 %v2108
    %2110 = vmatprep.subr.mxu0 0.0
    %v2111 = vand.u32 %v784, 4294901760
    %2112 = vmatpush1.msra.mxu0 %v2111
    %2113 = vmatprep.subr.mxu0 0.0
    %v2114 = vand.u32 %v785, 4294901760
    %2115 = vmatpush1.msra.mxu0 %v2114
    %2116 = vmatprep.subr.mxu0 0.0
    %v2117 = vand.u32 %v786, 4294901760
    %2118 = vmatpush1.msra.mxu0 %v2117
    %2119 = vmatprep.subr.mxu0 0.0
    %v2120 = vand.u32 %v787, 4294901760
    %2121 = vmatpush1.msra.mxu0 %v2120
    %2122 = vmatprep.subr.mxu0 0.0
    %2123 = vmatpush1.msra.mxu0 0.0
    %2124 = vmatprep.subr.mxu0 0.0
    %2125 = vmatpush1.msra.mxu0 0.0
    %2126 = vmatprep.subr.mxu0 0.0
    %2127 = vmatpush1.msra.mxu0 0.0
    %2128 = vmatprep.subr.mxu0 0.0
    %2129 = vmatpush1.msra.mxu0 0.0
    %2130 = vmatprep.subr.mxu0 0.0
    %2131 = vmatpush1.msra.mxu0 0.0
    %2132 = vmatprep.subr.mxu0 0.0
    %2133 = vmatpush1.msra.mxu0 0.0
    %2134 = vmatprep.subr.mxu0 0.0
    %2135 = vmatpush1.msra.mxu0 0.0
    %2136 = vmatprep.subr.mxu0 0.0
    %2137 = vmatpush1.msra.mxu0 0.0
    %2138 = vmatprep.subr.mxu0 0.0
    %2139 = vmatpush1.msra.mxu0 0.0
    %2140 = vmatprep.subr.mxu0 0.0
    %2141 = vmatpush1.msra.mxu0 0.0
    %2142 = vmatprep.subr.mxu0 0.0
    %2143 = vmatpush1.msra.mxu0 0.0
    %2144 = vmatprep.subr.mxu0 0.0
    %2145 = vmatpush1.msra.mxu0 0.0
    %2146 = vmatprep.subr.mxu0 0.0
    %2147 = vmatpush1.msra.mxu0 0.0
    %2148 = vmatprep.subr.mxu0 0.0
    %2149 = vmatpush1.msra.mxu0 0.0
    %2150 = vmatprep.subr.mxu0 0.0
    %2151 = vmatpush1.msra.mxu0 0.0
    %2152 = vmatprep.subr.mxu0 0.0
    %2153 = vmatpush1.msra.mxu0 0.0
    %2154 = vmatprep.subr.mxu0 0.0
    %2155 = vmatpush1.msra.mxu0 0.0
    %2156 = vmatprep.subr.mxu0 0.0
    %2157 = vmatpush1.msra.mxu0 0.0
    %2158 = vmatprep.subr.mxu0 0.0
    %2159 = vmatpush1.msra.mxu0 0.0
    %2160 = vmatprep.subr.mxu0 0.0
    %2161 = vmatpush1.msra.mxu0 0.0
    %2162 = vmatprep.subr.mxu0 0.0
    %2163 = vmatpush1.msra.mxu0 0.0
    %2164 = vmatprep.subr.mxu0 0.0
    %2165 = vmatpush1.msra.mxu0 0.0
    %2166 = vmatprep.subr.mxu0 0.0
    %2167 = vmatpush1.msra.mxu0 0.0
    %2168 = vmatprep.subr.mxu0 0.0
    %2169 = vmatpush1.msra.mxu0 0.0
    %2170 = vmatprep.subr.mxu0 0.0
    %2171 = vmatpush1.msra.mxu0 0.0
    %2172 = vmatprep.subr.mxu0 0.0
    %2173 = vmatpush1.msra.mxu0 0.0
    %2174 = vmatprep.mubr.f32.mxu0 0.0
    %v2175 = vand.u32 %v1836, 4294901760
    %v2176 = vsub.f32 %v1836, %v2175
    %v2177 = vand.u32 %v2176, 4294901760
    %2178 = vmatmul.mubr.f32.gmra.mrb[0].mxu0 %v2177
    %v2179 = vpop.f32.mrb[0].mxu0
    %v2180 = vadd.f32 %v2101, %v2179
    %v2181 = vpop.f32.mrb[0].mxu0
    %2182 = vdwg.mxu0
    %2183 = vmatprep.subr.mxu0 0.0
    %v2184 = vand.u32 %v782, 4294901760
    %v2185 = vsub.f32 %v782, %v2184
    %v2186 = vand.u32 %v2185, 4294901760
    %2187 = vmatpush1.msra.mxu0 %v2186
    %2188 = vmatprep.subr.mxu0 0.0
    %v2189 = vand.u32 %v783, 4294901760
    %v2190 = vsub.f32 %v783, %v2189
    %v2191 = vand.u32 %v2190, 4294901760
    %2192 = vmatpush1.msra.mxu0 %v2191
    %2193 = vmatprep.subr.mxu0 0.0
    %v2194 = vand.u32 %v784, 4294901760
    %v2195 = vsub.f32 %v784, %v2194
    %v2196 = vand.u32 %v2195, 4294901760
    %2197 = vmatpush1.msra.mxu0 %v2196
    %2198 = vmatprep.subr.mxu0 0.0
    %v2199 = vand.u32 %v785, 4294901760
    %v2200 = vsub.f32 %v785, %v2199
    %v2201 = vand.u32 %v2200, 4294901760
    %2202 = vmatpush1.msra.mxu0 %v2201
    %2203 = vmatprep.subr.mxu0 0.0
    %v2204 = vand.u32 %v786, 4294901760
    %v2205 = vsub.f32 %v786, %v2204
    %v2206 = vand.u32 %v2205, 4294901760
    %2207 = vmatpush1.msra.mxu0 %v2206
    %2208 = vmatprep.subr.mxu0 0.0
    %v2209 = vand.u32 %v787, 4294901760
    %v2210 = vsub.f32 %v787, %v2209
    %v2211 = vand.u32 %v2210, 4294901760
    %2212 = vmatpush1.msra.mxu0 %v2211
    %2213 = vmatprep.subr.mxu0 0.0
    %2214 = vmatpush1.msra.mxu0 0.0
    %2215 = vmatprep.subr.mxu0 0.0
    %2216 = vmatpush1.msra.mxu0 0.0
    %2217 = vmatprep.subr.mxu0 0.0
    %2218 = vmatpush1.msra.mxu0 0.0
    %2219 = vmatprep.subr.mxu0 0.0
    %2220 = vmatpush1.msra.mxu0 0.0
    %2221 = vmatprep.subr.mxu0 0.0
    %2222 = vmatpush1.msra.mxu0 0.0
    %2223 = vmatprep.subr.mxu0 0.0
    %2224 = vmatpush1.msra.mxu0 0.0
    %2225 = vmatprep.subr.mxu0 0.0
    %2226 = vmatpush1.msra.mxu0 0.0
    %2227 = vmatprep.subr.mxu0 0.0
    %2228 = vmatpush1.msra.mxu0 0.0
    %2229 = vmatprep.subr.mxu0 0.0
    %2230 = vmatpush1.msra.mxu0 0.0
    %2231 = vmatprep.subr.mxu0 0.0
    %2232 = vmatpush1.msra.mxu0 0.0
    %2233 = vmatprep.subr.mxu0 0.0
    %2234 = vmatpush1.msra.mxu0 0.0
    %2235 = vmatprep.subr.mxu0 0.0
    %2236 = vmatpush1.msra.mxu0 0.0
    %2237 = vmatprep.subr.mxu0 0.0
    %2238 = vmatpush1.msra.mxu0 0.0
    %2239 = vmatprep.subr.mxu0 0.0
    %2240 = vmatpush1.msra.mxu0 0.0
    %2241 = vmatprep.subr.mxu0 0.0
    %2242 = vmatpush1.msra.mxu0 0.0
    %2243 = vmatprep.subr.mxu0 0.0
    %2244 = vmatpush1.msra.mxu0 0.0
    %2245 = vmatprep.subr.mxu0 0.0
    %2246 = vmatpush1.msra.mxu0 0.0
    %2247 = vmatprep.subr.mxu0 0.0
    %2248 = vmatpush1.msra.mxu0 0.0
    %2249 = vmatprep.subr.mxu0 0.0
    %2250 = vmatpush1.msra.mxu0 0.0
    %2251 = vmatprep.subr.mxu0 0.0
    %2252 = vmatpush1.msra.mxu0 0.0
    %2253 = vmatprep.subr.mxu0 0.0
    %2254 = vmatpush1.msra.mxu0 0.0
    %2255 = vmatprep.subr.mxu0 0.0
    %2256 = vmatpush1.msra.mxu0 0.0
    %2257 = vmatprep.subr.mxu0 0.0
    %2258 = vmatpush1.msra.mxu0 0.0
    %2259 = vmatprep.subr.mxu0 0.0
    %2260 = vmatpush1.msra.mxu0 0.0
    %2261 = vmatprep.subr.mxu0 0.0
    %2262 = vmatpush1.msra.mxu0 0.0
    %2263 = vmatprep.subr.mxu0 0.0
    %2264 = vmatpush1.msra.mxu0 0.0
    %2265 = vmatprep.mubr.f32.mxu0 0.0
    %v2266 = vand.u32 %v1836, 4294901760
    %2267 = vmatmul.mubr.f32.gmra.mrb[0].mxu0 %v2266
    %v2268 = vpop.f32.mrb[0].mxu0
    %v2269 = vadd.f32 %v2180, %v2268
    %v2270 = vpop.f32.mrb[0].mxu0
    %2271 = vdwg.mxu0
    %2272 = vmatprep.subr.mxu0 0.0
    %v2273 = vand.u32 %v782, 4294901760
    %2274 = vmatpush1.msra.mxu0 %v2273
    %2275 = vmatprep.subr.mxu0 0.0
    %v2276 = vand.u32 %v783, 4294901760
    %2277 = vmatpush1.msra.mxu0 %v2276
    %2278 = vmatprep.subr.mxu0 0.0
    %v2279 = vand.u32 %v784, 4294901760
    %2280 = vmatpush1.msra.mxu0 %v2279
    %2281 = vmatprep.subr.mxu0 0.0
    %v2282 = vand.u32 %v785, 4294901760
    %2283 = vmatpush1.msra.mxu0 %v2282
    %2284 = vmatprep.subr.mxu0 0.0
    %v2285 = vand.u32 %v786, 4294901760
    %2286 = vmatpush1.msra.mxu0 %v2285
    %2287 = vmatprep.subr.mxu0 0.0
    %v2288 = vand.u32 %v787, 4294901760
    %2289 = vmatpush1.msra.mxu0 %v2288
    %2290 = vmatprep.subr.mxu0 0.0
    %2291 = vmatpush1.msra.mxu0 0.0
    %2292 = vmatprep.subr.mxu0 0.0
    %2293 = vmatpush1.msra.mxu0 0.0
    %2294 = vmatprep.subr.mxu0 0.0
    %2295 = vmatpush1.msra.mxu0 0.0
    %2296 = vmatprep.subr.mxu0 0.0
    %2297 = vmatpush1.msra.mxu0 0.0
    %2298 = vmatprep.subr.mxu0 0.0
    %2299 = vmatpush1.msra.mxu0 0.0
    %2300 = vmatprep.subr.mxu0 0.0
    %2301 = vmatpush1.msra.mxu0 0.0
    %2302 = vmatprep.subr.mxu0 0.0
    %2303 = vmatpush1.msra.mxu0 0.0
    %2304 = vmatprep.subr.mxu0 0.0
    %2305 = vmatpush1.msra.mxu0 0.0
    %2306 = vmatprep.subr.mxu0 0.0
    %2307 = vmatpush1.msra.mxu0 0.0
    %2308 = vmatprep.subr.mxu0 0.0
    %2309 = vmatpush1.msra.mxu0 0.0
    %2310 = vmatprep.subr.mxu0 0.0
    %2311 = vmatpush1.msra.mxu0 0.0
    %2312 = vmatprep.subr.mxu0 0.0
    %2313 = vmatpush1.msra.mxu0 0.0
    %2314 = vmatprep.subr.mxu0 0.0
    %2315 = vmatpush1.msra.mxu0 0.0
    %2316 = vmatprep.subr.mxu0 0.0
    %2317 = vmatpush1.msra.mxu0 0.0
    %2318 = vmatprep.subr.mxu0 0.0
    %2319 = vmatpush1.msra.mxu0 0.0
    %2320 = vmatprep.subr.mxu0 0.0
    %2321 = vmatpush1.msra.mxu0 0.0
    %2322 = vmatprep.subr.mxu0 0.0
    %2323 = vmatpush1.msra.mxu0 0.0
    %2324 = vmatprep.subr.mxu0 0.0
    %2325 = vmatpush1.msra.mxu0 0.0
    %2326 = vmatprep.subr.mxu0 0.0
    %2327 = vmatpush1.msra.mxu0 0.0
    %2328 = vmatprep.subr.mxu0 0.0
    %2329 = vmatpush1.msra.mxu0 0.0
    %2330 = vmatprep.subr.mxu0 0.0
    %2331 = vmatpush1.msra.mxu0 0.0
    %2332 = vmatprep.subr.mxu0 0.0
    %2333 = vmatpush1.msra.mxu0 0.0
    %2334 = vmatprep.subr.mxu0 0.0
    %2335 = vmatpush1.msra.mxu0 0.0
    %2336 = vmatprep.subr.mxu0 0.0
    %2337 = vmatpush1.msra.mxu0 0.0
    %2338 = vmatprep.subr.mxu0 0.0
    %2339 = vmatpush1.msra.mxu0 0.0
    %2340 = vmatprep.subr.mxu0 0.0
    %2341 = vmatpush1.msra.mxu0 0.0
    %2342 = vmatprep.mubr.f32.mxu0 0.0
    %v2343 = vand.u32 %v1836, 4294901760
    %2344 = vmatmul.mubr.f32.gmra.mrb[0].mxu0 %v2343
    %v2345 = vpop.f32.mrb[0].mxu0
    %v2346 = vadd.f32 %v2269, %v2345
    %v2347 = vpop.f32.mrb[0].mxu0
    %2348 = vdwg.mxu0
    %v2349 = vadd.f32 %v1834, %v2346
    %v2350 = vxor.u32 %v2349, 2147483648
    %v2351 = vmul.f32 %v2350, 1.442695
    %v2352 = vpow.pop %v2351
    %v2353 = vadd.f32 %v2352, 1.0
    %v2354 = vrcp.pop %v2353
    %v2355 = vmul.f32 1.0, %v2354
    %2357 = vrot.lane.b32.xlu0 %v2355, 96
    %v2358 = vpop.permute.xlu0 %2357
    %v2360 = vmul.f32 %v2355, %v2358
    %2362 = vrot.lane.b32.xlu0 %v2360, 64
    %v2363 = vpop.permute.xlu0 %2362
    %v2365 = vadd.f32 %v2355, %v2363
    %v2366 = vtanh.pop %v2365
    %2368 = vrot.lane.b32.xlu0 %v2366, 32
    %v2369 = vpop.permute.xlu0 %2368
    %v2371 = vmul.f32 %v2355, %v2369
    %2373 = vrot.lane.b32.xlu0 %v2371, 48
    %v2374 = vpop.permute.xlu0 %2373
    %v2376 = vadd.f32 %v1832, %v2374
    %2378 = vrot.lane.b32.xlu0 %v2365, 64
    %v2379 = vpop.permute.xlu0 %2378
    %v2380 = vsel %vm1340, %v2379, 0
    %2382 = vmatprep.subr.mxu0 0.0
    %v2383 = vand.u32 %v788, 4294901760
    %2384 = vmatpush1.msra.mxu0 %v2383
    %2385 = vmatprep.subr.mxu0 0.0
    %v2386 = vand.u32 %v789, 4294901760
    %2387 = vmatpush1.msra.mxu0 %v2386
    %2388 = vmatprep.subr.mxu0 0.0
    %v2389 = vand.u32 %v790, 4294901760
    %2390 = vmatpush1.msra.mxu0 %v2389
    %2391 = vmatprep.subr.mxu0 0.0
    %v2392 = vand.u32 %v791, 4294901760
    %2393 = vmatpush1.msra.mxu0 %v2392
    %2394 = vmatprep.subr.mxu0 0.0
    %2395 = vmatpush1.msra.mxu0 0.0
    %2396 = vmatprep.subr.mxu0 0.0
    %2397 = vmatpush1.msra.mxu0 0.0
    %2398 = vmatprep.subr.mxu0 0.0
    %2399 = vmatpush1.msra.mxu0 0.0
    %2400 = vmatprep.subr.mxu0 0.0
    %2401 = vmatpush1.msra.mxu0 0.0
    %2402 = vmatprep.subr.mxu0 0.0
    %2403 = vmatpush1.msra.mxu0 0.0
    %2404 = vmatprep.subr.mxu0 0.0
    %2405 = vmatpush1.msra.mxu0 0.0
    %2406 = vmatprep.subr.mxu0 0.0
    %2407 = vmatpush1.msra.mxu0 0.0
    %2408 = vmatprep.subr.mxu0 0.0
    %2409 = vmatpush1.msra.mxu0 0.0
    %2410 = vmatprep.subr.mxu0 0.0
    %2411 = vmatpush1.msra.mxu0 0.0
    %2412 = vmatprep.subr.mxu0 0.0
    %2413 = vmatpush1.msra.mxu0 0.0
    %2414 = vmatprep.subr.mxu0 0.0
    %2415 = vmatpush1.msra.mxu0 0.0
    %2416 = vmatprep.subr.mxu0 0.0
    %2417 = vmatpush1.msra.mxu0 0.0
    %2418 = vmatprep.subr.mxu0 0.0
    %2419 = vmatpush1.msra.mxu0 0.0
    %2420 = vmatprep.subr.mxu0 0.0
    %2421 = vmatpush1.msra.mxu0 0.0
    %2422 = vmatprep.subr.mxu0 0.0
    %2423 = vmatpush1.msra.mxu0 0.0
    %2424 = vmatprep.subr.mxu0 0.0
    %2425 = vmatpush1.msra.mxu0 0.0
    %2426 = vmatprep.subr.mxu0 0.0
    %2427 = vmatpush1.msra.mxu0 0.0
    %2428 = vmatprep.subr.mxu0 0.0
    %2429 = vmatpush1.msra.mxu0 0.0
    %2430 = vmatprep.subr.mxu0 0.0
    %2431 = vmatpush1.msra.mxu0 0.0
    %2432 = vmatprep.subr.mxu0 0.0
    %2433 = vmatpush1.msra.mxu0 0.0
    %2434 = vmatprep.subr.mxu0 0.0
    %2435 = vmatpush1.msra.mxu0 0.0
    %2436 = vmatprep.subr.mxu0 0.0
    %2437 = vmatpush1.msra.mxu0 0.0
    %2438 = vmatprep.subr.mxu0 0.0
    %2439 = vmatpush1.msra.mxu0 0.0
    %2440 = vmatprep.subr.mxu0 0.0
    %2441 = vmatpush1.msra.mxu0 0.0
    %2442 = vmatprep.subr.mxu0 0.0
    %2443 = vmatpush1.msra.mxu0 0.0
    %2444 = vmatprep.subr.mxu0 0.0
    %2445 = vmatpush1.msra.mxu0 0.0
    %2446 = vmatprep.subr.mxu0 0.0
    %2447 = vmatpush1.msra.mxu0 0.0
    %2448 = vmatprep.subr.mxu0 0.0
    %2449 = vmatpush1.msra.mxu0 0.0
    %2450 = vmatprep.mubr.f32.mxu0 0.0
    %v2451 = vand.u32 %v2380, 4294901760
    %v2452 = vsub.f32 %v2380, %v2451
    %v2453 = vand.u32 %v2452, 4294901760
    %v2454 = vsub.f32 %v2452, %v2453
    %v2455 = vand.u32 %v2454, 4294901760
    %2456 = vmatmul.mubr.f32.gmra.mrb[0].mxu0 %v2455
    %v2457 = vpop.f32.mrb[0].mxu0
    %v2458 = vadd.f32 0.0, %v2457
    %v2459 = vpop.f32.mrb[0].mxu0
    %2460 = vdwg.mxu0
    %2461 = vmatprep.subr.mxu0 0.0
    %v2462 = vand.u32 %v788, 4294901760
    %v2463 = vsub.f32 %v788, %v2462
    %v2464 = vand.u32 %v2463, 4294901760
    %v2465 = vsub.f32 %v2463, %v2464
    %v2466 = vand.u32 %v2465, 4294901760
    %2467 = vmatpush1.msra.mxu0 %v2466
    %2468 = vmatprep.subr.mxu0 0.0
    %v2469 = vand.u32 %v789, 4294901760
    %v2470 = vsub.f32 %v789, %v2469
    %v2471 = vand.u32 %v2470, 4294901760
    %v2472 = vsub.f32 %v2470, %v2471
    %v2473 = vand.u32 %v2472, 4294901760
    %2474 = vmatpush1.msra.mxu0 %v2473
    %2475 = vmatprep.subr.mxu0 0.0
    %v2476 = vand.u32 %v790, 4294901760
    %v2477 = vsub.f32 %v790, %v2476
    %v2478 = vand.u32 %v2477, 4294901760
    %v2479 = vsub.f32 %v2477, %v2478
    %v2480 = vand.u32 %v2479, 4294901760
    %2481 = vmatpush1.msra.mxu0 %v2480
    %2482 = vmatprep.subr.mxu0 0.0
    %v2483 = vand.u32 %v791, 4294901760
    %v2484 = vsub.f32 %v791, %v2483
    %v2485 = vand.u32 %v2484, 4294901760
    %v2486 = vsub.f32 %v2484, %v2485
    %v2487 = vand.u32 %v2486, 4294901760
    %2488 = vmatpush1.msra.mxu0 %v2487
    %2489 = vmatprep.subr.mxu0 0.0
    %2490 = vmatpush1.msra.mxu0 0.0
    %2491 = vmatprep.subr.mxu0 0.0
    %2492 = vmatpush1.msra.mxu0 0.0
    %2493 = vmatprep.subr.mxu0 0.0
    %2494 = vmatpush1.msra.mxu0 0.0
    %2495 = vmatprep.subr.mxu0 0.0
    %2496 = vmatpush1.msra.mxu0 0.0
    %2497 = vmatprep.subr.mxu0 0.0
    %2498 = vmatpush1.msra.mxu0 0.0
    %2499 = vmatprep.subr.mxu0 0.0
    %2500 = vmatpush1.msra.mxu0 0.0
    %2501 = vmatprep.subr.mxu0 0.0
    %2502 = vmatpush1.msra.mxu0 0.0
    %2503 = vmatprep.subr.mxu0 0.0
    %2504 = vmatpush1.msra.mxu0 0.0
    %2505 = vmatprep.subr.mxu0 0.0
    %2506 = vmatpush1.msra.mxu0 0.0
    %2507 = vmatprep.subr.mxu0 0.0
    %2508 = vmatpush1.msra.mxu0 0.0
    %2509 = vmatprep.subr.mxu0 0.0
    %2510 = vmatpush1.msra.mxu0 0.0
    %2511 = vmatprep.subr.mxu0 0.0
    %2512 = vmatpush1.msra.mxu0 0.0
    %2513 = vmatprep.subr.mxu0 0.0
    %2514 = vmatpush1.msra.mxu0 0.0
    %2515 = vmatprep.subr.mxu0 0.0
    %2516 = vmatpush1.msra.mxu0 0.0
    %2517 = vmatprep.subr.mxu0 0.0
    %2518 = vmatpush1.msra.mxu0 0.0
    %2519 = vmatprep.subr.mxu0 0.0
    %2520 = vmatpush1.msra.mxu0 0.0
    %2521 = vmatprep.subr.mxu0 0.0
    %2522 = vmatpush1.msra.mxu0 0.0
    %2523 = vmatprep.subr.mxu0 0.0
    %2524 = vmatpush1.msra.mxu0 0.0
    %2525 = vmatprep.subr.mxu0 0.0
    %2526 = vmatpush1.msra.mxu0 0.0
    %2527 = vmatprep.subr.mxu0 0.0
    %2528 = vmatpush1.msra.mxu0 0.0
    %2529 = vmatprep.subr.mxu0 0.0
    %2530 = vmatpush1.msra.mxu0 0.0
    %2531 = vmatprep.subr.mxu0 0.0
    %2532 = vmatpush1.msra.mxu0 0.0
    %2533 = vmatprep.subr.mxu0 0.0
    %2534 = vmatpush1.msra.mxu0 0.0
    %2535 = vmatprep.subr.mxu0 0.0
    %2536 = vmatpush1.msra.mxu0 0.0
    %2537 = vmatprep.subr.mxu0 0.0
    %2538 = vmatpush1.msra.mxu0 0.0
    %2539 = vmatprep.subr.mxu0 0.0
    %2540 = vmatpush1.msra.mxu0 0.0
    %2541 = vmatprep.subr.mxu0 0.0
    %2542 = vmatpush1.msra.mxu0 0.0
    %2543 = vmatprep.subr.mxu0 0.0
    %2544 = vmatpush1.msra.mxu0 0.0
    %2545 = vmatprep.mubr.f32.mxu0 0.0
    %v2546 = vand.u32 %v2380, 4294901760
    %2547 = vmatmul.mubr.f32.gmra.mrb[0].mxu0 %v2546
    %v2548 = vpop.f32.mrb[0].mxu0
    %v2549 = vadd.f32 %v2458, %v2548
    %v2550 = vpop.f32.mrb[0].mxu0
    %2551 = vdwg.mxu0
    %2552 = vmatprep.subr.mxu0 0.0
    %v2553 = vand.u32 %v788, 4294901760
    %v2554 = vsub.f32 %v788, %v2553
    %2555 = vmatpush1.msra.mxu0 %v2554
    %2556 = vmatprep.subr.mxu0 0.0
    %v2557 = vand.u32 %v789, 4294901760
    %v2558 = vsub.f32 %v789, %v2557
    %2559 = vmatpush1.msra.mxu0 %v2558
    %2560 = vmatprep.subr.mxu0 0.0
    %v2561 = vand.u32 %v790, 4294901760
    %v2562 = vsub.f32 %v790, %v2561
    %2563 = vmatpush1.msra.mxu0 %v2562
    %2564 = vmatprep.subr.mxu0 0.0
    %v2565 = vand.u32 %v791, 4294901760
    %v2566 = vsub.f32 %v791, %v2565
    %2567 = vmatpush1.msra.mxu0 %v2566
    %2568 = vmatprep.subr.mxu0 0.0
    %2569 = vmatpush1.msra.mxu0 0.0
    %2570 = vmatprep.subr.mxu0 0.0
    %2571 = vmatpush1.msra.mxu0 0.0
    %2572 = vmatprep.subr.mxu0 0.0
    %2573 = vmatpush1.msra.mxu0 0.0
    %2574 = vmatprep.subr.mxu0 0.0
    %2575 = vmatpush1.msra.mxu0 0.0
    %2576 = vmatprep.subr.mxu0 0.0
    %2577 = vmatpush1.msra.mxu0 0.0
    %2578 = vmatprep.subr.mxu0 0.0
    %2579 = vmatpush1.msra.mxu0 0.0
    %2580 = vmatprep.subr.mxu0 0.0
    %2581 = vmatpush1.msra.mxu0 0.0
    %2582 = vmatprep.subr.mxu0 0.0
    %2583 = vmatpush1.msra.mxu0 0.0
    %2584 = vmatprep.subr.mxu0 0.0
    %2585 = vmatpush1.msra.mxu0 0.0
    %2586 = vmatprep.subr.mxu0 0.0
    %2587 = vmatpush1.msra.mxu0 0.0
    %2588 = vmatprep.subr.mxu0 0.0
    %2589 = vmatpush1.msra.mxu0 0.0
    %2590 = vmatprep.subr.mxu0 0.0
    %2591 = vmatpush1.msra.mxu0 0.0
    %2592 = vmatprep.subr.mxu0 0.0
    %2593 = vmatpush1.msra.mxu0 0.0
    %2594 = vmatprep.subr.mxu0 0.0
    %2595 = vmatpush1.msra.mxu0 0.0
    %2596 = vmatprep.subr.mxu0 0.0
    %2597 = vmatpush1.msra.mxu0 0.0
    %2598 = vmatprep.subr.mxu0 0.0
    %2599 = vmatpush1.msra.mxu0 0.0
    %2600 = vmatprep.subr.mxu0 0.0
    %2601 = vmatpush1.msra.mxu0 0.0
    %2602 = vmatprep.subr.mxu0 0.0
    %2603 = vmatpush1.msra.mxu0 0.0
    %2604 = vmatprep.subr.mxu0 0.0
    %2605 = vmatpush1.msra.mxu0 0.0
    %2606 = vmatprep.subr.mxu0 0.0
    %2607 = vmatpush1.msra.mxu0 0.0
    %2608 = vmatprep.subr.mxu0 0.0
    %2609 = vmatpush1.msra.mxu0 0.0
    %2610 = vmatprep.subr.mxu0 0.0
    %2611 = vmatpush1.msra.mxu0 0.0
    %2612 = vmatprep.subr.mxu0 0.0
    %2613 = vmatpush1.msra.mxu0 0.0
    %2614 = vmatprep.subr.mxu0 0.0
    %2615 = vmatpush1.msra.mxu0 0.0
    %2616 = vmatprep.subr.mxu0 0.0
    %2617 = vmatpush1.msra.mxu0 0.0
    %2618 = vmatprep.subr.mxu0 0.0
    %2619 = vmatpush1.msra.mxu0 0.0
    %2620 = vmatprep.subr.mxu0 0.0
    %2621 = vmatpush1.msra.mxu0 0.0
    %2622 = vmatprep.subr.mxu0 0.0
    %2623 = vmatpush1.msra.mxu0 0.0
    %2624 = vmatprep.mubr.f32.mxu0 0.0
    %v2625 = vand.u32 %v2380, 4294901760
    %v2626 = vsub.f32 %v2380, %v2625
    %2627 = vmatmul.mubr.f32.gmra.mrb[0].mxu0 %v2626
    %v2628 = vpop.f32.mrb[0].mxu0
    %v2629 = vadd.f32 %v2549, %v2628
    %v2630 = vpop.f32.mrb[0].mxu0
    %2631 = vdwg.mxu0
    %2632 = vmatprep.subr.mxu0 0.0
    %v2633 = vand.u32 %v788, 4294901760
    %2634 = vmatpush1.msra.mxu0 %v2633
    %2635 = vmatprep.subr.mxu0 0.0
    %v2636 = vand.u32 %v789, 4294901760
    %2637 = vmatpush1.msra.mxu0 %v2636
    %2638 = vmatprep.subr.mxu0 0.0
    %v2639 = vand.u32 %v790, 4294901760
    %2640 = vmatpush1.msra.mxu0 %v2639
    %2641 = vmatprep.subr.mxu0 0.0
    %v2642 = vand.u32 %v791, 4294901760
    %2643 = vmatpush1.msra.mxu0 %v2642
    %2644 = vmatprep.subr.mxu0 0.0
    %2645 = vmatpush1.msra.mxu0 0.0
    %2646 = vmatprep.subr.mxu0 0.0
    %2647 = vmatpush1.msra.mxu0 0.0
    %2648 = vmatprep.subr.mxu0 0.0
    %2649 = vmatpush1.msra.mxu0 0.0
    %2650 = vmatprep.subr.mxu0 0.0
    %2651 = vmatpush1.msra.mxu0 0.0
    %2652 = vmatprep.subr.mxu0 0.0
    %2653 = vmatpush1.msra.mxu0 0.0
    %2654 = vmatprep.subr.mxu0 0.0
    %2655 = vmatpush1.msra.mxu0 0.0
    %2656 = vmatprep.subr.mxu0 0.0
    %2657 = vmatpush1.msra.mxu0 0.0
    %2658 = vmatprep.subr.mxu0 0.0
    %2659 = vmatpush1.msra.mxu0 0.0
    %2660 = vmatprep.subr.mxu0 0.0
    %2661 = vmatpush1.msra.mxu0 0.0
    %2662 = vmatprep.subr.mxu0 0.0
    %2663 = vmatpush1.msra.mxu0 0.0
    %2664 = vmatprep.subr.mxu0 0.0
    %2665 = vmatpush1.msra.mxu0 0.0
    %2666 = vmatprep.subr.mxu0 0.0
    %2667 = vmatpush1.msra.mxu0 0.0
    %2668 = vmatprep.subr.mxu0 0.0
    %2669 = vmatpush1.msra.mxu0 0.0
    %2670 = vmatprep.subr.mxu0 0.0
    %2671 = vmatpush1.msra.mxu0 0.0
    %2672 = vmatprep.subr.mxu0 0.0
    %2673 = vmatpush1.msra.mxu0 0.0
    %2674 = vmatprep.subr.mxu0 0.0
    %2675 = vmatpush1.msra.mxu0 0.0
    %2676 = vmatprep.subr.mxu0 0.0
    %2677 = vmatpush1.msra.mxu0 0.0
    %2678 = vmatprep.subr.mxu0 0.0
    %2679 = vmatpush1.msra.mxu0 0.0
    %2680 = vmatprep.subr.mxu0 0.0
    %2681 = vmatpush1.msra.mxu0 0.0
    %2682 = vmatprep.subr.mxu0 0.0
    %2683 = vmatpush1.msra.mxu0 0.0
    %2684 = vmatprep.subr.mxu0 0.0
    %2685 = vmatpush1.msra.mxu0 0.0
    %2686 = vmatprep.subr.mxu0 0.0
    %2687 = vmatpush1.msra.mxu0 0.0
    %2688 = vmatprep.subr.mxu0 0.0
    %2689 = vmatpush1.msra.mxu0 0.0
    %2690 = vmatprep.subr.mxu0 0.0
    %2691 = vmatpush1.msra.mxu0 0.0
    %2692 = vmatprep.subr.mxu0 0.0
    %2693 = vmatpush1.msra.mxu0 0.0
    %2694 = vmatprep.subr.mxu0 0.0
    %2695 = vmatpush1.msra.mxu0 0.0
    %2696 = vmatprep.subr.mxu0 0.0
    %2697 = vmatpush1.msra.mxu0 0.0
    %2698 = vmatprep.subr.mxu0 0.0
    %2699 = vmatpush1.msra.mxu0 0.0
    %2700 = vmatprep.mubr.f32.mxu0 0.0
    %v2701 = vand.u32 %v2380, 4294901760
    %v2702 = vsub.f32 %v2380, %v2701
    %v2703 = vand.u32 %v2702, 4294901760
    %2704 = vmatmul.mubr.f32.gmra.mrb[0].mxu0 %v2703
    %v2705 = vpop.f32.mrb[0].mxu0
    %v2706 = vadd.f32 %v2629, %v2705
    %v2707 = vpop.f32.mrb[0].mxu0
    %2708 = vdwg.mxu0
    %2709 = vmatprep.subr.mxu0 0.0
    %v2710 = vand.u32 %v788, 4294901760
    %v2711 = vsub.f32 %v788, %v2710
    %v2712 = vand.u32 %v2711, 4294901760
    %2713 = vmatpush1.msra.mxu0 %v2712
    %2714 = vmatprep.subr.mxu0 0.0
    %v2715 = vand.u32 %v789, 4294901760
    %v2716 = vsub.f32 %v789, %v2715
    %v2717 = vand.u32 %v2716, 4294901760
    %2718 = vmatpush1.msra.mxu0 %v2717
    %2719 = vmatprep.subr.mxu0 0.0
    %v2720 = vand.u32 %v790, 4294901760
    %v2721 = vsub.f32 %v790, %v2720
    %v2722 = vand.u32 %v2721, 4294901760
    %2723 = vmatpush1.msra.mxu0 %v2722
    %2724 = vmatprep.subr.mxu0 0.0
    %v2725 = vand.u32 %v791, 4294901760
    %v2726 = vsub.f32 %v791, %v2725
    %v2727 = vand.u32 %v2726, 4294901760
    %2728 = vmatpush1.msra.mxu0 %v2727
    %2729 = vmatprep.subr.mxu0 0.0
    %2730 = vmatpush1.msra.mxu0 0.0
    %2731 = vmatprep.subr.mxu0 0.0
    %2732 = vmatpush1.msra.mxu0 0.0
    %2733 = vmatprep.subr.mxu0 0.0
    %2734 = vmatpush1.msra.mxu0 0.0
    %2735 = vmatprep.subr.mxu0 0.0
    %2736 = vmatpush1.msra.mxu0 0.0
    %2737 = vmatprep.subr.mxu0 0.0
    %2738 = vmatpush1.msra.mxu0 0.0
    %2739 = vmatprep.subr.mxu0 0.0
    %2740 = vmatpush1.msra.mxu0 0.0
    %2741 = vmatprep.subr.mxu0 0.0
    %2742 = vmatpush1.msra.mxu0 0.0
    %2743 = vmatprep.subr.mxu0 0.0
    %2744 = vmatpush1.msra.mxu0 0.0
    %2745 = vmatprep.subr.mxu0 0.0
    %2746 = vmatpush1.msra.mxu0 0.0
    %2747 = vmatprep.subr.mxu0 0.0
    %2748 = vmatpush1.msra.mxu0 0.0
    %2749 = vmatprep.subr.mxu0 0.0
    %2750 = vmatpush1.msra.mxu0 0.0
    %2751 = vmatprep.subr.mxu0 0.0
    %2752 = vmatpush1.msra.mxu0 0.0
    %2753 = vmatprep.subr.mxu0 0.0
    %2754 = vmatpush1.msra.mxu0 0.0
    %2755 = vmatprep.subr.mxu0 0.0
    %2756 = vmatpush1.msra.mxu0 0.0
    %2757 = vmatprep.subr.mxu0 0.0
    %2758 = vmatpush1.msra.mxu0 0.0
    %2759 = vmatprep.subr.mxu0 0.0
    %2760 = vmatpush1.msra.mxu0 0.0
    %2761 = vmatprep.subr.mxu0 0.0
    %2762 = vmatpush1.msra.mxu0 0.0
    %2763 = vmatprep.subr.mxu0 0.0
    %2764 = vmatpush1.msra.mxu0 0.0
    %2765 = vmatprep.subr.mxu0 0.0
    %2766 = vmatpush1.msra.mxu0 0.0
    %2767 = vmatprep.subr.mxu0 0.0
    %2768 = vmatpush1.msra.mxu0 0.0
    %2769 = vmatprep.subr.mxu0 0.0
    %2770 = vmatpush1.msra.mxu0 0.0
    %2771 = vmatprep.subr.mxu0 0.0
    %2772 = vmatpush1.msra.mxu0 0.0
    %2773 = vmatprep.subr.mxu0 0.0
    %2774 = vmatpush1.msra.mxu0 0.0
    %2775 = vmatprep.subr.mxu0 0.0
    %2776 = vmatpush1.msra.mxu0 0.0
    %2777 = vmatprep.subr.mxu0 0.0
    %2778 = vmatpush1.msra.mxu0 0.0
    %2779 = vmatprep.subr.mxu0 0.0
    %2780 = vmatpush1.msra.mxu0 0.0
    %2781 = vmatprep.subr.mxu0 0.0
    %2782 = vmatpush1.msra.mxu0 0.0
    %2783 = vmatprep.subr.mxu0 0.0
    %2784 = vmatpush1.msra.mxu0 0.0
    %2785 = vmatprep.mubr.f32.mxu0 0.0
    %v2786 = vand.u32 %v2380, 4294901760
    %2787 = vmatmul.mubr.f32.gmra.mrb[0].mxu0 %v2786
    %v2788 = vpop.f32.mrb[0].mxu0
    %v2789 = vadd.f32 %v2706, %v2788
    %v2790 = vpop.f32.mrb[0].mxu0
    %2791 = vdwg.mxu0
    %2792 = vmatprep.subr.mxu0 0.0
    %v2793 = vand.u32 %v788, 4294901760
    %2794 = vmatpush1.msra.mxu0 %v2793
    %2795 = vmatprep.subr.mxu0 0.0
    %v2796 = vand.u32 %v789, 4294901760
    %2797 = vmatpush1.msra.mxu0 %v2796
    %2798 = vmatprep.subr.mxu0 0.0
    %v2799 = vand.u32 %v790, 4294901760
    %2800 = vmatpush1.msra.mxu0 %v2799
    %2801 = vmatprep.subr.mxu0 0.0
    %v2802 = vand.u32 %v791, 4294901760
    %2803 = vmatpush1.msra.mxu0 %v2802
    %2804 = vmatprep.subr.mxu0 0.0
    %2805 = vmatpush1.msra.mxu0 0.0
    %2806 = vmatprep.subr.mxu0 0.0
    %2807 = vmatpush1.msra.mxu0 0.0
    %2808 = vmatprep.subr.mxu0 0.0
    %2809 = vmatpush1.msra.mxu0 0.0
    %2810 = vmatprep.subr.mxu0 0.0
    %2811 = vmatpush1.msra.mxu0 0.0
    %2812 = vmatprep.subr.mxu0 0.0
    %2813 = vmatpush1.msra.mxu0 0.0
    %2814 = vmatprep.subr.mxu0 0.0
    %2815 = vmatpush1.msra.mxu0 0.0
    %2816 = vmatprep.subr.mxu0 0.0
    %2817 = vmatpush1.msra.mxu0 0.0
    %2818 = vmatprep.subr.mxu0 0.0
    %2819 = vmatpush1.msra.mxu0 0.0
    %2820 = vmatprep.subr.mxu0 0.0
    %2821 = vmatpush1.msra.mxu0 0.0
    %2822 = vmatprep.subr.mxu0 0.0
    %2823 = vmatpush1.msra.mxu0 0.0
    %2824 = vmatprep.subr.mxu0 0.0
    %2825 = vmatpush1.msra.mxu0 0.0
    %2826 = vmatprep.subr.mxu0 0.0
    %2827 = vmatpush1.msra.mxu0 0.0
    %2828 = vmatprep.subr.mxu0 0.0
    %2829 = vmatpush1.msra.mxu0 0.0
    %2830 = vmatprep.subr.mxu0 0.0
    %2831 = vmatpush1.msra.mxu0 0.0
    %2832 = vmatprep.subr.mxu0 0.0
    %2833 = vmatpush1.msra.mxu0 0.0
    %2834 = vmatprep.subr.mxu0 0.0
    %2835 = vmatpush1.msra.mxu0 0.0
    %2836 = vmatprep.subr.mxu0 0.0
    %2837 = vmatpush1.msra.mxu0 0.0
    %2838 = vmatprep.subr.mxu0 0.0
    %2839 = vmatpush1.msra.mxu0 0.0
    %2840 = vmatprep.subr.mxu0 0.0
    %2841 = vmatpush1.msra.mxu0 0.0
    %2842 = vmatprep.subr.mxu0 0.0
    %2843 = vmatpush1.msra.mxu0 0.0
    %2844 = vmatprep.subr.mxu0 0.0
    %2845 = vmatpush1.msra.mxu0 0.0
    %2846 = vmatprep.subr.mxu0 0.0
    %2847 = vmatpush1.msra.mxu0 0.0
    %2848 = vmatprep.subr.mxu0 0.0
    %2849 = vmatpush1.msra.mxu0 0.0
    %2850 = vmatprep.subr.mxu0 0.0
    %2851 = vmatpush1.msra.mxu0 0.0
    %2852 = vmatprep.subr.mxu0 0.0
    %2853 = vmatpush1.msra.mxu0 0.0
    %2854 = vmatprep.subr.mxu0 0.0
    %2855 = vmatpush1.msra.mxu0 0.0
    %2856 = vmatprep.subr.mxu0 0.0
    %2857 = vmatpush1.msra.mxu0 0.0
    %2858 = vmatprep.subr.mxu0 0.0
    %2859 = vmatpush1.msra.mxu0 0.0
    %2860 = vmatprep.mubr.f32.mxu0 0.0
    %v2861 = vand.u32 %v2380, 4294901760
    %2862 = vmatmul.mubr.f32.gmra.mrb[0].mxu0 %v2861
    %v2863 = vpop.f32.mrb[0].mxu0
    %v2864 = vadd.f32 %v2789, %v2863
    %v2865 = vpop.f32.mrb[0].mxu0
    %2866 = vdwg.mxu0
    %v2867 = vtanh.pop %v2864
    %2868 = vst.msk [vmem:[#allocation3] sm:$0xff] %vm74, %v2867
    %2869 = vst.msk [vmem:[#allocation3] sm:$0xff] %vm780, %v2376
    %s2870 = scalar_lea.vmem [#allocation10], 8
    %2871 = vst.msk [vmem:[%s2870] sm:$0xff] %vm74, %v2867
    %v2872 = vld [vmem:[#allocation3] sm:$0xff]
    %s2873 = scalar_lea.vmem [#allocation2], 16
    %v2874 = vld [vmem:[%s2873] sm:$0xff]
    %v2876 = vsel %vm794, %v2872, 0
    %2878 = vmatprep.subr.mxu0 0.0
    %v2879 = vand.u32 %v782, 4294901760
    %2880 = vmatpush1.msra.mxu0 %v2879
    %2881 = vmatprep.subr.mxu0 0.0
    %v2882 = vand.u32 %v783, 4294901760
    %2883 = vmatpush1.msra.mxu0 %v2882
    %2884 = vmatprep.subr.mxu0 0.0
    %v2885 = vand.u32 %v784, 4294901760
    %2886 = vmatpush1.msra.mxu0 %v2885
    %2887 = vmatprep.subr.mxu0 0.0
    %v2888 = vand.u32 %v785, 4294901760
    %2889 = vmatpush1.msra.mxu0 %v2888
    %2890 = vmatprep.subr.mxu0 0.0
    %v2891 = vand.u32 %v786, 4294901760
    %2892 = vmatpush1.msra.mxu0 %v2891
    %2893 = vmatprep.subr.mxu0 0.0
    %v2894 = vand.u32 %v787, 4294901760
    %2895 = vmatpush1.msra.mxu0 %v2894
    %2896 = vmatprep.subr.mxu0 0.0
    %2897 = vmatpush1.msra.mxu0 0.0
    %2898 = vmatprep.subr.mxu0 0.0
    %2899 = vmatpush1.msra.mxu0 0.0
    %2900 = vmatprep.subr.mxu0 0.0
    %2901 = vmatpush1.msra.mxu0 0.0
    %2902 = vmatprep.subr.mxu0 0.0
    %2903 = vmatpush1.msra.mxu0 0.0
    %2904 = vmatprep.subr.mxu0 0.0
    %2905 = vmatpush1.msra.mxu0 0.0
    %2906 = vmatprep.subr.mxu0 0.0
    %2907 = vmatpush1.msra.mxu0 0.0
    %2908 = vmatprep.subr.mxu0 0.0
    %2909 = vmatpush1.msra.mxu0 0.0
    %2910 = vmatprep.subr.mxu0 0.0
    %2911 = vmatpush1.msra.mxu0 0.0
    %2912 = vmatprep.subr.mxu0 0.0
    %2913 = vmatpush1.msra.mxu0 0.0
    %2914 = vmatprep.subr.mxu0 0.0
    %2915 = vmatpush1.msra.mxu0 0.0
    %2916 = vmatprep.subr.mxu0 0.0
    %2917 = vmatpush1.msra.mxu0 0.0
    %2918 = vmatprep.subr.mxu0 0.0
    %2919 = vmatpush1.msra.mxu0 0.0
    %2920 = vmatprep.subr.mxu0 0.0
    %2921 = vmatpush1.msra.mxu0 0.0
    %2922 = vmatprep.subr.mxu0 0.0
    %2923 = vmatpush1.msra.mxu0 0.0
    %2924 = vmatprep.subr.mxu0 0.0
    %2925 = vmatpush1.msra.mxu0 0.0
    %2926 = vmatprep.subr.mxu0 0.0
    %2927 = vmatpush1.msra.mxu0 0.0
    %2928 = vmatprep.subr.mxu0 0.0
    %2929 = vmatpush1.msra.mxu0 0.0
    %2930 = vmatprep.subr.mxu0 0.0
    %2931 = vmatpush1.msra.mxu0 0.0
    %2932 = vmatprep.subr.mxu0 0.0
    %2933 = vmatpush1.msra.mxu0 0.0
    %2934 = vmatprep.subr.mxu0 0.0
    %2935 = vmatpush1.msra.mxu0 0.0
    %2936 = vmatprep.subr.mxu0 0.0
    %2937 = vmatpush1.msra.mxu0 0.0
    %2938 = vmatprep.subr.mxu0 0.0
    %2939 = vmatpush1.msra.mxu0 0.0
    %2940 = vmatprep.subr.mxu0 0.0
    %2941 = vmatpush1.msra.mxu0 0.0
    %2942 = vmatprep.subr.mxu0 0.0
    %2943 = vmatpush1.msra.mxu0 0.0
    %2944 = vmatprep.subr.mxu0 0.0
    %2945 = vmatpush1.msra.mxu0 0.0
    %2946 = vmatprep.subr.mxu0 0.0
    %2947 = vmatpush1.msra.mxu0 0.0
    %2948 = vmatprep.mubr.f32.mxu0 0.0
    %v2949 = vand.u32 %v2876, 4294901760
    %v2950 = vsub.f32 %v2876, %v2949
    %v2951 = vand.u32 %v2950, 4294901760
    %v2952 = vsub.f32 %v2950, %v2951
    %v2953 = vand.u32 %v2952, 4294901760
    %2954 = vmatmul.mubr.f32.gmra.mrb[0].mxu0 %v2953
    %v2955 = vpop.f32.mrb[0].mxu0
    %v2956 = vadd.f32 0.0, %v2955
    %v2957 = vpop.f32.mrb[0].mxu0
    %2958 = vdwg.mxu0
    %2959 = vmatprep.subr.mxu0 0.0
    %v2960 = vand.u32 %v782, 4294901760
    %v2961 = vsub.f32 %v782, %v2960
    %v2962 = vand.u32 %v2961, 4294901760
    %v2963 = vsub.f32 %v2961, %v2962
    %v2964 = vand.u32 %v2963, 4294901760
    %2965 = vmatpush1.msra.mxu0 %v2964
    %2966 = vmatprep.subr.mxu0 0.0
    %v2967 = vand.u32 %v783, 4294901760
    %v2968 = vsub.f32 %v783, %v2967
    %v2969 = vand.u32 %v2968, 4294901760
    %v2970 = vsub.f32 %v2968, %v2969
    %v2971 = vand.u32 %v2970, 4294901760
    %2972 = vmatpush1.msra.mxu0 %v2971
    %2973 = vmatprep.subr.mxu0 0.0
    %v2974 = vand.u32 %v784, 4294901760
    %v2975 = vsub.f32 %v784, %v2974
    %v2976 = vand.u32 %v2975, 4294901760
    %v2977 = vsub.f32 %v2975, %v2976
    %v2978 = vand.u32 %v2977, 4294901760
    %2979 = vmatpush1.msra.mxu0 %v2978
    %2980 = vmatprep.subr.mxu0 0.0
    %v2981 = vand.u32 %v785, 4294901760
    %v2982 = vsub.f32 %v785, %v2981
    %v2983 = vand.u32 %v2982, 4294901760
    %v2984 = vsub.f32 %v2982, %v2983
    %v2985 = vand.u32 %v2984, 4294901760
    %2986 = vmatpush1.msra.mxu0 %v2985
    %2987 = vmatprep.subr.mxu0 0.0
    %v2988 = vand.u32 %v786, 4294901760
    %v2989 = vsub.f32 %v786, %v2988
    %v2990 = vand.u32 %v2989, 4294901760
    %v2991 = vsub.f32 %v2989, %v2990
    %v2992 = vand.u32 %v2991, 4294901760
    %2993 = vmatpush1.msra.mxu0 %v2992
    %2994 = vmatprep.subr.mxu0 0.0
    %v2995 = vand.u32 %v787, 4294901760
    %v2996 = vsub.f32 %v787, %v2995
    %v2997 = vand.u32 %v2996, 4294901760
    %v2998 = vsub.f32 %v2996, %v2997
    %v2999 = vand.u32 %v2998, 4294901760
    %3000 = vmatpush1.msra.mxu0 %v2999
    %3001 = vmatprep.subr.mxu0 0.0
    %3002 = vmatpush1.msra.mxu0 0.0
    %3003 = vmatprep.subr.mxu0 0.0
    %3004 = vmatpush1.msra.mxu0 0.0
    %3005 = vmatprep.subr.mxu0 0.0
    %3006 = vmatpush1.msra.mxu0 0.0
    %3007 = vmatprep.subr.mxu0 0.0
    %3008 = vmatpush1.msra.mxu0 0.0
    %3009 = vmatprep.subr.mxu0 0.0
    %3010 = vmatpush1.msra.mxu0 0.0
    %3011 = vmatprep.subr.mxu0 0.0
    %3012 = vmatpush1.msra.mxu0 0.0
    %3013 = vmatprep.subr.mxu0 0.0
    %3014 = vmatpush1.msra.mxu0 0.0
    %3015 = vmatprep.subr.mxu0 0.0
    %3016 = vmatpush1.msra.mxu0 0.0
    %3017 = vmatprep.subr.mxu0 0.0
    %3018 = vmatpush1.msra.mxu0 0.0
    %3019 = vmatprep.subr.mxu0 0.0
    %3020 = vmatpush1.msra.mxu0 0.0
    %3021 = vmatprep.subr.mxu0 0.0
    %3022 = vmatpush1.msra.mxu0 0.0
    %3023 = vmatprep.subr.mxu0 0.0
    %3024 = vmatpush1.msra.mxu0 0.0
    %3025 = vmatprep.subr.mxu0 0.0
    %3026 = vmatpush1.msra.mxu0 0.0
    %3027 = vmatprep.subr.mxu0 0.0
    %3028 = vmatpush1.msra.mxu0 0.0
    %3029 = vmatprep.subr.mxu0 0.0
    %3030 = vmatpush1.msra.mxu0 0.0
    %3031 = vmatprep.subr.mxu0 0.0
    %3032 = vmatpush1.msra.mxu0 0.0
    %3033 = vmatprep.subr.mxu0 0.0
    %3034 = vmatpush1.msra.mxu0 0.0
    %3035 = vmatprep.subr.mxu0 0.0
    %3036 = vmatpush1.msra.mxu0 0.0
    %3037 = vmatprep.subr.mxu0 0.0
    %3038 = vmatpush1.msra.mxu0 0.0
    %3039 = vmatprep.subr.mxu0 0.0
    %3040 = vmatpush1.msra.mxu0 0.0
    %3041 = vmatprep.subr.mxu0 0.0
    %3042 = vmatpush1.msra.mxu0 0.0
    %3043 = vmatprep.subr.mxu0 0.0
    %3044 = vmatpush1.msra.mxu0 0.0
    %3045 = vmatprep.subr.mxu0 0.0
    %3046 = vmatpush1.msra.mxu0 0.0
    %3047 = vmatprep.subr.mxu0 0.0
    %3048 = vmatpush1.msra.mxu0 0.0
    %3049 = vmatprep.subr.mxu0 0.0
    %3050 = vmatpush1.msra.mxu0 0.0
    %3051 = vmatprep.subr.mxu0 0.0
    %3052 = vmatpush1.msra.mxu0 0.0
    %3053 = vmatprep.mubr.f32.mxu0 0.0
    %v3054 = vand.u32 %v2876, 4294901760
    %3055 = vmatmul.mubr.f32.gmra.mrb[0].mxu0 %v3054
    %v3056 = vpop.f32.mrb[0].mxu0
    %v3057 = vadd.f32 %v2956, %v3056
    %v3058 = vpop.f32.mrb[0].mxu0
    %3059 = vdwg.mxu0
    %3060 = vmatprep.subr.mxu0 0.0
    %v3061 = vand.u32 %v782, 4294901760
    %v3062 = vsub.f32 %v782, %v3061
    %3063 = vmatpush1.msra.mxu0 %v3062
    %3064 = vmatprep.subr.mxu0 0.0
    %v3065 = vand.u32 %v783, 4294901760
    %v3066 = vsub.f32 %v783, %v3065
    %3067 = vmatpush1.msra.mxu0 %v3066
    %3068 = vmatprep.subr.mxu0 0.0
    %v3069 = vand.u32 %v784, 4294901760
    %v3070 = vsub.f32 %v784, %v3069
    %3071 = vmatpush1.msra.mxu0 %v3070
    %3072 = vmatprep.subr.mxu0 0.0
    %v3073 = vand.u32 %v785, 4294901760
    %v3074 = vsub.f32 %v785, %v3073
    %3075 = vmatpush1.msra.mxu0 %v3074
    %3076 = vmatprep.subr.mxu0 0.0
    %v3077 = vand.u32 %v786, 4294901760
    %v3078 = vsub.f32 %v786, %v3077
    %3079 = vmatpush1.msra.mxu0 %v3078
    %3080 = vmatprep.subr.mxu0 0.0
    %v3081 = vand.u32 %v787, 4294901760
    %v3082 = vsub.f32 %v787, %v3081
    %3083 = vmatpush1.msra.mxu0 %v3082
    %3084 = vmatprep.subr.mxu0 0.0
    %3085 = vmatpush1.msra.mxu0 0.0
    %3086 = vmatprep.subr.mxu0 0.0
    %3087 = vmatpush1.msra.mxu0 0.0
    %3088 = vmatprep.subr.mxu0 0.0
    %3089 = vmatpush1.msra.mxu0 0.0
    %3090 = vmatprep.subr.mxu0 0.0
    %3091 = vmatpush1.msra.mxu0 0.0
    %3092 = vmatprep.subr.mxu0 0.0
    %3093 = vmatpush1.msra.mxu0 0.0
    %3094 = vmatprep.subr.mxu0 0.0
    %3095 = vmatpush1.msra.mxu0 0.0
    %3096 = vmatprep.subr.mxu0 0.0
    %3097 = vmatpush1.msra.mxu0 0.0
    %3098 = vmatprep.subr.mxu0 0.0
    %3099 = vmatpush1.msra.mxu0 0.0
    %3100 = vmatprep.subr.mxu0 0.0
    %3101 = vmatpush1.msra.mxu0 0.0
    %3102 = vmatprep.subr.mxu0 0.0
    %3103 = vmatpush1.msra.mxu0 0.0
    %3104 = vmatprep.subr.mxu0 0.0
    %3105 = vmatpush1.msra.mxu0 0.0
    %3106 = vmatprep.subr.mxu0 0.0
    %3107 = vmatpush1.msra.mxu0 0.0
    %3108 = vmatprep.subr.mxu0 0.0
    %3109 = vmatpush1.msra.mxu0 0.0
    %3110 = vmatprep.subr.mxu0 0.0
    %3111 = vmatpush1.msra.mxu0 0.0
    %3112 = vmatprep.subr.mxu0 0.0
    %3113 = vmatpush1.msra.mxu0 0.0
    %3114 = vmatprep.subr.mxu0 0.0
    %3115 = vmatpush1.msra.mxu0 0.0
    %3116 = vmatprep.subr.mxu0 0.0
    %3117 = vmatpush1.msra.mxu0 0.0
    %3118 = vmatprep.subr.mxu0 0.0
    %3119 = vmatpush1.msra.mxu0 0.0
    %3120 = vmatprep.subr.mxu0 0.0
    %3121 = vmatpush1.msra.mxu0 0.0
    %3122 = vmatprep.subr.mxu0 0.0
    %3123 = vmatpush1.msra.mxu0 0.0
    %3124 = vmatprep.subr.mxu0 0.0
    %3125 = vmatpush1.msra.mxu0 0.0
    %3126 = vmatprep.subr.mxu0 0.0
    %3127 = vmatpush1.msra.mxu0 0.0
    %3128 = vmatprep.subr.mxu0 0.0
    %3129 = vmatpush1.msra.mxu0 0.0
    %3130 = vmatprep.subr.mxu0 0.0
    %3131 = vmatpush1.msra.mxu0 0.0
    %3132 = vmatprep.subr.mxu0 0.0
    %3133 = vmatpush1.msra.mxu0 0.0
    %3134 = vmatprep.subr.mxu0 0.0
    %3135 = vmatpush1.msra.mxu0 0.0
    %3136 = vmatprep.mubr.f32.mxu0 0.0
    %v3137 = vand.u32 %v2876, 4294901760
    %v3138 = vsub.f32 %v2876, %v3137
    %3139 = vmatmul.mubr.f32.gmra.mrb[0].mxu0 %v3138
    %v3140 = vpop.f32.mrb[0].mxu0
    %v3141 = vadd.f32 %v3057, %v3140
    %v3142 = vpop.f32.mrb[0].mxu0
    %3143 = vdwg.mxu0
    %3144 = vmatprep.subr.mxu0 0.0
    %v3145 = vand.u32 %v782, 4294901760
    %3146 = vmatpush1.msra.mxu0 %v3145
    %3147 = vmatprep.subr.mxu0 0.0
    %v3148 = vand.u32 %v783, 4294901760
    %3149 = vmatpush1.msra.mxu0 %v3148
    %3150 = vmatprep.subr.mxu0 0.0
    %v3151 = vand.u32 %v784, 4294901760
    %3152 = vmatpush1.msra.mxu0 %v3151
    %3153 = vmatprep.subr.mxu0 0.0
    %v3154 = vand.u32 %v785, 4294901760
    %3155 = vmatpush1.msra.mxu0 %v3154
    %3156 = vmatprep.subr.mxu0 0.0
    %v3157 = vand.u32 %v786, 4294901760
    %3158 = vmatpush1.msra.mxu0 %v3157
    %3159 = vmatprep.subr.mxu0 0.0
    %v3160 = vand.u32 %v787, 4294901760
    %3161 = vmatpush1.msra.mxu0 %v3160
    %3162 = vmatprep.subr.mxu0 0.0
    %3163 = vmatpush1.msra.mxu0 0.0
    %3164 = vmatprep.subr.mxu0 0.0
    %3165 = vmatpush1.msra.mxu0 0.0
    %3166 = vmatprep.subr.mxu0 0.0
    %3167 = vmatpush1.msra.mxu0 0.0
    %3168 = vmatprep.subr.mxu0 0.0
    %3169 = vmatpush1.msra.mxu0 0.0
    %3170 = vmatprep.subr.mxu0 0.0
    %3171 = vmatpush1.msra.mxu0 0.0
    %3172 = vmatprep.subr.mxu0 0.0
    %3173 = vmatpush1.msra.mxu0 0.0
    %3174 = vmatprep.subr.mxu0 0.0
    %3175 = vmatpush1.msra.mxu0 0.0
    %3176 = vmatprep.subr.mxu0 0.0
    %3177 = vmatpush1.msra.mxu0 0.0
    %3178 = vmatprep.subr.mxu0 0.0
    %3179 = vmatpush1.msra.mxu0 0.0
    %3180 = vmatprep.subr.mxu0 0.0
    %3181 = vmatpush1.msra.mxu0 0.0
    %3182 = vmatprep.subr.mxu0 0.0
    %3183 = vmatpush1.msra.mxu0 0.0
    %3184 = vmatprep.subr.mxu0 0.0
    %3185 = vmatpush1.msra.mxu0 0.0
    %3186 = vmatprep.subr.mxu0 0.0
    %3187 = vmatpush1.msra.mxu0 0.0
    %3188 = vmatprep.subr.mxu0 0.0
    %3189 = vmatpush1.msra.mxu0 0.0
    %3190 = vmatprep.subr.mxu0 0.0
    %3191 = vmatpush1.msra.mxu0 0.0
    %3192 = vmatprep.subr.mxu0 0.0
    %3193 = vmatpush1.msra.mxu0 0.0
    %3194 = vmatprep.subr.mxu0 0.0
    %3195 = vmatpush1.msra.mxu0 0.0
    %3196 = vmatprep.subr.mxu0 0.0
    %3197 = vmatpush1.msra.mxu0 0.0
    %3198 = vmatprep.subr.mxu0 0.0
    %3199 = vmatpush1.msra.mxu0 0.0
    %3200 = vmatprep.subr.mxu0 0.0
    %3201 = vmatpush1.msra.mxu0 0.0
    %3202 = vmatprep.subr.mxu0 0.0
    %3203 = vmatpush1.msra.mxu0 0.0
    %3204 = vmatprep.subr.mxu0 0.0
    %3205 = vmatpush1.msra.mxu0 0.0
    %3206 = vmatprep.subr.mxu0 0.0
    %3207 = vmatpush1.msra.mxu0 0.0
    %3208 = vmatprep.subr.mxu0 0.0
    %3209 = vmatpush1.msra.mxu0 0.0
    %3210 = vmatprep.subr.mxu0 0.0
    %3211 = vmatpush1.msra.mxu0 0.0
    %3212 = vmatprep.subr.mxu0 0.0
    %3213 = vmatpush1.msra.mxu0 0.0
    %3214 = vmatprep.mubr.f32.mxu0 0.0
    %v3215 = vand.u32 %v2876, 4294901760
    %v3216 = vsub.f32 %v2876, %v3215
    %v3217 = vand.u32 %v3216, 4294901760
    %3218 = vmatmul.mubr.f32.gmra.mrb[0].mxu0 %v3217
    %v3219 = vpop.f32.mrb[0].mxu0
    %v3220 = vadd.f32 %v3141, %v3219
    %v3221 = vpop.f32.mrb[0].mxu0
    %3222 = vdwg.mxu0
    %3223 = vmatprep.subr.mxu0 0.0
    %v3224 = vand.u32 %v782, 4294901760
    %v3225 = vsub.f32 %v782, %v3224
    %v3226 = vand.u32 %v3225, 4294901760
    %3227 = vmatpush1.msra.mxu0 %v3226
    %3228 = vmatprep.subr.mxu0 0.0
    %v3229 = vand.u32 %v783, 4294901760
    %v3230 = vsub.f32 %v783, %v3229
    %v3231 = vand.u32 %v3230, 4294901760
    %3232 = vmatpush1.msra.mxu0 %v3231
    %3233 = vmatprep.subr.mxu0 0.0
    %v3234 = vand.u32 %v784, 4294901760
    %v3235 = vsub.f32 %v784, %v3234
    %v3236 = vand.u32 %v3235, 4294901760
    %3237 = vmatpush1.msra.mxu0 %v3236
    %3238 = vmatprep.subr.mxu0 0.0
    %v3239 = vand.u32 %v785, 4294901760
    %v3240 = vsub.f32 %v785, %v3239
    %v3241 = vand.u32 %v3240, 4294901760
    %3242 = vmatpush1.msra.mxu0 %v3241
    %3243 = vmatprep.subr.mxu0 0.0
    %v3244 = vand.u32 %v786, 4294901760
    %v3245 = vsub.f32 %v786, %v3244
    %v3246 = vand.u32 %v3245, 4294901760
    %3247 = vmatpush1.msra.mxu0 %v3246
    %3248 = vmatprep.subr.mxu0 0.0
    %v3249 = vand.u32 %v787, 4294901760
    %v3250 = vsub.f32 %v787, %v3249
    %v3251 = vand.u32 %v3250, 4294901760
    %3252 = vmatpush1.msra.mxu0 %v3251
    %3253 = vmatprep.subr.mxu0 0.0
    %3254 = vmatpush1.msra.mxu0 0.0
    %3255 = vmatprep.subr.mxu0 0.0
    %3256 = vmatpush1.msra.mxu0 0.0
    %3257 = vmatprep.subr.mxu0 0.0
    %3258 = vmatpush1.msra.mxu0 0.0
    %3259 = vmatprep.subr.mxu0 0.0
    %3260 = vmatpush1.msra.mxu0 0.0
    %3261 = vmatprep.subr.mxu0 0.0
    %3262 = vmatpush1.msra.mxu0 0.0
    %3263 = vmatprep.subr.mxu0 0.0
    %3264 = vmatpush1.msra.mxu0 0.0
    %3265 = vmatprep.subr.mxu0 0.0
    %3266 = vmatpush1.msra.mxu0 0.0
    %3267 = vmatprep.subr.mxu0 0.0
    %3268 = vmatpush1.msra.mxu0 0.0
    %3269 = vmatprep.subr.mxu0 0.0
    %3270 = vmatpush1.msra.mxu0 0.0
    %3271 = vmatprep.subr.mxu0 0.0
    %3272 = vmatpush1.msra.mxu0 0.0
    %3273 = vmatprep.subr.mxu0 0.0
    %3274 = vmatpush1.msra.mxu0 0.0
    %3275 = vmatprep.subr.mxu0 0.0
    %3276 = vmatpush1.msra.mxu0 0.0
    %3277 = vmatprep.subr.mxu0 0.0
    %3278 = vmatpush1.msra.mxu0 0.0
    %3279 = vmatprep.subr.mxu0 0.0
    %3280 = vmatpush1.msra.mxu0 0.0
    %3281 = vmatprep.subr.mxu0 0.0
    %3282 = vmatpush1.msra.mxu0 0.0
    %3283 = vmatprep.subr.mxu0 0.0
    %3284 = vmatpush1.msra.mxu0 0.0
    %3285 = vmatprep.subr.mxu0 0.0
    %3286 = vmatpush1.msra.mxu0 0.0
    %3287 = vmatprep.subr.mxu0 0.0
    %3288 = vmatpush1.msra.mxu0 0.0
    %3289 = vmatprep.subr.mxu0 0.0
    %3290 = vmatpush1.msra.mxu0 0.0
    %3291 = vmatprep.subr.mxu0 0.0
    %3292 = vmatpush1.msra.mxu0 0.0
    %3293 = vmatprep.subr.mxu0 0.0
    %3294 = vmatpush1.msra.mxu0 0.0
    %3295 = vmatprep.subr.mxu0 0.0
    %3296 = vmatpush1.msra.mxu0 0.0
    %3297 = vmatprep.subr.mxu0 0.0
    %3298 = vmatpush1.msra.mxu0 0.0
    %3299 = vmatprep.subr.mxu0 0.0
    %3300 = vmatpush1.msra.mxu0 0.0
    %3301 = vmatprep.subr.mxu0 0.0
    %3302 = vmatpush1.msra.mxu0 0.0
    %3303 = vmatprep.subr.mxu0 0.0
    %3304 = vmatpush1.msra.mxu0 0.0
    %3305 = vmatprep.mubr.f32.mxu0 0.0
    %v3306 = vand.u32 %v2876, 4294901760
    %3307 = vmatmul.mubr.f32.gmra.mrb[0].mxu0 %v3306
    %v3308 = vpop.f32.mrb[0].mxu0
    %v3309 = vadd.f32 %v3220, %v3308
    %v3310 = vpop.f32.mrb[0].mxu0
    %3311 = vdwg.mxu0
    %3312 = vmatprep.subr.mxu0 0.0
    %v3313 = vand.u32 %v782, 4294901760
    %3314 = vmatpush1.msra.mxu0 %v3313
    %3315 = vmatprep.subr.mxu0 0.0
    %v3316 = vand.u32 %v783, 4294901760
    %3317 = vmatpush1.msra.mxu0 %v3316
    %3318 = vmatprep.subr.mxu0 0.0
    %v3319 = vand.u32 %v784, 4294901760
    %3320 = vmatpush1.msra.mxu0 %v3319
    %3321 = vmatprep.subr.mxu0 0.0
    %v3322 = vand.u32 %v785, 4294901760
    %3323 = vmatpush1.msra.mxu0 %v3322
    %3324 = vmatprep.subr.mxu0 0.0
    %v3325 = vand.u32 %v786, 4294901760
    %3326 = vmatpush1.msra.mxu0 %v3325
    %3327 = vmatprep.subr.mxu0 0.0
    %v3328 = vand.u32 %v787, 4294901760
    %3329 = vmatpush1.msra.mxu0 %v3328
    %3330 = vmatprep.subr.mxu0 0.0
    %3331 = vmatpush1.msra.mxu0 0.0
    %3332 = vmatprep.subr.mxu0 0.0
    %3333 = vmatpush1.msra.mxu0 0.0
    %3334 = vmatprep.subr.mxu0 0.0
    %3335 = vmatpush1.msra.mxu0 0.0
    %3336 = vmatprep.subr.mxu0 0.0
    %3337 = vmatpush1.msra.mxu0 0.0
    %3338 = vmatprep.subr.mxu0 0.0
    %3339 = vmatpush1.msra.mxu0 0.0
    %3340 = vmatprep.subr.mxu0 0.0
    %3341 = vmatpush1.msra.mxu0 0.0
    %3342 = vmatprep.subr.mxu0 0.0
    %3343 = vmatpush1.msra.mxu0 0.0
    %3344 = vmatprep.subr.mxu0 0.0
    %3345 = vmatpush1.msra.mxu0 0.0
    %3346 = vmatprep.subr.mxu0 0.0
    %3347 = vmatpush1.msra.mxu0 0.0
    %3348 = vmatprep.subr.mxu0 0.0
    %3349 = vmatpush1.msra.mxu0 0.0
    %3350 = vmatprep.subr.mxu0 0.0
    %3351 = vmatpush1.msra.mxu0 0.0
    %3352 = vmatprep.subr.mxu0 0.0
    %3353 = vmatpush1.msra.mxu0 0.0
    %3354 = vmatprep.subr.mxu0 0.0
    %3355 = vmatpush1.msra.mxu0 0.0
    %3356 = vmatprep.subr.mxu0 0.0
    %3357 = vmatpush1.msra.mxu0 0.0
    %3358 = vmatprep.subr.mxu0 0.0
    %3359 = vmatpush1.msra.mxu0 0.0
    %3360 = vmatprep.subr.mxu0 0.0
    %3361 = vmatpush1.msra.mxu0 0.0
    %3362 = vmatprep.subr.mxu0 0.0
    %3363 = vmatpush1.msra.mxu0 0.0
    %3364 = vmatprep.subr.mxu0 0.0
    %3365 = vmatpush1.msra.mxu0 0.0
    %3366 = vmatprep.subr.mxu0 0.0
    %3367 = vmatpush1.msra.mxu0 0.0
    %3368 = vmatprep.subr.mxu0 0.0
    %3369 = vmatpush1.msra.mxu0 0.0
    %3370 = vmatprep.subr.mxu0 0.0
    %3371 = vmatpush1.msra.mxu0 0.0
    %3372 = vmatprep.subr.mxu0 0.0
    %3373 = vmatpush1.msra.mxu0 0.0
    %3374 = vmatprep.subr.mxu0 0.0
    %3375 = vmatpush1.msra.mxu0 0.0
    %3376 = vmatprep.subr.mxu0 0.0
    %3377 = vmatpush1.msra.mxu0 0.0
    %3378 = vmatprep.subr.mxu0 0.0
    %3379 = vmatpush1.msra.mxu0 0.0
    %3380 = vmatprep.subr.mxu0 0.0
    %3381 = vmatpush1.msra.mxu0 0.0
    %3382 = vmatprep.mubr.f32.mxu0 0.0
    %v3383 = vand.u32 %v2876, 4294901760
    %3384 = vmatmul.mubr.f32.gmra.mrb[0].mxu0 %v3383
    %v3385 = vpop.f32.mrb[0].mxu0
    %v3386 = vadd.f32 %v3309, %v3385
    %v3387 = vpop.f32.mrb[0].mxu0
    %3388 = vdwg.mxu0
    %v3389 = vadd.f32 %v2874, %v3386
    %v3390 = vxor.u32 %v3389, 2147483648
    %v3391 = vmul.f32 %v3390, 1.442695
    %v3392 = vpow.pop %v3391
    %v3393 = vadd.f32 %v3392, 1.0
    %v3394 = vrcp.pop %v3393
    %v3395 = vmul.f32 1.0, %v3394
    %3397 = vrot.lane.b32.xlu0 %v3395, 96
    %v3398 = vpop.permute.xlu0 %3397
    %v3400 = vmul.f32 %v3395, %v3398
    %3402 = vrot.lane.b32.xlu0 %v3400, 64
    %v3403 = vpop.permute.xlu0 %3402
    %v3405 = vadd.f32 %v3395, %v3403
    %v3406 = vtanh.pop %v3405
    %3408 = vrot.lane.b32.xlu0 %v3406, 32
    %v3409 = vpop.permute.xlu0 %3408
    %v3411 = vmul.f32 %v3395, %v3409
    %3413 = vrot.lane.b32.xlu0 %v3411, 48
    %v3414 = vpop.permute.xlu0 %3413
    %v3416 = vadd.f32 %v2872, %v3414
    %3418 = vrot.lane.b32.xlu0 %v3405, 64
    %v3419 = vpop.permute.xlu0 %3418
    %v3420 = vsel %vm1340, %v3419, 0
    %3422 = vmatprep.subr.mxu0 0.0
    %v3423 = vand.u32 %v788, 4294901760
    %3424 = vmatpush1.msra.mxu0 %v3423
    %3425 = vmatprep.subr.mxu0 0.0
    %v3426 = vand.u32 %v789, 4294901760
    %3427 = vmatpush1.msra.mxu0 %v3426
    %3428 = vmatprep.subr.mxu0 0.0
    %v3429 = vand.u32 %v790, 4294901760
    %3430 = vmatpush1.msra.mxu0 %v3429
    %3431 = vmatprep.subr.mxu0 0.0
    %v3432 = vand.u32 %v791, 4294901760
    %3433 = vmatpush1.msra.mxu0 %v3432
    %3434 = vmatprep.subr.mxu0 0.0
    %3435 = vmatpush1.msra.mxu0 0.0
    %3436 = vmatprep.subr.mxu0 0.0
    %3437 = vmatpush1.msra.mxu0 0.0
    %3438 = vmatprep.subr.mxu0 0.0
    %3439 = vmatpush1.msra.mxu0 0.0
    %3440 = vmatprep.subr.mxu0 0.0
    %3441 = vmatpush1.msra.mxu0 0.0
    %3442 = vmatprep.subr.mxu0 0.0
    %3443 = vmatpush1.msra.mxu0 0.0
    %3444 = vmatprep.subr.mxu0 0.0
    %3445 = vmatpush1.msra.mxu0 0.0
    %3446 = vmatprep.subr.mxu0 0.0
    %3447 = vmatpush1.msra.mxu0 0.0
    %3448 = vmatprep.subr.mxu0 0.0
    %3449 = vmatpush1.msra.mxu0 0.0
    %3450 = vmatprep.subr.mxu0 0.0
    %3451 = vmatpush1.msra.mxu0 0.0
    %3452 = vmatprep.subr.mxu0 0.0
    %3453 = vmatpush1.msra.mxu0 0.0
    %3454 = vmatprep.subr.mxu0 0.0
    %3455 = vmatpush1.msra.mxu0 0.0
    %3456 = vmatprep.subr.mxu0 0.0
    %3457 = vmatpush1.msra.mxu0 0.0
    %3458 = vmatprep.subr.mxu0 0.0
    %3459 = vmatpush1.msra.mxu0 0.0
    %3460 = vmatprep.subr.mxu0 0.0
    %3461 = vmatpush1.msra.mxu0 0.0
    %3462 = vmatprep.subr.mxu0 0.0
    %3463 = vmatpush1.msra.mxu0 0.0
    %3464 = vmatprep.subr.mxu0 0.0
    %3465 = vmatpush1.msra.mxu0 0.0
    %3466 = vmatprep.subr.mxu0 0.0
    %3467 = vmatpush1.msra.mxu0 0.0
    %3468 = vmatprep.subr.mxu0 0.0
    %3469 = vmatpush1.msra.mxu0 0.0
    %3470 = vmatprep.subr.mxu0 0.0
    %3471 = vmatpush1.msra.mxu0 0.0
    %3472 = vmatprep.subr.mxu0 0.0
    %3473 = vmatpush1.msra.mxu0 0.0
    %3474 = vmatprep.subr.mxu0 0.0
    %3475 = vmatpush1.msra.mxu0 0.0
    %3476 = vmatprep.subr.mxu0 0.0
    %3477 = vmatpush1.msra.mxu0 0.0
    %3478 = vmatprep.subr.mxu0 0.0
    %3479 = vmatpush1.msra.mxu0 0.0
    %3480 = vmatprep.subr.mxu0 0.0
    %3481 = vmatpush1.msra.mxu0 0.0
    %3482 = vmatprep.subr.mxu0 0.0
    %3483 = vmatpush1.msra.mxu0 0.0
    %3484 = vmatprep.subr.mxu0 0.0
    %3485 = vmatpush1.msra.mxu0 0.0
    %3486 = vmatprep.subr.mxu0 0.0
    %3487 = vmatpush1.msra.mxu0 0.0
    %3488 = vmatprep.subr.mxu0 0.0
    %3489 = vmatpush1.msra.mxu0 0.0
    %3490 = vmatprep.mubr.f32.mxu0 0.0
    %v3491 = vand.u32 %v3420, 4294901760
    %v3492 = vsub.f32 %v3420, %v3491
    %v3493 = vand.u32 %v3492, 4294901760
    %v3494 = vsub.f32 %v3492, %v3493
    %v3495 = vand.u32 %v3494, 4294901760
    %3496 = vmatmul.mubr.f32.gmra.mrb[0].mxu0 %v3495
    %v3497 = vpop.f32.mrb[0].mxu0
    %v3498 = vadd.f32 0.0, %v3497
    %v3499 = vpop.f32.mrb[0].mxu0
    %3500 = vdwg.mxu0
    %3501 = vmatprep.subr.mxu0 0.0
    %v3502 = vand.u32 %v788, 4294901760
    %v3503 = vsub.f32 %v788, %v3502
    %v3504 = vand.u32 %v3503, 4294901760
    %v3505 = vsub.f32 %v3503, %v3504
    %v3506 = vand.u32 %v3505, 4294901760
    %3507 = vmatpush1.msra.mxu0 %v3506
    %3508 = vmatprep.subr.mxu0 0.0
    %v3509 = vand.u32 %v789, 4294901760
    %v3510 = vsub.f32 %v789, %v3509
    %v3511 = vand.u32 %v3510, 4294901760
    %v3512 = vsub.f32 %v3510, %v3511
    %v3513 = vand.u32 %v3512, 4294901760
    %3514 = vmatpush1.msra.mxu0 %v3513
    %3515 = vmatprep.subr.mxu0 0.0
    %v3516 = vand.u32 %v790, 4294901760
    %v3517 = vsub.f32 %v790, %v3516
    %v3518 = vand.u32 %v3517, 4294901760
    %v3519 = vsub.f32 %v3517, %v3518
    %v3520 = vand.u32 %v3519, 4294901760
    %3521 = vmatpush1.msra.mxu0 %v3520
    %3522 = vmatprep.subr.mxu0 0.0
    %v3523 = vand.u32 %v791, 4294901760
    %v3524 = vsub.f32 %v791, %v3523
    %v3525 = vand.u32 %v3524, 4294901760
    %v3526 = vsub.f32 %v3524, %v3525
    %v3527 = vand.u32 %v3526, 4294901760
    %3528 = vmatpush1.msra.mxu0 %v3527
    %3529 = vmatprep.subr.mxu0 0.0
    %3530 = vmatpush1.msra.mxu0 0.0
    %3531 = vmatprep.subr.mxu0 0.0
    %3532 = vmatpush1.msra.mxu0 0.0
    %3533 = vmatprep.subr.mxu0 0.0
    %3534 = vmatpush1.msra.mxu0 0.0
    %3535 = vmatprep.subr.mxu0 0.0
    %3536 = vmatpush1.msra.mxu0 0.0
    %3537 = vmatprep.subr.mxu0 0.0
    %3538 = vmatpush1.msra.mxu0 0.0
    %3539 = vmatprep.subr.mxu0 0.0
    %3540 = vmatpush1.msra.mxu0 0.0
    %3541 = vmatprep.subr.mxu0 0.0
    %3542 = vmatpush1.msra.mxu0 0.0
    %3543 = vmatprep.subr.mxu0 0.0
    %3544 = vmatpush1.msra.mxu0 0.0
    %3545 = vmatprep.subr.mxu0 0.0
    %3546 = vmatpush1.msra.mxu0 0.0
    %3547 = vmatprep.subr.mxu0 0.0
    %3548 = vmatpush1.msra.mxu0 0.0
    %3549 = vmatprep.subr.mxu0 0.0
    %3550 = vmatpush1.msra.mxu0 0.0
    %3551 = vmatprep.subr.mxu0 0.0
    %3552 = vmatpush1.msra.mxu0 0.0
    %3553 = vmatprep.subr.mxu0 0.0
    %3554 = vmatpush1.msra.mxu0 0.0
    %3555 = vmatprep.subr.mxu0 0.0
    %3556 = vmatpush1.msra.mxu0 0.0
    %3557 = vmatprep.subr.mxu0 0.0
    %3558 = vmatpush1.msra.mxu0 0.0
    %3559 = vmatprep.subr.mxu0 0.0
    %3560 = vmatpush1.msra.mxu0 0.0
    %3561 = vmatprep.subr.mxu0 0.0
    %3562 = vmatpush1.msra.mxu0 0.0
    %3563 = vmatprep.subr.mxu0 0.0
    %3564 = vmatpush1.msra.mxu0 0.0
    %3565 = vmatprep.subr.mxu0 0.0
    %3566 = vmatpush1.msra.mxu0 0.0
    %3567 = vmatprep.subr.mxu0 0.0
    %3568 = vmatpush1.msra.mxu0 0.0
    %3569 = vmatprep.subr.mxu0 0.0
    %3570 = vmatpush1.msra.mxu0 0.0
    %3571 = vmatprep.subr.mxu0 0.0
    %3572 = vmatpush1.msra.mxu0 0.0
    %3573 = vmatprep.subr.mxu0 0.0
    %3574 = vmatpush1.msra.mxu0 0.0
    %3575 = vmatprep.subr.mxu0 0.0
    %3576 = vmatpush1.msra.mxu0 0.0
    %3577 = vmatprep.subr.mxu0 0.0
    %3578 = vmatpush1.msra.mxu0 0.0
    %3579 = vmatprep.subr.mxu0 0.0
    %3580 = vmatpush1.msra.mxu0 0.0
    %3581 = vmatprep.subr.mxu0 0.0
    %3582 = vmatpush1.msra.mxu0 0.0
    %3583 = vmatprep.subr.mxu0 0.0
    %3584 = vmatpush1.msra.mxu0 0.0
    %3585 = vmatprep.mubr.f32.mxu0 0.0
    %v3586 = vand.u32 %v3420, 4294901760
    %3587 = vmatmul.mubr.f32.gmra.mrb[0].mxu0 %v3586
    %v3588 = vpop.f32.mrb[0].mxu0
    %v3589 = vadd.f32 %v3498, %v3588
    %v3590 = vpop.f32.mrb[0].mxu0
    %3591 = vdwg.mxu0
    %3592 = vmatprep.subr.mxu0 0.0
    %v3593 = vand.u32 %v788, 4294901760
    %v3594 = vsub.f32 %v788, %v3593
    %3595 = vmatpush1.msra.mxu0 %v3594
    %3596 = vmatprep.subr.mxu0 0.0
    %v3597 = vand.u32 %v789, 4294901760
    %v3598 = vsub.f32 %v789, %v3597
    %3599 = vmatpush1.msra.mxu0 %v3598
    %3600 = vmatprep.subr.mxu0 0.0
    %v3601 = vand.u32 %v790, 4294901760
    %v3602 = vsub.f32 %v790, %v3601
    %3603 = vmatpush1.msra.mxu0 %v3602
    %3604 = vmatprep.subr.mxu0 0.0
    %v3605 = vand.u32 %v791, 4294901760
    %v3606 = vsub.f32 %v791, %v3605
    %3607 = vmatpush1.msra.mxu0 %v3606
    %3608 = vmatprep.subr.mxu0 0.0
    %3609 = vmatpush1.msra.mxu0 0.0
    %3610 = vmatprep.subr.mxu0 0.0
    %3611 = vmatpush1.msra.mxu0 0.0
    %3612 = vmatprep.subr.mxu0 0.0
    %3613 = vmatpush1.msra.mxu0 0.0
    %3614 = vmatprep.subr.mxu0 0.0
    %3615 = vmatpush1.msra.mxu0 0.0
    %3616 = vmatprep.subr.mxu0 0.0
    %3617 = vmatpush1.msra.mxu0 0.0
    %3618 = vmatprep.subr.mxu0 0.0
    %3619 = vmatpush1.msra.mxu0 0.0
    %3620 = vmatprep.subr.mxu0 0.0
    %3621 = vmatpush1.msra.mxu0 0.0
    %3622 = vmatprep.subr.mxu0 0.0
    %3623 = vmatpush1.msra.mxu0 0.0
    %3624 = vmatprep.subr.mxu0 0.0
    %3625 = vmatpush1.msra.mxu0 0.0
    %3626 = vmatprep.subr.mxu0 0.0
    %3627 = vmatpush1.msra.mxu0 0.0
    %3628 = vmatprep.subr.mxu0 0.0
    %3629 = vmatpush1.msra.mxu0 0.0
    %3630 = vmatprep.subr.mxu0 0.0
    %3631 = vmatpush1.msra.mxu0 0.0
    %3632 = vmatprep.subr.mxu0 0.0
    %3633 = vmatpush1.msra.mxu0 0.0
    %3634 = vmatprep.subr.mxu0 0.0
    %3635 = vmatpush1.msra.mxu0 0.0
    %3636 = vmatprep.subr.mxu0 0.0
    %3637 = vmatpush1.msra.mxu0 0.0
    %3638 = vmatprep.subr.mxu0 0.0
    %3639 = vmatpush1.msra.mxu0 0.0
    %3640 = vmatprep.subr.mxu0 0.0
    %3641 = vmatpush1.msra.mxu0 0.0
    %3642 = vmatprep.subr.mxu0 0.0
    %3643 = vmatpush1.msra.mxu0 0.0
    %3644 = vmatprep.subr.mxu0 0.0
    %3645 = vmatpush1.msra.mxu0 0.0
    %3646 = vmatprep.subr.mxu0 0.0
    %3647 = vmatpush1.msra.mxu0 0.0
    %3648 = vmatprep.subr.mxu0 0.0
    %3649 = vmatpush1.msra.mxu0 0.0
    %3650 = vmatprep.subr.mxu0 0.0
    %3651 = vmatpush1.msra.mxu0 0.0
    %3652 = vmatprep.subr.mxu0 0.0
    %3653 = vmatpush1.msra.mxu0 0.0
    %3654 = vmatprep.subr.mxu0 0.0
    %3655 = vmatpush1.msra.mxu0 0.0
    %3656 = vmatprep.subr.mxu0 0.0
    %3657 = vmatpush1.msra.mxu0 0.0
    %3658 = vmatprep.subr.mxu0 0.0
    %3659 = vmatpush1.msra.mxu0 0.0
    %3660 = vmatprep.subr.mxu0 0.0
    %3661 = vmatpush1.msra.mxu0 0.0
    %3662 = vmatprep.subr.mxu0 0.0
    %3663 = vmatpush1.msra.mxu0 0.0
    %3664 = vmatprep.mubr.f32.mxu0 0.0
    %v3665 = vand.u32 %v3420, 4294901760
    %v3666 = vsub.f32 %v3420, %v3665
    %3667 = vmatmul.mubr.f32.gmra.mrb[0].mxu0 %v3666
    %v3668 = vpop.f32.mrb[0].mxu0
    %v3669 = vadd.f32 %v3589, %v3668
    %v3670 = vpop.f32.mrb[0].mxu0
    %3671 = vdwg.mxu0
    %3672 = vmatprep.subr.mxu0 0.0
    %v3673 = vand.u32 %v788, 4294901760
    %3674 = vmatpush1.msra.mxu0 %v3673
    %3675 = vmatprep.subr.mxu0 0.0
    %v3676 = vand.u32 %v789, 4294901760
    %3677 = vmatpush1.msra.mxu0 %v3676
    %3678 = vmatprep.subr.mxu0 0.0
    %v3679 = vand.u32 %v790, 4294901760
    %3680 = vmatpush1.msra.mxu0 %v3679
    %3681 = vmatprep.subr.mxu0 0.0
    %v3682 = vand.u32 %v791, 4294901760
    %3683 = vmatpush1.msra.mxu0 %v3682
    %3684 = vmatprep.subr.mxu0 0.0
    %3685 = vmatpush1.msra.mxu0 0.0
    %3686 = vmatprep.subr.mxu0 0.0
    %3687 = vmatpush1.msra.mxu0 0.0
    %3688 = vmatprep.subr.mxu0 0.0
    %3689 = vmatpush1.msra.mxu0 0.0
    %3690 = vmatprep.subr.mxu0 0.0
    %3691 = vmatpush1.msra.mxu0 0.0
    %3692 = vmatprep.subr.mxu0 0.0
    %3693 = vmatpush1.msra.mxu0 0.0
    %3694 = vmatprep.subr.mxu0 0.0
    %3695 = vmatpush1.msra.mxu0 0.0
    %3696 = vmatprep.subr.mxu0 0.0
    %3697 = vmatpush1.msra.mxu0 0.0
    %3698 = vmatprep.subr.mxu0 0.0
    %3699 = vmatpush1.msra.mxu0 0.0
    %3700 = vmatprep.subr.mxu0 0.0
    %3701 = vmatpush1.msra.mxu0 0.0
    %3702 = vmatprep.subr.mxu0 0.0
    %3703 = vmatpush1.msra.mxu0 0.0
    %3704 = vmatprep.subr.mxu0 0.0
    %3705 = vmatpush1.msra.mxu0 0.0
    %3706 = vmatprep.subr.mxu0 0.0
    %3707 = vmatpush1.msra.mxu0 0.0
    %3708 = vmatprep.subr.mxu0 0.0
    %3709 = vmatpush1.msra.mxu0 0.0
    %3710 = vmatprep.subr.mxu0 0.0
    %3711 = vmatpush1.msra.mxu0 0.0
    %3712 = vmatprep.subr.mxu0 0.0
    %3713 = vmatpush1.msra.mxu0 0.0
    %3714 = vmatprep.subr.mxu0 0.0
    %3715 = vmatpush1.msra.mxu0 0.0
    %3716 = vmatprep.subr.mxu0 0.0
    %3717 = vmatpush1.msra.mxu0 0.0
    %3718 = vmatprep.subr.mxu0 0.0
    %3719 = vmatpush1.msra.mxu0 0.0
    %3720 = vmatprep.subr.mxu0 0.0
    %3721 = vmatpush1.msra.mxu0 0.0
    %3722 = vmatprep.subr.mxu0 0.0
    %3723 = vmatpush1.msra.mxu0 0.0
    %3724 = vmatprep.subr.mxu0 0.0
    %3725 = vmatpush1.msra.mxu0 0.0
    %3726 = vmatprep.subr.mxu0 0.0
    %3727 = vmatpush1.msra.mxu0 0.0
    %3728 = vmatprep.subr.mxu0 0.0
    %3729 = vmatpush1.msra.mxu0 0.0
    %3730 = vmatprep.subr.mxu0 0.0
    %3731 = vmatpush1.msra.mxu0 0.0
    %3732 = vmatprep.subr.mxu0 0.0
    %3733 = vmatpush1.msra.mxu0 0.0
    %3734 = vmatprep.subr.mxu0 0.0
    %3735 = vmatpush1.msra.mxu0 0.0
    %3736 = vmatprep.subr.mxu0 0.0
    %3737 = vmatpush1.msra.mxu0 0.0
    %3738 = vmatprep.subr.mxu0 0.0
    %3739 = vmatpush1.msra.mxu0 0.0
    %3740 = vmatprep.mubr.f32.mxu0 0.0
    %v3741 = vand.u32 %v3420, 4294901760
    %v3742 = vsub.f32 %v3420, %v3741
    %v3743 = vand.u32 %v3742, 4294901760
    %3744 = vmatmul.mubr.f32.gmra.mrb[0].mxu0 %v3743
    %v3745 = vpop.f32.mrb[0].mxu0
    %v3746 = vadd.f32 %v3669, %v3745
    %v3747 = vpop.f32.mrb[0].mxu0
    %3748 = vdwg.mxu0
    %3749 = vmatprep.subr.mxu0 0.0
    %v3750 = vand.u32 %v788, 4294901760
    %v3751 = vsub.f32 %v788, %v3750
    %v3752 = vand.u32 %v3751, 4294901760
    %3753 = vmatpush1.msra.mxu0 %v3752
    %3754 = vmatprep.subr.mxu0 0.0
    %v3755 = vand.u32 %v789, 4294901760
    %v3756 = vsub.f32 %v789, %v3755
    %v3757 = vand.u32 %v3756, 4294901760
    %3758 = vmatpush1.msra.mxu0 %v3757
    %3759 = vmatprep.subr.mxu0 0.0
    %v3760 = vand.u32 %v790, 4294901760
    %v3761 = vsub.f32 %v790, %v3760
    %v3762 = vand.u32 %v3761, 4294901760
    %3763 = vmatpush1.msra.mxu0 %v3762
    %3764 = vmatprep.subr.mxu0 0.0
    %v3765 = vand.u32 %v791, 4294901760
    %v3766 = vsub.f32 %v791, %v3765
    %v3767 = vand.u32 %v3766, 4294901760
    %3768 = vmatpush1.msra.mxu0 %v3767
    %3769 = vmatprep.subr.mxu0 0.0
    %3770 = vmatpush1.msra.mxu0 0.0
    %3771 = vmatprep.subr.mxu0 0.0
    %3772 = vmatpush1.msra.mxu0 0.0
    %3773 = vmatprep.subr.mxu0 0.0
    %3774 = vmatpush1.msra.mxu0 0.0
    %3775 = vmatprep.subr.mxu0 0.0
    %3776 = vmatpush1.msra.mxu0 0.0
    %3777 = vmatprep.subr.mxu0 0.0
    %3778 = vmatpush1.msra.mxu0 0.0
    %3779 = vmatprep.subr.mxu0 0.0
    %3780 = vmatpush1.msra.mxu0 0.0
    %3781 = vmatprep.subr.mxu0 0.0
    %3782 = vmatpush1.msra.mxu0 0.0
    %3783 = vmatprep.subr.mxu0 0.0
    %3784 = vmatpush1.msra.mxu0 0.0
    %3785 = vmatprep.subr.mxu0 0.0
    %3786 = vmatpush1.msra.mxu0 0.0
    %3787 = vmatprep.subr.mxu0 0.0
    %3788 = vmatpush1.msra.mxu0 0.0
    %3789 = vmatprep.subr.mxu0 0.0
    %3790 = vmatpush1.msra.mxu0 0.0
    %3791 = vmatprep.subr.mxu0 0.0
    %3792 = vmatpush1.msra.mxu0 0.0
    %3793 = vmatprep.subr.mxu0 0.0
    %3794 = vmatpush1.msra.mxu0 0.0
    %3795 = vmatprep.subr.mxu0 0.0
    %3796 = vmatpush1.msra.mxu0 0.0
    %3797 = vmatprep.subr.mxu0 0.0
    %3798 = vmatpush1.msra.mxu0 0.0
    %3799 = vmatprep.subr.mxu0 0.0
    %3800 = vmatpush1.msra.mxu0 0.0
    %3801 = vmatprep.subr.mxu0 0.0
    %3802 = vmatpush1.msra.mxu0 0.0
    %3803 = vmatprep.subr.mxu0 0.0
    %3804 = vmatpush1.msra.mxu0 0.0
    %3805 = vmatprep.subr.mxu0 0.0
    %3806 = vmatpush1.msra.mxu0 0.0
    %3807 = vmatprep.subr.mxu0 0.0
    %3808 = vmatpush1.msra.mxu0 0.0
    %3809 = vmatprep.subr.mxu0 0.0
    %3810 = vmatpush1.msra.mxu0 0.0
    %3811 = vmatprep.subr.mxu0 0.0
    %3812 = vmatpush1.msra.mxu0 0.0
    %3813 = vmatprep.subr.mxu0 0.0
    %3814 = vmatpush1.msra.mxu0 0.0
    %3815 = vmatprep.subr.mxu0 0.0
    %3816 = vmatpush1.msra.mxu0 0.0
    %3817 = vmatprep.subr.mxu0 0.0
    %3818 = vmatpush1.msra.mxu0 0.0
    %3819 = vmatprep.subr.mxu0 0.0
    %3820 = vmatpush1.msra.mxu0 0.0
    %3821 = vmatprep.subr.mxu0 0.0
    %3822 = vmatpush1.msra.mxu0 0.0
    %3823 = vmatprep.subr.mxu0 0.0
    %3824 = vmatpush1.msra.mxu0 0.0
    %3825 = vmatprep.mubr.f32.mxu0 0.0
    %v3826 = vand.u32 %v3420, 4294901760
    %3827 = vmatmul.mubr.f32.gmra.mrb[0].mxu0 %v3826
    %v3828 = vpop.f32.mrb[0].mxu0
    %v3829 = vadd.f32 %v3746, %v3828
    %v3830 = vpop.f32.mrb[0].mxu0
    %3831 = vdwg.mxu0
    %3832 = vmatprep.subr.mxu0 0.0
    %v3833 = vand.u32 %v788, 4294901760
    %3834 = vmatpush1.msra.mxu0 %v3833
    %3835 = vmatprep.subr.mxu0 0.0
    %v3836 = vand.u32 %v789, 4294901760
    %3837 = vmatpush1.msra.mxu0 %v3836
    %3838 = vmatprep.subr.mxu0 0.0
    %v3839 = vand.u32 %v790, 4294901760
    %3840 = vmatpush1.msra.mxu0 %v3839
    %3841 = vmatprep.subr.mxu0 0.0
    %v3842 = vand.u32 %v791, 4294901760
    %3843 = vmatpush1.msra.mxu0 %v3842
    %3844 = vmatprep.subr.mxu0 0.0
    %3845 = vmatpush1.msra.mxu0 0.0
    %3846 = vmatprep.subr.mxu0 0.0
    %3847 = vmatpush1.msra.mxu0 0.0
    %3848 = vmatprep.subr.mxu0 0.0
    %3849 = vmatpush1.msra.mxu0 0.0
    %3850 = vmatprep.subr.mxu0 0.0
    %3851 = vmatpush1.msra.mxu0 0.0
    %3852 = vmatprep.subr.mxu0 0.0
    %3853 = vmatpush1.msra.mxu0 0.0
    %3854 = vmatprep.subr.mxu0 0.0
    %3855 = vmatpush1.msra.mxu0 0.0
    %3856 = vmatprep.subr.mxu0 0.0
    %3857 = vmatpush1.msra.mxu0 0.0
    %3858 = vmatprep.subr.mxu0 0.0
    %3859 = vmatpush1.msra.mxu0 0.0
    %3860 = vmatprep.subr.mxu0 0.0
    %3861 = vmatpush1.msra.mxu0 0.0
    %3862 = vmatprep.subr.mxu0 0.0
    %3863 = vmatpush1.msra.mxu0 0.0
    %3864 = vmatprep.subr.mxu0 0.0
    %3865 = vmatpush1.msra.mxu0 0.0
    %3866 = vmatprep.subr.mxu0 0.0
    %3867 = vmatpush1.msra.mxu0 0.0
    %3868 = vmatprep.subr.mxu0 0.0
    %3869 = vmatpush1.msra.mxu0 0.0
    %3870 = vmatprep.subr.mxu0 0.0
    %3871 = vmatpush1.msra.mxu0 0.0
    %3872 = vmatprep.subr.mxu0 0.0
    %3873 = vmatpush1.msra.mxu0 0.0
    %3874 = vmatprep.subr.mxu0 0.0
    %3875 = vmatpush1.msra.mxu0 0.0
    %3876 = vmatprep.subr.mxu0 0.0
    %3877 = vmatpush1.msra.mxu0 0.0
    %3878 = vmatprep.subr.mxu0 0.0
    %3879 = vmatpush1.msra.mxu0 0.0
    %3880 = vmatprep.subr.mxu0 0.0
    %3881 = vmatpush1.msra.mxu0 0.0
    %3882 = vmatprep.subr.mxu0 0.0
    %3883 = vmatpush1.msra.mxu0 0.0
    %3884 = vmatprep.subr.mxu0 0.0
    %3885 = vmatpush1.msra.mxu0 0.0
    %3886 = vmatprep.subr.mxu0 0.0
    %3887 = vmatpush1.msra.mxu0 0.0
    %3888 = vmatprep.subr.mxu0 0.0
    %3889 = vmatpush1.msra.mxu0 0.0
    %3890 = vmatprep.subr.mxu0 0.0
    %3891 = vmatpush1.msra.mxu0 0.0
    %3892 = vmatprep.subr.mxu0 0.0
    %3893 = vmatpush1.msra.mxu0 0.0
    %3894 = vmatprep.subr.mxu0 0.0
    %3895 = vmatpush1.msra.mxu0 0.0
    %3896 = vmatprep.subr.mxu0 0.0
    %3897 = vmatpush1.msra.mxu0 0.0
    %3898 = vmatprep.subr.mxu0 0.0
    %3899 = vmatpush1.msra.mxu0 0.0
    %3900 = vmatprep.mubr.f32.mxu0 0.0
    %v3901 = vand.u32 %v3420, 4294901760
    %3902 = vmatmul.mubr.f32.gmra.mrb[0].mxu0 %v3901
    %v3903 = vpop.f32.mrb[0].mxu0
    %v3904 = vadd.f32 %v3829, %v3903
    %v3905 = vpop.f32.mrb[0].mxu0
    %3906 = vdwg.mxu0
    %v3907 = vtanh.pop %v3904
    %3908 = vst.msk [vmem:[#allocation3] sm:$0xff] %vm74, %v3907
    %3909 = vst.msk [vmem:[#allocation3] sm:$0xff] %vm780, %v3416
    %s3910 = scalar_lea.vmem [#allocation10], 16
    %3911 = vst.msk [vmem:[%s3910] sm:$0xff] %vm74, %v3907
    %v3912 = vld [vmem:[#allocation3] sm:$0xff]
    %s3913 = scalar_lea.vmem [#allocation2], 24
    %v3914 = vld [vmem:[%s3913] sm:$0xff]
    %v3916 = vsel %vm794, %v3912, 0
    %3918 = vmatprep.subr.mxu0 0.0
    %v3919 = vand.u32 %v782, 4294901760
    %3920 = vmatpush1.msra.mxu0 %v3919
    %3921 = vmatprep.subr.mxu0 0.0
    %v3922 = vand.u32 %v783, 4294901760
    %3923 = vmatpush1.msra.mxu0 %v3922
    %3924 = vmatprep.subr.mxu0 0.0
    %v3925 = vand.u32 %v784, 4294901760
    %3926 = vmatpush1.msra.mxu0 %v3925
    %3927 = vmatprep.subr.mxu0 0.0
    %v3928 = vand.u32 %v785, 4294901760
    %3929 = vmatpush1.msra.mxu0 %v3928
    %3930 = vmatprep.subr.mxu0 0.0
    %v3931 = vand.u32 %v786, 4294901760
    %3932 = vmatpush1.msra.mxu0 %v3931
    %3933 = vmatprep.subr.mxu0 0.0
    %v3934 = vand.u32 %v787, 4294901760
    %3935 = vmatpush1.msra.mxu0 %v3934
    %3936 = vmatprep.subr.mxu0 0.0
    %3937 = vmatpush1.msra.mxu0 0.0
    %3938 = vmatprep.subr.mxu0 0.0
    %3939 = vmatpush1.msra.mxu0 0.0
    %3940 = vmatprep.subr.mxu0 0.0
    %3941 = vmatpush1.msra.mxu0 0.0
    %3942 = vmatprep.subr.mxu0 0.0
    %3943 = vmatpush1.msra.mxu0 0.0
    %3944 = vmatprep.subr.mxu0 0.0
    %3945 = vmatpush1.msra.mxu0 0.0
    %3946 = vmatprep.subr.mxu0 0.0
    %3947 = vmatpush1.msra.mxu0 0.0
    %3948 = vmatprep.subr.mxu0 0.0
    %3949 = vmatpush1.msra.mxu0 0.0
    %3950 = vmatprep.subr.mxu0 0.0
    %3951 = vmatpush1.msra.mxu0 0.0
    %3952 = vmatprep.subr.mxu0 0.0
    %3953 = vmatpush1.msra.mxu0 0.0
    %3954 = vmatprep.subr.mxu0 0.0
    %3955 = vmatpush1.msra.mxu0 0.0
    %3956 = vmatprep.subr.mxu0 0.0
    %3957 = vmatpush1.msra.mxu0 0.0
    %3958 = vmatprep.subr.mxu0 0.0
    %3959 = vmatpush1.msra.mxu0 0.0
    %3960 = vmatprep.subr.mxu0 0.0
    %3961 = vmatpush1.msra.mxu0 0.0
    %3962 = vmatprep.subr.mxu0 0.0
    %3963 = vmatpush1.msra.mxu0 0.0
    %3964 = vmatprep.subr.mxu0 0.0
    %3965 = vmatpush1.msra.mxu0 0.0
    %3966 = vmatprep.subr.mxu0 0.0
    %3967 = vmatpush1.msra.mxu0 0.0
    %3968 = vmatprep.subr.mxu0 0.0
    %3969 = vmatpush1.msra.mxu0 0.0
    %3970 = vmatprep.subr.mxu0 0.0
    %3971 = vmatpush1.msra.mxu0 0.0
    %3972 = vmatprep.subr.mxu0 0.0
    %3973 = vmatpush1.msra.mxu0 0.0
    %3974 = vmatprep.subr.mxu0 0.0
    %3975 = vmatpush1.msra.mxu0 0.0
    %3976 = vmatprep.subr.mxu0 0.0
    %3977 = vmatpush1.msra.mxu0 0.0
    %3978 = vmatprep.subr.mxu0 0.0
    %3979 = vmatpush1.msra.mxu0 0.0
    %3980 = vmatprep.subr.mxu0 0.0
    %3981 = vmatpush1.msra.mxu0 0.0
    %3982 = vmatprep.subr.mxu0 0.0
    %3983 = vmatpush1.msra.mxu0 0.0
    %3984 = vmatprep.subr.mxu0 0.0
    %3985 = vmatpush1.msra.mxu0 0.0
    %3986 = vmatprep.subr.mxu0 0.0
    %3987 = vmatpush1.msra.mxu0 0.0
    %3988 = vmatprep.mubr.f32.mxu0 0.0
    %v3989 = vand.u32 %v3916, 4294901760
    %v3990 = vsub.f32 %v3916, %v3989
    %v3991 = vand.u32 %v3990, 4294901760
    %v3992 = vsub.f32 %v3990, %v3991
    %v3993 = vand.u32 %v3992, 4294901760
    %3994 = vmatmul.mubr.f32.gmra.mrb[0].mxu0 %v3993
    %v3995 = vpop.f32.mrb[0].mxu0
    %v3996 = vadd.f32 0.0, %v3995
    %v3997 = vpop.f32.mrb[0].mxu0
    %3998 = vdwg.mxu0
    %3999 = vmatprep.subr.mxu0 0.0
    %v4000 = vand.u32 %v782, 4294901760
    %v4001 = vsub.f32 %v782, %v4000
    %v4002 = vand.u32 %v4001, 4294901760
    %v4003 = vsub.f32 %v4001, %v4002
    %v4004 = vand.u32 %v4003, 4294901760
    %4005 = vmatpush1.msra.mxu0 %v4004
    %4006 = vmatprep.subr.mxu0 0.0
    %v4007 = vand.u32 %v783, 4294901760
    %v4008 = vsub.f32 %v783, %v4007
    %v4009 = vand.u32 %v4008, 4294901760
    %v4010 = vsub.f32 %v4008, %v4009
    %v4011 = vand.u32 %v4010, 4294901760
    %4012 = vmatpush1.msra.mxu0 %v4011
    %4013 = vmatprep.subr.mxu0 0.0
    %v4014 = vand.u32 %v784, 4294901760
    %v4015 = vsub.f32 %v784, %v4014
    %v4016 = vand.u32 %v4015, 4294901760
    %v4017 = vsub.f32 %v4015, %v4016
    %v4018 = vand.u32 %v4017, 4294901760
    %4019 = vmatpush1.msra.mxu0 %v4018
    %4020 = vmatprep.subr.mxu0 0.0
    %v4021 = vand.u32 %v785, 4294901760
    %v4022 = vsub.f32 %v785, %v4021
    %v4023 = vand.u32 %v4022, 4294901760
    %v4024 = vsub.f32 %v4022, %v4023
    %v4025 = vand.u32 %v4024, 4294901760
    %4026 = vmatpush1.msra.mxu0 %v4025
    %4027 = vmatprep.subr.mxu0 0.0
    %v4028 = vand.u32 %v786, 4294901760
    %v4029 = vsub.f32 %v786, %v4028
    %v4030 = vand.u32 %v4029, 4294901760
    %v4031 = vsub.f32 %v4029, %v4030
    %v4032 = vand.u32 %v4031, 4294901760
    %4033 = vmatpush1.msra.mxu0 %v4032
    %4034 = vmatprep.subr.mxu0 0.0
    %v4035 = vand.u32 %v787, 4294901760
    %v4036 = vsub.f32 %v787, %v4035
    %v4037 = vand.u32 %v4036, 4294901760
    %v4038 = vsub.f32 %v4036, %v4037
    %v4039 = vand.u32 %v4038, 4294901760
    %4040 = vmatpush1.msra.mxu0 %v4039
    %4041 = vmatprep.subr.mxu0 0.0
    %4042 = vmatpush1.msra.mxu0 0.0
    %4043 = vmatprep.subr.mxu0 0.0
    %4044 = vmatpush1.msra.mxu0 0.0
    %4045 = vmatprep.subr.mxu0 0.0
    %4046 = vmatpush1.msra.mxu0 0.0
    %4047 = vmatprep.subr.mxu0 0.0
    %4048 = vmatpush1.msra.mxu0 0.0
    %4049 = vmatprep.subr.mxu0 0.0
    %4050 = vmatpush1.msra.mxu0 0.0
    %4051 = vmatprep.subr.mxu0 0.0
    %4052 = vmatpush1.msra.mxu0 0.0
    %4053 = vmatprep.subr.mxu0 0.0
    %4054 = vmatpush1.msra.mxu0 0.0
    %4055 = vmatprep.subr.mxu0 0.0
    %4056 = vmatpush1.msra.mxu0 0.0
    %4057 = vmatprep.subr.mxu0 0.0
    %4058 = vmatpush1.msra.mxu0 0.0
    %4059 = vmatprep.subr.mxu0 0.0
    %4060 = vmatpush1.msra.mxu0 0.0
    %4061 = vmatprep.subr.mxu0 0.0
    %4062 = vmatpush1.msra.mxu0 0.0
    %4063 = vmatprep.subr.mxu0 0.0
    %4064 = vmatpush1.msra.mxu0 0.0
    %4065 = vmatprep.subr.mxu0 0.0
    %4066 = vmatpush1.msra.mxu0 0.0
    %4067 = vmatprep.subr.mxu0 0.0
    %4068 = vmatpush1.msra.mxu0 0.0
    %4069 = vmatprep.subr.mxu0 0.0
    %4070 = vmatpush1.msra.mxu0 0.0
    %4071 = vmatprep.subr.mxu0 0.0
    %4072 = vmatpush1.msra.mxu0 0.0
    %4073 = vmatprep.subr.mxu0 0.0
    %4074 = vmatpush1.msra.mxu0 0.0
    %4075 = vmatprep.subr.mxu0 0.0
    %4076 = vmatpush1.msra.mxu0 0.0
    %4077 = vmatprep.subr.mxu0 0.0
    %4078 = vmatpush1.msra.mxu0 0.0
    %4079 = vmatprep.subr.mxu0 0.0
    %4080 = vmatpush1.msra.mxu0 0.0
    %4081 = vmatprep.subr.mxu0 0.0
    %4082 = vmatpush1.msra.mxu0 0.0
    %4083 = vmatprep.subr.mxu0 0.0
    %4084 = vmatpush1.msra.mxu0 0.0
    %4085 = vmatprep.subr.mxu0 0.0
    %4086 = vmatpush1.msra.mxu0 0.0
    %4087 = vmatprep.subr.mxu0 0.0
    %4088 = vmatpush1.msra.mxu0 0.0
    %4089 = vmatprep.subr.mxu0 0.0
    %4090 = vmatpush1.msra.mxu0 0.0
    %4091 = vmatprep.subr.mxu0 0.0
    %4092 = vmatpush1.msra.mxu0 0.0
    %4093 = vmatprep.mubr.f32.mxu0 0.0
    %v4094 = vand.u32 %v3916, 4294901760
    %4095 = vmatmul.mubr.f32.gmra.mrb[0].mxu0 %v4094
    %v4096 = vpop.f32.mrb[0].mxu0
    %v4097 = vadd.f32 %v3996, %v4096
    %v4098 = vpop.f32.mrb[0].mxu0
    %4099 = vdwg.mxu0
    %4100 = vmatprep.subr.mxu0 0.0
    %v4101 = vand.u32 %v782, 4294901760
    %v4102 = vsub.f32 %v782, %v4101
    %4103 = vmatpush1.msra.mxu0 %v4102
    %4104 = vmatprep.subr.mxu0 0.0
    %v4105 = vand.u32 %v783, 4294901760
    %v4106 = vsub.f32 %v783, %v4105
    %4107 = vmatpush1.msra.mxu0 %v4106
    %4108 = vmatprep.subr.mxu0 0.0
    %v4109 = vand.u32 %v784, 4294901760
    %v4110 = vsub.f32 %v784, %v4109
    %4111 = vmatpush1.msra.mxu0 %v4110
    %4112 = vmatprep.subr.mxu0 0.0
    %v4113 = vand.u32 %v785, 4294901760
    %v4114 = vsub.f32 %v785, %v4113
    %4115 = vmatpush1.msra.mxu0 %v4114
    %4116 = vmatprep.subr.mxu0 0.0
    %v4117 = vand.u32 %v786, 4294901760
    %v4118 = vsub.f32 %v786, %v4117
    %4119 = vmatpush1.msra.mxu0 %v4118
    %4120 = vmatprep.subr.mxu0 0.0
    %v4121 = vand.u32 %v787, 4294901760
    %v4122 = vsub.f32 %v787, %v4121
    %4123 = vmatpush1.msra.mxu0 %v4122
    %4124 = vmatprep.subr.mxu0 0.0
    %4125 = vmatpush1.msra.mxu0 0.0
    %4126 = vmatprep.subr.mxu0 0.0
    %4127 = vmatpush1.msra.mxu0 0.0
    %4128 = vmatprep.subr.mxu0 0.0
    %4129 = vmatpush1.msra.mxu0 0.0
    %4130 = vmatprep.subr.mxu0 0.0
    %4131 = vmatpush1.msra.mxu0 0.0
    %4132 = vmatprep.subr.mxu0 0.0
    %4133 = vmatpush1.msra.mxu0 0.0
    %4134 = vmatprep.subr.mxu0 0.0
    %4135 = vmatpush1.msra.mxu0 0.0
    %4136 = vmatprep.subr.mxu0 0.0
    %4137 = vmatpush1.msra.mxu0 0.0
    %4138 = vmatprep.subr.mxu0 0.0
    %4139 = vmatpush1.msra.mxu0 0.0
    %4140 = vmatprep.subr.mxu0 0.0
    %4141 = vmatpush1.msra.mxu0 0.0
    %4142 = vmatprep.subr.mxu0 0.0
    %4143 = vmatpush1.msra.mxu0 0.0
    %4144 = vmatprep.subr.mxu0 0.0
    %4145 = vmatpush1.msra.mxu0 0.0
    %4146 = vmatprep.subr.mxu0 0.0
    %4147 = vmatpush1.msra.mxu0 0.0
    %4148 = vmatprep.subr.mxu0 0.0
    %4149 = vmatpush1.msra.mxu0 0.0
    %4150 = vmatprep.subr.mxu0 0.0
    %4151 = vmatpush1.msra.mxu0 0.0
    %4152 = vmatprep.subr.mxu0 0.0
    %4153 = vmatpush1.msra.mxu0 0.0
    %4154 = vmatprep.subr.mxu0 0.0
    %4155 = vmatpush1.msra.mxu0 0.0
    %4156 = vmatprep.subr.mxu0 0.0
    %4157 = vmatpush1.msra.mxu0 0.0
    %4158 = vmatprep.subr.mxu0 0.0
    %4159 = vmatpush1.msra.mxu0 0.0
    %4160 = vmatprep.subr.mxu0 0.0
    %4161 = vmatpush1.msra.mxu0 0.0
    %4162 = vmatprep.subr.mxu0 0.0
    %4163 = vmatpush1.msra.mxu0 0.0
    %4164 = vmatprep.subr.mxu0 0.0
    %4165 = vmatpush1.msra.mxu0 0.0
    %4166 = vmatprep.subr.mxu0 0.0
    %4167 = vmatpush1.msra.mxu0 0.0
    %4168 = vmatprep.subr.mxu0 0.0
    %4169 = vmatpush1.msra.mxu0 0.0
    %4170 = vmatprep.subr.mxu0 0.0
    %4171 = vmatpush1.msra.mxu0 0.0
    %4172 = vmatprep.subr.mxu0 0.0
    %4173 = vmatpush1.msra.mxu0 0.0
    %4174 = vmatprep.subr.mxu0 0.0
    %4175 = vmatpush1.msra.mxu0 0.0
    %4176 = vmatprep.mubr.f32.mxu0 0.0
    %v4177 = vand.u32 %v3916, 4294901760
    %v4178 = vsub.f32 %v3916, %v4177
    %4179 = vmatmul.mubr.f32.gmra.mrb[0].mxu0 %v4178
    %v4180 = vpop.f32.mrb[0].mxu0
    %v4181 = vadd.f32 %v4097, %v4180
    %v4182 = vpop.f32.mrb[0].mxu0
    %4183 = vdwg.mxu0
    %4184 = vmatprep.subr.mxu0 0.0
    %v4185 = vand.u32 %v782, 4294901760
    %4186 = vmatpush1.msra.mxu0 %v4185
    %4187 = vmatprep.subr.mxu0 0.0
    %v4188 = vand.u32 %v783, 4294901760
    %4189 = vmatpush1.msra.mxu0 %v4188
    %4190 = vmatprep.subr.mxu0 0.0
    %v4191 = vand.u32 %v784, 4294901760
    %4192 = vmatpush1.msra.mxu0 %v4191
    %4193 = vmatprep.subr.mxu0 0.0
    %v4194 = vand.u32 %v785, 4294901760
    %4195 = vmatpush1.msra.mxu0 %v4194
    %4196 = vmatprep.subr.mxu0 0.0
    %v4197 = vand.u32 %v786, 4294901760
    %4198 = vmatpush1.msra.mxu0 %v4197
    %4199 = vmatprep.subr.mxu0 0.0
    %v4200 = vand.u32 %v787, 4294901760
    %4201 = vmatpush1.msra.mxu0 %v4200
    %4202 = vmatprep.subr.mxu0 0.0
    %4203 = vmatpush1.msra.mxu0 0.0
    %4204 = vmatprep.subr.mxu0 0.0
    %4205 = vmatpush1.msra.mxu0 0.0
    %4206 = vmatprep.subr.mxu0 0.0
    %4207 = vmatpush1.msra.mxu0 0.0
    %4208 = vmatprep.subr.mxu0 0.0
    %4209 = vmatpush1.msra.mxu0 0.0
    %4210 = vmatprep.subr.mxu0 0.0
    %4211 = vmatpush1.msra.mxu0 0.0
    %4212 = vmatprep.subr.mxu0 0.0
    %4213 = vmatpush1.msra.mxu0 0.0
    %4214 = vmatprep.subr.mxu0 0.0
    %4215 = vmatpush1.msra.mxu0 0.0
    %4216 = vmatprep.subr.mxu0 0.0
    %4217 = vmatpush1.msra.mxu0 0.0
    %4218 = vmatprep.subr.mxu0 0.0
    %4219 = vmatpush1.msra.mxu0 0.0
    %4220 = vmatprep.subr.mxu0 0.0
    %4221 = vmatpush1.msra.mxu0 0.0
    %4222 = vmatprep.subr.mxu0 0.0
    %4223 = vmatpush1.msra.mxu0 0.0
    %4224 = vmatprep.subr.mxu0 0.0
    %4225 = vmatpush1.msra.mxu0 0.0
    %4226 = vmatprep.subr.mxu0 0.0
    %4227 = vmatpush1.msra.mxu0 0.0
    %4228 = vmatprep.subr.mxu0 0.0
    %4229 = vmatpush1.msra.mxu0 0.0
    %4230 = vmatprep.subr.mxu0 0.0
    %4231 = vmatpush1.msra.mxu0 0.0
    %4232 = vmatprep.subr.mxu0 0.0
    %4233 = vmatpush1.msra.mxu0 0.0
    %4234 = vmatprep.subr.mxu0 0.0
    %4235 = vmatpush1.msra.mxu0 0.0
    %4236 = vmatprep.subr.mxu0 0.0
    %4237 = vmatpush1.msra.mxu0 0.0
    %4238 = vmatprep.subr.mxu0 0.0
    %4239 = vmatpush1.msra.mxu0 0.0
    %4240 = vmatprep.subr.mxu0 0.0
    %4241 = vmatpush1.msra.mxu0 0.0
    %4242 = vmatprep.subr.mxu0 0.0
    %4243 = vmatpush1.msra.mxu0 0.0
    %4244 = vmatprep.subr.mxu0 0.0
    %4245 = vmatpush1.msra.mxu0 0.0
    %4246 = vmatprep.subr.mxu0 0.0
    %4247 = vmatpush1.msra.mxu0 0.0
    %4248 = vmatprep.subr.mxu0 0.0
    %4249 = vmatpush1.msra.mxu0 0.0
    %4250 = vmatprep.subr.mxu0 0.0
    %4251 = vmatpush1.msra.mxu0 0.0
    %4252 = vmatprep.subr.mxu0 0.0
    %4253 = vmatpush1.msra.mxu0 0.0
    %4254 = vmatprep.mubr.f32.mxu0 0.0
    %v4255 = vand.u32 %v3916, 4294901760
    %v4256 = vsub.f32 %v3916, %v4255
    %v4257 = vand.u32 %v4256, 4294901760
    %4258 = vmatmul.mubr.f32.gmra.mrb[0].mxu0 %v4257
    %v4259 = vpop.f32.mrb[0].mxu0
    %v4260 = vadd.f32 %v4181, %v4259
    %v4261 = vpop.f32.mrb[0].mxu0
    %4262 = vdwg.mxu0
    %4263 = vmatprep.subr.mxu0 0.0
    %v4264 = vand.u32 %v782, 4294901760
    %v4265 = vsub.f32 %v782, %v4264
    %v4266 = vand.u32 %v4265, 4294901760
    %4267 = vmatpush1.msra.mxu0 %v4266
    %4268 = vmatprep.subr.mxu0 0.0
    %v4269 = vand.u32 %v783, 4294901760
    %v4270 = vsub.f32 %v783, %v4269
    %v4271 = vand.u32 %v4270, 4294901760
    %4272 = vmatpush1.msra.mxu0 %v4271
    %4273 = vmatprep.subr.mxu0 0.0
    %v4274 = vand.u32 %v784, 4294901760
    %v4275 = vsub.f32 %v784, %v4274
    %v4276 = vand.u32 %v4275, 4294901760
    %4277 = vmatpush1.msra.mxu0 %v4276
    %4278 = vmatprep.subr.mxu0 0.0
    %v4279 = vand.u32 %v785, 4294901760
    %v4280 = vsub.f32 %v785, %v4279
    %v4281 = vand.u32 %v4280, 4294901760
    %4282 = vmatpush1.msra.mxu0 %v4281
    %4283 = vmatprep.subr.mxu0 0.0
    %v4284 = vand.u32 %v786, 4294901760
    %v4285 = vsub.f32 %v786, %v4284
    %v4286 = vand.u32 %v4285, 4294901760
    %4287 = vmatpush1.msra.mxu0 %v4286
    %4288 = vmatprep.subr.mxu0 0.0
    %v4289 = vand.u32 %v787, 4294901760
    %v4290 = vsub.f32 %v787, %v4289
    %v4291 = vand.u32 %v4290, 4294901760
    %4292 = vmatpush1.msra.mxu0 %v4291
    %4293 = vmatprep.subr.mxu0 0.0
    %4294 = vmatpush1.msra.mxu0 0.0
    %4295 = vmatprep.subr.mxu0 0.0
    %4296 = vmatpush1.msra.mxu0 0.0
    %4297 = vmatprep.subr.mxu0 0.0
    %4298 = vmatpush1.msra.mxu0 0.0
    %4299 = vmatprep.subr.mxu0 0.0
    %4300 = vmatpush1.msra.mxu0 0.0
    %4301 = vmatprep.subr.mxu0 0.0
    %4302 = vmatpush1.msra.mxu0 0.0
    %4303 = vmatprep.subr.mxu0 0.0
    %4304 = vmatpush1.msra.mxu0 0.0
    %4305 = vmatprep.subr.mxu0 0.0
    %4306 = vmatpush1.msra.mxu0 0.0
    %4307 = vmatprep.subr.mxu0 0.0
    %4308 = vmatpush1.msra.mxu0 0.0
    %4309 = vmatprep.subr.mxu0 0.0
    %4310 = vmatpush1.msra.mxu0 0.0
    %4311 = vmatprep.subr.mxu0 0.0
    %4312 = vmatpush1.msra.mxu0 0.0
    %4313 = vmatprep.subr.mxu0 0.0
    %4314 = vmatpush1.msra.mxu0 0.0
    %4315 = vmatprep.subr.mxu0 0.0
    %4316 = vmatpush1.msra.mxu0 0.0
    %4317 = vmatprep.subr.mxu0 0.0
    %4318 = vmatpush1.msra.mxu0 0.0
    %4319 = vmatprep.subr.mxu0 0.0
    %4320 = vmatpush1.msra.mxu0 0.0
    %4321 = vmatprep.subr.mxu0 0.0
    %4322 = vmatpush1.msra.mxu0 0.0
    %4323 = vmatprep.subr.mxu0 0.0
    %4324 = vmatpush1.msra.mxu0 0.0
    %4325 = vmatprep.subr.mxu0 0.0
    %4326 = vmatpush1.msra.mxu0 0.0
    %4327 = vmatprep.subr.mxu0 0.0
    %4328 = vmatpush1.msra.mxu0 0.0
    %4329 = vmatprep.subr.mxu0 0.0
    %4330 = vmatpush1.msra.mxu0 0.0
    %4331 = vmatprep.subr.mxu0 0.0
    %4332 = vmatpush1.msra.mxu0 0.0
    %4333 = vmatprep.subr.mxu0 0.0
    %4334 = vmatpush1.msra.mxu0 0.0
    %4335 = vmatprep.subr.mxu0 0.0
    %4336 = vmatpush1.msra.mxu0 0.0
    %4337 = vmatprep.subr.mxu0 0.0
    %4338 = vmatpush1.msra.mxu0 0.0
    %4339 = vmatprep.subr.mxu0 0.0
    %4340 = vmatpush1.msra.mxu0 0.0
    %4341 = vmatprep.subr.mxu0 0.0
    %4342 = vmatpush1.msra.mxu0 0.0
    %4343 = vmatprep.subr.mxu0 0.0
    %4344 = vmatpush1.msra.mxu0 0.0
    %4345 = vmatprep.mubr.f32.mxu0 0.0
    %v4346 = vand.u32 %v3916, 4294901760
    %4347 = vmatmul.mubr.f32.gmra.mrb[0].mxu0 %v4346
    %v4348 = vpop.f32.mrb[0].mxu0
    %v4349 = vadd.f32 %v4260, %v4348
    %v4350 = vpop.f32.mrb[0].mxu0
    %4351 = vdwg.mxu0
    %4352 = vmatprep.subr.mxu0 0.0
    %v4353 = vand.u32 %v782, 4294901760
    %4354 = vmatpush1.msra.mxu0 %v4353
    %4355 = vmatprep.subr.mxu0 0.0
    %v4356 = vand.u32 %v783, 4294901760
    %4357 = vmatpush1.msra.mxu0 %v4356
    %4358 = vmatprep.subr.mxu0 0.0
    %v4359 = vand.u32 %v784, 4294901760
    %4360 = vmatpush1.msra.mxu0 %v4359
    %4361 = vmatprep.subr.mxu0 0.0
    %v4362 = vand.u32 %v785, 4294901760
    %4363 = vmatpush1.msra.mxu0 %v4362
    %4364 = vmatprep.subr.mxu0 0.0
    %v4365 = vand.u32 %v786, 4294901760
    %4366 = vmatpush1.msra.mxu0 %v4365
    %4367 = vmatprep.subr.mxu0 0.0
    %v4368 = vand.u32 %v787, 4294901760
    %4369 = vmatpush1.msra.mxu0 %v4368
    %4370 = vmatprep.subr.mxu0 0.0
    %4371 = vmatpush1.msra.mxu0 0.0
    %4372 = vmatprep.subr.mxu0 0.0
    %4373 = vmatpush1.msra.mxu0 0.0
    %4374 = vmatprep.subr.mxu0 0.0
    %4375 = vmatpush1.msra.mxu0 0.0
    %4376 = vmatprep.subr.mxu0 0.0
    %4377 = vmatpush1.msra.mxu0 0.0
    %4378 = vmatprep.subr.mxu0 0.0
    %4379 = vmatpush1.msra.mxu0 0.0
    %4380 = vmatprep.subr.mxu0 0.0
    %4381 = vmatpush1.msra.mxu0 0.0
    %4382 = vmatprep.subr.mxu0 0.0
    %4383 = vmatpush1.msra.mxu0 0.0
    %4384 = vmatprep.subr.mxu0 0.0
    %4385 = vmatpush1.msra.mxu0 0.0
    %4386 = vmatprep.subr.mxu0 0.0
    %4387 = vmatpush1.msra.mxu0 0.0
    %4388 = vmatprep.subr.mxu0 0.0
    %4389 = vmatpush1.msra.mxu0 0.0
    %4390 = vmatprep.subr.mxu0 0.0
    %4391 = vmatpush1.msra.mxu0 0.0
    %4392 = vmatprep.subr.mxu0 0.0
    %4393 = vmatpush1.msra.mxu0 0.0
    %4394 = vmatprep.subr.mxu0 0.0
    %4395 = vmatpush1.msra.mxu0 0.0
    %4396 = vmatprep.subr.mxu0 0.0
    %4397 = vmatpush1.msra.mxu0 0.0
    %4398 = vmatprep.subr.mxu0 0.0
    %4399 = vmatpush1.msra.mxu0 0.0
    %4400 = vmatprep.subr.mxu0 0.0
    %4401 = vmatpush1.msra.mxu0 0.0
    %4402 = vmatprep.subr.mxu0 0.0
    %4403 = vmatpush1.msra.mxu0 0.0
    %4404 = vmatprep.subr.mxu0 0.0
    %4405 = vmatpush1.msra.mxu0 0.0
    %4406 = vmatprep.subr.mxu0 0.0
    %4407 = vmatpush1.msra.mxu0 0.0
    %4408 = vmatprep.subr.mxu0 0.0
    %4409 = vmatpush1.msra.mxu0 0.0
    %4410 = vmatprep.subr.mxu0 0.0
    %4411 = vmatpush1.msra.mxu0 0.0
    %4412 = vmatprep.subr.mxu0 0.0
    %4413 = vmatpush1.msra.mxu0 0.0
    %4414 = vmatprep.subr.mxu0 0.0
    %4415 = vmatpush1.msra.mxu0 0.0
    %4416 = vmatprep.subr.mxu0 0.0
    %4417 = vmatpush1.msra.mxu0 0.0
    %4418 = vmatprep.subr.mxu0 0.0
    %4419 = vmatpush1.msra.mxu0 0.0
    %4420 = vmatprep.subr.mxu0 0.0
    %4421 = vmatpush1.msra.mxu0 0.0
    %4422 = vmatprep.mubr.f32.mxu0 0.0
    %v4423 = vand.u32 %v3916, 4294901760
    %4424 = vmatmul.mubr.f32.gmra.mrb[0].mxu0 %v4423
    %v4425 = vpop.f32.mrb[0].mxu0
    %v4426 = vadd.f32 %v4349, %v4425
    %v4427 = vpop.f32.mrb[0].mxu0
    %4428 = vdwg.mxu0
    %v4429 = vadd.f32 %v3914, %v4426
    %v4430 = vxor.u32 %v4429, 2147483648
    %v4431 = vmul.f32 %v4430, 1.442695
    %v4432 = vpow.pop %v4431
    %v4433 = vadd.f32 %v4432, 1.0
    %v4434 = vrcp.pop %v4433
    %v4435 = vmul.f32 1.0, %v4434
    %4437 = vrot.lane.b32.xlu0 %v4435, 96
    %v4438 = vpop.permute.xlu0 %4437
    %v4440 = vmul.f32 %v4435, %v4438
    %4442 = vrot.lane.b32.xlu0 %v4440, 64
    %v4443 = vpop.permute.xlu0 %4442
    %v4445 = vadd.f32 %v4435, %v4443
    %v4446 = vtanh.pop %v4445
    %4448 = vrot.lane.b32.xlu0 %v4446, 32
    %v4449 = vpop.permute.xlu0 %4448
    %v4451 = vmul.f32 %v4435, %v4449
    %4453 = vrot.lane.b32.xlu0 %v4451, 48
    %v4454 = vpop.permute.xlu0 %4453
    %v4456 = vadd.f32 %v3912, %v4454
    %4458 = vrot.lane.b32.xlu0 %v4445, 64
    %v4459 = vpop.permute.xlu0 %4458
    %v4460 = vsel %vm1340, %v4459, 0
    %4462 = vmatprep.subr.mxu0 0.0
    %v4463 = vand.u32 %v788, 4294901760
    %4464 = vmatpush1.msra.mxu0 %v4463
    %4465 = vmatprep.subr.mxu0 0.0
    %v4466 = vand.u32 %v789, 4294901760
    %4467 = vmatpush1.msra.mxu0 %v4466
    %4468 = vmatprep.subr.mxu0 0.0
    %v4469 = vand.u32 %v790, 4294901760
    %4470 = vmatpush1.msra.mxu0 %v4469
    %4471 = vmatprep.subr.mxu0 0.0
    %v4472 = vand.u32 %v791, 4294901760
    %4473 = vmatpush1.msra.mxu0 %v4472
    %4474 = vmatprep.subr.mxu0 0.0
    %4475 = vmatpush1.msra.mxu0 0.0
    %4476 = vmatprep.subr.mxu0 0.0
    %4477 = vmatpush1.msra.mxu0 0.0
    %4478 = vmatprep.subr.mxu0 0.0
    %4479 = vmatpush1.msra.mxu0 0.0
    %4480 = vmatprep.subr.mxu0 0.0
    %4481 = vmatpush1.msra.mxu0 0.0
    %4482 = vmatprep.subr.mxu0 0.0
    %4483 = vmatpush1.msra.mxu0 0.0
    %4484 = vmatprep.subr.mxu0 0.0
    %4485 = vmatpush1.msra.mxu0 0.0
    %4486 = vmatprep.subr.mxu0 0.0
    %4487 = vmatpush1.msra.mxu0 0.0
    %4488 = vmatprep.subr.mxu0 0.0
    %4489 = vmatpush1.msra.mxu0 0.0
    %4490 = vmatprep.subr.mxu0 0.0
    %4491 = vmatpush1.msra.mxu0 0.0
    %4492 = vmatprep.subr.mxu0 0.0
    %4493 = vmatpush1.msra.mxu0 0.0
    %4494 = vmatprep.subr.mxu0 0.0
    %4495 = vmatpush1.msra.mxu0 0.0
    %4496 = vmatprep.subr.mxu0 0.0
    %4497 = vmatpush1.msra.mxu0 0.0
    %4498 = vmatprep.subr.mxu0 0.0
    %4499 = vmatpush1.msra.mxu0 0.0
    %4500 = vmatprep.subr.mxu0 0.0
    %4501 = vmatpush1.msra.mxu0 0.0
    %4502 = vmatprep.subr.mxu0 0.0
    %4503 = vmatpush1.msra.mxu0 0.0
    %4504 = vmatprep.subr.mxu0 0.0
    %4505 = vmatpush1.msra.mxu0 0.0
    %4506 = vmatprep.subr.mxu0 0.0
    %4507 = vmatpush1.msra.mxu0 0.0
    %4508 = vmatprep.subr.mxu0 0.0
    %4509 = vmatpush1.msra.mxu0 0.0
    %4510 = vmatprep.subr.mxu0 0.0
    %4511 = vmatpush1.msra.mxu0 0.0
    %4512 = vmatprep.subr.mxu0 0.0
    %4513 = vmatpush1.msra.mxu0 0.0
    %4514 = vmatprep.subr.mxu0 0.0
    %4515 = vmatpush1.msra.mxu0 0.0
    %4516 = vmatprep.subr.mxu0 0.0
    %4517 = vmatpush1.msra.mxu0 0.0
    %4518 = vmatprep.subr.mxu0 0.0
    %4519 = vmatpush1.msra.mxu0 0.0
    %4520 = vmatprep.subr.mxu0 0.0
    %4521 = vmatpush1.msra.mxu0 0.0
    %4522 = vmatprep.subr.mxu0 0.0
    %4523 = vmatpush1.msra.mxu0 0.0
    %4524 = vmatprep.subr.mxu0 0.0
    %4525 = vmatpush1.msra.mxu0 0.0
    %4526 = vmatprep.subr.mxu0 0.0
    %4527 = vmatpush1.msra.mxu0 0.0
    %4528 = vmatprep.subr.mxu0 0.0
    %4529 = vmatpush1.msra.mxu0 0.0
    %4530 = vmatprep.mubr.f32.mxu0 0.0
    %v4531 = vand.u32 %v4460, 4294901760
    %v4532 = vsub.f32 %v4460, %v4531
    %v4533 = vand.u32 %v4532, 4294901760
    %v4534 = vsub.f32 %v4532, %v4533
    %v4535 = vand.u32 %v4534, 4294901760
    %4536 = vmatmul.mubr.f32.gmra.mrb[0].mxu0 %v4535
    %v4537 = vpop.f32.mrb[0].mxu0
    %v4538 = vadd.f32 0.0, %v4537
    %v4539 = vpop.f32.mrb[0].mxu0
    %4540 = vdwg.mxu0
    %4541 = vmatprep.subr.mxu0 0.0
    %v4542 = vand.u32 %v788, 4294901760
    %v4543 = vsub.f32 %v788, %v4542
    %v4544 = vand.u32 %v4543, 4294901760
    %v4545 = vsub.f32 %v4543, %v4544
    %v4546 = vand.u32 %v4545, 4294901760
    %4547 = vmatpush1.msra.mxu0 %v4546
    %4548 = vmatprep.subr.mxu0 0.0
    %v4549 = vand.u32 %v789, 4294901760
    %v4550 = vsub.f32 %v789, %v4549
    %v4551 = vand.u32 %v4550, 4294901760
    %v4552 = vsub.f32 %v4550, %v4551
    %v4553 = vand.u32 %v4552, 4294901760
    %4554 = vmatpush1.msra.mxu0 %v4553
    %4555 = vmatprep.subr.mxu0 0.0
    %v4556 = vand.u32 %v790, 4294901760
    %v4557 = vsub.f32 %v790, %v4556
    %v4558 = vand.u32 %v4557, 4294901760
    %v4559 = vsub.f32 %v4557, %v4558
    %v4560 = vand.u32 %v4559, 4294901760
    %4561 = vmatpush1.msra.mxu0 %v4560
    %4562 = vmatprep.subr.mxu0 0.0
    %v4563 = vand.u32 %v791, 4294901760
    %v4564 = vsub.f32 %v791, %v4563
    %v4565 = vand.u32 %v4564, 4294901760
    %v4566 = vsub.f32 %v4564, %v4565
    %v4567 = vand.u32 %v4566, 4294901760
    %4568 = vmatpush1.msra.mxu0 %v4567
    %4569 = vmatprep.subr.mxu0 0.0
    %4570 = vmatpush1.msra.mxu0 0.0
    %4571 = vmatprep.subr.mxu0 0.0
    %4572 = vmatpush1.msra.mxu0 0.0
    %4573 = vmatprep.subr.mxu0 0.0
    %4574 = vmatpush1.msra.mxu0 0.0
    %4575 = vmatprep.subr.mxu0 0.0
    %4576 = vmatpush1.msra.mxu0 0.0
    %4577 = vmatprep.subr.mxu0 0.0
    %4578 = vmatpush1.msra.mxu0 0.0
    %4579 = vmatprep.subr.mxu0 0.0
    %4580 = vmatpush1.msra.mxu0 0.0
    %4581 = vmatprep.subr.mxu0 0.0
    %4582 = vmatpush1.msra.mxu0 0.0
    %4583 = vmatprep.subr.mxu0 0.0
    %4584 = vmatpush1.msra.mxu0 0.0
    %4585 = vmatprep.subr.mxu0 0.0
    %4586 = vmatpush1.msra.mxu0 0.0
    %4587 = vmatprep.subr.mxu0 0.0
    %4588 = vmatpush1.msra.mxu0 0.0
    %4589 = vmatprep.subr.mxu0 0.0
    %4590 = vmatpush1.msra.mxu0 0.0
    %4591 = vmatprep.subr.mxu0 0.0
    %4592 = vmatpush1.msra.mxu0 0.0
    %4593 = vmatprep.subr.mxu0 0.0
    %4594 = vmatpush1.msra.mxu0 0.0
    %4595 = vmatprep.subr.mxu0 0.0
    %4596 = vmatpush1.msra.mxu0 0.0
    %4597 = vmatprep.subr.mxu0 0.0
    %4598 = vmatpush1.msra.mxu0 0.0
    %4599 = vmatprep.subr.mxu0 0.0
    %4600 = vmatpush1.msra.mxu0 0.0
    %4601 = vmatprep.subr.mxu0 0.0
    %4602 = vmatpush1.msra.mxu0 0.0
    %4603 = vmatprep.subr.mxu0 0.0
    %4604 = vmatpush1.msra.mxu0 0.0
    %4605 = vmatprep.subr.mxu0 0.0
    %4606 = vmatpush1.msra.mxu0 0.0
    %4607 = vmatprep.subr.mxu0 0.0
    %4608 = vmatpush1.msra.mxu0 0.0
    %4609 = vmatprep.subr.mxu0 0.0
    %4610 = vmatpush1.msra.mxu0 0.0
    %4611 = vmatprep.subr.mxu0 0.0
    %4612 = vmatpush1.msra.mxu0 0.0
    %4613 = vmatprep.subr.mxu0 0.0
    %4614 = vmatpush1.msra.mxu0 0.0
    %4615 = vmatprep.subr.mxu0 0.0
    %4616 = vmatpush1.msra.mxu0 0.0
    %4617 = vmatprep.subr.mxu0 0.0
    %4618 = vmatpush1.msra.mxu0 0.0
    %4619 = vmatprep.subr.mxu0 0.0
    %4620 = vmatpush1.msra.mxu0 0.0
    %4621 = vmatprep.subr.mxu0 0.0
    %4622 = vmatpush1.msra.mxu0 0.0
    %4623 = vmatprep.subr.mxu0 0.0
    %4624 = vmatpush1.msra.mxu0 0.0
    %4625 = vmatprep.mubr.f32.mxu0 0.0
    %v4626 = vand.u32 %v4460, 4294901760
    %4627 = vmatmul.mubr.f32.gmra.mrb[0].mxu0 %v4626
    %v4628 = vpop.f32.mrb[0].mxu0
    %v4629 = vadd.f32 %v4538, %v4628
    %v4630 = vpop.f32.mrb[0].mxu0
    %4631 = vdwg.mxu0
    %4632 = vmatprep.subr.mxu0 0.0
    %v4633 = vand.u32 %v788, 4294901760
    %v4634 = vsub.f32 %v788, %v4633
    %4635 = vmatpush1.msra.mxu0 %v4634
    %4636 = vmatprep.subr.mxu0 0.0
    %v4637 = vand.u32 %v789, 4294901760
    %v4638 = vsub.f32 %v789, %v4637
    %4639 = vmatpush1.msra.mxu0 %v4638
    %4640 = vmatprep.subr.mxu0 0.0
    %v4641 = vand.u32 %v790, 4294901760
    %v4642 = vsub.f32 %v790, %v4641
    %4643 = vmatpush1.msra.mxu0 %v4642
    %4644 = vmatprep.subr.mxu0 0.0
    %v4645 = vand.u32 %v791, 4294901760
    %v4646 = vsub.f32 %v791, %v4645
    %4647 = vmatpush1.msra.mxu0 %v4646
    %4648 = vmatprep.subr.mxu0 0.0
    %4649 = vmatpush1.msra.mxu0 0.0
    %4650 = vmatprep.subr.mxu0 0.0
    %4651 = vmatpush1.msra.mxu0 0.0
    %4652 = vmatprep.subr.mxu0 0.0
    %4653 = vmatpush1.msra.mxu0 0.0
    %4654 = vmatprep.subr.mxu0 0.0
    %4655 = vmatpush1.msra.mxu0 0.0
    %4656 = vmatprep.subr.mxu0 0.0
    %4657 = vmatpush1.msra.mxu0 0.0
    %4658 = vmatprep.subr.mxu0 0.0
    %4659 = vmatpush1.msra.mxu0 0.0
    %4660 = vmatprep.subr.mxu0 0.0
    %4661 = vmatpush1.msra.mxu0 0.0
    %4662 = vmatprep.subr.mxu0 0.0
    %4663 = vmatpush1.msra.mxu0 0.0
    %4664 = vmatprep.subr.mxu0 0.0
    %4665 = vmatpush1.msra.mxu0 0.0
    %4666 = vmatprep.subr.mxu0 0.0
    %4667 = vmatpush1.msra.mxu0 0.0
    %4668 = vmatprep.subr.mxu0 0.0
    %4669 = vmatpush1.msra.mxu0 0.0
    %4670 = vmatprep.subr.mxu0 0.0
    %4671 = vmatpush1.msra.mxu0 0.0
    %4672 = vmatprep.subr.mxu0 0.0
    %4673 = vmatpush1.msra.mxu0 0.0
    %4674 = vmatprep.subr.mxu0 0.0
    %4675 = vmatpush1.msra.mxu0 0.0
    %4676 = vmatprep.subr.mxu0 0.0
    %4677 = vmatpush1.msra.mxu0 0.0
    %4678 = vmatprep.subr.mxu0 0.0
    %4679 = vmatpush1.msra.mxu0 0.0
    %4680 = vmatprep.subr.mxu0 0.0
    %4681 = vmatpush1.msra.mxu0 0.0
    %4682 = vmatprep.subr.mxu0 0.0
    %4683 = vmatpush1.msra.mxu0 0.0
    %4684 = vmatprep.subr.mxu0 0.0
    %4685 = vmatpush1.msra.mxu0 0.0
    %4686 = vmatprep.subr.mxu0 0.0
    %4687 = vmatpush1.msra.mxu0 0.0
    %4688 = vmatprep.subr.mxu0 0.0
    %4689 = vmatpush1.msra.mxu0 0.0
    %4690 = vmatprep.subr.mxu0 0.0
    %4691 = vmatpush1.msra.mxu0 0.0
    %4692 = vmatprep.subr.mxu0 0.0
    %4693 = vmatpush1.msra.mxu0 0.0
    %4694 = vmatprep.subr.mxu0 0.0
    %4695 = vmatpush1.msra.mxu0 0.0
    %4696 = vmatprep.subr.mxu0 0.0
    %4697 = vmatpush1.msra.mxu0 0.0
    %4698 = vmatprep.subr.mxu0 0.0
    %4699 = vmatpush1.msra.mxu0 0.0
    %4700 = vmatprep.subr.mxu0 0.0
    %4701 = vmatpush1.msra.mxu0 0.0
    %4702 = vmatprep.subr.mxu0 0.0
    %4703 = vmatpush1.msra.mxu0 0.0
    %4704 = vmatprep.mubr.f32.mxu0 0.0
    %v4705 = vand.u32 %v4460, 4294901760
    %v4706 = vsub.f32 %v4460, %v4705
    %4707 = vmatmul.mubr.f32.gmra.mrb[0].mxu0 %v4706
    %v4708 = vpop.f32.mrb[0].mxu0
    %v4709 = vadd.f32 %v4629, %v4708
    %v4710 = vpop.f32.mrb[0].mxu0
    %4711 = vdwg.mxu0
    %4712 = vmatprep.subr.mxu0 0.0
    %v4713 = vand.u32 %v788, 4294901760
    %4714 = vmatpush1.msra.mxu0 %v4713
    %4715 = vmatprep.subr.mxu0 0.0
    %v4716 = vand.u32 %v789, 4294901760
    %4717 = vmatpush1.msra.mxu0 %v4716
    %4718 = vmatprep.subr.mxu0 0.0
    %v4719 = vand.u32 %v790, 4294901760
    %4720 = vmatpush1.msra.mxu0 %v4719
    %4721 = vmatprep.subr.mxu0 0.0
    %v4722 = vand.u32 %v791, 4294901760
    %4723 = vmatpush1.msra.mxu0 %v4722
    %4724 = vmatprep.subr.mxu0 0.0
    %4725 = vmatpush1.msra.mxu0 0.0
    %4726 = vmatprep.subr.mxu0 0.0
    %4727 = vmatpush1.msra.mxu0 0.0
    %4728 = vmatprep.subr.mxu0 0.0
    %4729 = vmatpush1.msra.mxu0 0.0
    %4730 = vmatprep.subr.mxu0 0.0
    %4731 = vmatpush1.msra.mxu0 0.0
    %4732 = vmatprep.subr.mxu0 0.0
    %4733 = vmatpush1.msra.mxu0 0.0
    %4734 = vmatprep.subr.mxu0 0.0
    %4735 = vmatpush1.msra.mxu0 0.0
    %4736 = vmatprep.subr.mxu0 0.0
    %4737 = vmatpush1.msra.mxu0 0.0
    %4738 = vmatprep.subr.mxu0 0.0
    %4739 = vmatpush1.msra.mxu0 0.0
    %4740 = vmatprep.subr.mxu0 0.0
    %4741 = vmatpush1.msra.mxu0 0.0
    %4742 = vmatprep.subr.mxu0 0.0
    %4743 = vmatpush1.msra.mxu0 0.0
    %4744 = vmatprep.subr.mxu0 0.0
    %4745 = vmatpush1.msra.mxu0 0.0
    %4746 = vmatprep.subr.mxu0 0.0
    %4747 = vmatpush1.msra.mxu0 0.0
    %4748 = vmatprep.subr.mxu0 0.0
    %4749 = vmatpush1.msra.mxu0 0.0
    %4750 = vmatprep.subr.mxu0 0.0
    %4751 = vmatpush1.msra.mxu0 0.0
    %4752 = vmatprep.subr.mxu0 0.0
    %4753 = vmatpush1.msra.mxu0 0.0
    %4754 = vmatprep.subr.mxu0 0.0
    %4755 = vmatpush1.msra.mxu0 0.0
    %4756 = vmatprep.subr.mxu0 0.0
    %4757 = vmatpush1.msra.mxu0 0.0
    %4758 = vmatprep.subr.mxu0 0.0
    %4759 = vmatpush1.msra.mxu0 0.0
    %4760 = vmatprep.subr.mxu0 0.0
    %4761 = vmatpush1.msra.mxu0 0.0
    %4762 = vmatprep.subr.mxu0 0.0
    %4763 = vmatpush1.msra.mxu0 0.0
    %4764 = vmatprep.subr.mxu0 0.0
    %4765 = vmatpush1.msra.mxu0 0.0
    %4766 = vmatprep.subr.mxu0 0.0
    %4767 = vmatpush1.msra.mxu0 0.0
    %4768 = vmatprep.subr.mxu0 0.0
    %4769 = vmatpush1.msra.mxu0 0.0
    %4770 = vmatprep.subr.mxu0 0.0
    %4771 = vmatpush1.msra.mxu0 0.0
    %4772 = vmatprep.subr.mxu0 0.0
    %4773 = vmatpush1.msra.mxu0 0.0
    %4774 = vmatprep.subr.mxu0 0.0
    %4775 = vmatpush1.msra.mxu0 0.0
    %4776 = vmatprep.subr.mxu0 0.0
    %4777 = vmatpush1.msra.mxu0 0.0
    %4778 = vmatprep.subr.mxu0 0.0
    %4779 = vmatpush1.msra.mxu0 0.0
    %4780 = vmatprep.mubr.f32.mxu0 0.0
    %v4781 = vand.u32 %v4460, 4294901760
    %v4782 = vsub.f32 %v4460, %v4781
    %v4783 = vand.u32 %v4782, 4294901760
    %4784 = vmatmul.mubr.f32.gmra.mrb[0].mxu0 %v4783
    %v4785 = vpop.f32.mrb[0].mxu0
    %v4786 = vadd.f32 %v4709, %v4785
    %v4787 = vpop.f32.mrb[0].mxu0
    %4788 = vdwg.mxu0
    %4789 = vmatprep.subr.mxu0 0.0
    %v4790 = vand.u32 %v788, 4294901760
    %v4791 = vsub.f32 %v788, %v4790
    %v4792 = vand.u32 %v4791, 4294901760
    %4793 = vmatpush1.msra.mxu0 %v4792
    %4794 = vmatprep.subr.mxu0 0.0
    %v4795 = vand.u32 %v789, 4294901760
    %v4796 = vsub.f32 %v789, %v4795
    %v4797 = vand.u32 %v4796, 4294901760
    %4798 = vmatpush1.msra.mxu0 %v4797
    %4799 = vmatprep.subr.mxu0 0.0
    %v4800 = vand.u32 %v790, 4294901760
    %v4801 = vsub.f32 %v790, %v4800
    %v4802 = vand.u32 %v4801, 4294901760
    %4803 = vmatpush1.msra.mxu0 %v4802
    %4804 = vmatprep.subr.mxu0 0.0
    %v4805 = vand.u32 %v791, 4294901760
    %v4806 = vsub.f32 %v791, %v4805
    %v4807 = vand.u32 %v4806, 4294901760
    %4808 = vmatpush1.msra.mxu0 %v4807
    %4809 = vmatprep.subr.mxu0 0.0
    %4810 = vmatpush1.msra.mxu0 0.0
    %4811 = vmatprep.subr.mxu0 0.0
    %4812 = vmatpush1.msra.mxu0 0.0
    %4813 = vmatprep.subr.mxu0 0.0
    %4814 = vmatpush1.msra.mxu0 0.0
    %4815 = vmatprep.subr.mxu0 0.0
    %4816 = vmatpush1.msra.mxu0 0.0
    %4817 = vmatprep.subr.mxu0 0.0
    %4818 = vmatpush1.msra.mxu0 0.0
    %4819 = vmatprep.subr.mxu0 0.0
    %4820 = vmatpush1.msra.mxu0 0.0
    %4821 = vmatprep.subr.mxu0 0.0
    %4822 = vmatpush1.msra.mxu0 0.0
    %4823 = vmatprep.subr.mxu0 0.0
    %4824 = vmatpush1.msra.mxu0 0.0
    %4825 = vmatprep.subr.mxu0 0.0
    %4826 = vmatpush1.msra.mxu0 0.0
    %4827 = vmatprep.subr.mxu0 0.0
    %4828 = vmatpush1.msra.mxu0 0.0
    %4829 = vmatprep.subr.mxu0 0.0
    %4830 = vmatpush1.msra.mxu0 0.0
    %4831 = vmatprep.subr.mxu0 0.0
    %4832 = vmatpush1.msra.mxu0 0.0
    %4833 = vmatprep.subr.mxu0 0.0
    %4834 = vmatpush1.msra.mxu0 0.0
    %4835 = vmatprep.subr.mxu0 0.0
    %4836 = vmatpush1.msra.mxu0 0.0
    %4837 = vmatprep.subr.mxu0 0.0
    %4838 = vmatpush1.msra.mxu0 0.0
    %4839 = vmatprep.subr.mxu0 0.0
    %4840 = vmatpush1.msra.mxu0 0.0
    %4841 = vmatprep.subr.mxu0 0.0
    %4842 = vmatpush1.msra.mxu0 0.0
    %4843 = vmatprep.subr.mxu0 0.0
    %4844 = vmatpush1.msra.mxu0 0.0
    %4845 = vmatprep.subr.mxu0 0.0
    %4846 = vmatpush1.msra.mxu0 0.0
    %4847 = vmatprep.subr.mxu0 0.0
    %4848 = vmatpush1.msra.mxu0 0.0
    %4849 = vmatprep.subr.mxu0 0.0
    %4850 = vmatpush1.msra.mxu0 0.0
    %4851 = vmatprep.subr.mxu0 0.0
    %4852 = vmatpush1.msra.mxu0 0.0
    %4853 = vmatprep.subr.mxu0 0.0
    %4854 = vmatpush1.msra.mxu0 0.0
    %4855 = vmatprep.subr.mxu0 0.0
    %4856 = vmatpush1.msra.mxu0 0.0
    %4857 = vmatprep.subr.mxu0 0.0
    %4858 = vmatpush1.msra.mxu0 0.0
    %4859 = vmatprep.subr.mxu0 0.0
    %4860 = vmatpush1.msra.mxu0 0.0
    %4861 = vmatprep.subr.mxu0 0.0
    %4862 = vmatpush1.msra.mxu0 0.0
    %4863 = vmatprep.subr.mxu0 0.0
    %4864 = vmatpush1.msra.mxu0 0.0
    %4865 = vmatprep.mubr.f32.mxu0 0.0
    %v4866 = vand.u32 %v4460, 4294901760
    %4867 = vmatmul.mubr.f32.gmra.mrb[0].mxu0 %v4866
    %v4868 = vpop.f32.mrb[0].mxu0
    %v4869 = vadd.f32 %v4786, %v4868
    %v4870 = vpop.f32.mrb[0].mxu0
    %4871 = vdwg.mxu0
    %4872 = vmatprep.subr.mxu0 0.0
    %v4873 = vand.u32 %v788, 4294901760
    %4874 = vmatpush1.msra.mxu0 %v4873
    %4875 = vmatprep.subr.mxu0 0.0
    %v4876 = vand.u32 %v789, 4294901760
    %4877 = vmatpush1.msra.mxu0 %v4876
    %4878 = vmatprep.subr.mxu0 0.0
    %v4879 = vand.u32 %v790, 4294901760
    %4880 = vmatpush1.msra.mxu0 %v4879
    %4881 = vmatprep.subr.mxu0 0.0
    %v4882 = vand.u32 %v791, 4294901760
    %4883 = vmatpush1.msra.mxu0 %v4882
    %4884 = vmatprep.subr.mxu0 0.0
    %4885 = vmatpush1.msra.mxu0 0.0
    %4886 = vmatprep.subr.mxu0 0.0
    %4887 = vmatpush1.msra.mxu0 0.0
    %4888 = vmatprep.subr.mxu0 0.0
    %4889 = vmatpush1.msra.mxu0 0.0
    %4890 = vmatprep.subr.mxu0 0.0
    %4891 = vmatpush1.msra.mxu0 0.0
    %4892 = vmatprep.subr.mxu0 0.0
    %4893 = vmatpush1.msra.mxu0 0.0
    %4894 = vmatprep.subr.mxu0 0.0
    %4895 = vmatpush1.msra.mxu0 0.0
    %4896 = vmatprep.subr.mxu0 0.0
    %4897 = vmatpush1.msra.mxu0 0.0
    %4898 = vmatprep.subr.mxu0 0.0
    %4899 = vmatpush1.msra.mxu0 0.0
    %4900 = vmatprep.subr.mxu0 0.0
    %4901 = vmatpush1.msra.mxu0 0.0
    %4902 = vmatprep.subr.mxu0 0.0
    %4903 = vmatpush1.msra.mxu0 0.0
    %4904 = vmatprep.subr.mxu0 0.0
    %4905 = vmatpush1.msra.mxu0 0.0
    %4906 = vmatprep.subr.mxu0 0.0
    %4907 = vmatpush1.msra.mxu0 0.0
    %4908 = vmatprep.subr.mxu0 0.0
    %4909 = vmatpush1.msra.mxu0 0.0
    %4910 = vmatprep.subr.mxu0 0.0
    %4911 = vmatpush1.msra.mxu0 0.0
    %4912 = vmatprep.subr.mxu0 0.0
    %4913 = vmatpush1.msra.mxu0 0.0
    %4914 = vmatprep.subr.mxu0 0.0
    %4915 = vmatpush1.msra.mxu0 0.0
    %4916 = vmatprep.subr.mxu0 0.0
    %4917 = vmatpush1.msra.mxu0 0.0
    %4918 = vmatprep.subr.mxu0 0.0
    %4919 = vmatpush1.msra.mxu0 0.0
    %4920 = vmatprep.subr.mxu0 0.0
    %4921 = vmatpush1.msra.mxu0 0.0
    %4922 = vmatprep.subr.mxu0 0.0
    %4923 = vmatpush1.msra.mxu0 0.0
    %4924 = vmatprep.subr.mxu0 0.0
    %4925 = vmatpush1.msra.mxu0 0.0
    %4926 = vmatprep.subr.mxu0 0.0
    %4927 = vmatpush1.msra.mxu0 0.0
    %4928 = vmatprep.subr.mxu0 0.0
    %4929 = vmatpush1.msra.mxu0 0.0
    %4930 = vmatprep.subr.mxu0 0.0
    %4931 = vmatpush1.msra.mxu0 0.0
    %4932 = vmatprep.subr.mxu0 0.0
    %4933 = vmatpush1.msra.mxu0 0.0
    %4934 = vmatprep.subr.mxu0 0.0
    %4935 = vmatpush1.msra.mxu0 0.0
    %4936 = vmatprep.subr.mxu0 0.0
    %4937 = vmatpush1.msra.mxu0 0.0
    %4938 = vmatprep.subr.mxu0 0.0
    %4939 = vmatpush1.msra.mxu0 0.0
    %4940 = vmatprep.mubr.f32.mxu0 0.0
    %v4941 = vand.u32 %v4460, 4294901760
    %4942 = vmatmul.mubr.f32.gmra.mrb[0].mxu0 %v4941
    %v4943 = vpop.f32.mrb[0].mxu0
    %v4944 = vadd.f32 %v4869, %v4943
    %v4945 = vpop.f32.mrb[0].mxu0
    %4946 = vdwg.mxu0
    %v4947 = vtanh.pop %v4944
    %4948 = vst.msk [vmem:[#allocation3] sm:$0xff] %vm74, %v4947
    %4949 = vst.msk [vmem:[#allocation3] sm:$0xff] %vm780, %v4456
    %s4950 = scalar_lea.vmem [#allocation10], 24
    %4951 = vst.msk [vmem:[%s4950] sm:$0xff] %vm74, %v4947
    %v4952 = vld [vmem:[#allocation3] sm:$0xff]
    %s4953 = scalar_lea.vmem [#allocation2], 32
    %v4954 = vld [vmem:[%s4953] sm:$0xff]
    %v4956 = vsel %vm794, %v4952, 0
    %4958 = vmatprep.subr.mxu0 0.0
    %v4959 = vand.u32 %v782, 4294901760
    %4960 = vmatpush1.msra.mxu0 %v4959
    %4961 = vmatprep.subr.mxu0 0.0
    %v4962 = vand.u32 %v783, 4294901760
    %4963 = vmatpush1.msra.mxu0 %v4962
    %4964 = vmatprep.subr.mxu0 0.0
    %v4965 = vand.u32 %v784, 4294901760
    %4966 = vmatpush1.msra.mxu0 %v4965
    %4967 = vmatprep.subr.mxu0 0.0
    %v4968 = vand.u32 %v785, 4294901760
    %4969 = vmatpush1.msra.mxu0 %v4968
    %4970 = vmatprep.subr.mxu0 0.0
    %v4971 = vand.u32 %v786, 4294901760
    %4972 = vmatpush1.msra.mxu0 %v4971
    %4973 = vmatprep.subr.mxu0 0.0
    %v4974 = vand.u32 %v787, 4294901760
    %4975 = vmatpush1.msra.mxu0 %v4974
    %4976 = vmatprep.subr.mxu0 0.0
    %4977 = vmatpush1.msra.mxu0 0.0
    %4978 = vmatprep.subr.mxu0 0.0
    %4979 = vmatpush1.msra.mxu0 0.0
    %4980 = vmatprep.subr.mxu0 0.0
    %4981 = vmatpush1.msra.mxu0 0.0
    %4982 = vmatprep.subr.mxu0 0.0
    %4983 = vmatpush1.msra.mxu0 0.0
    %4984 = vmatprep.subr.mxu0 0.0
    %4985 = vmatpush1.msra.mxu0 0.0
    %4986 = vmatprep.subr.mxu0 0.0
    %4987 = vmatpush1.msra.mxu0 0.0
    %4988 = vmatprep.subr.mxu0 0.0
    %4989 = vmatpush1.msra.mxu0 0.0
    %4990 = vmatprep.subr.mxu0 0.0
    %4991 = vmatpush1.msra.mxu0 0.0
    %4992 = vmatprep.subr.mxu0 0.0
    %4993 = vmatpush1.msra.mxu0 0.0
    %4994 = vmatprep.subr.mxu0 0.0
    %4995 = vmatpush1.msra.mxu0 0.0
    %4996 = vmatprep.subr.mxu0 0.0
    %4997 = vmatpush1.msra.mxu0 0.0
    %4998 = vmatprep.subr.mxu0 0.0
    %4999 = vmatpush1.msra.mxu0 0.0
    %5000 = vmatprep.subr.mxu0 0.0
    %5001 = vmatpush1.msra.mxu0 0.0
    %5002 = vmatprep.subr.mxu0 0.0
    %5003 = vmatpush1.msra.mxu0 0.0
    %5004 = vmatprep.subr.mxu0 0.0
    %5005 = vmatpush1.msra.mxu0 0.0
    %5006 = vmatprep.subr.mxu0 0.0
    %5007 = vmatpush1.msra.mxu0 0.0
    %5008 = vmatprep.subr.mxu0 0.0
    %5009 = vmatpush1.msra.mxu0 0.0
    %5010 = vmatprep.subr.mxu0 0.0
    %5011 = vmatpush1.msra.mxu0 0.0
    %5012 = vmatprep.subr.mxu0 0.0
    %5013 = vmatpush1.msra.mxu0 0.0
    %5014 = vmatprep.subr.mxu0 0.0
    %5015 = vmatpush1.msra.mxu0 0.0
    %5016 = vmatprep.subr.mxu0 0.0
    %5017 = vmatpush1.msra.mxu0 0.0
    %5018 = vmatprep.subr.mxu0 0.0
    %5019 = vmatpush1.msra.mxu0 0.0
    %5020 = vmatprep.subr.mxu0 0.0
    %5021 = vmatpush1.msra.mxu0 0.0
    %5022 = vmatprep.subr.mxu0 0.0
    %5023 = vmatpush1.msra.mxu0 0.0
    %5024 = vmatprep.subr.mxu0 0.0
    %5025 = vmatpush1.msra.mxu0 0.0
    %5026 = vmatprep.subr.mxu0 0.0
    %5027 = vmatpush1.msra.mxu0 0.0
    %5028 = vmatprep.mubr.f32.mxu0 0.0
    %v5029 = vand.u32 %v4956, 4294901760
    %v5030 = vsub.f32 %v4956, %v5029
    %v5031 = vand.u32 %v5030, 4294901760
    %v5032 = vsub.f32 %v5030, %v5031
    %v5033 = vand.u32 %v5032, 4294901760
    %5034 = vmatmul.mubr.f32.gmra.mrb[0].mxu0 %v5033
    %v5035 = vpop.f32.mrb[0].mxu0
    %v5036 = vadd.f32 0.0, %v5035
    %v5037 = vpop.f32.mrb[0].mxu0
    %5038 = vdwg.mxu0
    %5039 = vmatprep.subr.mxu0 0.0
    %v5040 = vand.u32 %v782, 4294901760
    %v5041 = vsub.f32 %v782, %v5040
    %v5042 = vand.u32 %v5041, 4294901760
    %v5043 = vsub.f32 %v5041, %v5042
    %v5044 = vand.u32 %v5043, 4294901760
    %5045 = vmatpush1.msra.mxu0 %v5044
    %5046 = vmatprep.subr.mxu0 0.0
    %v5047 = vand.u32 %v783, 4294901760
    %v5048 = vsub.f32 %v783, %v5047
    %v5049 = vand.u32 %v5048, 4294901760
    %v5050 = vsub.f32 %v5048, %v5049
    %v5051 = vand.u32 %v5050, 4294901760
    %5052 = vmatpush1.msra.mxu0 %v5051
    %5053 = vmatprep.subr.mxu0 0.0
    %v5054 = vand.u32 %v784, 4294901760
    %v5055 = vsub.f32 %v784, %v5054
    %v5056 = vand.u32 %v5055, 4294901760
    %v5057 = vsub.f32 %v5055, %v5056
    %v5058 = vand.u32 %v5057, 4294901760
    %5059 = vmatpush1.msra.mxu0 %v5058
    %5060 = vmatprep.subr.mxu0 0.0
    %v5061 = vand.u32 %v785, 4294901760
    %v5062 = vsub.f32 %v785, %v5061
    %v5063 = vand.u32 %v5062, 4294901760
    %v5064 = vsub.f32 %v5062, %v5063
    %v5065 = vand.u32 %v5064, 4294901760
    %5066 = vmatpush1.msra.mxu0 %v5065
    %5067 = vmatprep.subr.mxu0 0.0
    %v5068 = vand.u32 %v786, 4294901760
    %v5069 = vsub.f32 %v786, %v5068
    %v5070 = vand.u32 %v5069, 4294901760
    %v5071 = vsub.f32 %v5069, %v5070
    %v5072 = vand.u32 %v5071, 4294901760
    %5073 = vmatpush1.msra.mxu0 %v5072
    %5074 = vmatprep.subr.mxu0 0.0
    %v5075 = vand.u32 %v787, 4294901760
    %v5076 = vsub.f32 %v787, %v5075
    %v5077 = vand.u32 %v5076, 4294901760
    %v5078 = vsub.f32 %v5076, %v5077
    %v5079 = vand.u32 %v5078, 4294901760
    %5080 = vmatpush1.msra.mxu0 %v5079
    %5081 = vmatprep.subr.mxu0 0.0
    %5082 = vmatpush1.msra.mxu0 0.0
    %5083 = vmatprep.subr.mxu0 0.0
    %5084 = vmatpush1.msra.mxu0 0.0
    %5085 = vmatprep.subr.mxu0 0.0
    %5086 = vmatpush1.msra.mxu0 0.0
    %5087 = vmatprep.subr.mxu0 0.0
    %5088 = vmatpush1.msra.mxu0 0.0
    %5089 = vmatprep.subr.mxu0 0.0
    %5090 = vmatpush1.msra.mxu0 0.0
    %5091 = vmatprep.subr.mxu0 0.0
    %5092 = vmatpush1.msra.mxu0 0.0
    %5093 = vmatprep.subr.mxu0 0.0
    %5094 = vmatpush1.msra.mxu0 0.0
    %5095 = vmatprep.subr.mxu0 0.0
    %5096 = vmatpush1.msra.mxu0 0.0
    %5097 = vmatprep.subr.mxu0 0.0
    %5098 = vmatpush1.msra.mxu0 0.0
    %5099 = vmatprep.subr.mxu0 0.0
    %5100 = vmatpush1.msra.mxu0 0.0
    %5101 = vmatprep.subr.mxu0 0.0
    %5102 = vmatpush1.msra.mxu0 0.0
    %5103 = vmatprep.subr.mxu0 0.0
    %5104 = vmatpush1.msra.mxu0 0.0
    %5105 = vmatprep.subr.mxu0 0.0
    %5106 = vmatpush1.msra.mxu0 0.0
    %5107 = vmatprep.subr.mxu0 0.0
    %5108 = vmatpush1.msra.mxu0 0.0
    %5109 = vmatprep.subr.mxu0 0.0
    %5110 = vmatpush1.msra.mxu0 0.0
    %5111 = vmatprep.subr.mxu0 0.0
    %5112 = vmatpush1.msra.mxu0 0.0
    %5113 = vmatprep.subr.mxu0 0.0
    %5114 = vmatpush1.msra.mxu0 0.0
    %5115 = vmatprep.subr.mxu0 0.0
    %5116 = vmatpush1.msra.mxu0 0.0
    %5117 = vmatprep.subr.mxu0 0.0
    %5118 = vmatpush1.msra.mxu0 0.0
    %5119 = vmatprep.subr.mxu0 0.0
    %5120 = vmatpush1.msra.mxu0 0.0
    %5121 = vmatprep.subr.mxu0 0.0
    %5122 = vmatpush1.msra.mxu0 0.0
    %5123 = vmatprep.subr.mxu0 0.0
    %5124 = vmatpush1.msra.mxu0 0.0
    %5125 = vmatprep.subr.mxu0 0.0
    %5126 = vmatpush1.msra.mxu0 0.0
    %5127 = vmatprep.subr.mxu0 0.0
    %5128 = vmatpush1.msra.mxu0 0.0
    %5129 = vmatprep.subr.mxu0 0.0
    %5130 = vmatpush1.msra.mxu0 0.0
    %5131 = vmatprep.subr.mxu0 0.0
    %5132 = vmatpush1.msra.mxu0 0.0
    %5133 = vmatprep.mubr.f32.mxu0 0.0
    %v5134 = vand.u32 %v4956, 4294901760
    %5135 = vmatmul.mubr.f32.gmra.mrb[0].mxu0 %v5134
    %v5136 = vpop.f32.mrb[0].mxu0
    %v5137 = vadd.f32 %v5036, %v5136
    %v5138 = vpop.f32.mrb[0].mxu0
    %5139 = vdwg.mxu0
    %5140 = vmatprep.subr.mxu0 0.0
    %v5141 = vand.u32 %v782, 4294901760
    %v5142 = vsub.f32 %v782, %v5141
    %5143 = vmatpush1.msra.mxu0 %v5142
    %5144 = vmatprep.subr.mxu0 0.0
    %v5145 = vand.u32 %v783, 4294901760
    %v5146 = vsub.f32 %v783, %v5145
    %5147 = vmatpush1.msra.mxu0 %v5146
    %5148 = vmatprep.subr.mxu0 0.0
    %v5149 = vand.u32 %v784, 4294901760
    %v5150 = vsub.f32 %v784, %v5149
    %5151 = vmatpush1.msra.mxu0 %v5150
    %5152 = vmatprep.subr.mxu0 0.0
    %v5153 = vand.u32 %v785, 4294901760
    %v5154 = vsub.f32 %v785, %v5153
    %5155 = vmatpush1.msra.mxu0 %v5154
    %5156 = vmatprep.subr.mxu0 0.0
    %v5157 = vand.u32 %v786, 4294901760
    %v5158 = vsub.f32 %v786, %v5157
    %5159 = vmatpush1.msra.mxu0 %v5158
    %5160 = vmatprep.subr.mxu0 0.0
    %v5161 = vand.u32 %v787, 4294901760
    %v5162 = vsub.f32 %v787, %v5161
    %5163 = vmatpush1.msra.mxu0 %v5162
    %5164 = vmatprep.subr.mxu0 0.0
    %5165 = vmatpush1.msra.mxu0 0.0
    %5166 = vmatprep.subr.mxu0 0.0
    %5167 = vmatpush1.msra.mxu0 0.0
    %5168 = vmatprep.subr.mxu0 0.0
    %5169 = vmatpush1.msra.mxu0 0.0
    %5170 = vmatprep.subr.mxu0 0.0
    %5171 = vmatpush1.msra.mxu0 0.0
    %5172 = vmatprep.subr.mxu0 0.0
    %5173 = vmatpush1.msra.mxu0 0.0
    %5174 = vmatprep.subr.mxu0 0.0
    %5175 = vmatpush1.msra.mxu0 0.0
    %5176 = vmatprep.subr.mxu0 0.0
    %5177 = vmatpush1.msra.mxu0 0.0
    %5178 = vmatprep.subr.mxu0 0.0
    %5179 = vmatpush1.msra.mxu0 0.0
    %5180 = vmatprep.subr.mxu0 0.0
    %5181 = vmatpush1.msra.mxu0 0.0
    %5182 = vmatprep.subr.mxu0 0.0
    %5183 = vmatpush1.msra.mxu0 0.0
    %5184 = vmatprep.subr.mxu0 0.0
    %5185 = vmatpush1.msra.mxu0 0.0
    %5186 = vmatprep.subr.mxu0 0.0
    %5187 = vmatpush1.msra.mxu0 0.0
    %5188 = vmatprep.subr.mxu0 0.0
    %5189 = vmatpush1.msra.mxu0 0.0
    %5190 = vmatprep.subr.mxu0 0.0
    %5191 = vmatpush1.msra.mxu0 0.0
    %5192 = vmatprep.subr.mxu0 0.0
    %5193 = vmatpush1.msra.mxu0 0.0
    %5194 = vmatprep.subr.mxu0 0.0
    %5195 = vmatpush1.msra.mxu0 0.0
    %5196 = vmatprep.subr.mxu0 0.0
    %5197 = vmatpush1.msra.mxu0 0.0
    %5198 = vmatprep.subr.mxu0 0.0
    %5199 = vmatpush1.msra.mxu0 0.0
    %5200 = vmatprep.subr.mxu0 0.0
    %5201 = vmatpush1.msra.mxu0 0.0
    %5202 = vmatprep.subr.mxu0 0.0
    %5203 = vmatpush1.msra.mxu0 0.0
    %5204 = vmatprep.subr.mxu0 0.0
    %5205 = vmatpush1.msra.mxu0 0.0
    %5206 = vmatprep.subr.mxu0 0.0
    %5207 = vmatpush1.msra.mxu0 0.0
    %5208 = vmatprep.subr.mxu0 0.0
    %5209 = vmatpush1.msra.mxu0 0.0
    %5210 = vmatprep.subr.mxu0 0.0
    %5211 = vmatpush1.msra.mxu0 0.0
    %5212 = vmatprep.subr.mxu0 0.0
    %5213 = vmatpush1.msra.mxu0 0.0
    %5214 = vmatprep.subr.mxu0 0.0
    %5215 = vmatpush1.msra.mxu0 0.0
    %5216 = vmatprep.mubr.f32.mxu0 0.0
    %v5217 = vand.u32 %v4956, 4294901760
    %v5218 = vsub.f32 %v4956, %v5217
    %5219 = vmatmul.mubr.f32.gmra.mrb[0].mxu0 %v5218
    %v5220 = vpop.f32.mrb[0].mxu0
    %v5221 = vadd.f32 %v5137, %v5220
    %v5222 = vpop.f32.mrb[0].mxu0
    %5223 = vdwg.mxu0
    %5224 = vmatprep.subr.mxu0 0.0
    %v5225 = vand.u32 %v782, 4294901760
    %5226 = vmatpush1.msra.mxu0 %v5225
    %5227 = vmatprep.subr.mxu0 0.0
    %v5228 = vand.u32 %v783, 4294901760
    %5229 = vmatpush1.msra.mxu0 %v5228
    %5230 = vmatprep.subr.mxu0 0.0
    %v5231 = vand.u32 %v784, 4294901760
    %5232 = vmatpush1.msra.mxu0 %v5231
    %5233 = vmatprep.subr.mxu0 0.0
    %v5234 = vand.u32 %v785, 4294901760
    %5235 = vmatpush1.msra.mxu0 %v5234
    %5236 = vmatprep.subr.mxu0 0.0
    %v5237 = vand.u32 %v786, 4294901760
    %5238 = vmatpush1.msra.mxu0 %v5237
    %5239 = vmatprep.subr.mxu0 0.0
    %v5240 = vand.u32 %v787, 4294901760
    %5241 = vmatpush1.msra.mxu0 %v5240
    %5242 = vmatprep.subr.mxu0 0.0
    %5243 = vmatpush1.msra.mxu0 0.0
    %5244 = vmatprep.subr.mxu0 0.0
    %5245 = vmatpush1.msra.mxu0 0.0
    %5246 = vmatprep.subr.mxu0 0.0
    %5247 = vmatpush1.msra.mxu0 0.0
    %5248 = vmatprep.subr.mxu0 0.0
    %5249 = vmatpush1.msra.mxu0 0.0
    %5250 = vmatprep.subr.mxu0 0.0
    %5251 = vmatpush1.msra.mxu0 0.0
    %5252 = vmatprep.subr.mxu0 0.0
    %5253 = vmatpush1.msra.mxu0 0.0
    %5254 = vmatprep.subr.mxu0 0.0
    %5255 = vmatpush1.msra.mxu0 0.0
    %5256 = vmatprep.subr.mxu0 0.0
    %5257 = vmatpush1.msra.mxu0 0.0
    %5258 = vmatprep.subr.mxu0 0.0
    %5259 = vmatpush1.msra.mxu0 0.0
    %5260 = vmatprep.subr.mxu0 0.0
    %5261 = vmatpush1.msra.mxu0 0.0
    %5262 = vmatprep.subr.mxu0 0.0
    %5263 = vmatpush1.msra.mxu0 0.0
    %5264 = vmatprep.subr.mxu0 0.0
    %5265 = vmatpush1.msra.mxu0 0.0
    %5266 = vmatprep.subr.mxu0 0.0
    %5267 = vmatpush1.msra.mxu0 0.0
    %5268 = vmatprep.subr.mxu0 0.0
    %5269 = vmatpush1.msra.mxu0 0.0
    %5270 = vmatprep.subr.mxu0 0.0
    %5271 = vmatpush1.msra.mxu0 0.0
    %5272 = vmatprep.subr.mxu0 0.0
    %5273 = vmatpush1.msra.mxu0 0.0
    %5274 = vmatprep.subr.mxu0 0.0
    %5275 = vmatpush1.msra.mxu0 0.0
    %5276 = vmatprep.subr.mxu0 0.0
    %5277 = vmatpush1.msra.mxu0 0.0
    %5278 = vmatprep.subr.mxu0 0.0
    %5279 = vmatpush1.msra.mxu0 0.0
    %5280 = vmatprep.subr.mxu0 0.0
    %5281 = vmatpush1.msra.mxu0 0.0
    %5282 = vmatprep.subr.mxu0 0.0
    %5283 = vmatpush1.msra.mxu0 0.0
    %5284 = vmatprep.subr.mxu0 0.0
    %5285 = vmatpush1.msra.mxu0 0.0
    %5286 = vmatprep.subr.mxu0 0.0
    %5287 = vmatpush1.msra.mxu0 0.0
    %5288 = vmatprep.subr.mxu0 0.0
    %5289 = vmatpush1.msra.mxu0 0.0
    %5290 = vmatprep.subr.mxu0 0.0
    %5291 = vmatpush1.msra.mxu0 0.0
    %5292 = vmatprep.subr.mxu0 0.0
    %5293 = vmatpush1.msra.mxu0 0.0
    %5294 = vmatprep.mubr.f32.mxu0 0.0
    %v5295 = vand.u32 %v4956, 4294901760
    %v5296 = vsub.f32 %v4956, %v5295
    %v5297 = vand.u32 %v5296, 4294901760
    %5298 = vmatmul.mubr.f32.gmra.mrb[0].mxu0 %v5297
    %v5299 = vpop.f32.mrb[0].mxu0
    %v5300 = vadd.f32 %v5221, %v5299
    %v5301 = vpop.f32.mrb[0].mxu0
    %5302 = vdwg.mxu0
    %5303 = vmatprep.subr.mxu0 0.0
    %v5304 = vand.u32 %v782, 4294901760
    %v5305 = vsub.f32 %v782, %v5304
    %v5306 = vand.u32 %v5305, 4294901760
    %5307 = vmatpush1.msra.mxu0 %v5306
    %5308 = vmatprep.subr.mxu0 0.0
    %v5309 = vand.u32 %v783, 4294901760
    %v5310 = vsub.f32 %v783, %v5309
    %v5311 = vand.u32 %v5310, 4294901760
    %5312 = vmatpush1.msra.mxu0 %v5311
    %5313 = vmatprep.subr.mxu0 0.0
    %v5314 = vand.u32 %v784, 4294901760
    %v5315 = vsub.f32 %v784, %v5314
    %v5316 = vand.u32 %v5315, 4294901760
    %5317 = vmatpush1.msra.mxu0 %v5316
    %5318 = vmatprep.subr.mxu0 0.0
    %v5319 = vand.u32 %v785, 4294901760
    %v5320 = vsub.f32 %v785, %v5319
    %v5321 = vand.u32 %v5320, 4294901760
    %5322 = vmatpush1.msra.mxu0 %v5321
    %5323 = vmatprep.subr.mxu0 0.0
    %v5324 = vand.u32 %v786, 4294901760
    %v5325 = vsub.f32 %v786, %v5324
    %v5326 = vand.u32 %v5325, 4294901760
    %5327 = vmatpush1.msra.mxu0 %v5326
    %5328 = vmatprep.subr.mxu0 0.0
    %v5329 = vand.u32 %v787, 4294901760
    %v5330 = vsub.f32 %v787, %v5329
    %v5331 = vand.u32 %v5330, 4294901760
    %5332 = vmatpush1.msra.mxu0 %v5331
    %5333 = vmatprep.subr.mxu0 0.0
    %5334 = vmatpush1.msra.mxu0 0.0
    %5335 = vmatprep.subr.mxu0 0.0
    %5336 = vmatpush1.msra.mxu0 0.0
    %5337 = vmatprep.subr.mxu0 0.0
    %5338 = vmatpush1.msra.mxu0 0.0
    %5339 = vmatprep.subr.mxu0 0.0
    %5340 = vmatpush1.msra.mxu0 0.0
    %5341 = vmatprep.subr.mxu0 0.0
    %5342 = vmatpush1.msra.mxu0 0.0
    %5343 = vmatprep.subr.mxu0 0.0
    %5344 = vmatpush1.msra.mxu0 0.0
    %5345 = vmatprep.subr.mxu0 0.0
    %5346 = vmatpush1.msra.mxu0 0.0
    %5347 = vmatprep.subr.mxu0 0.0
    %5348 = vmatpush1.msra.mxu0 0.0
    %5349 = vmatprep.subr.mxu0 0.0
    %5350 = vmatpush1.msra.mxu0 0.0
    %5351 = vmatprep.subr.mxu0 0.0
    %5352 = vmatpush1.msra.mxu0 0.0
    %5353 = vmatprep.subr.mxu0 0.0
    %5354 = vmatpush1.msra.mxu0 0.0
    %5355 = vmatprep.subr.mxu0 0.0
    %5356 = vmatpush1.msra.mxu0 0.0
    %5357 = vmatprep.subr.mxu0 0.0
    %5358 = vmatpush1.msra.mxu0 0.0
    %5359 = vmatprep.subr.mxu0 0.0
    %5360 = vmatpush1.msra.mxu0 0.0
    %5361 = vmatprep.subr.mxu0 0.0
    %5362 = vmatpush1.msra.mxu0 0.0
    %5363 = vmatprep.subr.mxu0 0.0
    %5364 = vmatpush1.msra.mxu0 0.0
    %5365 = vmatprep.subr.mxu0 0.0
    %5366 = vmatpush1.msra.mxu0 0.0
    %5367 = vmatprep.subr.mxu0 0.0
    %5368 = vmatpush1.msra.mxu0 0.0
    %5369 = vmatprep.subr.mxu0 0.0
    %5370 = vmatpush1.msra.mxu0 0.0
    %5371 = vmatprep.subr.mxu0 0.0
    %5372 = vmatpush1.msra.mxu0 0.0
    %5373 = vmatprep.subr.mxu0 0.0
    %5374 = vmatpush1.msra.mxu0 0.0
    %5375 = vmatprep.subr.mxu0 0.0
    %5376 = vmatpush1.msra.mxu0 0.0
    %5377 = vmatprep.subr.mxu0 0.0
    %5378 = vmatpush1.msra.mxu0 0.0
    %5379 = vmatprep.subr.mxu0 0.0
    %5380 = vmatpush1.msra.mxu0 0.0
    %5381 = vmatprep.subr.mxu0 0.0
    %5382 = vmatpush1.msra.mxu0 0.0
    %5383 = vmatprep.subr.mxu0 0.0
    %5384 = vmatpush1.msra.mxu0 0.0
    %5385 = vmatprep.mubr.f32.mxu0 0.0
    %v5386 = vand.u32 %v4956, 4294901760
    %5387 = vmatmul.mubr.f32.gmra.mrb[0].mxu0 %v5386
    %v5388 = vpop.f32.mrb[0].mxu0
    %v5389 = vadd.f32 %v5300, %v5388
    %v5390 = vpop.f32.mrb[0].mxu0
    %5391 = vdwg.mxu0
    %5392 = vmatprep.subr.mxu0 0.0
    %v5393 = vand.u32 %v782, 4294901760
    %5394 = vmatpush1.msra.mxu0 %v5393
    %5395 = vmatprep.subr.mxu0 0.0
    %v5396 = vand.u32 %v783, 4294901760
    %5397 = vmatpush1.msra.mxu0 %v5396
    %5398 = vmatprep.subr.mxu0 0.0
    %v5399 = vand.u32 %v784, 4294901760
    %5400 = vmatpush1.msra.mxu0 %v5399
    %5401 = vmatprep.subr.mxu0 0.0
    %v5402 = vand.u32 %v785, 4294901760
    %5403 = vmatpush1.msra.mxu0 %v5402
    %5404 = vmatprep.subr.mxu0 0.0
    %v5405 = vand.u32 %v786, 4294901760
    %5406 = vmatpush1.msra.mxu0 %v5405
    %5407 = vmatprep.subr.mxu0 0.0
    %v5408 = vand.u32 %v787, 4294901760
    %5409 = vmatpush1.msra.mxu0 %v5408
    %5410 = vmatprep.subr.mxu0 0.0
    %5411 = vmatpush1.msra.mxu0 0.0
    %5412 = vmatprep.subr.mxu0 0.0
    %5413 = vmatpush1.msra.mxu0 0.0
    %5414 = vmatprep.subr.mxu0 0.0
    %5415 = vmatpush1.msra.mxu0 0.0
    %5416 = vmatprep.subr.mxu0 0.0
    %5417 = vmatpush1.msra.mxu0 0.0
    %5418 = vmatprep.subr.mxu0 0.0
    %5419 = vmatpush1.msra.mxu0 0.0
    %5420 = vmatprep.subr.mxu0 0.0
    %5421 = vmatpush1.msra.mxu0 0.0
    %5422 = vmatprep.subr.mxu0 0.0
    %5423 = vmatpush1.msra.mxu0 0.0
    %5424 = vmatprep.subr.mxu0 0.0
    %5425 = vmatpush1.msra.mxu0 0.0
    %5426 = vmatprep.subr.mxu0 0.0
    %5427 = vmatpush1.msra.mxu0 0.0
    %5428 = vmatprep.subr.mxu0 0.0
    %5429 = vmatpush1.msra.mxu0 0.0
    %5430 = vmatprep.subr.mxu0 0.0
    %5431 = vmatpush1.msra.mxu0 0.0
    %5432 = vmatprep.subr.mxu0 0.0
    %5433 = vmatpush1.msra.mxu0 0.0
    %5434 = vmatprep.subr.mxu0 0.0
    %5435 = vmatpush1.msra.mxu0 0.0
    %5436 = vmatprep.subr.mxu0 0.0
    %5437 = vmatpush1.msra.mxu0 0.0
    %5438 = vmatprep.subr.mxu0 0.0
    %5439 = vmatpush1.msra.mxu0 0.0
    %5440 = vmatprep.subr.mxu0 0.0
    %5441 = vmatpush1.msra.mxu0 0.0
    %5442 = vmatprep.subr.mxu0 0.0
    %5443 = vmatpush1.msra.mxu0 0.0
    %5444 = vmatprep.subr.mxu0 0.0
    %5445 = vmatpush1.msra.mxu0 0.0
    %5446 = vmatprep.subr.mxu0 0.0
    %5447 = vmatpush1.msra.mxu0 0.0
    %5448 = vmatprep.subr.mxu0 0.0
    %5449 = vmatpush1.msra.mxu0 0.0
    %5450 = vmatprep.subr.mxu0 0.0
    %5451 = vmatpush1.msra.mxu0 0.0
    %5452 = vmatprep.subr.mxu0 0.0
    %5453 = vmatpush1.msra.mxu0 0.0
    %5454 = vmatprep.subr.mxu0 0.0
    %5455 = vmatpush1.msra.mxu0 0.0
    %5456 = vmatprep.subr.mxu0 0.0
    %5457 = vmatpush1.msra.mxu0 0.0
    %5458 = vmatprep.subr.mxu0 0.0
    %5459 = vmatpush1.msra.mxu0 0.0
    %5460 = vmatprep.subr.mxu0 0.0
    %5461 = vmatpush1.msra.mxu0 0.0
    %5462 = vmatprep.mubr.f32.mxu0 0.0
    %v5463 = vand.u32 %v4956, 4294901760
    %5464 = vmatmul.mubr.f32.gmra.mrb[0].mxu0 %v5463
    %v5465 = vpop.f32.mrb[0].mxu0
    %v5466 = vadd.f32 %v5389, %v5465
    %v5467 = vpop.f32.mrb[0].mxu0
    %5468 = vdwg.mxu0
    %v5469 = vadd.f32 %v4954, %v5466
    %v5470 = vxor.u32 %v5469, 2147483648
    %v5471 = vmul.f32 %v5470, 1.442695
    %v5472 = vpow.pop %v5471
    %v5473 = vadd.f32 %v5472, 1.0
    %v5474 = vrcp.pop %v5473
    %v5475 = vmul.f32 1.0, %v5474
    %5477 = vrot.lane.b32.xlu0 %v5475, 96
    %v5478 = vpop.permute.xlu0 %5477
    %v5480 = vmul.f32 %v5475, %v5478
    %5482 = vrot.lane.b32.xlu0 %v5480, 64
    %v5483 = vpop.permute.xlu0 %5482
    %v5485 = vadd.f32 %v5475, %v5483
    %v5486 = vtanh.pop %v5485
    %5488 = vrot.lane.b32.xlu0 %v5486, 32
    %v5489 = vpop.permute.xlu0 %5488
    %v5491 = vmul.f32 %v5475, %v5489
    %5493 = vrot.lane.b32.xlu0 %v5491, 48
    %v5494 = vpop.permute.xlu0 %5493
    %v5496 = vadd.f32 %v4952, %v5494
    %5498 = vrot.lane.b32.xlu0 %v5485, 64
    %v5499 = vpop.permute.xlu0 %5498
    %v5500 = vsel %vm1340, %v5499, 0
    %5502 = vmatprep.subr.mxu0 0.0
    %v5503 = vand.u32 %v788, 4294901760
    %5504 = vmatpush1.msra.mxu0 %v5503
    %5505 = vmatprep.subr.mxu0 0.0
    %v5506 = vand.u32 %v789, 4294901760
    %5507 = vmatpush1.msra.mxu0 %v5506
    %5508 = vmatprep.subr.mxu0 0.0
    %v5509 = vand.u32 %v790, 4294901760
    %5510 = vmatpush1.msra.mxu0 %v5509
    %5511 = vmatprep.subr.mxu0 0.0
    %v5512 = vand.u32 %v791, 4294901760
    %5513 = vmatpush1.msra.mxu0 %v5512
    %5514 = vmatprep.subr.mxu0 0.0
    %5515 = vmatpush1.msra.mxu0 0.0
    %5516 = vmatprep.subr.mxu0 0.0
    %5517 = vmatpush1.msra.mxu0 0.0
    %5518 = vmatprep.subr.mxu0 0.0
    %5519 = vmatpush1.msra.mxu0 0.0
    %5520 = vmatprep.subr.mxu0 0.0
    %5521 = vmatpush1.msra.mxu0 0.0
    %5522 = vmatprep.subr.mxu0 0.0
    %5523 = vmatpush1.msra.mxu0 0.0
    %5524 = vmatprep.subr.mxu0 0.0
    %5525 = vmatpush1.msra.mxu0 0.0
    %5526 = vmatprep.subr.mxu0 0.0
    %5527 = vmatpush1.msra.mxu0 0.0
    %5528 = vmatprep.subr.mxu0 0.0
    %5529 = vmatpush1.msra.mxu0 0.0
    %5530 = vmatprep.subr.mxu0 0.0
    %5531 = vmatpush1.msra.mxu0 0.0
    %5532 = vmatprep.subr.mxu0 0.0
    %5533 = vmatpush1.msra.mxu0 0.0
    %5534 = vmatprep.subr.mxu0 0.0
    %5535 = vmatpush1.msra.mxu0 0.0
    %5536 = vmatprep.subr.mxu0 0.0
    %5537 = vmatpush1.msra.mxu0 0.0
    %5538 = vmatprep.subr.mxu0 0.0
    %5539 = vmatpush1.msra.mxu0 0.0
    %5540 = vmatprep.subr.mxu0 0.0
    %5541 = vmatpush1.msra.mxu0 0.0
    %5542 = vmatprep.subr.mxu0 0.0
    %5543 = vmatpush1.msra.mxu0 0.0
    %5544 = vmatprep.subr.mxu0 0.0
    %5545 = vmatpush1.msra.mxu0 0.0
    %5546 = vmatprep.subr.mxu0 0.0
    %5547 = vmatpush1.msra.mxu0 0.0
    %5548 = vmatprep.subr.mxu0 0.0
    %5549 = vmatpush1.msra.mxu0 0.0
    %5550 = vmatprep.subr.mxu0 0.0
    %5551 = vmatpush1.msra.mxu0 0.0
    %5552 = vmatprep.subr.mxu0 0.0
    %5553 = vmatpush1.msra.mxu0 0.0
    %5554 = vmatprep.subr.mxu0 0.0
    %5555 = vmatpush1.msra.mxu0 0.0
    %5556 = vmatprep.subr.mxu0 0.0
    %5557 = vmatpush1.msra.mxu0 0.0
    %5558 = vmatprep.subr.mxu0 0.0
    %5559 = vmatpush1.msra.mxu0 0.0
    %5560 = vmatprep.subr.mxu0 0.0
    %5561 = vmatpush1.msra.mxu0 0.0
    %5562 = vmatprep.subr.mxu0 0.0
    %5563 = vmatpush1.msra.mxu0 0.0
    %5564 = vmatprep.subr.mxu0 0.0
    %5565 = vmatpush1.msra.mxu0 0.0
    %5566 = vmatprep.subr.mxu0 0.0
    %5567 = vmatpush1.msra.mxu0 0.0
    %5568 = vmatprep.subr.mxu0 0.0
    %5569 = vmatpush1.msra.mxu0 0.0
    %5570 = vmatprep.mubr.f32.mxu0 0.0
    %v5571 = vand.u32 %v5500, 4294901760
    %v5572 = vsub.f32 %v5500, %v5571
    %v5573 = vand.u32 %v5572, 4294901760
    %v5574 = vsub.f32 %v5572, %v5573
    %v5575 = vand.u32 %v5574, 4294901760
    %5576 = vmatmul.mubr.f32.gmra.mrb[0].mxu0 %v5575
    %v5577 = vpop.f32.mrb[0].mxu0
    %v5578 = vadd.f32 0.0, %v5577
    %v5579 = vpop.f32.mrb[0].mxu0
    %5580 = vdwg.mxu0
    %5581 = vmatprep.subr.mxu0 0.0
    %v5582 = vand.u32 %v788, 4294901760
    %v5583 = vsub.f32 %v788, %v5582
    %v5584 = vand.u32 %v5583, 4294901760
    %v5585 = vsub.f32 %v5583, %v5584
    %v5586 = vand.u32 %v5585, 4294901760
    %5587 = vmatpush1.msra.mxu0 %v5586
    %5588 = vmatprep.subr.mxu0 0.0
    %v5589 = vand.u32 %v789, 4294901760
    %v5590 = vsub.f32 %v789, %v5589
    %v5591 = vand.u32 %v5590, 4294901760
    %v5592 = vsub.f32 %v5590, %v5591
    %v5593 = vand.u32 %v5592, 4294901760
    %5594 = vmatpush1.msra.mxu0 %v5593
    %5595 = vmatprep.subr.mxu0 0.0
    %v5596 = vand.u32 %v790, 4294901760
    %v5597 = vsub.f32 %v790, %v5596
    %v5598 = vand.u32 %v5597, 4294901760
    %v5599 = vsub.f32 %v5597, %v5598
    %v5600 = vand.u32 %v5599, 4294901760
    %5601 = vmatpush1.msra.mxu0 %v5600
    %5602 = vmatprep.subr.mxu0 0.0
    %v5603 = vand.u32 %v791, 4294901760
    %v5604 = vsub.f32 %v791, %v5603
    %v5605 = vand.u32 %v5604, 4294901760
    %v5606 = vsub.f32 %v5604, %v5605
    %v5607 = vand.u32 %v5606, 4294901760
    %5608 = vmatpush1.msra.mxu0 %v5607
    %5609 = vmatprep.subr.mxu0 0.0
    %5610 = vmatpush1.msra.mxu0 0.0
    %5611 = vmatprep.subr.mxu0 0.0
    %5612 = vmatpush1.msra.mxu0 0.0
    %5613 = vmatprep.subr.mxu0 0.0
    %5614 = vmatpush1.msra.mxu0 0.0
    %5615 = vmatprep.subr.mxu0 0.0
    %5616 = vmatpush1.msra.mxu0 0.0
    %5617 = vmatprep.subr.mxu0 0.0
    %5618 = vmatpush1.msra.mxu0 0.0
    %5619 = vmatprep.subr.mxu0 0.0
    %5620 = vmatpush1.msra.mxu0 0.0
    %5621 = vmatprep.subr.mxu0 0.0
    %5622 = vmatpush1.msra.mxu0 0.0
    %5623 = vmatprep.subr.mxu0 0.0
    %5624 = vmatpush1.msra.mxu0 0.0
    %5625 = vmatprep.subr.mxu0 0.0
    %5626 = vmatpush1.msra.mxu0 0.0
    %5627 = vmatprep.subr.mxu0 0.0
    %5628 = vmatpush1.msra.mxu0 0.0
    %5629 = vmatprep.subr.mxu0 0.0
    %5630 = vmatpush1.msra.mxu0 0.0
    %5631 = vmatprep.subr.mxu0 0.0
    %5632 = vmatpush1.msra.mxu0 0.0
    %5633 = vmatprep.subr.mxu0 0.0
    %5634 = vmatpush1.msra.mxu0 0.0
    %5635 = vmatprep.subr.mxu0 0.0
    %5636 = vmatpush1.msra.mxu0 0.0
    %5637 = vmatprep.subr.mxu0 0.0
    %5638 = vmatpush1.msra.mxu0 0.0
    %5639 = vmatprep.subr.mxu0 0.0
    %5640 = vmatpush1.msra.mxu0 0.0
    %5641 = vmatprep.subr.mxu0 0.0
    %5642 = vmatpush1.msra.mxu0 0.0
    %5643 = vmatprep.subr.mxu0 0.0
    %5644 = vmatpush1.msra.mxu0 0.0
    %5645 = vmatprep.subr.mxu0 0.0
    %5646 = vmatpush1.msra.mxu0 0.0
    %5647 = vmatprep.subr.mxu0 0.0
    %5648 = vmatpush1.msra.mxu0 0.0
    %5649 = vmatprep.subr.mxu0 0.0
    %5650 = vmatpush1.msra.mxu0 0.0
    %5651 = vmatprep.subr.mxu0 0.0
    %5652 = vmatpush1.msra.mxu0 0.0
    %5653 = vmatprep.subr.mxu0 0.0
    %5654 = vmatpush1.msra.mxu0 0.0
    %5655 = vmatprep.subr.mxu0 0.0
    %5656 = vmatpush1.msra.mxu0 0.0
    %5657 = vmatprep.subr.mxu0 0.0
    %5658 = vmatpush1.msra.mxu0 0.0
    %5659 = vmatprep.subr.mxu0 0.0
    %5660 = vmatpush1.msra.mxu0 0.0
    %5661 = vmatprep.subr.mxu0 0.0
    %5662 = vmatpush1.msra.mxu0 0.0
    %5663 = vmatprep.subr.mxu0 0.0
    %5664 = vmatpush1.msra.mxu0 0.0
    %5665 = vmatprep.mubr.f32.mxu0 0.0
    %v5666 = vand.u32 %v5500, 4294901760
    %5667 = vmatmul.mubr.f32.gmra.mrb[0].mxu0 %v5666
    %v5668 = vpop.f32.mrb[0].mxu0
    %v5669 = vadd.f32 %v5578, %v5668
    %v5670 = vpop.f32.mrb[0].mxu0
    %5671 = vdwg.mxu0
    %5672 = vmatprep.subr.mxu0 0.0
    %v5673 = vand.u32 %v788, 4294901760
    %v5674 = vsub.f32 %v788, %v5673
    %5675 = vmatpush1.msra.mxu0 %v5674
    %5676 = vmatprep.subr.mxu0 0.0
    %v5677 = vand.u32 %v789, 4294901760
    %v5678 = vsub.f32 %v789, %v5677
    %5679 = vmatpush1.msra.mxu0 %v5678
    %5680 = vmatprep.subr.mxu0 0.0
    %v5681 = vand.u32 %v790, 4294901760
    %v5682 = vsub.f32 %v790, %v5681
    %5683 = vmatpush1.msra.mxu0 %v5682
    %5684 = vmatprep.subr.mxu0 0.0
    %v5685 = vand.u32 %v791, 4294901760
    %v5686 = vsub.f32 %v791, %v5685
    %5687 = vmatpush1.msra.mxu0 %v5686
    %5688 = vmatprep.subr.mxu0 0.0
    %5689 = vmatpush1.msra.mxu0 0.0
    %5690 = vmatprep.subr.mxu0 0.0
    %5691 = vmatpush1.msra.mxu0 0.0
    %5692 = vmatprep.subr.mxu0 0.0
    %5693 = vmatpush1.msra.mxu0 0.0
    %5694 = vmatprep.subr.mxu0 0.0
    %5695 = vmatpush1.msra.mxu0 0.0
    %5696 = vmatprep.subr.mxu0 0.0
    %5697 = vmatpush1.msra.mxu0 0.0
    %5698 = vmatprep.subr.mxu0 0.0
    %5699 = vmatpush1.msra.mxu0 0.0
    %5700 = vmatprep.subr.mxu0 0.0
    %5701 = vmatpush1.msra.mxu0 0.0
    %5702 = vmatprep.subr.mxu0 0.0
    %5703 = vmatpush1.msra.mxu0 0.0
    %5704 = vmatprep.subr.mxu0 0.0
    %5705 = vmatpush1.msra.mxu0 0.0
    %5706 = vmatprep.subr.mxu0 0.0
    %5707 = vmatpush1.msra.mxu0 0.0
    %5708 = vmatprep.subr.mxu0 0.0
    %5709 = vmatpush1.msra.mxu0 0.0
    %5710 = vmatprep.subr.mxu0 0.0
    %5711 = vmatpush1.msra.mxu0 0.0
    %5712 = vmatprep.subr.mxu0 0.0
    %5713 = vmatpush1.msra.mxu0 0.0
    %5714 = vmatprep.subr.mxu0 0.0
    %5715 = vmatpush1.msra.mxu0 0.0
    %5716 = vmatprep.subr.mxu0 0.0
    %5717 = vmatpush1.msra.mxu0 0.0
    %5718 = vmatprep.subr.mxu0 0.0
    %5719 = vmatpush1.msra.mxu0 0.0
    %5720 = vmatprep.subr.mxu0 0.0
    %5721 = vmatpush1.msra.mxu0 0.0
    %5722 = vmatprep.subr.mxu0 0.0
    %5723 = vmatpush1.msra.mxu0 0.0
    %5724 = vmatprep.subr.mxu0 0.0
    %5725 = vmatpush1.msra.mxu0 0.0
    %5726 = vmatprep.subr.mxu0 0.0
    %5727 = vmatpush1.msra.mxu0 0.0
    %5728 = vmatprep.subr.mxu0 0.0
    %5729 = vmatpush1.msra.mxu0 0.0
    %5730 = vmatprep.subr.mxu0 0.0
    %5731 = vmatpush1.msra.mxu0 0.0
    %5732 = vmatprep.subr.mxu0 0.0
    %5733 = vmatpush1.msra.mxu0 0.0
    %5734 = vmatprep.subr.mxu0 0.0
    %5735 = vmatpush1.msra.mxu0 0.0
    %5736 = vmatprep.subr.mxu0 0.0
    %5737 = vmatpush1.msra.mxu0 0.0
    %5738 = vmatprep.subr.mxu0 0.0
    %5739 = vmatpush1.msra.mxu0 0.0
    %5740 = vmatprep.subr.mxu0 0.0
    %5741 = vmatpush1.msra.mxu0 0.0
    %5742 = vmatprep.subr.mxu0 0.0
    %5743 = vmatpush1.msra.mxu0 0.0
    %5744 = vmatprep.mubr.f32.mxu0 0.0
    %v5745 = vand.u32 %v5500, 4294901760
    %v5746 = vsub.f32 %v5500, %v5745
    %5747 = vmatmul.mubr.f32.gmra.mrb[0].mxu0 %v5746
    %v5748 = vpop.f32.mrb[0].mxu0
    %v5749 = vadd.f32 %v5669, %v5748
    %v5750 = vpop.f32.mrb[0].mxu0
    %5751 = vdwg.mxu0
    %5752 = vmatprep.subr.mxu0 0.0
    %v5753 = vand.u32 %v788, 4294901760
    %5754 = vmatpush1.msra.mxu0 %v5753
    %5755 = vmatprep.subr.mxu0 0.0
    %v5756 = vand.u32 %v789, 4294901760
    %5757 = vmatpush1.msra.mxu0 %v5756
    %5758 = vmatprep.subr.mxu0 0.0
    %v5759 = vand.u32 %v790, 4294901760
    %5760 = vmatpush1.msra.mxu0 %v5759
    %5761 = vmatprep.subr.mxu0 0.0
    %v5762 = vand.u32 %v791, 4294901760
    %5763 = vmatpush1.msra.mxu0 %v5762
    %5764 = vmatprep.subr.mxu0 0.0
    %5765 = vmatpush1.msra.mxu0 0.0
    %5766 = vmatprep.subr.mxu0 0.0
    %5767 = vmatpush1.msra.mxu0 0.0
    %5768 = vmatprep.subr.mxu0 0.0
    %5769 = vmatpush1.msra.mxu0 0.0
    %5770 = vmatprep.subr.mxu0 0.0
    %5771 = vmatpush1.msra.mxu0 0.0
    %5772 = vmatprep.subr.mxu0 0.0
    %5773 = vmatpush1.msra.mxu0 0.0
    %5774 = vmatprep.subr.mxu0 0.0
    %5775 = vmatpush1.msra.mxu0 0.0
    %5776 = vmatprep.subr.mxu0 0.0
    %5777 = vmatpush1.msra.mxu0 0.0
    %5778 = vmatprep.subr.mxu0 0.0
    %5779 = vmatpush1.msra.mxu0 0.0
    %5780 = vmatprep.subr.mxu0 0.0
    %5781 = vmatpush1.msra.mxu0 0.0
    %5782 = vmatprep.subr.mxu0 0.0
    %5783 = vmatpush1.msra.mxu0 0.0
    %5784 = vmatprep.subr.mxu0 0.0
    %5785 = vmatpush1.msra.mxu0 0.0
    %5786 = vmatprep.subr.mxu0 0.0
    %5787 = vmatpush1.msra.mxu0 0.0
    %5788 = vmatprep.subr.mxu0 0.0
    %5789 = vmatpush1.msra.mxu0 0.0
    %5790 = vmatprep.subr.mxu0 0.0
    %5791 = vmatpush1.msra.mxu0 0.0
    %5792 = vmatprep.subr.mxu0 0.0
    %5793 = vmatpush1.msra.mxu0 0.0
    %5794 = vmatprep.subr.mxu0 0.0
    %5795 = vmatpush1.msra.mxu0 0.0
    %5796 = vmatprep.subr.mxu0 0.0
    %5797 = vmatpush1.msra.mxu0 0.0
    %5798 = vmatprep.subr.mxu0 0.0
    %5799 = vmatpush1.msra.mxu0 0.0
    %5800 = vmatprep.subr.mxu0 0.0
    %5801 = vmatpush1.msra.mxu0 0.0
    %5802 = vmatprep.subr.mxu0 0.0
    %5803 = vmatpush1.msra.mxu0 0.0
    %5804 = vmatprep.subr.mxu0 0.0
    %5805 = vmatpush1.msra.mxu0 0.0
    %5806 = vmatprep.subr.mxu0 0.0
    %5807 = vmatpush1.msra.mxu0 0.0
    %5808 = vmatprep.subr.mxu0 0.0
    %5809 = vmatpush1.msra.mxu0 0.0
    %5810 = vmatprep.subr.mxu0 0.0
    %5811 = vmatpush1.msra.mxu0 0.0
    %5812 = vmatprep.subr.mxu0 0.0
    %5813 = vmatpush1.msra.mxu0 0.0
    %5814 = vmatprep.subr.mxu0 0.0
    %5815 = vmatpush1.msra.mxu0 0.0
    %5816 = vmatprep.subr.mxu0 0.0
    %5817 = vmatpush1.msra.mxu0 0.0
    %5818 = vmatprep.subr.mxu0 0.0
    %5819 = vmatpush1.msra.mxu0 0.0
    %5820 = vmatprep.mubr.f32.mxu0 0.0
    %v5821 = vand.u32 %v5500, 4294901760
    %v5822 = vsub.f32 %v5500, %v5821
    %v5823 = vand.u32 %v5822, 4294901760
    %5824 = vmatmul.mubr.f32.gmra.mrb[0].mxu0 %v5823
    %v5825 = vpop.f32.mrb[0].mxu0
    %v5826 = vadd.f32 %v5749, %v5825
    %v5827 = vpop.f32.mrb[0].mxu0
    %5828 = vdwg.mxu0
    %5829 = vmatprep.subr.mxu0 0.0
    %v5830 = vand.u32 %v788, 4294901760
    %v5831 = vsub.f32 %v788, %v5830
    %v5832 = vand.u32 %v5831, 4294901760
    %5833 = vmatpush1.msra.mxu0 %v5832
    %5834 = vmatprep.subr.mxu0 0.0
    %v5835 = vand.u32 %v789, 4294901760
    %v5836 = vsub.f32 %v789, %v5835
    %v5837 = vand.u32 %v5836, 4294901760
    %5838 = vmatpush1.msra.mxu0 %v5837
    %5839 = vmatprep.subr.mxu0 0.0
    %v5840 = vand.u32 %v790, 4294901760
    %v5841 = vsub.f32 %v790, %v5840
    %v5842 = vand.u32 %v5841, 4294901760
    %5843 = vmatpush1.msra.mxu0 %v5842
    %5844 = vmatprep.subr.mxu0 0.0
    %v5845 = vand.u32 %v791, 4294901760
    %v5846 = vsub.f32 %v791, %v5845
    %v5847 = vand.u32 %v5846, 4294901760
    %5848 = vmatpush1.msra.mxu0 %v5847
    %5849 = vmatprep.subr.mxu0 0.0
    %5850 = vmatpush1.msra.mxu0 0.0
    %5851 = vmatprep.subr.mxu0 0.0
    %5852 = vmatpush1.msra.mxu0 0.0
    %5853 = vmatprep.subr.mxu0 0.0
    %5854 = vmatpush1.msra.mxu0 0.0
    %5855 = vmatprep.subr.mxu0 0.0
    %5856 = vmatpush1.msra.mxu0 0.0
    %5857 = vmatprep.subr.mxu0 0.0
    %5858 = vmatpush1.msra.mxu0 0.0
    %5859 = vmatprep.subr.mxu0 0.0
    %5860 = vmatpush1.msra.mxu0 0.0
    %5861 = vmatprep.subr.mxu0 0.0
    %5862 = vmatpush1.msra.mxu0 0.0
    %5863 = vmatprep.subr.mxu0 0.0
    %5864 = vmatpush1.msra.mxu0 0.0
    %5865 = vmatprep.subr.mxu0 0.0
    %5866 = vmatpush1.msra.mxu0 0.0
    %5867 = vmatprep.subr.mxu0 0.0
    %5868 = vmatpush1.msra.mxu0 0.0
    %5869 = vmatprep.subr.mxu0 0.0
    %5870 = vmatpush1.msra.mxu0 0.0
    %5871 = vmatprep.subr.mxu0 0.0
    %5872 = vmatpush1.msra.mxu0 0.0
    %5873 = vmatprep.subr.mxu0 0.0
    %5874 = vmatpush1.msra.mxu0 0.0
    %5875 = vmatprep.subr.mxu0 0.0
    %5876 = vmatpush1.msra.mxu0 0.0
    %5877 = vmatprep.subr.mxu0 0.0
    %5878 = vmatpush1.msra.mxu0 0.0
    %5879 = vmatprep.subr.mxu0 0.0
    %5880 = vmatpush1.msra.mxu0 0.0
    %5881 = vmatprep.subr.mxu0 0.0
    %5882 = vmatpush1.msra.mxu0 0.0
    %5883 = vmatprep.subr.mxu0 0.0
    %5884 = vmatpush1.msra.mxu0 0.0
    %5885 = vmatprep.subr.mxu0 0.0
    %5886 = vmatpush1.msra.mxu0 0.0
    %5887 = vmatprep.subr.mxu0 0.0
    %5888 = vmatpush1.msra.mxu0 0.0
    %5889 = vmatprep.subr.mxu0 0.0
    %5890 = vmatpush1.msra.mxu0 0.0
    %5891 = vmatprep.subr.mxu0 0.0
    %5892 = vmatpush1.msra.mxu0 0.0
    %5893 = vmatprep.subr.mxu0 0.0
    %5894 = vmatpush1.msra.mxu0 0.0
    %5895 = vmatprep.subr.mxu0 0.0
    %5896 = vmatpush1.msra.mxu0 0.0
    %5897 = vmatprep.subr.mxu0 0.0
    %5898 = vmatpush1.msra.mxu0 0.0
    %5899 = vmatprep.subr.mxu0 0.0
    %5900 = vmatpush1.msra.mxu0 0.0
    %5901 = vmatprep.subr.mxu0 0.0
    %5902 = vmatpush1.msra.mxu0 0.0
    %5903 = vmatprep.subr.mxu0 0.0
    %5904 = vmatpush1.msra.mxu0 0.0
    %5905 = vmatprep.mubr.f32.mxu0 0.0
    %v5906 = vand.u32 %v5500, 4294901760
    %5907 = vmatmul.mubr.f32.gmra.mrb[0].mxu0 %v5906
    %v5908 = vpop.f32.mrb[0].mxu0
    %v5909 = vadd.f32 %v5826, %v5908
    %v5910 = vpop.f32.mrb[0].mxu0
    %5911 = vdwg.mxu0
    %5912 = vmatprep.subr.mxu0 0.0
    %v5913 = vand.u32 %v788, 4294901760
    %5914 = vmatpush1.msra.mxu0 %v5913
    %5915 = vmatprep.subr.mxu0 0.0
    %v5916 = vand.u32 %v789, 4294901760
    %5917 = vmatpush1.msra.mxu0 %v5916
    %5918 = vmatprep.subr.mxu0 0.0
    %v5919 = vand.u32 %v790, 4294901760
    %5920 = vmatpush1.msra.mxu0 %v5919
    %5921 = vmatprep.subr.mxu0 0.0
    %v5922 = vand.u32 %v791, 4294901760
    %5923 = vmatpush1.msra.mxu0 %v5922
    %5924 = vmatprep.subr.mxu0 0.0
    %5925 = vmatpush1.msra.mxu0 0.0
    %5926 = vmatprep.subr.mxu0 0.0
    %5927 = vmatpush1.msra.mxu0 0.0
    %5928 = vmatprep.subr.mxu0 0.0
    %5929 = vmatpush1.msra.mxu0 0.0
    %5930 = vmatprep.subr.mxu0 0.0
    %5931 = vmatpush1.msra.mxu0 0.0
    %5932 = vmatprep.subr.mxu0 0.0
    %5933 = vmatpush1.msra.mxu0 0.0
    %5934 = vmatprep.subr.mxu0 0.0
    %5935 = vmatpush1.msra.mxu0 0.0
    %5936 = vmatprep.subr.mxu0 0.0
    %5937 = vmatpush1.msra.mxu0 0.0
    %5938 = vmatprep.subr.mxu0 0.0
    %5939 = vmatpush1.msra.mxu0 0.0
    %5940 = vmatprep.subr.mxu0 0.0
    %5941 = vmatpush1.msra.mxu0 0.0
    %5942 = vmatprep.subr.mxu0 0.0
    %5943 = vmatpush1.msra.mxu0 0.0
    %5944 = vmatprep.subr.mxu0 0.0
    %5945 = vmatpush1.msra.mxu0 0.0
    %5946 = vmatprep.subr.mxu0 0.0
    %5947 = vmatpush1.msra.mxu0 0.0
    %5948 = vmatprep.subr.mxu0 0.0
    %5949 = vmatpush1.msra.mxu0 0.0
    %5950 = vmatprep.subr.mxu0 0.0
    %5951 = vmatpush1.msra.mxu0 0.0
    %5952 = vmatprep.subr.mxu0 0.0
    %5953 = vmatpush1.msra.mxu0 0.0
    %5954 = vmatprep.subr.mxu0 0.0
    %5955 = vmatpush1.msra.mxu0 0.0
    %5956 = vmatprep.subr.mxu0 0.0
    %5957 = vmatpush1.msra.mxu0 0.0
    %5958 = vmatprep.subr.mxu0 0.0
    %5959 = vmatpush1.msra.mxu0 0.0
    %5960 = vmatprep.subr.mxu0 0.0
    %5961 = vmatpush1.msra.mxu0 0.0
    %5962 = vmatprep.subr.mxu0 0.0
    %5963 = vmatpush1.msra.mxu0 0.0
    %5964 = vmatprep.subr.mxu0 0.0
    %5965 = vmatpush1.msra.mxu0 0.0
    %5966 = vmatprep.subr.mxu0 0.0
    %5967 = vmatpush1.msra.mxu0 0.0
    %5968 = vmatprep.subr.mxu0 0.0
    %5969 = vmatpush1.msra.mxu0 0.0
    %5970 = vmatprep.subr.mxu0 0.0
    %5971 = vmatpush1.msra.mxu0 0.0
    %5972 = vmatprep.subr.mxu0 0.0
    %5973 = vmatpush1.msra.mxu0 0.0
    %5974 = vmatprep.subr.mxu0 0.0
    %5975 = vmatpush1.msra.mxu0 0.0
    %5976 = vmatprep.subr.mxu0 0.0
    %5977 = vmatpush1.msra.mxu0 0.0
    %5978 = vmatprep.subr.mxu0 0.0
    %5979 = vmatpush1.msra.mxu0 0.0
    %5980 = vmatprep.mubr.f32.mxu0 0.0
    %v5981 = vand.u32 %v5500, 4294901760
    %5982 = vmatmul.mubr.f32.gmra.mrb[0].mxu0 %v5981
    %v5983 = vpop.f32.mrb[0].mxu0
    %v5984 = vadd.f32 %v5909, %v5983
    %v5985 = vpop.f32.mrb[0].mxu0
    %5986 = vdwg.mxu0
    %v5987 = vtanh.pop %v5984
    %5988 = vst.msk [vmem:[#allocation3] sm:$0xff] %vm74, %v5987
    %5989 = vst.msk [vmem:[#allocation3] sm:$0xff] %vm780, %v5496
    %s5990 = scalar_lea.vmem [#allocation10], 32
    %5991 = vst.msk [vmem:[%s5990] sm:$0xff] %vm74, %v5987
    %v5992 = vld [vmem:[#allocation3] sm:$0xff]
    %s5993 = scalar_lea.vmem [#allocation2], 40
    %v5994 = vld [vmem:[%s5993] sm:$0xff]
    %v5996 = vsel %vm794, %v5992, 0
    %5998 = vmatprep.subr.mxu0 0.0
    %v5999 = vand.u32 %v782, 4294901760
    %6000 = vmatpush1.msra.mxu0 %v5999
    %6001 = vmatprep.subr.mxu0 0.0
    %v6002 = vand.u32 %v783, 4294901760
    %6003 = vmatpush1.msra.mxu0 %v6002
    %6004 = vmatprep.subr.mxu0 0.0
    %v6005 = vand.u32 %v784, 4294901760
    %6006 = vmatpush1.msra.mxu0 %v6005
    %6007 = vmatprep.subr.mxu0 0.0
    %v6008 = vand.u32 %v785, 4294901760
    %6009 = vmatpush1.msra.mxu0 %v6008
    %6010 = vmatprep.subr.mxu0 0.0
    %v6011 = vand.u32 %v786, 4294901760
    %6012 = vmatpush1.msra.mxu0 %v6011
    %6013 = vmatprep.subr.mxu0 0.0
    %v6014 = vand.u32 %v787, 4294901760
    %6015 = vmatpush1.msra.mxu0 %v6014
    %6016 = vmatprep.subr.mxu0 0.0
    %6017 = vmatpush1.msra.mxu0 0.0
    %6018 = vmatprep.subr.mxu0 0.0
    %6019 = vmatpush1.msra.mxu0 0.0
    %6020 = vmatprep.subr.mxu0 0.0
    %6021 = vmatpush1.msra.mxu0 0.0
    %6022 = vmatprep.subr.mxu0 0.0
    %6023 = vmatpush1.msra.mxu0 0.0
    %6024 = vmatprep.subr.mxu0 0.0
    %6025 = vmatpush1.msra.mxu0 0.0
    %6026 = vmatprep.subr.mxu0 0.0
    %6027 = vmatpush1.msra.mxu0 0.0
    %6028 = vmatprep.subr.mxu0 0.0
    %6029 = vmatpush1.msra.mxu0 0.0
    %6030 = vmatprep.subr.mxu0 0.0
    %6031 = vmatpush1.msra.mxu0 0.0
    %6032 = vmatprep.subr.mxu0 0.0
    %6033 = vmatpush1.msra.mxu0 0.0
    %6034 = vmatprep.subr.mxu0 0.0
    %6035 = vmatpush1.msra.mxu0 0.0
    %6036 = vmatprep.subr.mxu0 0.0
    %6037 = vmatpush1.msra.mxu0 0.0
    %6038 = vmatprep.subr.mxu0 0.0
    %6039 = vmatpush1.msra.mxu0 0.0
    %6040 = vmatprep.subr.mxu0 0.0
    %6041 = vmatpush1.msra.mxu0 0.0
    %6042 = vmatprep.subr.mxu0 0.0
    %6043 = vmatpush1.msra.mxu0 0.0
    %6044 = vmatprep.subr.mxu0 0.0
    %6045 = vmatpush1.msra.mxu0 0.0
    %6046 = vmatprep.subr.mxu0 0.0
    %6047 = vmatpush1.msra.mxu0 0.0
    %6048 = vmatprep.subr.mxu0 0.0
    %6049 = vmatpush1.msra.mxu0 0.0
    %6050 = vmatprep.subr.mxu0 0.0
    %6051 = vmatpush1.msra.mxu0 0.0
    %6052 = vmatprep.subr.mxu0 0.0
    %6053 = vmatpush1.msra.mxu0 0.0
    %6054 = vmatprep.subr.mxu0 0.0
    %6055 = vmatpush1.msra.mxu0 0.0
    %6056 = vmatprep.subr.mxu0 0.0
    %6057 = vmatpush1.msra.mxu0 0.0
    %6058 = vmatprep.subr.mxu0 0.0
    %6059 = vmatpush1.msra.mxu0 0.0
    %6060 = vmatprep.subr.mxu0 0.0
    %6061 = vmatpush1.msra.mxu0 0.0
    %6062 = vmatprep.subr.mxu0 0.0
    %6063 = vmatpush1.msra.mxu0 0.0
    %6064 = vmatprep.subr.mxu0 0.0
    %6065 = vmatpush1.msra.mxu0 0.0
    %6066 = vmatprep.subr.mxu0 0.0
    %6067 = vmatpush1.msra.mxu0 0.0
    %6068 = vmatprep.mubr.f32.mxu0 0.0
    %v6069 = vand.u32 %v5996, 4294901760
    %v6070 = vsub.f32 %v5996, %v6069
    %v6071 = vand.u32 %v6070, 4294901760
    %v6072 = vsub.f32 %v6070, %v6071
    %v6073 = vand.u32 %v6072, 4294901760
    %6074 = vmatmul.mubr.f32.gmra.mrb[0].mxu0 %v6073
    %v6075 = vpop.f32.mrb[0].mxu0
    %v6076 = vadd.f32 0.0, %v6075
    %v6077 = vpop.f32.mrb[0].mxu0
    %6078 = vdwg.mxu0
    %6079 = vmatprep.subr.mxu0 0.0
    %v6080 = vand.u32 %v782, 4294901760
    %v6081 = vsub.f32 %v782, %v6080
    %v6082 = vand.u32 %v6081, 4294901760
    %v6083 = vsub.f32 %v6081, %v6082
    %v6084 = vand.u32 %v6083, 4294901760
    %6085 = vmatpush1.msra.mxu0 %v6084
    %6086 = vmatprep.subr.mxu0 0.0
    %v6087 = vand.u32 %v783, 4294901760
    %v6088 = vsub.f32 %v783, %v6087
    %v6089 = vand.u32 %v6088, 4294901760
    %v6090 = vsub.f32 %v6088, %v6089
    %v6091 = vand.u32 %v6090, 4294901760
    %6092 = vmatpush1.msra.mxu0 %v6091
    %6093 = vmatprep.subr.mxu0 0.0
    %v6094 = vand.u32 %v784, 4294901760
    %v6095 = vsub.f32 %v784, %v6094
    %v6096 = vand.u32 %v6095, 4294901760
    %v6097 = vsub.f32 %v6095, %v6096
    %v6098 = vand.u32 %v6097, 4294901760
    %6099 = vmatpush1.msra.mxu0 %v6098
    %6100 = vmatprep.subr.mxu0 0.0
    %v6101 = vand.u32 %v785, 4294901760
    %v6102 = vsub.f32 %v785, %v6101
    %v6103 = vand.u32 %v6102, 4294901760
    %v6104 = vsub.f32 %v6102, %v6103
    %v6105 = vand.u32 %v6104, 4294901760
    %6106 = vmatpush1.msra.mxu0 %v6105
    %6107 = vmatprep.subr.mxu0 0.0
    %v6108 = vand.u32 %v786, 4294901760
    %v6109 = vsub.f32 %v786, %v6108
    %v6110 = vand.u32 %v6109, 4294901760
    %v6111 = vsub.f32 %v6109, %v6110
    %v6112 = vand.u32 %v6111, 4294901760
    %6113 = vmatpush1.msra.mxu0 %v6112
    %6114 = vmatprep.subr.mxu0 0.0
    %v6115 = vand.u32 %v787, 4294901760
    %v6116 = vsub.f32 %v787, %v6115
    %v6117 = vand.u32 %v6116, 4294901760
    %v6118 = vsub.f32 %v6116, %v6117
    %v6119 = vand.u32 %v6118, 4294901760
    %6120 = vmatpush1.msra.mxu0 %v6119
    %6121 = vmatprep.subr.mxu0 0.0
    %6122 = vmatpush1.msra.mxu0 0.0
    %6123 = vmatprep.subr.mxu0 0.0
    %6124 = vmatpush1.msra.mxu0 0.0
    %6125 = vmatprep.subr.mxu0 0.0
    %6126 = vmatpush1.msra.mxu0 0.0
    %6127 = vmatprep.subr.mxu0 0.0
    %6128 = vmatpush1.msra.mxu0 0.0
    %6129 = vmatprep.subr.mxu0 0.0
    %6130 = vmatpush1.msra.mxu0 0.0
    %6131 = vmatprep.subr.mxu0 0.0
    %6132 = vmatpush1.msra.mxu0 0.0
    %6133 = vmatprep.subr.mxu0 0.0
    %6134 = vmatpush1.msra.mxu0 0.0
    %6135 = vmatprep.subr.mxu0 0.0
    %6136 = vmatpush1.msra.mxu0 0.0
    %6137 = vmatprep.subr.mxu0 0.0
    %6138 = vmatpush1.msra.mxu0 0.0
    %6139 = vmatprep.subr.mxu0 0.0
    %6140 = vmatpush1.msra.mxu0 0.0
    %6141 = vmatprep.subr.mxu0 0.0
    %6142 = vmatpush1.msra.mxu0 0.0
    %6143 = vmatprep.subr.mxu0 0.0
    %6144 = vmatpush1.msra.mxu0 0.0
    %6145 = vmatprep.subr.mxu0 0.0
    %6146 = vmatpush1.msra.mxu0 0.0
    %6147 = vmatprep.subr.mxu0 0.0
    %6148 = vmatpush1.msra.mxu0 0.0
    %6149 = vmatprep.subr.mxu0 0.0
    %6150 = vmatpush1.msra.mxu0 0.0
    %6151 = vmatprep.subr.mxu0 0.0
    %6152 = vmatpush1.msra.mxu0 0.0
    %6153 = vmatprep.subr.mxu0 0.0
    %6154 = vmatpush1.msra.mxu0 0.0
    %6155 = vmatprep.subr.mxu0 0.0
    %6156 = vmatpush1.msra.mxu0 0.0
    %6157 = vmatprep.subr.mxu0 0.0
    %6158 = vmatpush1.msra.mxu0 0.0
    %6159 = vmatprep.subr.mxu0 0.0
    %6160 = vmatpush1.msra.mxu0 0.0
    %6161 = vmatprep.subr.mxu0 0.0
    %6162 = vmatpush1.msra.mxu0 0.0
    %6163 = vmatprep.subr.mxu0 0.0
    %6164 = vmatpush1.msra.mxu0 0.0
    %6165 = vmatprep.subr.mxu0 0.0
    %6166 = vmatpush1.msra.mxu0 0.0
    %6167 = vmatprep.subr.mxu0 0.0
    %6168 = vmatpush1.msra.mxu0 0.0
    %6169 = vmatprep.subr.mxu0 0.0
    %6170 = vmatpush1.msra.mxu0 0.0
    %6171 = vmatprep.subr.mxu0 0.0
    %6172 = vmatpush1.msra.mxu0 0.0
    %6173 = vmatprep.mubr.f32.mxu0 0.0
    %v6174 = vand.u32 %v5996, 4294901760
    %6175 = vmatmul.mubr.f32.gmra.mrb[0].mxu0 %v6174
    %v6176 = vpop.f32.mrb[0].mxu0
    %v6177 = vadd.f32 %v6076, %v6176
    %v6178 = vpop.f32.mrb[0].mxu0
    %6179 = vdwg.mxu0
    %6180 = vmatprep.subr.mxu0 0.0
    %v6181 = vand.u32 %v782, 4294901760
    %v6182 = vsub.f32 %v782, %v6181
    %6183 = vmatpush1.msra.mxu0 %v6182
    %6184 = vmatprep.subr.mxu0 0.0
    %v6185 = vand.u32 %v783, 4294901760
    %v6186 = vsub.f32 %v783, %v6185
    %6187 = vmatpush1.msra.mxu0 %v6186
    %6188 = vmatprep.subr.mxu0 0.0
    %v6189 = vand.u32 %v784, 4294901760
    %v6190 = vsub.f32 %v784, %v6189
    %6191 = vmatpush1.msra.mxu0 %v6190
    %6192 = vmatprep.subr.mxu0 0.0
    %v6193 = vand.u32 %v785, 4294901760
    %v6194 = vsub.f32 %v785, %v6193
    %6195 = vmatpush1.msra.mxu0 %v6194
    %6196 = vmatprep.subr.mxu0 0.0
    %v6197 = vand.u32 %v786, 4294901760
    %v6198 = vsub.f32 %v786, %v6197
    %6199 = vmatpush1.msra.mxu0 %v6198
    %6200 = vmatprep.subr.mxu0 0.0
    %v6201 = vand.u32 %v787, 4294901760
    %v6202 = vsub.f32 %v787, %v6201
    %6203 = vmatpush1.msra.mxu0 %v6202
    %6204 = vmatprep.subr.mxu0 0.0
    %6205 = vmatpush1.msra.mxu0 0.0
    %6206 = vmatprep.subr.mxu0 0.0
    %6207 = vmatpush1.msra.mxu0 0.0
    %6208 = vmatprep.subr.mxu0 0.0
    %6209 = vmatpush1.msra.mxu0 0.0
    %6210 = vmatprep.subr.mxu0 0.0
    %6211 = vmatpush1.msra.mxu0 0.0
    %6212 = vmatprep.subr.mxu0 0.0
    %6213 = vmatpush1.msra.mxu0 0.0
    %6214 = vmatprep.subr.mxu0 0.0
    %6215 = vmatpush1.msra.mxu0 0.0
    %6216 = vmatprep.subr.mxu0 0.0
    %6217 = vmatpush1.msra.mxu0 0.0
    %6218 = vmatprep.subr.mxu0 0.0
    %6219 = vmatpush1.msra.mxu0 0.0
    %6220 = vmatprep.subr.mxu0 0.0
    %6221 = vmatpush1.msra.mxu0 0.0
    %6222 = vmatprep.subr.mxu0 0.0
    %6223 = vmatpush1.msra.mxu0 0.0
    %6224 = vmatprep.subr.mxu0 0.0
    %6225 = vmatpush1.msra.mxu0 0.0
    %6226 = vmatprep.subr.mxu0 0.0
    %6227 = vmatpush1.msra.mxu0 0.0
    %6228 = vmatprep.subr.mxu0 0.0
    %6229 = vmatpush1.msra.mxu0 0.0
    %6230 = vmatprep.subr.mxu0 0.0
    %6231 = vmatpush1.msra.mxu0 0.0
    %6232 = vmatprep.subr.mxu0 0.0
    %6233 = vmatpush1.msra.mxu0 0.0
    %6234 = vmatprep.subr.mxu0 0.0
    %6235 = vmatpush1.msra.mxu0 0.0
    %6236 = vmatprep.subr.mxu0 0.0
    %6237 = vmatpush1.msra.mxu0 0.0
    %6238 = vmatprep.subr.mxu0 0.0
    %6239 = vmatpush1.msra.mxu0 0.0
    %6240 = vmatprep.subr.mxu0 0.0
    %6241 = vmatpush1.msra.mxu0 0.0
    %6242 = vmatprep.subr.mxu0 0.0
    %6243 = vmatpush1.msra.mxu0 0.0
    %6244 = vmatprep.subr.mxu0 0.0
    %6245 = vmatpush1.msra.mxu0 0.0
    %6246 = vmatprep.subr.mxu0 0.0
    %6247 = vmatpush1.msra.mxu0 0.0
    %6248 = vmatprep.subr.mxu0 0.0
    %6249 = vmatpush1.msra.mxu0 0.0
    %6250 = vmatprep.subr.mxu0 0.0
    %6251 = vmatpush1.msra.mxu0 0.0
    %6252 = vmatprep.subr.mxu0 0.0
    %6253 = vmatpush1.msra.mxu0 0.0
    %6254 = vmatprep.subr.mxu0 0.0
    %6255 = vmatpush1.msra.mxu0 0.0
    %6256 = vmatprep.mubr.f32.mxu0 0.0
    %v6257 = vand.u32 %v5996, 4294901760
    %v6258 = vsub.f32 %v5996, %v6257
    %6259 = vmatmul.mubr.f32.gmra.mrb[0].mxu0 %v6258
    %v6260 = vpop.f32.mrb[0].mxu0
    %v6261 = vadd.f32 %v6177, %v6260
    %v6262 = vpop.f32.mrb[0].mxu0
    %6263 = vdwg.mxu0
    %6264 = vmatprep.subr.mxu0 0.0
    %v6265 = vand.u32 %v782, 4294901760
    %6266 = vmatpush1.msra.mxu0 %v6265
    %6267 = vmatprep.subr.mxu0 0.0
    %v6268 = vand.u32 %v783, 4294901760
    %6269 = vmatpush1.msra.mxu0 %v6268
    %6270 = vmatprep.subr.mxu0 0.0
    %v6271 = vand.u32 %v784, 4294901760
    %6272 = vmatpush1.msra.mxu0 %v6271
    %6273 = vmatprep.subr.mxu0 0.0
    %v6274 = vand.u32 %v785, 4294901760
    %6275 = vmatpush1.msra.mxu0 %v6274
    %6276 = vmatprep.subr.mxu0 0.0
    %v6277 = vand.u32 %v786, 4294901760
    %6278 = vmatpush1.msra.mxu0 %v6277
    %6279 = vmatprep.subr.mxu0 0.0
    %v6280 = vand.u32 %v787, 4294901760
    %6281 = vmatpush1.msra.mxu0 %v6280
    %6282 = vmatprep.subr.mxu0 0.0
    %6283 = vmatpush1.msra.mxu0 0.0
    %6284 = vmatprep.subr.mxu0 0.0
    %6285 = vmatpush1.msra.mxu0 0.0
    %6286 = vmatprep.subr.mxu0 0.0
    %6287 = vmatpush1.msra.mxu0 0.0
    %6288 = vmatprep.subr.mxu0 0.0
    %6289 = vmatpush1.msra.mxu0 0.0
    %6290 = vmatprep.subr.mxu0 0.0
    %6291 = vmatpush1.msra.mxu0 0.0
    %6292 = vmatprep.subr.mxu0 0.0
    %6293 = vmatpush1.msra.mxu0 0.0
    %6294 = vmatprep.subr.mxu0 0.0
    %6295 = vmatpush1.msra.mxu0 0.0
    %6296 = vmatprep.subr.mxu0 0.0
    %6297 = vmatpush1.msra.mxu0 0.0
    %6298 = vmatprep.subr.mxu0 0.0
    %6299 = vmatpush1.msra.mxu0 0.0
    %6300 = vmatprep.subr.mxu0 0.0
    %6301 = vmatpush1.msra.mxu0 0.0
    %6302 = vmatprep.subr.mxu0 0.0
    %6303 = vmatpush1.msra.mxu0 0.0
    %6304 = vmatprep.subr.mxu0 0.0
    %6305 = vmatpush1.msra.mxu0 0.0
    %6306 = vmatprep.subr.mxu0 0.0
    %6307 = vmatpush1.msra.mxu0 0.0
    %6308 = vmatprep.subr.mxu0 0.0
    %6309 = vmatpush1.msra.mxu0 0.0
    %6310 = vmatprep.subr.mxu0 0.0
    %6311 = vmatpush1.msra.mxu0 0.0
    %6312 = vmatprep.subr.mxu0 0.0
    %6313 = vmatpush1.msra.mxu0 0.0
    %6314 = vmatprep.subr.mxu0 0.0
    %6315 = vmatpush1.msra.mxu0 0.0
    %6316 = vmatprep.subr.mxu0 0.0
    %6317 = vmatpush1.msra.mxu0 0.0
    %6318 = vmatprep.subr.mxu0 0.0
    %6319 = vmatpush1.msra.mxu0 0.0
    %6320 = vmatprep.subr.mxu0 0.0
    %6321 = vmatpush1.msra.mxu0 0.0
    %6322 = vmatprep.subr.mxu0 0.0
    %6323 = vmatpush1.msra.mxu0 0.0
    %6324 = vmatprep.subr.mxu0 0.0
    %6325 = vmatpush1.msra.mxu0 0.0
    %6326 = vmatprep.subr.mxu0 0.0
    %6327 = vmatpush1.msra.mxu0 0.0
    %6328 = vmatprep.subr.mxu0 0.0
    %6329 = vmatpush1.msra.mxu0 0.0
    %6330 = vmatprep.subr.mxu0 0.0
    %6331 = vmatpush1.msra.mxu0 0.0
    %6332 = vmatprep.subr.mxu0 0.0
    %6333 = vmatpush1.msra.mxu0 0.0
    %6334 = vmatprep.mubr.f32.mxu0 0.0
    %v6335 = vand.u32 %v5996, 4294901760
    %v6336 = vsub.f32 %v5996, %v6335
    %v6337 = vand.u32 %v6336, 4294901760
    %6338 = vmatmul.mubr.f32.gmra.mrb[0].mxu0 %v6337
    %v6339 = vpop.f32.mrb[0].mxu0
    %v6340 = vadd.f32 %v6261, %v6339
    %v6341 = vpop.f32.mrb[0].mxu0
    %6342 = vdwg.mxu0
    %6343 = vmatprep.subr.mxu0 0.0
    %v6344 = vand.u32 %v782, 4294901760
    %v6345 = vsub.f32 %v782, %v6344
    %v6346 = vand.u32 %v6345, 4294901760
    %6347 = vmatpush1.msra.mxu0 %v6346
    %6348 = vmatprep.subr.mxu0 0.0
    %v6349 = vand.u32 %v783, 4294901760
    %v6350 = vsub.f32 %v783, %v6349
    %v6351 = vand.u32 %v6350, 4294901760
    %6352 = vmatpush1.msra.mxu0 %v6351
    %6353 = vmatprep.subr.mxu0 0.0
    %v6354 = vand.u32 %v784, 4294901760
    %v6355 = vsub.f32 %v784, %v6354
    %v6356 = vand.u32 %v6355, 4294901760
    %6357 = vmatpush1.msra.mxu0 %v6356
    %6358 = vmatprep.subr.mxu0 0.0
    %v6359 = vand.u32 %v785, 4294901760
    %v6360 = vsub.f32 %v785, %v6359
    %v6361 = vand.u32 %v6360, 4294901760
    %6362 = vmatpush1.msra.mxu0 %v6361
    %6363 = vmatprep.subr.mxu0 0.0
    %v6364 = vand.u32 %v786, 4294901760
    %v6365 = vsub.f32 %v786, %v6364
    %v6366 = vand.u32 %v6365, 4294901760
    %6367 = vmatpush1.msra.mxu0 %v6366
    %6368 = vmatprep.subr.mxu0 0.0
    %v6369 = vand.u32 %v787, 4294901760
    %v6370 = vsub.f32 %v787, %v6369
    %v6371 = vand.u32 %v6370, 4294901760
    %6372 = vmatpush1.msra.mxu0 %v6371
    %6373 = vmatprep.subr.mxu0 0.0
    %6374 = vmatpush1.msra.mxu0 0.0
    %6375 = vmatprep.subr.mxu0 0.0
    %6376 = vmatpush1.msra.mxu0 0.0
    %6377 = vmatprep.subr.mxu0 0.0
    %6378 = vmatpush1.msra.mxu0 0.0
    %6379 = vmatprep.subr.mxu0 0.0
    %6380 = vmatpush1.msra.mxu0 0.0
    %6381 = vmatprep.subr.mxu0 0.0
    %6382 = vmatpush1.msra.mxu0 0.0
    %6383 = vmatprep.subr.mxu0 0.0
    %6384 = vmatpush1.msra.mxu0 0.0
    %6385 = vmatprep.subr.mxu0 0.0
    %6386 = vmatpush1.msra.mxu0 0.0
    %6387 = vmatprep.subr.mxu0 0.0
    %6388 = vmatpush1.msra.mxu0 0.0
    %6389 = vmatprep.subr.mxu0 0.0
    %6390 = vmatpush1.msra.mxu0 0.0
    %6391 = vmatprep.subr.mxu0 0.0
    %6392 = vmatpush1.msra.mxu0 0.0
    %6393 = vmatprep.subr.mxu0 0.0
    %6394 = vmatpush1.msra.mxu0 0.0
    %6395 = vmatprep.subr.mxu0 0.0
    %6396 = vmatpush1.msra.mxu0 0.0
    %6397 = vmatprep.subr.mxu0 0.0
    %6398 = vmatpush1.msra.mxu0 0.0
    %6399 = vmatprep.subr.mxu0 0.0
    %6400 = vmatpush1.msra.mxu0 0.0
    %6401 = vmatprep.subr.mxu0 0.0
    %6402 = vmatpush1.msra.mxu0 0.0
    %6403 = vmatprep.subr.mxu0 0.0
    %6404 = vmatpush1.msra.mxu0 0.0
    %6405 = vmatprep.subr.mxu0 0.0
    %6406 = vmatpush1.msra.mxu0 0.0
    %6407 = vmatprep.subr.mxu0 0.0
    %6408 = vmatpush1.msra.mxu0 0.0
    %6409 = vmatprep.subr.mxu0 0.0
    %6410 = vmatpush1.msra.mxu0 0.0
    %6411 = vmatprep.subr.mxu0 0.0
    %6412 = vmatpush1.msra.mxu0 0.0
    %6413 = vmatprep.subr.mxu0 0.0
    %6414 = vmatpush1.msra.mxu0 0.0
    %6415 = vmatprep.subr.mxu0 0.0
    %6416 = vmatpush1.msra.mxu0 0.0
    %6417 = vmatprep.subr.mxu0 0.0
    %6418 = vmatpush1.msra.mxu0 0.0
    %6419 = vmatprep.subr.mxu0 0.0
    %6420 = vmatpush1.msra.mxu0 0.0
    %6421 = vmatprep.subr.mxu0 0.0
    %6422 = vmatpush1.msra.mxu0 0.0
    %6423 = vmatprep.subr.mxu0 0.0
    %6424 = vmatpush1.msra.mxu0 0.0
    %6425 = vmatprep.mubr.f32.mxu0 0.0
    %v6426 = vand.u32 %v5996, 4294901760
    %6427 = vmatmul.mubr.f32.gmra.mrb[0].mxu0 %v6426
    %v6428 = vpop.f32.mrb[0].mxu0
    %v6429 = vadd.f32 %v6340, %v6428
    %v6430 = vpop.f32.mrb[0].mxu0
    %6431 = vdwg.mxu0
    %6432 = vmatprep.subr.mxu0 0.0
    %v6433 = vand.u32 %v782, 4294901760
    %6434 = vmatpush1.msra.mxu0 %v6433
    %6435 = vmatprep.subr.mxu0 0.0
    %v6436 = vand.u32 %v783, 4294901760
    %6437 = vmatpush1.msra.mxu0 %v6436
    %6438 = vmatprep.subr.mxu0 0.0
    %v6439 = vand.u32 %v784, 4294901760
    %6440 = vmatpush1.msra.mxu0 %v6439
    %6441 = vmatprep.subr.mxu0 0.0
    %v6442 = vand.u32 %v785, 4294901760
    %6443 = vmatpush1.msra.mxu0 %v6442
    %6444 = vmatprep.subr.mxu0 0.0
    %v6445 = vand.u32 %v786, 4294901760
    %6446 = vmatpush1.msra.mxu0 %v6445
    %6447 = vmatprep.subr.mxu0 0.0
    %v6448 = vand.u32 %v787, 4294901760
    %6449 = vmatpush1.msra.mxu0 %v6448
    %6450 = vmatprep.subr.mxu0 0.0
    %6451 = vmatpush1.msra.mxu0 0.0
    %6452 = vmatprep.subr.mxu0 0.0
    %6453 = vmatpush1.msra.mxu0 0.0
    %6454 = vmatprep.subr.mxu0 0.0
    %6455 = vmatpush1.msra.mxu0 0.0
    %6456 = vmatprep.subr.mxu0 0.0
    %6457 = vmatpush1.msra.mxu0 0.0
    %6458 = vmatprep.subr.mxu0 0.0
    %6459 = vmatpush1.msra.mxu0 0.0
    %6460 = vmatprep.subr.mxu0 0.0
    %6461 = vmatpush1.msra.mxu0 0.0
    %6462 = vmatprep.subr.mxu0 0.0
    %6463 = vmatpush1.msra.mxu0 0.0
    %6464 = vmatprep.subr.mxu0 0.0
    %6465 = vmatpush1.msra.mxu0 0.0
    %6466 = vmatprep.subr.mxu0 0.0
    %6467 = vmatpush1.msra.mxu0 0.0
    %6468 = vmatprep.subr.mxu0 0.0
    %6469 = vmatpush1.msra.mxu0 0.0
    %6470 = vmatprep.subr.mxu0 0.0
    %6471 = vmatpush1.msra.mxu0 0.0
    %6472 = vmatprep.subr.mxu0 0.0
    %6473 = vmatpush1.msra.mxu0 0.0
    %6474 = vmatprep.subr.mxu0 0.0
    %6475 = vmatpush1.msra.mxu0 0.0
    %6476 = vmatprep.subr.mxu0 0.0
    %6477 = vmatpush1.msra.mxu0 0.0
    %6478 = vmatprep.subr.mxu0 0.0
    %6479 = vmatpush1.msra.mxu0 0.0
    %6480 = vmatprep.subr.mxu0 0.0
    %6481 = vmatpush1.msra.mxu0 0.0
    %6482 = vmatprep.subr.mxu0 0.0
    %6483 = vmatpush1.msra.mxu0 0.0
    %6484 = vmatprep.subr.mxu0 0.0
    %6485 = vmatpush1.msra.mxu0 0.0
    %6486 = vmatprep.subr.mxu0 0.0
    %6487 = vmatpush1.msra.mxu0 0.0
    %6488 = vmatprep.subr.mxu0 0.0
    %6489 = vmatpush1.msra.mxu0 0.0
    %6490 = vmatprep.subr.mxu0 0.0
    %6491 = vmatpush1.msra.mxu0 0.0
    %6492 = vmatprep.subr.mxu0 0.0
    %6493 = vmatpush1.msra.mxu0 0.0
    %6494 = vmatprep.subr.mxu0 0.0
    %6495 = vmatpush1.msra.mxu0 0.0
    %6496 = vmatprep.subr.mxu0 0.0
    %6497 = vmatpush1.msra.mxu0 0.0
    %6498 = vmatprep.subr.mxu0 0.0
    %6499 = vmatpush1.msra.mxu0 0.0
    %6500 = vmatprep.subr.mxu0 0.0
    %6501 = vmatpush1.msra.mxu0 0.0
    %6502 = vmatprep.mubr.f32.mxu0 0.0
    %v6503 = vand.u32 %v5996, 4294901760
    %6504 = vmatmul.mubr.f32.gmra.mrb[0].mxu0 %v6503
    %v6505 = vpop.f32.mrb[0].mxu0
    %v6506 = vadd.f32 %v6429, %v6505
    %v6507 = vpop.f32.mrb[0].mxu0
    %6508 = vdwg.mxu0
    %v6509 = vadd.f32 %v5994, %v6506
    %v6510 = vxor.u32 %v6509, 2147483648
    %v6511 = vmul.f32 %v6510, 1.442695
    %v6512 = vpow.pop %v6511
    %v6513 = vadd.f32 %v6512, 1.0
    %v6514 = vrcp.pop %v6513
    %v6515 = vmul.f32 1.0, %v6514
    %6517 = vrot.lane.b32.xlu0 %v6515, 96
    %v6518 = vpop.permute.xlu0 %6517
    %v6520 = vmul.f32 %v6515, %v6518
    %6522 = vrot.lane.b32.xlu0 %v6520, 64
    %v6523 = vpop.permute.xlu0 %6522
    %v6525 = vadd.f32 %v6515, %v6523
    %v6526 = vtanh.pop %v6525
    %6528 = vrot.lane.b32.xlu0 %v6526, 32
    %v6529 = vpop.permute.xlu0 %6528
    %v6531 = vmul.f32 %v6515, %v6529
    %6533 = vrot.lane.b32.xlu0 %v6531, 48
    %v6534 = vpop.permute.xlu0 %6533
    %v6536 = vadd.f32 %v5992, %v6534
    %6538 = vrot.lane.b32.xlu0 %v6525, 64
    %v6539 = vpop.permute.xlu0 %6538
    %v6540 = vsel %vm1340, %v6539, 0
    %6542 = vmatprep.subr.mxu0 0.0
    %v6543 = vand.u32 %v788, 4294901760
    %6544 = vmatpush1.msra.mxu0 %v6543
    %6545 = vmatprep.subr.mxu0 0.0
    %v6546 = vand.u32 %v789, 4294901760
    %6547 = vmatpush1.msra.mxu0 %v6546
    %6548 = vmatprep.subr.mxu0 0.0
    %v6549 = vand.u32 %v790, 4294901760
    %6550 = vmatpush1.msra.mxu0 %v6549
    %6551 = vmatprep.subr.mxu0 0.0
    %v6552 = vand.u32 %v791, 4294901760
    %6553 = vmatpush1.msra.mxu0 %v6552
    %6554 = vmatprep.subr.mxu0 0.0
    %6555 = vmatpush1.msra.mxu0 0.0
    %6556 = vmatprep.subr.mxu0 0.0
    %6557 = vmatpush1.msra.mxu0 0.0
    %6558 = vmatprep.subr.mxu0 0.0
    %6559 = vmatpush1.msra.mxu0 0.0
    %6560 = vmatprep.subr.mxu0 0.0
    %6561 = vmatpush1.msra.mxu0 0.0
    %6562 = vmatprep.subr.mxu0 0.0
    %6563 = vmatpush1.msra.mxu0 0.0
    %6564 = vmatprep.subr.mxu0 0.0
    %6565 = vmatpush1.msra.mxu0 0.0
    %6566 = vmatprep.subr.mxu0 0.0
    %6567 = vmatpush1.msra.mxu0 0.0
    %6568 = vmatprep.subr.mxu0 0.0
    %6569 = vmatpush1.msra.mxu0 0.0
    %6570 = vmatprep.subr.mxu0 0.0
    %6571 = vmatpush1.msra.mxu0 0.0
    %6572 = vmatprep.subr.mxu0 0.0
    %6573 = vmatpush1.msra.mxu0 0.0
    %6574 = vmatprep.subr.mxu0 0.0
    %6575 = vmatpush1.msra.mxu0 0.0
    %6576 = vmatprep.subr.mxu0 0.0
    %6577 = vmatpush1.msra.mxu0 0.0
    %6578 = vmatprep.subr.mxu0 0.0
    %6579 = vmatpush1.msra.mxu0 0.0
    %6580 = vmatprep.subr.mxu0 0.0
    %6581 = vmatpush1.msra.mxu0 0.0
    %6582 = vmatprep.subr.mxu0 0.0
    %6583 = vmatpush1.msra.mxu0 0.0
    %6584 = vmatprep.subr.mxu0 0.0
    %6585 = vmatpush1.msra.mxu0 0.0
    %6586 = vmatprep.subr.mxu0 0.0
    %6587 = vmatpush1.msra.mxu0 0.0
    %6588 = vmatprep.subr.mxu0 0.0
    %6589 = vmatpush1.msra.mxu0 0.0
    %6590 = vmatprep.subr.mxu0 0.0
    %6591 = vmatpush1.msra.mxu0 0.0
    %6592 = vmatprep.subr.mxu0 0.0
    %6593 = vmatpush1.msra.mxu0 0.0
    %6594 = vmatprep.subr.mxu0 0.0
    %6595 = vmatpush1.msra.mxu0 0.0
    %6596 = vmatprep.subr.mxu0 0.0
    %6597 = vmatpush1.msra.mxu0 0.0
    %6598 = vmatprep.subr.mxu0 0.0
    %6599 = vmatpush1.msra.mxu0 0.0
    %6600 = vmatprep.subr.mxu0 0.0
    %6601 = vmatpush1.msra.mxu0 0.0
    %6602 = vmatprep.subr.mxu0 0.0
    %6603 = vmatpush1.msra.mxu0 0.0
    %6604 = vmatprep.subr.mxu0 0.0
    %6605 = vmatpush1.msra.mxu0 0.0
    %6606 = vmatprep.subr.mxu0 0.0
    %6607 = vmatpush1.msra.mxu0 0.0
    %6608 = vmatprep.subr.mxu0 0.0
    %6609 = vmatpush1.msra.mxu0 0.0
    %6610 = vmatprep.mubr.f32.mxu0 0.0
    %v6611 = vand.u32 %v6540, 4294901760
    %v6612 = vsub.f32 %v6540, %v6611
    %v6613 = vand.u32 %v6612, 4294901760
    %v6614 = vsub.f32 %v6612, %v6613
    %v6615 = vand.u32 %v6614, 4294901760
    %6616 = vmatmul.mubr.f32.gmra.mrb[0].mxu0 %v6615
    %v6617 = vpop.f32.mrb[0].mxu0
    %v6618 = vadd.f32 0.0, %v6617
    %v6619 = vpop.f32.mrb[0].mxu0
    %6620 = vdwg.mxu0
    %6621 = vmatprep.subr.mxu0 0.0
    %v6622 = vand.u32 %v788, 4294901760
    %v6623 = vsub.f32 %v788, %v6622
    %v6624 = vand.u32 %v6623, 4294901760
    %v6625 = vsub.f32 %v6623, %v6624
    %v6626 = vand.u32 %v6625, 4294901760
    %6627 = vmatpush1.msra.mxu0 %v6626
    %6628 = vmatprep.subr.mxu0 0.0
    %v6629 = vand.u32 %v789, 4294901760
    %v6630 = vsub.f32 %v789, %v6629
    %v6631 = vand.u32 %v6630, 4294901760
    %v6632 = vsub.f32 %v6630, %v6631
    %v6633 = vand.u32 %v6632, 4294901760
    %6634 = vmatpush1.msra.mxu0 %v6633
    %6635 = vmatprep.subr.mxu0 0.0
    %v6636 = vand.u32 %v790, 4294901760
    %v6637 = vsub.f32 %v790, %v6636
    %v6638 = vand.u32 %v6637, 4294901760
    %v6639 = vsub.f32 %v6637, %v6638
    %v6640 = vand.u32 %v6639, 4294901760
    %6641 = vmatpush1.msra.mxu0 %v6640
    %6642 = vmatprep.subr.mxu0 0.0
    %v6643 = vand.u32 %v791, 4294901760
    %v6644 = vsub.f32 %v791, %v6643
    %v6645 = vand.u32 %v6644, 4294901760
    %v6646 = vsub.f32 %v6644, %v6645
    %v6647 = vand.u32 %v6646, 4294901760
    %6648 = vmatpush1.msra.mxu0 %v6647
    %6649 = vmatprep.subr.mxu0 0.0
    %6650 = vmatpush1.msra.mxu0 0.0
    %6651 = vmatprep.subr.mxu0 0.0
    %6652 = vmatpush1.msra.mxu0 0.0
    %6653 = vmatprep.subr.mxu0 0.0
    %6654 = vmatpush1.msra.mxu0 0.0
    %6655 = vmatprep.subr.mxu0 0.0
    %6656 = vmatpush1.msra.mxu0 0.0
    %6657 = vmatprep.subr.mxu0 0.0
    %6658 = vmatpush1.msra.mxu0 0.0
    %6659 = vmatprep.subr.mxu0 0.0
    %6660 = vmatpush1.msra.mxu0 0.0
    %6661 = vmatprep.subr.mxu0 0.0
    %6662 = vmatpush1.msra.mxu0 0.0
    %6663 = vmatprep.subr.mxu0 0.0
    %6664 = vmatpush1.msra.mxu0 0.0
    %6665 = vmatprep.subr.mxu0 0.0
    %6666 = vmatpush1.msra.mxu0 0.0
    %6667 = vmatprep.subr.mxu0 0.0
    %6668 = vmatpush1.msra.mxu0 0.0
    %6669 = vmatprep.subr.mxu0 0.0
    %6670 = vmatpush1.msra.mxu0 0.0
    %6671 = vmatprep.subr.mxu0 0.0
    %6672 = vmatpush1.msra.mxu0 0.0
    %6673 = vmatprep.subr.mxu0 0.0
    %6674 = vmatpush1.msra.mxu0 0.0
    %6675 = vmatprep.subr.mxu0 0.0
    %6676 = vmatpush1.msra.mxu0 0.0
    %6677 = vmatprep.subr.mxu0 0.0
    %6678 = vmatpush1.msra.mxu0 0.0
    %6679 = vmatprep.subr.mxu0 0.0
    %6680 = vmatpush1.msra.mxu0 0.0
    %6681 = vmatprep.subr.mxu0 0.0
    %6682 = vmatpush1.msra.mxu0 0.0
    %6683 = vmatprep.subr.mxu0 0.0
    %6684 = vmatpush1.msra.mxu0 0.0
    %6685 = vmatprep.subr.mxu0 0.0
    %6686 = vmatpush1.msra.mxu0 0.0
    %6687 = vmatprep.subr.mxu0 0.0
    %6688 = vmatpush1.msra.mxu0 0.0
    %6689 = vmatprep.subr.mxu0 0.0
    %6690 = vmatpush1.msra.mxu0 0.0
    %6691 = vmatprep.subr.mxu0 0.0
    %6692 = vmatpush1.msra.mxu0 0.0
    %6693 = vmatprep.subr.mxu0 0.0
    %6694 = vmatpush1.msra.mxu0 0.0
    %6695 = vmatprep.subr.mxu0 0.0
    %6696 = vmatpush1.msra.mxu0 0.0
    %6697 = vmatprep.subr.mxu0 0.0
    %6698 = vmatpush1.msra.mxu0 0.0
    %6699 = vmatprep.subr.mxu0 0.0
    %6700 = vmatpush1.msra.mxu0 0.0
    %6701 = vmatprep.subr.mxu0 0.0
    %6702 = vmatpush1.msra.mxu0 0.0
    %6703 = vmatprep.subr.mxu0 0.0
    %6704 = vmatpush1.msra.mxu0 0.0
    %6705 = vmatprep.mubr.f32.mxu0 0.0
    %v6706 = vand.u32 %v6540, 4294901760
    %6707 = vmatmul.mubr.f32.gmra.mrb[0].mxu0 %v6706
    %v6708 = vpop.f32.mrb[0].mxu0
    %v6709 = vadd.f32 %v6618, %v6708
    %v6710 = vpop.f32.mrb[0].mxu0
    %6711 = vdwg.mxu0
    %6712 = vmatprep.subr.mxu0 0.0
    %v6713 = vand.u32 %v788, 4294901760
    %v6714 = vsub.f32 %v788, %v6713
    %6715 = vmatpush1.msra.mxu0 %v6714
    %6716 = vmatprep.subr.mxu0 0.0
    %v6717 = vand.u32 %v789, 4294901760
    %v6718 = vsub.f32 %v789, %v6717
    %6719 = vmatpush1.msra.mxu0 %v6718
    %6720 = vmatprep.subr.mxu0 0.0
    %v6721 = vand.u32 %v790, 4294901760
    %v6722 = vsub.f32 %v790, %v6721
    %6723 = vmatpush1.msra.mxu0 %v6722
    %6724 = vmatprep.subr.mxu0 0.0
    %v6725 = vand.u32 %v791, 4294901760
    %v6726 = vsub.f32 %v791, %v6725
    %6727 = vmatpush1.msra.mxu0 %v6726
    %6728 = vmatprep.subr.mxu0 0.0
    %6729 = vmatpush1.msra.mxu0 0.0
    %6730 = vmatprep.subr.mxu0 0.0
    %6731 = vmatpush1.msra.mxu0 0.0
    %6732 = vmatprep.subr.mxu0 0.0
    %6733 = vmatpush1.msra.mxu0 0.0
    %6734 = vmatprep.subr.mxu0 0.0
    %6735 = vmatpush1.msra.mxu0 0.0
    %6736 = vmatprep.subr.mxu0 0.0
    %6737 = vmatpush1.msra.mxu0 0.0
    %6738 = vmatprep.subr.mxu0 0.0
    %6739 = vmatpush1.msra.mxu0 0.0
    %6740 = vmatprep.subr.mxu0 0.0
    %6741 = vmatpush1.msra.mxu0 0.0
    %6742 = vmatprep.subr.mxu0 0.0
    %6743 = vmatpush1.msra.mxu0 0.0
    %6744 = vmatprep.subr.mxu0 0.0
    %6745 = vmatpush1.msra.mxu0 0.0
    %6746 = vmatprep.subr.mxu0 0.0
    %6747 = vmatpush1.msra.mxu0 0.0
    %6748 = vmatprep.subr.mxu0 0.0
    %6749 = vmatpush1.msra.mxu0 0.0
    %6750 = vmatprep.subr.mxu0 0.0
    %6751 = vmatpush1.msra.mxu0 0.0
    %6752 = vmatprep.subr.mxu0 0.0
    %6753 = vmatpush1.msra.mxu0 0.0
    %6754 = vmatprep.subr.mxu0 0.0
    %6755 = vmatpush1.msra.mxu0 0.0
    %6756 = vmatprep.subr.mxu0 0.0
    %6757 = vmatpush1.msra.mxu0 0.0
    %6758 = vmatprep.subr.mxu0 0.0
    %6759 = vmatpush1.msra.mxu0 0.0
    %6760 = vmatprep.subr.mxu0 0.0
    %6761 = vmatpush1.msra.mxu0 0.0
    %6762 = vmatprep.subr.mxu0 0.0
    %6763 = vmatpush1.msra.mxu0 0.0
    %6764 = vmatprep.subr.mxu0 0.0
    %6765 = vmatpush1.msra.mxu0 0.0
    %6766 = vmatprep.subr.mxu0 0.0
    %6767 = vmatpush1.msra.mxu0 0.0
    %6768 = vmatprep.subr.mxu0 0.0
    %6769 = vmatpush1.msra.mxu0 0.0
    %6770 = vmatprep.subr.mxu0 0.0
    %6771 = vmatpush1.msra.mxu0 0.0
    %6772 = vmatprep.subr.mxu0 0.0
    %6773 = vmatpush1.msra.mxu0 0.0
    %6774 = vmatprep.subr.mxu0 0.0
    %6775 = vmatpush1.msra.mxu0 0.0
    %6776 = vmatprep.subr.mxu0 0.0
    %6777 = vmatpush1.msra.mxu0 0.0
    %6778 = vmatprep.subr.mxu0 0.0
    %6779 = vmatpush1.msra.mxu0 0.0
    %6780 = vmatprep.subr.mxu0 0.0
    %6781 = vmatpush1.msra.mxu0 0.0
    %6782 = vmatprep.subr.mxu0 0.0
    %6783 = vmatpush1.msra.mxu0 0.0
    %6784 = vmatprep.mubr.f32.mxu0 0.0
    %v6785 = vand.u32 %v6540, 4294901760
    %v6786 = vsub.f32 %v6540, %v6785
    %6787 = vmatmul.mubr.f32.gmra.mrb[0].mxu0 %v6786
    %v6788 = vpop.f32.mrb[0].mxu0
    %v6789 = vadd.f32 %v6709, %v6788
    %v6790 = vpop.f32.mrb[0].mxu0
    %6791 = vdwg.mxu0
    %6792 = vmatprep.subr.mxu0 0.0
    %v6793 = vand.u32 %v788, 4294901760
    %6794 = vmatpush1.msra.mxu0 %v6793
    %6795 = vmatprep.subr.mxu0 0.0
    %v6796 = vand.u32 %v789, 4294901760
    %6797 = vmatpush1.msra.mxu0 %v6796
    %6798 = vmatprep.subr.mxu0 0.0
    %v6799 = vand.u32 %v790, 4294901760
    %6800 = vmatpush1.msra.mxu0 %v6799
    %6801 = vmatprep.subr.mxu0 0.0
    %v6802 = vand.u32 %v791, 4294901760
    %6803 = vmatpush1.msra.mxu0 %v6802
    %6804 = vmatprep.subr.mxu0 0.0
    %6805 = vmatpush1.msra.mxu0 0.0
    %6806 = vmatprep.subr.mxu0 0.0
    %6807 = vmatpush1.msra.mxu0 0.0
    %6808 = vmatprep.subr.mxu0 0.0
    %6809 = vmatpush1.msra.mxu0 0.0
    %6810 = vmatprep.subr.mxu0 0.0
    %6811 = vmatpush1.msra.mxu0 0.0
    %6812 = vmatprep.subr.mxu0 0.0
    %6813 = vmatpush1.msra.mxu0 0.0
    %6814 = vmatprep.subr.mxu0 0.0
    %6815 = vmatpush1.msra.mxu0 0.0
    %6816 = vmatprep.subr.mxu0 0.0
    %6817 = vmatpush1.msra.mxu0 0.0
    %6818 = vmatprep.subr.mxu0 0.0
    %6819 = vmatpush1.msra.mxu0 0.0
    %6820 = vmatprep.subr.mxu0 0.0
    %6821 = vmatpush1.msra.mxu0 0.0
    %6822 = vmatprep.subr.mxu0 0.0
    %6823 = vmatpush1.msra.mxu0 0.0
    %6824 = vmatprep.subr.mxu0 0.0
    %6825 = vmatpush1.msra.mxu0 0.0
    %6826 = vmatprep.subr.mxu0 0.0
    %6827 = vmatpush1.msra.mxu0 0.0
    %6828 = vmatprep.subr.mxu0 0.0
    %6829 = vmatpush1.msra.mxu0 0.0
    %6830 = vmatprep.subr.mxu0 0.0
    %6831 = vmatpush1.msra.mxu0 0.0
    %6832 = vmatprep.subr.mxu0 0.0
    %6833 = vmatpush1.msra.mxu0 0.0
    %6834 = vmatprep.subr.mxu0 0.0
    %6835 = vmatpush1.msra.mxu0 0.0
    %6836 = vmatprep.subr.mxu0 0.0
    %6837 = vmatpush1.msra.mxu0 0.0
    %6838 = vmatprep.subr.mxu0 0.0
    %6839 = vmatpush1.msra.mxu0 0.0
    %6840 = vmatprep.subr.mxu0 0.0
    %6841 = vmatpush1.msra.mxu0 0.0
    %6842 = vmatprep.subr.mxu0 0.0
    %6843 = vmatpush1.msra.mxu0 0.0
    %6844 = vmatprep.subr.mxu0 0.0
    %6845 = vmatpush1.msra.mxu0 0.0
    %6846 = vmatprep.subr.mxu0 0.0
    %6847 = vmatpush1.msra.mxu0 0.0
    %6848 = vmatprep.subr.mxu0 0.0
    %6849 = vmatpush1.msra.mxu0 0.0
    %6850 = vmatprep.subr.mxu0 0.0
    %6851 = vmatpush1.msra.mxu0 0.0
    %6852 = vmatprep.subr.mxu0 0.0
    %6853 = vmatpush1.msra.mxu0 0.0
    %6854 = vmatprep.subr.mxu0 0.0
    %6855 = vmatpush1.msra.mxu0 0.0
    %6856 = vmatprep.subr.mxu0 0.0
    %6857 = vmatpush1.msra.mxu0 0.0
    %6858 = vmatprep.subr.mxu0 0.0
    %6859 = vmatpush1.msra.mxu0 0.0
    %6860 = vmatprep.mubr.f32.mxu0 0.0
    %v6861 = vand.u32 %v6540, 4294901760
    %v6862 = vsub.f32 %v6540, %v6861
    %v6863 = vand.u32 %v6862, 4294901760
    %6864 = vmatmul.mubr.f32.gmra.mrb[0].mxu0 %v6863
    %v6865 = vpop.f32.mrb[0].mxu0
    %v6866 = vadd.f32 %v6789, %v6865
    %v6867 = vpop.f32.mrb[0].mxu0
    %6868 = vdwg.mxu0
    %6869 = vmatprep.subr.mxu0 0.0
    %v6870 = vand.u32 %v788, 4294901760
    %v6871 = vsub.f32 %v788, %v6870
    %v6872 = vand.u32 %v6871, 4294901760
    %6873 = vmatpush1.msra.mxu0 %v6872
    %6874 = vmatprep.subr.mxu0 0.0
    %v6875 = vand.u32 %v789, 4294901760
    %v6876 = vsub.f32 %v789, %v6875
    %v6877 = vand.u32 %v6876, 4294901760
    %6878 = vmatpush1.msra.mxu0 %v6877
    %6879 = vmatprep.subr.mxu0 0.0
    %v6880 = vand.u32 %v790, 4294901760
    %v6881 = vsub.f32 %v790, %v6880
    %v6882 = vand.u32 %v6881, 4294901760
    %6883 = vmatpush1.msra.mxu0 %v6882
    %6884 = vmatprep.subr.mxu0 0.0
    %v6885 = vand.u32 %v791, 4294901760
    %v6886 = vsub.f32 %v791, %v6885
    %v6887 = vand.u32 %v6886, 4294901760
    %6888 = vmatpush1.msra.mxu0 %v6887
    %6889 = vmatprep.subr.mxu0 0.0
    %6890 = vmatpush1.msra.mxu0 0.0
    %6891 = vmatprep.subr.mxu0 0.0
    %6892 = vmatpush1.msra.mxu0 0.0
    %6893 = vmatprep.subr.mxu0 0.0
    %6894 = vmatpush1.msra.mxu0 0.0
    %6895 = vmatprep.subr.mxu0 0.0
    %6896 = vmatpush1.msra.mxu0 0.0
    %6897 = vmatprep.subr.mxu0 0.0
    %6898 = vmatpush1.msra.mxu0 0.0
    %6899 = vmatprep.subr.mxu0 0.0
    %6900 = vmatpush1.msra.mxu0 0.0
    %6901 = vmatprep.subr.mxu0 0.0
    %6902 = vmatpush1.msra.mxu0 0.0
    %6903 = vmatprep.subr.mxu0 0.0
    %6904 = vmatpush1.msra.mxu0 0.0
    %6905 = vmatprep.subr.mxu0 0.0
    %6906 = vmatpush1.msra.mxu0 0.0
    %6907 = vmatprep.subr.mxu0 0.0
    %6908 = vmatpush1.msra.mxu0 0.0
    %6909 = vmatprep.subr.mxu0 0.0
    %6910 = vmatpush1.msra.mxu0 0.0
    %6911 = vmatprep.subr.mxu0 0.0
    %6912 = vmatpush1.msra.mxu0 0.0
    %6913 = vmatprep.subr.mxu0 0.0
    %6914 = vmatpush1.msra.mxu0 0.0
    %6915 = vmatprep.subr.mxu0 0.0
    %6916 = vmatpush1.msra.mxu0 0.0
    %6917 = vmatprep.subr.mxu0 0.0
    %6918 = vmatpush1.msra.mxu0 0.0
    %6919 = vmatprep.subr.mxu0 0.0
    %6920 = vmatpush1.msra.mxu0 0.0
    %6921 = vmatprep.subr.mxu0 0.0
    %6922 = vmatpush1.msra.mxu0 0.0
    %6923 = vmatprep.subr.mxu0 0.0
    %6924 = vmatpush1.msra.mxu0 0.0
    %6925 = vmatprep.subr.mxu0 0.0
    %6926 = vmatpush1.msra.mxu0 0.0
    %6927 = vmatprep.subr.mxu0 0.0
    %6928 = vmatpush1.msra.mxu0 0.0
    %6929 = vmatprep.subr.mxu0 0.0
    %6930 = vmatpush1.msra.mxu0 0.0
    %6931 = vmatprep.subr.mxu0 0.0
    %6932 = vmatpush1.msra.mxu0 0.0
    %6933 = vmatprep.subr.mxu0 0.0
    %6934 = vmatpush1.msra.mxu0 0.0
    %6935 = vmatprep.subr.mxu0 0.0
    %6936 = vmatpush1.msra.mxu0 0.0
    %6937 = vmatprep.subr.mxu0 0.0
    %6938 = vmatpush1.msra.mxu0 0.0
    %6939 = vmatprep.subr.mxu0 0.0
    %6940 = vmatpush1.msra.mxu0 0.0
    %6941 = vmatprep.subr.mxu0 0.0
    %6942 = vmatpush1.msra.mxu0 0.0
    %6943 = vmatprep.subr.mxu0 0.0
    %6944 = vmatpush1.msra.mxu0 0.0
    %6945 = vmatprep.mubr.f32.mxu0 0.0
    %v6946 = vand.u32 %v6540, 4294901760
    %6947 = vmatmul.mubr.f32.gmra.mrb[0].mxu0 %v6946
    %v6948 = vpop.f32.mrb[0].mxu0
    %v6949 = vadd.f32 %v6866, %v6948
    %v6950 = vpop.f32.mrb[0].mxu0
    %6951 = vdwg.mxu0
    %6952 = vmatprep.subr.mxu0 0.0
    %v6953 = vand.u32 %v788, 4294901760
    %6954 = vmatpush1.msra.mxu0 %v6953
    %6955 = vmatprep.subr.mxu0 0.0
    %v6956 = vand.u32 %v789, 4294901760
    %6957 = vmatpush1.msra.mxu0 %v6956
    %6958 = vmatprep.subr.mxu0 0.0
    %v6959 = vand.u32 %v790, 4294901760
    %6960 = vmatpush1.msra.mxu0 %v6959
    %6961 = vmatprep.subr.mxu0 0.0
    %v6962 = vand.u32 %v791, 4294901760
    %6963 = vmatpush1.msra.mxu0 %v6962
    %6964 = vmatprep.subr.mxu0 0.0
    %6965 = vmatpush1.msra.mxu0 0.0
    %6966 = vmatprep.subr.mxu0 0.0
    %6967 = vmatpush1.msra.mxu0 0.0
    %6968 = vmatprep.subr.mxu0 0.0
    %6969 = vmatpush1.msra.mxu0 0.0
    %6970 = vmatprep.subr.mxu0 0.0
    %6971 = vmatpush1.msra.mxu0 0.0
    %6972 = vmatprep.subr.mxu0 0.0
    %6973 = vmatpush1.msra.mxu0 0.0
    %6974 = vmatprep.subr.mxu0 0.0
    %6975 = vmatpush1.msra.mxu0 0.0
    %6976 = vmatprep.subr.mxu0 0.0
    %6977 = vmatpush1.msra.mxu0 0.0
    %6978 = vmatprep.subr.mxu0 0.0
    %6979 = vmatpush1.msra.mxu0 0.0
    %6980 = vmatprep.subr.mxu0 0.0
    %6981 = vmatpush1.msra.mxu0 0.0
    %6982 = vmatprep.subr.mxu0 0.0
    %6983 = vmatpush1.msra.mxu0 0.0
    %6984 = vmatprep.subr.mxu0 0.0
    %6985 = vmatpush1.msra.mxu0 0.0
    %6986 = vmatprep.subr.mxu0 0.0
    %6987 = vmatpush1.msra.mxu0 0.0
    %6988 = vmatprep.subr.mxu0 0.0
    %6989 = vmatpush1.msra.mxu0 0.0
    %6990 = vmatprep.subr.mxu0 0.0
    %6991 = vmatpush1.msra.mxu0 0.0
    %6992 = vmatprep.subr.mxu0 0.0
    %6993 = vmatpush1.msra.mxu0 0.0
    %6994 = vmatprep.subr.mxu0 0.0
    %6995 = vmatpush1.msra.mxu0 0.0
    %6996 = vmatprep.subr.mxu0 0.0
    %6997 = vmatpush1.msra.mxu0 0.0
    %6998 = vmatprep.subr.mxu0 0.0
    %6999 = vmatpush1.msra.mxu0 0.0
    %7000 = vmatprep.subr.mxu0 0.0
    %7001 = vmatpush1.msra.mxu0 0.0
    %7002 = vmatprep.subr.mxu0 0.0
    %7003 = vmatpush1.msra.mxu0 0.0
    %7004 = vmatprep.subr.mxu0 0.0
    %7005 = vmatpush1.msra.mxu0 0.0
    %7006 = vmatprep.subr.mxu0 0.0
    %7007 = vmatpush1.msra.mxu0 0.0
    %7008 = vmatprep.subr.mxu0 0.0
    %7009 = vmatpush1.msra.mxu0 0.0
    %7010 = vmatprep.subr.mxu0 0.0
    %7011 = vmatpush1.msra.mxu0 0.0
    %7012 = vmatprep.subr.mxu0 0.0
    %7013 = vmatpush1.msra.mxu0 0.0
    %7014 = vmatprep.subr.mxu0 0.0
    %7015 = vmatpush1.msra.mxu0 0.0
    %7016 = vmatprep.subr.mxu0 0.0
    %7017 = vmatpush1.msra.mxu0 0.0
    %7018 = vmatprep.subr.mxu0 0.0
    %7019 = vmatpush1.msra.mxu0 0.0
    %7020 = vmatprep.mubr.f32.mxu0 0.0
    %v7021 = vand.u32 %v6540, 4294901760
    %7022 = vmatmul.mubr.f32.gmra.mrb[0].mxu0 %v7021
    %v7023 = vpop.f32.mrb[0].mxu0
    %v7024 = vadd.f32 %v6949, %v7023
    %v7025 = vpop.f32.mrb[0].mxu0
    %7026 = vdwg.mxu0
    %v7027 = vtanh.pop %v7024
    %7028 = vst.msk [vmem:[#allocation3] sm:$0xff] %vm74, %v7027
    %7029 = vst.msk [vmem:[#allocation3] sm:$0xff] %vm780, %v6536
    %s7030 = scalar_lea.vmem [#allocation10], 40
    %7031 = vst.msk [vmem:[%s7030] sm:$0xff] %vm74, %v7027
    %v7032 = vld [vmem:[#allocation3] sm:$0xff]
    %7034 = vrot.lane.b32.xlu0 %v7032, 112
    %v7035 = vpop.permute.xlu0 %7034
    %7037 = vst.msk [vmem:[#allocation11] sm:$0xff] %vm1340, %v7035
    // Predicated region
    $region38: #{mmu_forward_seq.1} parent=1 // pred_check
      _
    $region39: #{mmu_forward_seq.1} parent=1 // pred_check_branch
      %7039 = sbr.rel (0) target = $region41
    $region40: #{mmu_forward_seq.1} parent=1 // pred_region
      %s7041 = ssub.s32 768, 768
      %7042 = vsyncadd [#allocation6], %s7041
      %s7043 = sshll.u32 [#allocation10], 4
      %s7044 = int_to_ptr.vmem [resolvable:$true] %s7043
      %7049 = dma.vmem_to_hbm [thread:$0]  %s7044, 768, %s6, [#allocation6], 128, 128, 8
    $region41: #{mmu_forward_seq.1} parent=1 // pred_fallthru
      _
    // Predicated region
    $region42: #{mmu_forward_seq.1} parent=1 // pred_check
      _
    $region43: #{mmu_forward_seq.1} parent=1 // pred_check_branch
      %7051 = sbr.rel (0) target = $region45
    $region44: #{mmu_forward_seq.1} parent=1 // pred_region
      %s7053 = ssub.s32 128, 128
      %7054 = vsyncadd [#allocation12], %s7053
      %s7056 = sshll.u32 [#allocation11], 4
      %s7057 = int_to_ptr.vmem [resolvable:$true] %s7056
      %7059 = dma.vmem_to_hbm [thread:$0]  %s7057, 128, %s7, [#allocation12]
    $region45: #{mmu_forward_seq.1} parent=1 // pred_fallthru
      _
    // Predicated region
    $region46: #{mmu_forward_seq.1} parent=1 // pred_check
      _
    $region47: #{mmu_forward_seq.1} parent=1 // pred_check_branch
      %7061 = sbr.rel (0) target = $region49
    $region48: #{mmu_forward_seq.1} parent=1 // pred_region
      %7062 = dma.done [#allocation6], 768
    $region49: #{mmu_forward_seq.1} parent=1 // pred_fallthru
      _
    // Predicated region
    $region50: #{mmu_forward_seq.1} parent=1 // pred_check
      _
    $region51: #{mmu_forward_seq.1} parent=1 // pred_check_branch
      %7064 = sbr.rel (0) target = $region53
    $region52: #{mmu_forward_seq.1} parent=1 // pred_region
      %7065 = dma.done [#allocation12], 128
    $region53: #{mmu_forward_seq.1} parent=1 // pred_fallthru
      _
    %7066 = vsyncpa [#allocation5], 1
    %7067 = vsyncpa [#allocation8], 1
    %7068 = vsyncpa [#allocation6], 1
    %7069 = vsyncpa [#allocation12], 1

</llo_original>
